<compile_context>
chip_gen: v5e
topology: v5e:2x2
jax: 0.10.0
libtpu: 0.0.40
codegen_flags: <defaults>
</compile_context>

<pallas_src>
import functools
import math

import jax
import jax.numpy as jnp
from jax.experimental import pallas as pl
from jax.experimental.pallas import tpu as pltpu


# ----------------------------------------------------------------------------
# In-kernel helpers
# ----------------------------------------------------------------------------
def _sigmoid(x):
    return 1.0 / (1.0 + jnp.exp(-x))


def _conv3x3_relu(pad_ref, x, w_ref, b, h, wd, cin, cout):
    """3x3 'same' conv + bias + ReLU via kx-im2col in VMEM scratch.

    x       : (h, wd, n, cin) f32 activations (n = Bb*T images, t-major).
    pad_ref : VMEM scratch (h+2, wd, n, 3*cin) f32.
    w_ref   : (3, 3*cin, cout) bf16 weights, rows ordered (kx, ci).
    b       : (1, cout) f32 bias.
    Returns (h, wd, n, cout) f32.
    """
    n = x.shape[2]
    c3 = 3 * cin

    # Zero only the 1-pixel halo (interior is fully overwritten below).  Done
    # every step so the kernel is correct under a megacore "parallel" split.
    pad_ref[0] = jnp.zeros((wd, n, c3), jnp.float32)
    pad_ref[h + 1] = jnp.zeros((wd, n, c3), jnp.float32)
    pad_ref[1:h + 1, 0:1, :, 0:cin] = jnp.zeros((h, 1, n, cin), jnp.float32)
    pad_ref[1:h + 1, wd - 1:wd, :, 2 * cin:3 * cin] = jnp.zeros(
        (h, 1, n, cin), jnp.float32)

    # kx-im2col: lane groups = [left | centre | right] W-neighbours.
    pad_ref[1:h + 1, 1:wd, :, 0:cin] = x[:, 0:wd - 1]
    pad_ref[1:h + 1, :, :, cin:2 * cin] = x
    pad_ref[1:h + 1, 0:wd - 1, :, 2 * cin:3 * cin] = x[:, 1:wd]

    m = h * wd * n
    acc = None
    for ky in range(3):     # 3 matmuls (K = 3*cin) instead of 9 (K = cin)
        patch = pad_ref[ky:ky + h].reshape(m, c3).astype(jnp.bfloat16)
        part = jnp.dot(patch, w_ref[ky], preferred_element_type=jnp.float32)
        acc = part if acc is None else acc + part
    y = jnp.maximum(acc + b, 0.0)
    return y.reshape(h, wd, n, cout)


def _maxpool2x2(y):
    """2x2 max-pool over the two leading (spatial) dims of (h, w, n, c)."""
    h, wd, n, c = y.shape
    y = y.reshape(h, wd // 2, 2, n, c).max(axis=2)     # pool along W (leading dim)
    y = y.reshape(h // 2, 2, wd // 2, n, c).max(axis=1)  # pool along H (leading dim)
    return y


# ----------------------------------------------------------------------------
# Fused forward kernel: one grid step = Bb clips x T frames
# ----------------------------------------------------------------------------
def _cnn_lstm_kernel(x_ref, w1_ref, b1_ref, w2_ref, b2_ref, w3_ref, b3_ref,
                     wih_ref, whh_ref, bl_ref, wfc_ref, bfc_ref,
                     o_ref, pad1_ref, pad2_ref, pad3_ref,
                     *, T, Bb, H, W, C, Hd):
    x = x_ref[0]                                      # (H, W, N, C), N = T*Bb, t-major

    # ---- CNN feature extractor (all N = Bb*T images at once) ----------------
    y1 = _conv3x3_relu(pad1_ref, x, w1_ref, b1_ref[...], H, W, C, 16)
    p1 = _maxpool2x2(y1)                              # (H/2, W/2, N, 16)
    y2 = _conv3x3_relu(pad2_ref, p1, w2_ref, b2_ref[...], H // 2, W // 2, 16, 32)
    p2 = _maxpool2x2(y2)                              # (H/4, W/4, N, 32)
    y3 = _conv3x3_relu(pad3_ref, p2, w3_ref, b3_ref[...], H // 4, W // 4, 32, 64)
    feats = jnp.mean(y3, axis=(0, 1))                 # GAP -> (N, 64)

    # ---- LSTM (fused gates i,f,g,o; Bb sequences in parallel) ---------------
    # Hoisted input projection for ALL timesteps (off the serial chain).
    gx = jnp.dot(feats.astype(jnp.bfloat16), wih_ref[...],
                 preferred_element_type=jnp.float32) + bl_ref[...]   # (N, 4*Hd)
    whh = whh_ref[...]                                # (Hd, 4*Hd) bf16

    hs = jnp.zeros((Bb, Hd), jnp.float32)
    cs = jnp.zeros((Bb, Hd), jnp.float32)
    for t in range(T):   # static unroll; switch to lax.fori_loop for large T
        g = gx[t * Bb:(t + 1) * Bb, :] + jnp.dot(
            hs.astype(jnp.bfloat16), whh, preferred_element_type=jnp.float32)
        i_g = _sigmoid(g[:, 0:Hd])
        f_g = _sigmoid(g[:, Hd:2 * Hd])
        g_g = jnp.tanh(g[:, 2 * Hd:3 * Hd])
        o_g = _sigmoid(g[:, 3 * Hd:4 * Hd])
        cs = f_g * cs + i_g * g_g
        hs = o_g * jnp.tanh(cs)

    # ---- fc(lstm_out[:, -1, :]) ---------------------------------------------
    out = jnp.dot(hs.astype(jnp.bfloat16), wfc_ref[...],
                  preferred_element_type=jnp.float32) + bfc_ref[...]
    o_ref[0] = out                                    # (Bb, num_classes)


# ----------------------------------------------------------------------------
# Wrapper (layout plumbing only; all compute lives in the kernel)
# ----------------------------------------------------------------------------
def cnn_lstm_forward(x, params, *, block_clips=None):
    # x: (B, T, C, H, W) -- PyTorch NCHW per frame
    B, T, C, H, W = x.shape
    assert H % 4 == 0 and W % 4 == 0, "two MaxPool2d(2) stages need H,W % 4 == 0"
    Hd = params["whh"].shape[0]
    ncls = params["wfc"].shape[-1]

    # Clips per grid step.  T*Bb must be a multiple of 8 so the in-kernel row
    # collapses are tile-aligned; grow Bb while keeping >=2 grid steps when
    # possible (v7x has 2 TensorCores) and a modest VMEM footprint.
    if block_clips is None:
        block_clips = 8 // math.gcd(T, 8)
        while block_clips * 2 <= 8 and block_clips * 4 <= B:
            block_clips *= 2
    Bb = block_clips
    assert (T * Bb) % 8 == 0, "block_clips must make T*block_clips a multiple of 8"

    B_pad = ((B + Bb - 1) // Bb) * Bb
    nb = B_pad // Bb
    if B_pad != B:
        x = jnp.concatenate(
            [x, jnp.zeros((B_pad - B,) + x.shape[1:], x.dtype)], axis=0)

    N = T * Bb
    # (B,T,C,H,W) -> (nb, H, W, T*Bb, C); within a block the image rows are
    # t-major (row = t*Bb + clip) so timestep t is a contiguous row slice.
    xk = x.reshape(nb, Bb, T, C, H, W)
    xk = jnp.transpose(xk, (0, 4, 5, 2, 1, 3))        # (nb, H, W, T, Bb, C)
    xk = xk.reshape(nb, H, W, N, C).astype(jnp.float32)

    bf = jnp.bfloat16
    kernel = functools.partial(_cnn_lstm_kernel, T=T, Bb=Bb, H=H, W=W, C=C, Hd=Hd)
    out = pl.pallas_call(
        kernel,
        out_shape=jax.ShapeDtypeStruct((nb, Bb, ncls), jnp.float32),
        grid=(nb,),
        in_specs=[
            pl.BlockSpec((1, H, W, N, C), lambda i: (i, 0, 0, 0, 0)),
            pl.BlockSpec((3, 3 * C, 16), lambda i: (0, 0, 0)),
            pl.BlockSpec((1, 16), lambda i: (0, 0)),
            pl.BlockSpec((3, 48, 32), lambda i: (0, 0, 0)),
            pl.BlockSpec((1, 32), lambda i: (0, 0)),
            pl.BlockSpec((3, 96, 64), lambda i: (0, 0, 0)),
            pl.BlockSpec((1, 64), lambda i: (0, 0)),
            pl.BlockSpec((64, 4 * Hd), lambda i: (0, 0)),   # W_ih (fused gates)
            pl.BlockSpec((Hd, 4 * Hd), lambda i: (0, 0)),   # W_hh (fused gates)
            pl.BlockSpec((1, 4 * Hd), lambda i: (0, 0)),    # b_ih + b_hh
            pl.BlockSpec((Hd, ncls), lambda i: (0, 0)),
            pl.BlockSpec((1, ncls), lambda i: (0, 0)),
        ],
        out_specs=pl.BlockSpec((1, Bb, ncls), lambda i: (i, 0, 0)),
        scratch_shapes=[
            pltpu.VMEM((H + 2, W, N, 3 * C), jnp.float32),          # conv1 im2col
            pltpu.VMEM((H // 2 + 2, W // 2, N, 3 * 16), jnp.float32),  # conv2 im2col
            pltpu.VMEM((H // 4 + 2, W // 4, N, 3 * 32), jnp.float32),  # conv3 im2col
        ],
        compiler_params=pltpu.CompilerParams(
            dimension_semantics=("parallel",),   # split clip blocks across TCs
            vmem_limit_bytes=48 * 1024 * 1024,   # stays under v7x's 64 MiB physical
        ),
    )(xk,
      params["w1"].astype(bf), params["b1"],
      params["w2"].astype(bf), params["b2"],
      params["w3"].astype(bf), params["b3"],
      params["wih"].astype(bf), params["whh"].astype(bf), params["blstm"],
      params["wfc"].astype(bf), params["bfc"])

    return out.reshape(B_pad, ncls)[:B]


# ----------------------------------------------------------------------------
# Parameter init (PyTorch-style uniform +/- 1/sqrt(fan_in))
# ----------------------------------------------------------------------------
def init_params(key, num_classes=2):
    ks = jax.random.split(key, 12)

    def u(k, shape, fan_in):
        bound = 1.0 / float(fan_in) ** 0.5
        return jax.random.uniform(k, shape, jnp.float32, -bound, bound)

    Hd = 64
    return {
        # Conv weights laid out (ky, kx*Cin + ci, Cout); from a PyTorch
        # (Cout, Cin, 3, 3) tensor: w.permute(2, 3, 1, 0).reshape(3, 3*Cin, Cout).
        "w1": u(ks[0], (3, 3 * 3, 16), 3 * 9),
        "b1": u(ks[1], (1, 16), 3 * 9),
        "w2": u(ks[2], (3, 3 * 16, 32), 16 * 9),
        "b2": u(ks[3], (1, 32), 16 * 9),
        "w3": u(ks[4], (3, 3 * 32, 64), 32 * 9),
        "b3": u(ks[5], (1, 64), 32 * 9),
        # LSTM fused gates (order i,f,g,o): wih == weight_ih_l0.T (64, 4*Hd),
        # whh == weight_hh_l0.T (Hd, 4*Hd), blstm == (b_ih + b_hh)[None, :].
        "wih": u(ks[6], (64, 4 * Hd), Hd),
        "whh": u(ks[7], (Hd, 4 * Hd), Hd),
        "blstm": u(ks[8], (1, 4 * Hd), Hd) + u(ks[9], (1, 4 * Hd), Hd),
        "wfc": u(ks[10], (Hd, num_classes), Hd),
        "bfc": u(ks[11], (1, num_classes), Hd),
    }


if __name__ == "__main__":
    key = jax.random.PRNGKey(0)
    kx, kp = jax.random.split(key)
    # (B, T, C, H, W) = (2, 4, 3, 16, 16)
    x = jax.random.normal(kx, (2, 4, 3, 16, 16), jnp.float32)
    params = init_params(kp, num_classes=2)

    out = jax.jit(cnn_lstm_forward)(x, params)
    out = jax.block_until_ready(out)
    assert out.shape == (2, 2) and out.dtype == jnp.float32
    assert bool(jnp.all(jnp.isfinite(out)))
    print("KERNEL_OK")
</pallas_src>

<mosaic_0001>
module attributes {stable_mosaic.version = 11 : i64} {
  func.func @_cnn_lstm_kernel(%arg0: i32, %arg1: memref<1x16x16x8x3xf32, #tpu.memory_space<vmem>>, %arg2: memref<3x9x16xbf16, #tpu.memory_space<vmem>>, %arg3: memref<1x16xf32, #tpu.memory_space<vmem>>, %arg4: memref<3x48x32xbf16, #tpu.memory_space<vmem>>, %arg5: memref<1x32xf32, #tpu.memory_space<vmem>>, %arg6: memref<3x96x64xbf16, #tpu.memory_space<vmem>>, %arg7: memref<1x64xf32, #tpu.memory_space<vmem>>, %arg8: memref<64x256xbf16, #tpu.memory_space<vmem>>, %arg9: memref<64x256xbf16, #tpu.memory_space<vmem>>, %arg10: memref<1x256xf32, #tpu.memory_space<vmem>>, %arg11: memref<64x2xbf16, #tpu.memory_space<vmem>>, %arg12: memref<1x2xf32, #tpu.memory_space<vmem>>, %arg13: memref<1x2x2xf32, #tpu.memory_space<vmem>>, %arg14: memref<18x16x8x9xf32, #tpu.memory_space<vmem>>, %arg15: memref<10x8x8x48xf32, #tpu.memory_space<vmem>>, %arg16: memref<6x4x8x96xf32, #tpu.memory_space<vmem>>) attributes {dimension_semantics = [#tpu.dimension_semantics<parallel>], iteration_bounds = array<i64: 1>, scalar_prefetch = 0 : i64, scratch_operands = 3 : i64, tpu.core_type = #tpu.core_type<tc>, window_params = [{transform_indices = @transform_0, window_bounds = array<i64: 1, 16, 16, 8, 3>}, {pipeline_mode = #tpu.pipeline_mode<synchronous>, transform_indices = @transform_1, window_bounds = array<i64: 3, 9, 16>}, {pipeline_mode = #tpu.pipeline_mode<synchronous>, transform_indices = @transform_2, window_bounds = array<i64: 1, 16>}, {pipeline_mode = #tpu.pipeline_mode<synchronous>, transform_indices = @transform_3, window_bounds = array<i64: 3, 48, 32>}, {pipeline_mode = #tpu.pipeline_mode<synchronous>, transform_indices = @transform_4, window_bounds = array<i64: 1, 32>}, {pipeline_mode = #tpu.pipeline_mode<synchronous>, transform_indices = @transform_5, window_bounds = array<i64: 3, 96, 64>}, {pipeline_mode = #tpu.pipeline_mode<synchronous>, transform_indices = @transform_6, window_bounds = array<i64: 1, 64>}, {pipeline_mode = #tpu.pipeline_mode<synchronous>, transform_indices = @transform_7, window_bounds = array<i64: 64, 256>}, {pipeline_mode = #tpu.pipeline_mode<synchronous>, transform_indices = @transform_8, window_bounds = array<i64: 64, 256>}, {pipeline_mode = #tpu.pipeline_mode<synchronous>, transform_indices = @transform_9, window_bounds = array<i64: 1, 256>}, {pipeline_mode = #tpu.pipeline_mode<synchronous>, transform_indices = @transform_10, window_bounds = array<i64: 64, 2>}, {pipeline_mode = #tpu.pipeline_mode<synchronous>, transform_indices = @transform_11, window_bounds = array<i64: 1, 2>}, {transform_indices = @transform_12, window_bounds = array<i64: 1, 2, 2>}]} {
    %c0 = arith.constant 0 : index
    %c0_0 = arith.constant 0 : index
    %c0_1 = arith.constant 0 : index
    %c0_2 = arith.constant 0 : index
    %c0_3 = arith.constant 0 : index
    %0 = vector.load %arg1[%c0, %c0_0, %c0_1, %c0_2, %c0_3] : memref<1x16x16x8x3xf32, #tpu.memory_space<vmem>>, vector<1x16x16x8x3xf32>
    %1 = vector.shape_cast %0 : vector<1x16x16x8x3xf32> to vector<16x16x8x3xf32>
    %c0_4 = arith.constant 0 : index
    %c0_5 = arith.constant 0 : index
    %2 = vector.load %arg3[%c0_4, %c0_5] : memref<1x16xf32, #tpu.memory_space<vmem>>, vector<1x16xf32>
    %cst = arith.constant 0.000000e+00 : f32
    %3 = vector.broadcast %cst : f32 to vector<16x8x9xf32>
    %c0_6 = arith.constant 0 : index
    %c0_7 = arith.constant 0 : index
    %c0_8 = arith.constant 0 : index
    %c0_9 = arith.constant 0 : index
    %4 = vector.load %arg14[%c0_6, %c0_7, %c0_8, %c0_9] : memref<18x16x8x9xf32, #tpu.memory_space<vmem>>, vector<1x16x8x9xf32>
    %5 = vector.shape_cast %4 : vector<1x16x8x9xf32> to vector<16x8x9xf32>
    %6 = vector.shape_cast %3 : vector<16x8x9xf32> to vector<1x16x8x9xf32>
    tpu.vector_store %arg14[%c0_6, %c0_7, %c0_8, %c0_9], %6 {strides = array<i32>} : memref<18x16x8x9xf32, #tpu.memory_space<vmem>>, vector<1x16x8x9xf32>,
    %cst_10 = arith.constant 0.000000e+00 : f32
    %7 = vector.broadcast %cst_10 : f32 to vector<16x8x9xf32>
    %c17 = arith.constant 17 : index
    %c0_11 = arith.constant 0 : index
    %c0_12 = arith.constant 0 : index
    %c0_13 = arith.constant 0 : index
    %8 = vector.load %arg14[%c17, %c0_11, %c0_12, %c0_13] : memref<18x16x8x9xf32, #tpu.memory_space<vmem>>, vector<1x16x8x9xf32>
    %9 = vector.shape_cast %8 : vector<1x16x8x9xf32> to vector<16x8x9xf32>
    %10 = vector.shape_cast %7 : vector<16x8x9xf32> to vector<1x16x8x9xf32>
    tpu.vector_store %arg14[%c17, %c0_11, %c0_12, %c0_13], %10 {strides = array<i32>} : memref<18x16x8x9xf32, #tpu.memory_space<vmem>>, vector<1x16x8x9xf32>,
    %cst_14 = arith.constant 0.000000e+00 : f32
    %11 = vector.broadcast %cst_14 : f32 to vector<16x1x8x3xf32>
    %c1 = arith.constant 1 : index
    %c0_15 = arith.constant 0 : index
    %c0_16 = arith.constant 0 : index
    %c0_17 = arith.constant 0 : index
    %12 = vector.load %arg14[%c1, %c0_15, %c0_16, %c0_17] : memref<18x16x8x9xf32, #tpu.memory_space<vmem>>, vector<16x1x8x3xf32>
    tpu.vector_store %arg14[%c1, %c0_15, %c0_16, %c0_17], %11 {strides = array<i32>} : memref<18x16x8x9xf32, #tpu.memory_space<vmem>>, vector<16x1x8x3xf32>,
    %cst_18 = arith.constant 0.000000e+00 : f32
    %13 = vector.broadcast %cst_18 : f32 to vector<16x1x8x3xf32>
    %c1_19 = arith.constant 1 : index
    %c15 = arith.constant 15 : index
    %c0_20 = arith.constant 0 : index
    %c6 = arith.constant 6 : index
    %14 = vector.load %arg14[%c1_19, %c15, %c0_20, %c6] : memref<18x16x8x9xf32, #tpu.memory_space<vmem>>, vector<16x1x8x3xf32>
    tpu.vector_store %arg14[%c1_19, %c15, %c0_20, %c6], %13 {strides = array<i32>} : memref<18x16x8x9xf32, #tpu.memory_space<vmem>>, vector<16x1x8x3xf32>,
    %15 = vector.extract_strided_slice %1 {offsets = [0, 0, 0, 0], sizes = [16, 15, 8, 3], strides = [1, 1, 1, 1]} : vector<16x16x8x3xf32> to vector<16x15x8x3xf32>
    %c1_21 = arith.constant 1 : index
    %c1_22 = arith.constant 1 : index
    %c0_23 = arith.constant 0 : index
    %c0_24 = arith.constant 0 : index
    %16 = vector.load %arg14[%c1_21, %c1_22, %c0_23, %c0_24] : memref<18x16x8x9xf32, #tpu.memory_space<vmem>>, vector<16x15x8x3xf32>
    tpu.vector_store %arg14[%c1_21, %c1_22, %c0_23, %c0_24], %15 {strides = array<i32>} : memref<18x16x8x9xf32, #tpu.memory_space<vmem>>, vector<16x15x8x3xf32>,
    %c1_25 = arith.constant 1 : index
    %c0_26 = arith.constant 0 : index
    %c0_27 = arith.constant 0 : index
    %c3 = arith.constant 3 : index
    %17 = vector.load %arg14[%c1_25, %c0_26, %c0_27, %c3] : memref<18x16x8x9xf32, #tpu.memory_space<vmem>>, vector<16x16x8x3xf32>
    tpu.vector_store %arg14[%c1_25, %c0_26, %c0_27, %c3], %1 {strides = array<i32>} : memref<18x16x8x9xf32, #tpu.memory_space<vmem>>, vector<16x16x8x3xf32>,
    %18 = vector.extract_strided_slice %1 {offsets = [0, 1, 0, 0], sizes = [16, 15, 8, 3], strides = [1, 1, 1, 1]} : vector<16x16x8x3xf32> to vector<16x15x8x3xf32>
    %c1_28 = arith.constant 1 : index
    %c0_29 = arith.constant 0 : index
    %c0_30 = arith.constant 0 : index
    %c6_31 = arith.constant 6 : index
    %19 = vector.load %arg14[%c1_28, %c0_29, %c0_30, %c6_31] : memref<18x16x8x9xf32, #tpu.memory_space<vmem>>, vector<16x15x8x3xf32>
    tpu.vector_store %arg14[%c1_28, %c0_29, %c0_30, %c6_31], %18 {strides = array<i32>} : memref<18x16x8x9xf32, #tpu.memory_space<vmem>>, vector<16x15x8x3xf32>,
    %c0_32 = arith.constant 0 : index
    %c0_33 = arith.constant 0 : index
    %c0_34 = arith.constant 0 : index
    %c0_35 = arith.constant 0 : index
    %20 = vector.load %arg14[%c0_32, %c0_33, %c0_34, %c0_35] : memref<18x16x8x9xf32, #tpu.memory_space<vmem>>, vector<16x16x8x9xf32>
    %21 = vector.shape_cast %20 : vector<16x16x8x9xf32> to vector<2048x9xf32>
    %22 = arith.truncf %21 : vector<2048x9xf32> to vector<2048x9xbf16>
    %c0_36 = arith.constant 0 : index
    %c0_37 = arith.constant 0 : index
    %c0_38 = arith.constant 0 : index
    %23 = vector.load %arg2[%c0_36, %c0_37, %c0_38] : memref<3x9x16xbf16, #tpu.memory_space<vmem>>, vector<1x9x16xbf16>
    %24 = vector.shape_cast %23 : vector<1x9x16xbf16> to vector<9x16xbf16>
    %cst_39 = arith.constant dense<0.000000e+00> : vector<2048x16xf32>
    %25 = tpu.matmul %22, %24, %cst_39 {dimension_numbers = #tpu.dot_dimension_numbers<[1], [0], [0], [1], [0, 0, 1, 1], [], []>} : vector<2048x9xbf16>, vector<9x16xbf16>, vector<2048x16xf32> -> vector<2048x16xf32>
    %c1_40 = arith.constant 1 : index
    %c0_41 = arith.constant 0 : index
    %c0_42 = arith.constant 0 : index
    %c0_43 = arith.constant 0 : index
    %26 = vector.load %arg14[%c1_40, %c0_41, %c0_42, %c0_43] : memref<18x16x8x9xf32, #tpu.memory_space<vmem>>, vector<16x16x8x9xf32>
    %27 = vector.shape_cast %26 : vector<16x16x8x9xf32> to vector<2048x9xf32>
    %28 = arith.truncf %27 : vector<2048x9xf32> to vector<2048x9xbf16>
    %c1_44 = arith.constant 1 : index
    %c0_45 = arith.constant 0 : index
    %c0_46 = arith.constant 0 : index
    %29 = vector.load %arg2[%c1_44, %c0_45, %c0_46] : memref<3x9x16xbf16, #tpu.memory_space<vmem>>, vector<1x9x16xbf16>
    %30 = vector.shape_cast %29 : vector<1x9x16xbf16> to vector<9x16xbf16>
    %cst_47 = arith.constant dense<0.000000e+00> : vector<2048x16xf32>
    %31 = tpu.matmul %28, %30, %cst_47 {dimension_numbers = #tpu.dot_dimension_numbers<[1], [0], [0], [1], [0, 0, 1, 1], [], []>} : vector<2048x9xbf16>, vector<9x16xbf16>, vector<2048x16xf32> -> vector<2048x16xf32>
    %32 = arith.addf %25, %31 : vector<2048x16xf32>
    %c2 = arith.constant 2 : index
    %c0_48 = arith.constant 0 : index
    %c0_49 = arith.constant 0 : index
    %c0_50 = arith.constant 0 : index
    %33 = vector.load %arg14[%c2, %c0_48, %c0_49, %c0_50] : memref<18x16x8x9xf32, #tpu.memory_space<vmem>>, vector<16x16x8x9xf32>
    %34 = vector.shape_cast %33 : vector<16x16x8x9xf32> to vector<2048x9xf32>
    %35 = arith.truncf %34 : vector<2048x9xf32> to vector<2048x9xbf16>
    %c2_51 = arith.constant 2 : index
    %c0_52 = arith.constant 0 : index
    %c0_53 = arith.constant 0 : index
    %36 = vector.load %arg2[%c2_51, %c0_52, %c0_53] : memref<3x9x16xbf16, #tpu.memory_space<vmem>>, vector<1x9x16xbf16>
    %37 = vector.shape_cast %36 : vector<1x9x16xbf16> to vector<9x16xbf16>
    %cst_54 = arith.constant dense<0.000000e+00> : vector<2048x16xf32>
    %38 = tpu.matmul %35, %37, %cst_54 {dimension_numbers = #tpu.dot_dimension_numbers<[1], [0], [0], [1], [0, 0, 1, 1], [], []>} : vector<2048x9xbf16>, vector<9x16xbf16>, vector<2048x16xf32> -> vector<2048x16xf32>
    %39 = arith.addf %32, %38 : vector<2048x16xf32>
    %40 = vector.broadcast %2 : vector<1x16xf32> to vector<2048x16xf32>
    %41 = arith.addf %39, %40 : vector<2048x16xf32>
    %cst_55 = arith.constant 0.000000e+00 : f32
    %42 = vector.broadcast %cst_55 : f32 to vector<2048x16xf32>
    %43 = arith.maximumf %41, %42 : vector<2048x16xf32>
    %44 = vector.shape_cast %43 : vector<2048x16xf32> to vector<16x16x8x16xf32>
    %45 = vector.shape_cast %44 : vector<16x16x8x16xf32> to vector<16x8x2x8x16xf32>
    %cst_56 = arith.constant dense<0xFF800000> : vector<16x8x8x16xf32>
    %46 = vector.multi_reduction <maximumf>, %45, %cst_56 [2] : vector<16x8x2x8x16xf32> to vector<16x8x8x16xf32>
    %47 = vector.shape_cast %46 : vector<16x8x8x16xf32> to vector<8x2x8x8x16xf32>
    %cst_57 = arith.constant dense<0xFF800000> : vector<8x8x8x16xf32>
    %48 = vector.multi_reduction <maximumf>, %47, %cst_57 [1] : vector<8x2x8x8x16xf32> to vector<8x8x8x16xf32>
    %c0_58 = arith.constant 0 : index
    %c0_59 = arith.constant 0 : index
    %49 = vector.load %arg5[%c0_58, %c0_59] : memref<1x32xf32, #tpu.memory_space<vmem>>, vector<1x32xf32>
    %cst_60 = arith.constant 0.000000e+00 : f32
    %50 = vector.broadcast %cst_60 : f32 to vector<8x8x48xf32>
    %c0_61 = arith.constant 0 : index
    %c0_62 = arith.constant 0 : index
    %c0_63 = arith.constant 0 : index
    %c0_64 = arith.constant 0 : index
    %51 = vector.load %arg15[%c0_61, %c0_62, %c0_63, %c0_64] : memref<10x8x8x48xf32, #tpu.memory_space<vmem>>, vector<1x8x8x48xf32>
    %52 = vector.shape_cast %51 : vector<1x8x8x48xf32> to vector<8x8x48xf32>
    %53 = vector.shape_cast %50 : vector<8x8x48xf32> to vector<1x8x8x48xf32>
    tpu.vector_store %arg15[%c0_61, %c0_62, %c0_63, %c0_64], %53 {strides = array<i32>} : memref<10x8x8x48xf32, #tpu.memory_space<vmem>>, vector<1x8x8x48xf32>,
    %cst_65 = arith.constant 0.000000e+00 : f32
    %54 = vector.broadcast %cst_65 : f32 to vector<8x8x48xf32>
    %c9 = arith.constant 9 : index
    %c0_66 = arith.constant 0 : index
    %c0_67 = arith.constant 0 : index
    %c0_68 = arith.constant 0 : index
    %55 = vector.load %arg15[%c9, %c0_66, %c0_67, %c0_68] : memref<10x8x8x48xf32, #tpu.memory_space<vmem>>, vector<1x8x8x48xf32>
    %56 = vector.shape_cast %55 : vector<1x8x8x48xf32> to vector<8x8x48xf32>
    %57 = vector.shape_cast %54 : vector<8x8x48xf32> to vector<1x8x8x48xf32>
    tpu.vector_store %arg15[%c9, %c0_66, %c0_67, %c0_68], %57 {strides = array<i32>} : memref<10x8x8x48xf32, #tpu.memory_space<vmem>>, vector<1x8x8x48xf32>,
    %cst_69 = arith.constant 0.000000e+00 : f32
    %58 = vector.broadcast %cst_69 : f32 to vector<8x1x8x16xf32>
    %c1_70 = arith.constant 1 : index
    %c0_71 = arith.constant 0 : index
    %c0_72 = arith.constant 0 : index
    %c0_73 = arith.constant 0 : index
    %59 = vector.load %arg15[%c1_70, %c0_71, %c0_72, %c0_73] : memref<10x8x8x48xf32, #tpu.memory_space<vmem>>, vector<8x1x8x16xf32>
    tpu.vector_store %arg15[%c1_70, %c0_71, %c0_72, %c0_73], %58 {strides = array<i32>} : memref<10x8x8x48xf32, #tpu.memory_space<vmem>>, vector<8x1x8x16xf32>,
    %cst_74 = arith.constant 0.000000e+00 : f32
    %60 = vector.broadcast %cst_74 : f32 to vector<8x1x8x16xf32>
    %c1_75 = arith.constant 1 : index
    %c7 = arith.constant 7 : index
    %c0_76 = arith.constant 0 : index
    %c32 = arith.constant 32 : index
    %61 = vector.load %arg15[%c1_75, %c7, %c0_76, %c32] : memref<10x8x8x48xf32, #tpu.memory_space<vmem>>, vector<8x1x8x16xf32>
    tpu.vector_store %arg15[%c1_75, %c7, %c0_76, %c32], %60 {strides = array<i32>} : memref<10x8x8x48xf32, #tpu.memory_space<vmem>>, vector<8x1x8x16xf32>,
    %62 = vector.extract_strided_slice %48 {offsets = [0, 0, 0, 0], sizes = [8, 7, 8, 16], strides = [1, 1, 1, 1]} : vector<8x8x8x16xf32> to vector<8x7x8x16xf32>
    %c1_77 = arith.constant 1 : index
    %c1_78 = arith.constant 1 : index
    %c0_79 = arith.constant 0 : index
    %c0_80 = arith.constant 0 : index
    %63 = vector.load %arg15[%c1_77, %c1_78, %c0_79, %c0_80] : memref<10x8x8x48xf32, #tpu.memory_space<vmem>>, vector<8x7x8x16xf32>
    tpu.vector_store %arg15[%c1_77, %c1_78, %c0_79, %c0_80], %62 {strides = array<i32>} : memref<10x8x8x48xf32, #tpu.memory_space<vmem>>, vector<8x7x8x16xf32>,
    %c1_81 = arith.constant 1 : index
    %c0_82 = arith.constant 0 : index
    %c0_83 = arith.constant 0 : index
    %c16 = arith.constant 16 : index
    %64 = vector.load %arg15[%c1_81, %c0_82, %c0_83, %c16] : memref<10x8x8x48xf32, #tpu.memory_space<vmem>>, vector<8x8x8x16xf32>
    tpu.vector_store %arg15[%c1_81, %c0_82, %c0_83, %c16], %48 {strides = array<i32>} : memref<10x8x8x48xf32, #tpu.memory_space<vmem>>, vector<8x8x8x16xf32>,
    %65 = vector.extract_strided_slice %48 {offsets = [0, 1, 0, 0], sizes = [8, 7, 8, 16], strides = [1, 1, 1, 1]} : vector<8x8x8x16xf32> to vector<8x7x8x16xf32>
    %c1_84 = arith.constant 1 : index
    %c0_85 = arith.constant 0 : index
    %c0_86 = arith.constant 0 : index
    %c32_87 = arith.constant 32 : index
    %66 = vector.load %arg15[%c1_84, %c0_85, %c0_86, %c32_87] : memref<10x8x8x48xf32, #tpu.memory_space<vmem>>, vector<8x7x8x16xf32>
    tpu.vector_store %arg15[%c1_84, %c0_85, %c0_86, %c32_87], %65 {strides = array<i32>} : memref<10x8x8x48xf32, #tpu.memory_space<vmem>>, vector<8x7x8x16xf32>,
    %c0_88 = arith.constant 0 : index
    %c0_89 = arith.constant 0 : index
    %c0_90 = arith.constant 0 : index
    %c0_91 = arith.constant 0 : index
    %67 = vector.load %arg15[%c0_88, %c0_89, %c0_90, %c0_91] : memref<10x8x8x48xf32, #tpu.memory_space<vmem>>, vector<8x8x8x48xf32>
    %68 = vector.shape_cast %67 : vector<8x8x8x48xf32> to vector<512x48xf32>
    %69 = arith.truncf %68 : vector<512x48xf32> to vector<512x48xbf16>
    %c0_92 = arith.constant 0 : index
    %c0_93 = arith.constant 0 : index
    %c0_94 = arith.constant 0 : index
    %70 = vector.load %arg4[%c0_92, %c0_93, %c0_94] : memref<3x48x32xbf16, #tpu.memory_space<vmem>>, vector<1x48x32xbf16>
    %71 = vector.shape_cast %70 : vector<1x48x32xbf16> to vector<48x32xbf16>
    %cst_95 = arith.constant dense<0.000000e+00> : vector<512x32xf32>
    %72 = tpu.matmul %69, %71, %cst_95 {dimension_numbers = #tpu.dot_dimension_numbers<[1], [0], [0], [1], [0, 0, 1, 1], [], []>} : vector<512x48xbf16>, vector<48x32xbf16>, vector<512x32xf32> -> vector<512x32xf32>
    %c1_96 = arith.constant 1 : index
    %c0_97 = arith.constant 0 : index
    %c0_98 = arith.constant 0 : index
    %c0_99 = arith.constant 0 : index
    %73 = vector.load %arg15[%c1_96, %c0_97, %c0_98, %c0_99] : memref<10x8x8x48xf32, #tpu.memory_space<vmem>>, vector<8x8x8x48xf32>
    %74 = vector.shape_cast %73 : vector<8x8x8x48xf32> to vector<512x48xf32>
    %75 = arith.truncf %74 : vector<512x48xf32> to vector<512x48xbf16>
    %c1_100 = arith.constant 1 : index
    %c0_101 = arith.constant 0 : index
    %c0_102 = arith.constant 0 : index
    %76 = vector.load %arg4[%c1_100, %c0_101, %c0_102] : memref<3x48x32xbf16, #tpu.memory_space<vmem>>, vector<1x48x32xbf16>
    %77 = vector.shape_cast %76 : vector<1x48x32xbf16> to vector<48x32xbf16>
    %cst_103 = arith.constant dense<0.000000e+00> : vector<512x32xf32>
    %78 = tpu.matmul %75, %77, %cst_103 {dimension_numbers = #tpu.dot_dimension_numbers<[1], [0], [0], [1], [0, 0, 1, 1], [], []>} : vector<512x48xbf16>, vector<48x32xbf16>, vector<512x32xf32> -> vector<512x32xf32>
    %79 = arith.addf %72, %78 : vector<512x32xf32>
    %c2_104 = arith.constant 2 : index
    %c0_105 = arith.constant 0 : index
    %c0_106 = arith.constant 0 : index
    %c0_107 = arith.constant 0 : index
    %80 = vector.load %arg15[%c2_104, %c0_105, %c0_106, %c0_107] : memref<10x8x8x48xf32, #tpu.memory_space<vmem>>, vector<8x8x8x48xf32>
    %81 = vector.shape_cast %80 : vector<8x8x8x48xf32> to vector<512x48xf32>
    %82 = arith.truncf %81 : vector<512x48xf32> to vector<512x48xbf16>
    %c2_108 = arith.constant 2 : index
    %c0_109 = arith.constant 0 : index
    %c0_110 = arith.constant 0 : index
    %83 = vector.load %arg4[%c2_108, %c0_109, %c0_110] : memref<3x48x32xbf16, #tpu.memory_space<vmem>>, vector<1x48x32xbf16>
    %84 = vector.shape_cast %83 : vector<1x48x32xbf16> to vector<48x32xbf16>
    %cst_111 = arith.constant dense<0.000000e+00> : vector<512x32xf32>
    %85 = tpu.matmul %82, %84, %cst_111 {dimension_numbers = #tpu.dot_dimension_numbers<[1], [0], [0], [1], [0, 0, 1, 1], [], []>} : vector<512x48xbf16>, vector<48x32xbf16>, vector<512x32xf32> -> vector<512x32xf32>
    %86 = arith.addf %79, %85 : vector<512x32xf32>
    %87 = vector.broadcast %49 : vector<1x32xf32> to vector<512x32xf32>
    %88 = arith.addf %86, %87 : vector<512x32xf32>
    %cst_112 = arith.constant 0.000000e+00 : f32
    %89 = vector.broadcast %cst_112 : f32 to vector<512x32xf32>
    %90 = arith.maximumf %88, %89 : vector<512x32xf32>
    %91 = vector.shape_cast %90 : vector<512x32xf32> to vector<8x8x8x32xf32>
    %92 = vector.shape_cast %91 : vector<8x8x8x32xf32> to vector<8x4x2x8x32xf32>
    %cst_113 = arith.constant dense<0xFF800000> : vector<8x4x8x32xf32>
    %93 = vector.multi_reduction <maximumf>, %92, %cst_113 [2] : vector<8x4x2x8x32xf32> to vector<8x4x8x32xf32>
    %94 = vector.shape_cast %93 : vector<8x4x8x32xf32> to vector<4x2x4x8x32xf32>
    %cst_114 = arith.constant dense<0xFF800000> : vector<4x4x8x32xf32>
    %95 = vector.multi_reduction <maximumf>, %94, %cst_114 [1] : vector<4x2x4x8x32xf32> to vector<4x4x8x32xf32>
    %c0_115 = arith.constant 0 : index
    %c0_116 = arith.constant 0 : index
    %96 = vector.load %arg7[%c0_115, %c0_116] : memref<1x64xf32, #tpu.memory_space<vmem>>, vector<1x64xf32>
    %cst_117 = arith.constant 0.000000e+00 : f32
    %97 = vector.broadcast %cst_117 : f32 to vector<4x8x96xf32>
    %c0_118 = arith.constant 0 : index
    %c0_119 = arith.constant 0 : index
    %c0_120 = arith.constant 0 : index
    %c0_121 = arith.constant 0 : index
    %98 = vector.load %arg16[%c0_118, %c0_119, %c0_120, %c0_121] : memref<6x4x8x96xf32, #tpu.memory_space<vmem>>, vector<1x4x8x96xf32>
    %99 = vector.shape_cast %98 : vector<1x4x8x96xf32> to vector<4x8x96xf32>
    %100 = vector.shape_cast %97 : vector<4x8x96xf32> to vector<1x4x8x96xf32>
    tpu.vector_store %arg16[%c0_118, %c0_119, %c0_120, %c0_121], %100 {strides = array<i32>} : memref<6x4x8x96xf32, #tpu.memory_space<vmem>>, vector<1x4x8x96xf32>,
    %cst_122 = arith.constant 0.000000e+00 : f32
    %101 = vector.broadcast %cst_122 : f32 to vector<4x8x96xf32>
    %c5 = arith.constant 5 : index
    %c0_123 = arith.constant 0 : index
    %c0_124 = arith.constant 0 : index
    %c0_125 = arith.constant 0 : index
    %102 = vector.load %arg16[%c5, %c0_123, %c0_124, %c0_125] : memref<6x4x8x96xf32, #tpu.memory_space<vmem>>, vector<1x4x8x96xf32>
    %103 = vector.shape_cast %102 : vector<1x4x8x96xf32> to vector<4x8x96xf32>
    %104 = vector.shape_cast %101 : vector<4x8x96xf32> to vector<1x4x8x96xf32>
    tpu.vector_store %arg16[%c5, %c0_123, %c0_124, %c0_125], %104 {strides = array<i32>} : memref<6x4x8x96xf32, #tpu.memory_space<vmem>>, vector<1x4x8x96xf32>,
    %cst_126 = arith.constant 0.000000e+00 : f32
    %105 = vector.broadcast %cst_126 : f32 to vector<4x1x8x32xf32>
    %c1_127 = arith.constant 1 : index
    %c0_128 = arith.constant 0 : index
    %c0_129 = arith.constant 0 : index
    %c0_130 = arith.constant 0 : index
    %106 = vector.load %arg16[%c1_127, %c0_128, %c0_129, %c0_130] : memref<6x4x8x96xf32, #tpu.memory_space<vmem>>, vector<4x1x8x32xf32>
    tpu.vector_store %arg16[%c1_127, %c0_128, %c0_129, %c0_130], %105 {strides = array<i32>} : memref<6x4x8x96xf32, #tpu.memory_space<vmem>>, vector<4x1x8x32xf32>,
    %cst_131 = arith.constant 0.000000e+00 : f32
    %107 = vector.broadcast %cst_131 : f32 to vector<4x1x8x32xf32>
    %c1_132 = arith.constant 1 : index
    %c3_133 = arith.constant 3 : index
    %c0_134 = arith.constant 0 : index
    %c64 = arith.constant 64 : index
    %108 = vector.load %arg16[%c1_132, %c3_133, %c0_134, %c64] : memref<6x4x8x96xf32, #tpu.memory_space<vmem>>, vector<4x1x8x32xf32>
    tpu.vector_store %arg16[%c1_132, %c3_133, %c0_134, %c64], %107 {strides = array<i32>} : memref<6x4x8x96xf32, #tpu.memory_space<vmem>>, vector<4x1x8x32xf32>,
    %109 = vector.extract_strided_slice %95 {offsets = [0, 0, 0, 0], sizes = [4, 3, 8, 32], strides = [1, 1, 1, 1]} : vector<4x4x8x32xf32> to vector<4x3x8x32xf32>
    %c1_135 = arith.constant 1 : index
    %c1_136 = arith.constant 1 : index
    %c0_137 = arith.constant 0 : index
    %c0_138 = arith.constant 0 : index
    %110 = vector.load %arg16[%c1_135, %c1_136, %c0_137, %c0_138] : memref<6x4x8x96xf32, #tpu.memory_space<vmem>>, vector<4x3x8x32xf32>
    tpu.vector_store %arg16[%c1_135, %c1_136, %c0_137, %c0_138], %109 {strides = array<i32>} : memref<6x4x8x96xf32, #tpu.memory_space<vmem>>, vector<4x3x8x32xf32>,
    %c1_139 = arith.constant 1 : index
    %c0_140 = arith.constant 0 : index
    %c0_141 = arith.constant 0 : index
    %c32_142 = arith.constant 32 : index
    %111 = vector.load %arg16[%c1_139, %c0_140, %c0_141, %c32_142] : memref<6x4x8x96xf32, #tpu.memory_space<vmem>>, vector<4x4x8x32xf32>
    tpu.vector_store %arg16[%c1_139, %c0_140, %c0_141, %c32_142], %95 {strides = array<i32>} : memref<6x4x8x96xf32, #tpu.memory_space<vmem>>, vector<4x4x8x32xf32>,
    %112 = vector.extract_strided_slice %95 {offsets = [0, 1, 0, 0], sizes = [4, 3, 8, 32], strides = [1, 1, 1, 1]} : vector<4x4x8x32xf32> to vector<4x3x8x32xf32>
    %c1_143 = arith.constant 1 : index
    %c0_144 = arith.constant 0 : index
    %c0_145 = arith.constant 0 : index
    %c64_146 = arith.constant 64 : index
    %113 = vector.load %arg16[%c1_143, %c0_144, %c0_145, %c64_146] : memref<6x4x8x96xf32, #tpu.memory_space<vmem>>, vector<4x3x8x32xf32>
    tpu.vector_store %arg16[%c1_143, %c0_144, %c0_145, %c64_146], %112 {strides = array<i32>} : memref<6x4x8x96xf32, #tpu.memory_space<vmem>>, vector<4x3x8x32xf32>,
    %c0_147 = arith.constant 0 : index
    %c0_148 = arith.constant 0 : index
    %c0_149 = arith.constant 0 : index
    %c0_150 = arith.constant 0 : index
    %114 = vector.load %arg16[%c0_147, %c0_148, %c0_149, %c0_150] : memref<6x4x8x96xf32, #tpu.memory_space<vmem>>, vector<4x4x8x96xf32>
    %115 = vector.shape_cast %114 : vector<4x4x8x96xf32> to vector<128x96xf32>
    %116 = arith.truncf %115 : vector<128x96xf32> to vector<128x96xbf16>
    %c0_151 = arith.constant 0 : index
    %c0_152 = arith.constant 0 : index
    %c0_153 = arith.constant 0 : index
    %117 = vector.load %arg6[%c0_151, %c0_152, %c0_153] : memref<3x96x64xbf16, #tpu.memory_space<vmem>>, vector<1x96x64xbf16>
    %118 = vector.shape_cast %117 : vector<1x96x64xbf16> to vector<96x64xbf16>
    %cst_154 = arith.constant dense<0.000000e+00> : vector<128x64xf32>
    %119 = tpu.matmul %116, %118, %cst_154 {dimension_numbers = #tpu.dot_dimension_numbers<[1], [0], [0], [1], [0, 0, 1, 1], [], []>} : vector<128x96xbf16>, vector<96x64xbf16>, vector<128x64xf32> -> vector<128x64xf32>
    %c1_155 = arith.constant 1 : index
    %c0_156 = arith.constant 0 : index
    %c0_157 = arith.constant 0 : index
    %c0_158 = arith.constant 0 : index
    %120 = vector.load %arg16[%c1_155, %c0_156, %c0_157, %c0_158] : memref<6x4x8x96xf32, #tpu.memory_space<vmem>>, vector<4x4x8x96xf32>
    %121 = vector.shape_cast %120 : vector<4x4x8x96xf32> to vector<128x96xf32>
    %122 = arith.truncf %121 : vector<128x96xf32> to vector<128x96xbf16>
    %c1_159 = arith.constant 1 : index
    %c0_160 = arith.constant 0 : index
    %c0_161 = arith.constant 0 : index
    %123 = vector.load %arg6[%c1_159, %c0_160, %c0_161] : memref<3x96x64xbf16, #tpu.memory_space<vmem>>, vector<1x96x64xbf16>
    %124 = vector.shape_cast %123 : vector<1x96x64xbf16> to vector<96x64xbf16>
    %cst_162 = arith.constant dense<0.000000e+00> : vector<128x64xf32>
    %125 = tpu.matmul %122, %124, %cst_162 {dimension_numbers = #tpu.dot_dimension_numbers<[1], [0], [0], [1], [0, 0, 1, 1], [], []>} : vector<128x96xbf16>, vector<96x64xbf16>, vector<128x64xf32> -> vector<128x64xf32>
    %126 = arith.addf %119, %125 : vector<128x64xf32>
    %c2_163 = arith.constant 2 : index
    %c0_164 = arith.constant 0 : index
    %c0_165 = arith.constant 0 : index
    %c0_166 = arith.constant 0 : index
    %127 = vector.load %arg16[%c2_163, %c0_164, %c0_165, %c0_166] : memref<6x4x8x96xf32, #tpu.memory_space<vmem>>, vector<4x4x8x96xf32>
    %128 = vector.shape_cast %127 : vector<4x4x8x96xf32> to vector<128x96xf32>
    %129 = arith.truncf %128 : vector<128x96xf32> to vector<128x96xbf16>
    %c2_167 = arith.constant 2 : index
    %c0_168 = arith.constant 0 : index
    %c0_169 = arith.constant 0 : index
    %130 = vector.load %arg6[%c2_167, %c0_168, %c0_169] : memref<3x96x64xbf16, #tpu.memory_space<vmem>>, vector<1x96x64xbf16>
    %131 = vector.shape_cast %130 : vector<1x96x64xbf16> to vector<96x64xbf16>
    %cst_170 = arith.constant dense<0.000000e+00> : vector<128x64xf32>
    %132 = tpu.matmul %129, %131, %cst_170 {dimension_numbers = #tpu.dot_dimension_numbers<[1], [0], [0], [1], [0, 0, 1, 1], [], []>} : vector<128x96xbf16>, vector<96x64xbf16>, vector<128x64xf32> -> vector<128x64xf32>
    %133 = arith.addf %126, %132 : vector<128x64xf32>
    %134 = vector.broadcast %96 : vector<1x64xf32> to vector<128x64xf32>
    %135 = arith.addf %133, %134 : vector<128x64xf32>
    %cst_171 = arith.constant 0.000000e+00 : f32
    %136 = vector.broadcast %cst_171 : f32 to vector<128x64xf32>
    %137 = arith.maximumf %135, %136 : vector<128x64xf32>
    %138 = vector.shape_cast %137 : vector<128x64xf32> to vector<4x4x8x64xf32>
    %cst_172 = arith.constant dense<0.000000e+00> : vector<8x64xf32>
    %139 = vector.multi_reduction <add>, %138, %cst_172 [0, 1] : vector<4x4x8x64xf32> to vector<8x64xf32>
    %cst_173 = arith.constant 1.600000e+01 : f32
    %140 = vector.broadcast %cst_173 : f32 to vector<8x64xf32>
    %141 = arith.divf %139, %140 : vector<8x64xf32>
    %142 = arith.truncf %141 : vector<8x64xf32> to vector<8x64xbf16>
    %c0_174 = arith.constant 0 : index
    %c0_175 = arith.constant 0 : index
    %143 = vector.load %arg8[%c0_174, %c0_175] : memref<64x256xbf16, #tpu.memory_space<vmem>>, vector<64x256xbf16>
    %cst_176 = arith.constant dense<0.000000e+00> : vector<8x256xf32>
    %144 = tpu.matmul %142, %143, %cst_176 {dimension_numbers = #tpu.dot_dimension_numbers<[1], [0], [0], [1], [0, 0, 1, 1], [], []>} : vector<8x64xbf16>, vector<64x256xbf16>, vector<8x256xf32> -> vector<8x256xf32>
    %c0_177 = arith.constant 0 : index
    %c0_178 = arith.constant 0 : index
    %145 = vector.load %arg10[%c0_177, %c0_178] : memref<1x256xf32, #tpu.memory_space<vmem>>, vector<1x256xf32>
    %146 = vector.broadcast %145 : vector<1x256xf32> to vector<8x256xf32>
    %147 = arith.addf %144, %146 : vector<8x256xf32>
    %c0_179 = arith.constant 0 : index
    %c0_180 = arith.constant 0 : index
    %148 = vector.load %arg9[%c0_179, %c0_180] : memref<64x256xbf16, #tpu.memory_space<vmem>>, vector<64x256xbf16>
    %cst_181 = arith.constant 0.000000e+00 : f32
    %149 = vector.broadcast %cst_181 : f32 to vector<2x64xf32>
    %cst_182 = arith.constant 0.000000e+00 : f32
    %150 = vector.broadcast %cst_182 : f32 to vector<2x64xf32>
    %151 = vector.extract_strided_slice %147 {offsets = [0, 0], sizes = [2, 256], strides = [1, 1]} : vector<8x256xf32> to vector<2x256xf32>
    %152 = arith.truncf %149 : vector<2x64xf32> to vector<2x64xbf16>
    %cst_183 = arith.constant dense<0.000000e+00> : vector<2x256xf32>
    %153 = tpu.matmul %152, %148, %cst_183 {dimension_numbers = #tpu.dot_dimension_numbers<[1], [0], [0], [1], [0, 0, 1, 1], [], []>} : vector<2x64xbf16>, vector<64x256xbf16>, vector<2x256xf32> -> vector<2x256xf32>
    %154 = arith.addf %151, %153 : vector<2x256xf32>
    %155 = vector.extract_strided_slice %154 {offsets = [0, 0], sizes = [2, 64], strides = [1, 1]} : vector<2x256xf32> to vector<2x64xf32>
    %cst_184 = arith.constant 0.000000e+00 : f32
    %156 = vector.broadcast %cst_184 : f32 to vector<2x64xf32>
    %157 = arith.subf %156, %155 : vector<2x64xf32>
    %158 = math.exp %157 : vector<2x64xf32>
    %cst_185 = arith.constant 1.000000e+00 : f32
    %159 = vector.broadcast %cst_185 : f32 to vector<2x64xf32>
    %160 = arith.addf %159, %158 : vector<2x64xf32>
    %cst_186 = arith.constant 1.000000e+00 : f32
    %161 = vector.broadcast %cst_186 : f32 to vector<2x64xf32>
    %162 = arith.divf %161, %160 : vector<2x64xf32>
    %163 = vector.extract_strided_slice %154 {offsets = [0, 64], sizes = [2, 64], strides = [1, 1]} : vector<2x256xf32> to vector<2x64xf32>
    %cst_187 = arith.constant 0.000000e+00 : f32
    %164 = vector.broadcast %cst_187 : f32 to vector<2x64xf32>
    %165 = arith.subf %164, %163 : vector<2x64xf32>
    %166 = math.exp %165 : vector<2x64xf32>
    %cst_188 = arith.constant 1.000000e+00 : f32
    %167 = vector.broadcast %cst_188 : f32 to vector<2x64xf32>
    %168 = arith.addf %167, %166 : vector<2x64xf32>
    %cst_189 = arith.constant 1.000000e+00 : f32
    %169 = vector.broadcast %cst_189 : f32 to vector<2x64xf32>
    %170 = arith.divf %169, %168 : vector<2x64xf32>
    %171 = vector.extract_strided_slice %154 {offsets = [0, 128], sizes = [2, 64], strides = [1, 1]} : vector<2x256xf32> to vector<2x64xf32>
    %172 = math.tanh %171 : vector<2x64xf32>
    %173 = vector.extract_strided_slice %154 {offsets = [0, 192], sizes = [2, 64], strides = [1, 1]} : vector<2x256xf32> to vector<2x64xf32>
    %cst_190 = arith.constant 0.000000e+00 : f32
    %174 = vector.broadcast %cst_190 : f32 to vector<2x64xf32>
    %175 = arith.subf %174, %173 : vector<2x64xf32>
    %176 = math.exp %175 : vector<2x64xf32>
    %cst_191 = arith.constant 1.000000e+00 : f32
    %177 = vector.broadcast %cst_191 : f32 to vector<2x64xf32>
    %178 = arith.addf %177, %176 : vector<2x64xf32>
    %cst_192 = arith.constant 1.000000e+00 : f32
    %179 = vector.broadcast %cst_192 : f32 to vector<2x64xf32>
    %180 = arith.divf %179, %178 : vector<2x64xf32>
    %181 = arith.mulf %170, %150 : vector<2x64xf32>
    %182 = arith.mulf %162, %172 : vector<2x64xf32>
    %183 = arith.addf %181, %182 : vector<2x64xf32>
    %184 = math.tanh %183 : vector<2x64xf32>
    %185 = arith.mulf %180, %184 : vector<2x64xf32>
    %186 = vector.extract_strided_slice %147 {offsets = [2, 0], sizes = [2, 256], strides = [1, 1]} : vector<8x256xf32> to vector<2x256xf32>
    %187 = arith.truncf %185 : vector<2x64xf32> to vector<2x64xbf16>
    %cst_193 = arith.constant dense<0.000000e+00> : vector<2x256xf32>
    %188 = tpu.matmul %187, %148, %cst_193 {dimension_numbers = #tpu.dot_dimension_numbers<[1], [0], [0], [1], [0, 0, 1, 1], [], []>} : vector<2x64xbf16>, vector<64x256xbf16>, vector<2x256xf32> -> vector<2x256xf32>
    %189 = arith.addf %186, %188 : vector<2x256xf32>
    %190 = vector.extract_strided_slice %189 {offsets = [0, 0], sizes = [2, 64], strides = [1, 1]} : vector<2x256xf32> to vector<2x64xf32>
    %cst_194 = arith.constant 0.000000e+00 : f32
    %191 = vector.broadcast %cst_194 : f32 to vector<2x64xf32>
    %192 = arith.subf %191, %190 : vector<2x64xf32>
    %193 = math.exp %192 : vector<2x64xf32>
    %cst_195 = arith.constant 1.000000e+00 : f32
    %194 = vector.broadcast %cst_195 : f32 to vector<2x64xf32>
    %195 = arith.addf %194, %193 : vector<2x64xf32>
    %cst_196 = arith.constant 1.000000e+00 : f32
    %196 = vector.broadcast %cst_196 : f32 to vector<2x64xf32>
    %197 = arith.divf %196, %195 : vector<2x64xf32>
    %198 = vector.extract_strided_slice %189 {offsets = [0, 64], sizes = [2, 64], strides = [1, 1]} : vector<2x256xf32> to vector<2x64xf32>
    %cst_197 = arith.constant 0.000000e+00 : f32
    %199 = vector.broadcast %cst_197 : f32 to vector<2x64xf32>
    %200 = arith.subf %199, %198 : vector<2x64xf32>
    %201 = math.exp %200 : vector<2x64xf32>
    %cst_198 = arith.constant 1.000000e+00 : f32
    %202 = vector.broadcast %cst_198 : f32 to vector<2x64xf32>
    %203 = arith.addf %202, %201 : vector<2x64xf32>
    %cst_199 = arith.constant 1.000000e+00 : f32
    %204 = vector.broadcast %cst_199 : f32 to vector<2x64xf32>
    %205 = arith.divf %204, %203 : vector<2x64xf32>
    %206 = vector.extract_strided_slice %189 {offsets = [0, 128], sizes = [2, 64], strides = [1, 1]} : vector<2x256xf32> to vector<2x64xf32>
    %207 = math.tanh %206 : vector<2x64xf32>
    %208 = vector.extract_strided_slice %189 {offsets = [0, 192], sizes = [2, 64], strides = [1, 1]} : vector<2x256xf32> to vector<2x64xf32>
    %cst_200 = arith.constant 0.000000e+00 : f32
    %209 = vector.broadcast %cst_200 : f32 to vector<2x64xf32>
    %210 = arith.subf %209, %208 : vector<2x64xf32>
    %211 = math.exp %210 : vector<2x64xf32>
    %cst_201 = arith.constant 1.000000e+00 : f32
    %212 = vector.broadcast %cst_201 : f32 to vector<2x64xf32>
    %213 = arith.addf %212, %211 : vector<2x64xf32>
    %cst_202 = arith.constant 1.000000e+00 : f32
    %214 = vector.broadcast %cst_202 : f32 to vector<2x64xf32>
    %215 = arith.divf %214, %213 : vector<2x64xf32>
    %216 = arith.mulf %205, %183 : vector<2x64xf32>
    %217 = arith.mulf %197, %207 : vector<2x64xf32>
    %218 = arith.addf %216, %217 : vector<2x64xf32>
    %219 = math.tanh %218 : vector<2x64xf32>
    %220 = arith.mulf %215, %219 : vector<2x64xf32>
    %221 = vector.extract_strided_slice %147 {offsets = [4, 0], sizes = [2, 256], strides = [1, 1]} : vector<8x256xf32> to vector<2x256xf32>
    %222 = arith.truncf %220 : vector<2x64xf32> to vector<2x64xbf16>
    %cst_203 = arith.constant dense<0.000000e+00> : vector<2x256xf32>
    %223 = tpu.matmul %222, %148, %cst_203 {dimension_numbers = #tpu.dot_dimension_numbers<[1], [0], [0], [1], [0, 0, 1, 1], [], []>} : vector<2x64xbf16>, vector<64x256xbf16>, vector<2x256xf32> -> vector<2x256xf32>
    %224 = arith.addf %221, %223 : vector<2x256xf32>
    %225 = vector.extract_strided_slice %224 {offsets = [0, 0], sizes = [2, 64], strides = [1, 1]} : vector<2x256xf32> to vector<2x64xf32>
    %cst_204 = arith.constant 0.000000e+00 : f32
    %226 = vector.broadcast %cst_204 : f32 to vector<2x64xf32>
    %227 = arith.subf %226, %225 : vector<2x64xf32>
    %228 = math.exp %227 : vector<2x64xf32>
    %cst_205 = arith.constant 1.000000e+00 : f32
    %229 = vector.broadcast %cst_205 : f32 to vector<2x64xf32>
    %230 = arith.addf %229, %228 : vector<2x64xf32>
    %cst_206 = arith.constant 1.000000e+00 : f32
    %231 = vector.broadcast %cst_206 : f32 to vector<2x64xf32>
    %232 = arith.divf %231, %230 : vector<2x64xf32>
    %233 = vector.extract_strided_slice %224 {offsets = [0, 64], sizes = [2, 64], strides = [1, 1]} : vector<2x256xf32> to vector<2x64xf32>
    %cst_207 = arith.constant 0.000000e+00 : f32
    %234 = vector.broadcast %cst_207 : f32 to vector<2x64xf32>
    %235 = arith.subf %234, %233 : vector<2x64xf32>
    %236 = math.exp %235 : vector<2x64xf32>
    %cst_208 = arith.constant 1.000000e+00 : f32
    %237 = vector.broadcast %cst_208 : f32 to vector<2x64xf32>
    %238 = arith.addf %237, %236 : vector<2x64xf32>
    %cst_209 = arith.constant 1.000000e+00 : f32
    %239 = vector.broadcast %cst_209 : f32 to vector<2x64xf32>
    %240 = arith.divf %239, %238 : vector<2x64xf32>
    %241 = vector.extract_strided_slice %224 {offsets = [0, 128], sizes = [2, 64], strides = [1, 1]} : vector<2x256xf32> to vector<2x64xf32>
    %242 = math.tanh %241 : vector<2x64xf32>
    %243 = vector.extract_strided_slice %224 {offsets = [0, 192], sizes = [2, 64], strides = [1, 1]} : vector<2x256xf32> to vector<2x64xf32>
    %cst_210 = arith.constant 0.000000e+00 : f32
    %244 = vector.broadcast %cst_210 : f32 to vector<2x64xf32>
    %245 = arith.subf %244, %243 : vector<2x64xf32>
    %246 = math.exp %245 : vector<2x64xf32>
    %cst_211 = arith.constant 1.000000e+00 : f32
    %247 = vector.broadcast %cst_211 : f32 to vector<2x64xf32>
    %248 = arith.addf %247, %246 : vector<2x64xf32>
    %cst_212 = arith.constant 1.000000e+00 : f32
    %249 = vector.broadcast %cst_212 : f32 to vector<2x64xf32>
    %250 = arith.divf %249, %248 : vector<2x64xf32>
    %251 = arith.mulf %240, %218 : vector<2x64xf32>
    %252 = arith.mulf %232, %242 : vector<2x64xf32>
    %253 = arith.addf %251, %252 : vector<2x64xf32>
    %254 = math.tanh %253 : vector<2x64xf32>
    %255 = arith.mulf %250, %254 : vector<2x64xf32>
    %256 = vector.extract_strided_slice %147 {offsets = [6, 0], sizes = [2, 256], strides = [1, 1]} : vector<8x256xf32> to vector<2x256xf32>
    %257 = arith.truncf %255 : vector<2x64xf32> to vector<2x64xbf16>
    %cst_213 = arith.constant dense<0.000000e+00> : vector<2x256xf32>
    %258 = tpu.matmul %257, %148, %cst_213 {dimension_numbers = #tpu.dot_dimension_numbers<[1], [0], [0], [1], [0, 0, 1, 1], [], []>} : vector<2x64xbf16>, vector<64x256xbf16>, vector<2x256xf32> -> vector<2x256xf32>
    %259 = arith.addf %256, %258 : vector<2x256xf32>
    %260 = vector.extract_strided_slice %259 {offsets = [0, 0], sizes = [2, 64], strides = [1, 1]} : vector<2x256xf32> to vector<2x64xf32>
    %cst_214 = arith.constant 0.000000e+00 : f32
    %261 = vector.broadcast %cst_214 : f32 to vector<2x64xf32>
    %262 = arith.subf %261, %260 : vector<2x64xf32>
    %263 = math.exp %262 : vector<2x64xf32>
    %cst_215 = arith.constant 1.000000e+00 : f32
    %264 = vector.broadcast %cst_215 : f32 to vector<2x64xf32>
    %265 = arith.addf %264, %263 : vector<2x64xf32>
    %cst_216 = arith.constant 1.000000e+00 : f32
    %266 = vector.broadcast %cst_216 : f32 to vector<2x64xf32>
    %267 = arith.divf %266, %265 : vector<2x64xf32>
    %268 = vector.extract_strided_slice %259 {offsets = [0, 64], sizes = [2, 64], strides = [1, 1]} : vector<2x256xf32> to vector<2x64xf32>
    %cst_217 = arith.constant 0.000000e+00 : f32
    %269 = vector.broadcast %cst_217 : f32 to vector<2x64xf32>
    %270 = arith.subf %269, %268 : vector<2x64xf32>
    %271 = math.exp %270 : vector<2x64xf32>
    %cst_218 = arith.constant 1.000000e+00 : f32
    %272 = vector.broadcast %cst_218 : f32 to vector<2x64xf32>
    %273 = arith.addf %272, %271 : vector<2x64xf32>
    %cst_219 = arith.constant 1.000000e+00 : f32
    %274 = vector.broadcast %cst_219 : f32 to vector<2x64xf32>
    %275 = arith.divf %274, %273 : vector<2x64xf32>
    %276 = vector.extract_strided_slice %259 {offsets = [0, 128], sizes = [2, 64], strides = [1, 1]} : vector<2x256xf32> to vector<2x64xf32>
    %277 = math.tanh %276 : vector<2x64xf32>
    %278 = vector.extract_strided_slice %259 {offsets = [0, 192], sizes = [2, 64], strides = [1, 1]} : vector<2x256xf32> to vector<2x64xf32>
    %cst_220 = arith.constant 0.000000e+00 : f32
    %279 = vector.broadcast %cst_220 : f32 to vector<2x64xf32>
    %280 = arith.subf %279, %278 : vector<2x64xf32>
    %281 = math.exp %280 : vector<2x64xf32>
    %cst_221 = arith.constant 1.000000e+00 : f32
    %282 = vector.broadcast %cst_221 : f32 to vector<2x64xf32>
    %283 = arith.addf %282, %281 : vector<2x64xf32>
    %cst_222 = arith.constant 1.000000e+00 : f32
    %284 = vector.broadcast %cst_222 : f32 to vector<2x64xf32>
    %285 = arith.divf %284, %283 : vector<2x64xf32>
    %286 = arith.mulf %275, %253 : vector<2x64xf32>
    %287 = arith.mulf %267, %277 : vector<2x64xf32>
    %288 = arith.addf %286, %287 : vector<2x64xf32>
    %289 = math.tanh %288 : vector<2x64xf32>
    %290 = arith.mulf %285, %289 : vector<2x64xf32>
    %291 = arith.truncf %290 : vector<2x64xf32> to vector<2x64xbf16>
    %c0_223 = arith.constant 0 : index
    %c0_224 = arith.constant 0 : index
    %292 = vector.load %arg11[%c0_223, %c0_224] : memref<64x2xbf16, #tpu.memory_space<vmem>>, vector<64x2xbf16>
    %cst_225 = arith.constant dense<0.000000e+00> : vector<2x2xf32>
    %293 = tpu.matmul %291, %292, %cst_225 {dimension_numbers = #tpu.dot_dimension_numbers<[1], [0], [0], [1], [0, 0, 1, 1], [], []>} : vector<2x64xbf16>, vector<64x2xbf16>, vector<2x2xf32> -> vector<2x2xf32>
    %c0_226 = arith.constant 0 : index
    %c0_227 = arith.constant 0 : index
    %294 = vector.load %arg12[%c0_226, %c0_227] : memref<1x2xf32, #tpu.memory_space<vmem>>, vector<1x2xf32>
    %295 = vector.broadcast %294 : vector<1x2xf32> to vector<2x2xf32>
    %296 = arith.addf %293, %295 : vector<2x2xf32>
    %c0_228 = arith.constant 0 : index
    %c0_229 = arith.constant 0 : index
    %c0_230 = arith.constant 0 : index
    %297 = vector.load %arg13[%c0_228, %c0_229, %c0_230] : memref<1x2x2xf32, #tpu.memory_space<vmem>>, vector<1x2x2xf32>
    %298 = vector.shape_cast %297 : vector<1x2x2xf32> to vector<2x2xf32>
    %299 = vector.shape_cast %296 : vector<2x2xf32> to vector<1x2x2xf32>
    tpu.vector_store %arg13[%c0_228, %c0_229, %c0_230], %299 {strides = array<i32>} : memref<1x2x2xf32, #tpu.memory_space<vmem>>, vector<1x2x2xf32>,
    return
  }
  func.func @transform_0(%arg0: i32) -> (i32, i32, i32, i32, i32) {
    %c0_i32 = arith.constant 0 : i32
    %c0_i32_0 = arith.constant 0 : i32
    %c0_i32_1 = arith.constant 0 : i32
    %c0_i32_2 = arith.constant 0 : i32
    %c0_i32_3 = arith.constant 0 : i32
    return %arg0, %c0_i32, %c0_i32_0, %c0_i32_1, %c0_i32_2 : i32, i32, i32, i32, i32
  }
  func.func @transform_1(%arg0: i32) -> (i32, i32, i32) {
    %c0_i32 = arith.constant 0 : i32
    %c0_i32_0 = arith.constant 0 : i32
    %c0_i32_1 = arith.constant 0 : i32
    %c0_i32_2 = arith.constant 0 : i32
    return %c0_i32, %c0_i32_0, %c0_i32_1 : i32, i32, i32
  }
  func.func @transform_2(%arg0: i32) -> (i32, i32) {
    %c0_i32 = arith.constant 0 : i32
    %c0_i32_0 = arith.constant 0 : i32
    %c0_i32_1 = arith.constant 0 : i32
    return %c0_i32, %c0_i32_0 : i32, i32
  }
  func.func @transform_3(%arg0: i32) -> (i32, i32, i32) {
    %c0_i32 = arith.constant 0 : i32
    %c0_i32_0 = arith.constant 0 : i32
    %c0_i32_1 = arith.constant 0 : i32
    %c0_i32_2 = arith.constant 0 : i32
    return %c0_i32, %c0_i32_0, %c0_i32_1 : i32, i32, i32
  }
  func.func @transform_4(%arg0: i32) -> (i32, i32) {
    %c0_i32 = arith.constant 0 : i32
    %c0_i32_0 = arith.constant 0 : i32
    %c0_i32_1 = arith.constant 0 : i32
    return %c0_i32, %c0_i32_0 : i32, i32
  }
  func.func @transform_5(%arg0: i32) -> (i32, i32, i32) {
    %c0_i32 = arith.constant 0 : i32
    %c0_i32_0 = arith.constant 0 : i32
    %c0_i32_1 = arith.constant 0 : i32
    %c0_i32_2 = arith.constant 0 : i32
    return %c0_i32, %c0_i32_0, %c0_i32_1 : i32, i32, i32
  }
  func.func @transform_6(%arg0: i32) -> (i32, i32) {
    %c0_i32 = arith.constant 0 : i32
    %c0_i32_0 = arith.constant 0 : i32
    %c0_i32_1 = arith.constant 0 : i32
    return %c0_i32, %c0_i32_0 : i32, i32
  }
  func.func @transform_7(%arg0: i32) -> (i32, i32) {
    %c0_i32 = arith.constant 0 : i32
    %c0_i32_0 = arith.constant 0 : i32
    %c0_i32_1 = arith.constant 0 : i32
    return %c0_i32, %c0_i32_0 : i32, i32
  }
  func.func @transform_8(%arg0: i32) -> (i32, i32) {
    %c0_i32 = arith.constant 0 : i32
    %c0_i32_0 = arith.constant 0 : i32
    %c0_i32_1 = arith.constant 0 : i32
    return %c0_i32, %c0_i32_0 : i32, i32
  }
  func.func @transform_9(%arg0: i32) -> (i32, i32) {
    %c0_i32 = arith.constant 0 : i32
    %c0_i32_0 = arith.constant 0 : i32
    %c0_i32_1 = arith.constant 0 : i32
    return %c0_i32, %c0_i32_0 : i32, i32
  }
  func.func @transform_10(%arg0: i32) -> (i32, i32) {
    %c0_i32 = arith.constant 0 : i32
    %c0_i32_0 = arith.constant 0 : i32
    %c0_i32_1 = arith.constant 0 : i32
    return %c0_i32, %c0_i32_0 : i32, i32
  }
  func.func @transform_11(%arg0: i32) -> (i32, i32) {
    %c0_i32 = arith.constant 0 : i32
    %c0_i32_0 = arith.constant 0 : i32
    %c0_i32_1 = arith.constant 0 : i32
    return %c0_i32, %c0_i32_0 : i32, i32
  }
  func.func @transform_12(%arg0: i32) -> (i32, i32, i32) {
    %c0_i32 = arith.constant 0 : i32
    %c0_i32_0 = arith.constant 0 : i32
    %c0_i32_1 = arith.constant 0 : i32
    return %arg0, %c0_i32, %c0_i32_0 : i32, i32, i32
  }
}

</mosaic_0001>

<llo_original>
// kernel: cnn_lstm_forward.1
$region0: #{cnn_lstm_forward.1}
  #allocation0 [shape = 'u32[]', space=smem, size = 0x4, offset = 0x4, fixed_abs, tag = 'smem constant byte address 0x4 - core index']
  #allocation1 [shape = 'u32[72,128]{1,0:T(1,128)}', space=vmem, size = 0x9000, scoped, tag = 'internal scratch']
  #allocation2 [shape = 'f32[18,16,8,9]{3,2,1,0:T(8,128)}', space=vmem, size = 0x120000, scoped, tag = 'scratch operand']
  #allocation3 [shape = 'f32[10,8,8,48]{3,2,1,0:T(8,128)}', space=vmem, size = 0x50000, scoped, tag = 'scratch operand']
  #allocation4 [shape = 'f32[6,4,8,96]{3,2,1,0:T(8,128)}', space=vmem, size = 0x18000, scoped, tag = 'scratch operand']
  %s0 = inlined_call_operand.vmem [shape: f32[1,16,16,8,3], index: 0, kind: input, shape index: {}]
  %s1 = inlined_call_operand.vmem [shape: bf16[3,9,16], index: 1, kind: input, shape index: {}]
  %s2 = inlined_call_operand.vmem [shape: f32[1,16], index: 2, kind: input, shape index: {}]
  %s3 = inlined_call_operand.vmem [shape: bf16[3,48,32], index: 3, kind: input, shape index: {}]
  %s4 = inlined_call_operand.vmem [shape: f32[1,32], index: 4, kind: input, shape index: {}]
  %s5 = inlined_call_operand.vmem [shape: bf16[3,96,64], index: 5, kind: input, shape index: {}]
  %s6 = inlined_call_operand.vmem [shape: f32[1,64], index: 6, kind: input, shape index: {}]
  %s7 = inlined_call_operand.vmem [shape: bf16[64,256], index: 7, kind: input, shape index: {}]
  %s8 = inlined_call_operand.vmem [shape: bf16[64,256], index: 8, kind: input, shape index: {}]
  %s9 = inlined_call_operand.vmem [shape: f32[1,256], index: 9, kind: input, shape index: {}]
  %s10 = inlined_call_operand.vmem [shape: bf16[64,2], index: 10, kind: input, shape index: {}]
  %s11 = inlined_call_operand.vmem [shape: f32[1,2], index: 11, kind: input, shape index: {}]
  %s12 = inlined_call_operand.hbm [shape: f32[1,2,2], index: 12, kind: output, shape index: {}]
  %s13 = sld [smem:[#allocation0]]
  $region58: #{cnn_lstm_forward.1} parent=0
    _
  %s15 = ssub.s32 1, %s13
  %s16 = scalar_select 0, %s15, %s13
  $region1: #{cnn_lstm_forward.1} parent=0
    #allocation5 [shape = 'u8[1024]{0}', space=vmem, size = 0x400, scoped, tag = 'output window, operand 0, single buffered']
    #allocation6 [shape = 's32[1]{0}', space=sflag, size = 0x4, scoped, tag = 'scoped memory for cnn_lstm_forward.1']
    %17 = vsyncpa [#allocation6], 0
    // Predicated region
    $region2: #{cnn_lstm_forward.1} parent=1 // pred_check
      _
    $region3: #{cnn_lstm_forward.1} parent=1 // pred_check_branch
      %19 = sbr.rel (0) target = $region5
    $region4: #{cnn_lstm_forward.1} parent=1 // pred_region
      _
    $region5: #{cnn_lstm_forward.1} parent=1 // pred_fallthru
      _
    // Predicated region
    $region6: #{cnn_lstm_forward.1} parent=1 // pred_check
      _
    $region7: #{cnn_lstm_forward.1} parent=1 // pred_check_branch
      %21 = sbr.rel (0) target = $region9
    $region8: #{cnn_lstm_forward.1} parent=1 // pred_region
      _
    $region9: #{cnn_lstm_forward.1} parent=1 // pred_fallthru
      _
    // Predicated region
    $region10: #{cnn_lstm_forward.1} parent=1 // pred_check
      _
    $region11: #{cnn_lstm_forward.1} parent=1 // pred_check_branch
      %23 = sbr.rel (0) target = $region13
    $region12: #{cnn_lstm_forward.1} parent=1 // pred_region
      _
    $region13: #{cnn_lstm_forward.1} parent=1 // pred_fallthru
      _
    // Predicated region
    $region14: #{cnn_lstm_forward.1} parent=1 // pred_check
      _
    $region15: #{cnn_lstm_forward.1} parent=1 // pred_check_branch
      %25 = sbr.rel (0) target = $region17
    $region16: #{cnn_lstm_forward.1} parent=1 // pred_region
      _
    $region17: #{cnn_lstm_forward.1} parent=1 // pred_fallthru
      _
    // Predicated region
    $region18: #{cnn_lstm_forward.1} parent=1 // pred_check
      _
    $region19: #{cnn_lstm_forward.1} parent=1 // pred_check_branch
      %27 = sbr.rel (0) target = $region21
    $region20: #{cnn_lstm_forward.1} parent=1 // pred_region
      _
    $region21: #{cnn_lstm_forward.1} parent=1 // pred_fallthru
      _
    // Predicated region
    $region22: #{cnn_lstm_forward.1} parent=1 // pred_check
      _
    $region23: #{cnn_lstm_forward.1} parent=1 // pred_check_branch
      %29 = sbr.rel (0) target = $region25
    $region24: #{cnn_lstm_forward.1} parent=1 // pred_region
      _
    $region25: #{cnn_lstm_forward.1} parent=1 // pred_fallthru
      _
    // Predicated region
    $region26: #{cnn_lstm_forward.1} parent=1 // pred_check
      _
    $region27: #{cnn_lstm_forward.1} parent=1 // pred_check_branch
      %31 = sbr.rel (0) target = $region29
    $region28: #{cnn_lstm_forward.1} parent=1 // pred_region
      _
    $region29: #{cnn_lstm_forward.1} parent=1 // pred_fallthru
      _
    // Predicated region
    $region30: #{cnn_lstm_forward.1} parent=1 // pred_check
      _
    $region31: #{cnn_lstm_forward.1} parent=1 // pred_check_branch
      %33 = sbr.rel (0) target = $region33
    $region32: #{cnn_lstm_forward.1} parent=1 // pred_region
      _
    $region33: #{cnn_lstm_forward.1} parent=1 // pred_fallthru
      _
    // Predicated region
    $region34: #{cnn_lstm_forward.1} parent=1 // pred_check
      _
    $region35: #{cnn_lstm_forward.1} parent=1 // pred_check_branch
      %35 = sbr.rel (0) target = $region37
    $region36: #{cnn_lstm_forward.1} parent=1 // pred_region
      _
    $region37: #{cnn_lstm_forward.1} parent=1 // pred_fallthru
      _
    // Predicated region
    $region38: #{cnn_lstm_forward.1} parent=1 // pred_check
      _
    $region39: #{cnn_lstm_forward.1} parent=1 // pred_check_branch
      %37 = sbr.rel (0) target = $region41
    $region40: #{cnn_lstm_forward.1} parent=1 // pred_region
      _
    $region41: #{cnn_lstm_forward.1} parent=1 // pred_fallthru
      _
    // Predicated region
    $region42: #{cnn_lstm_forward.1} parent=1 // pred_check
      _
    $region43: #{cnn_lstm_forward.1} parent=1 // pred_check_branch
      %39 = sbr.rel (0) target = $region45
    $region44: #{cnn_lstm_forward.1} parent=1 // pred_region
      _
    $region45: #{cnn_lstm_forward.1} parent=1 // pred_fallthru
      _
    // Predicated region
    $region46: #{cnn_lstm_forward.1} parent=1 // pred_check
      _
    $region47: #{cnn_lstm_forward.1} parent=1 // pred_check_branch
      %41 = sbr.rel (0) target = $region49
    $region48: #{cnn_lstm_forward.1} parent=1 // pred_region
      _
    $region49: #{cnn_lstm_forward.1} parent=1 // pred_fallthru
      _
    %v43 = vld [vmem:[%s0] sm:$0xff]
    %v44 = vld [vmem:[%s0 + $0x8] sm:$0xff]
    %v45 = vld [vmem:[%s0 + $0x10] sm:$0xff]
    %v46 = vld [vmem:[%s0 + $0x18] sm:$0xff]
    %v47 = vld [vmem:[%s0 + $0x20] sm:$0xff]
    %v48 = vld [vmem:[%s0 + $0x28] sm:$0xff]
    %v49 = vld [vmem:[%s0 + $0x30] sm:$0xff]
    %v50 = vld [vmem:[%s0 + $0x38] sm:$0xff]
    %v51 = vld [vmem:[%s0 + $0x40] sm:$0xff]
    %v52 = vld [vmem:[%s0 + $0x48] sm:$0xff]
    %v53 = vld [vmem:[%s0 + $0x50] sm:$0xff]
    %v54 = vld [vmem:[%s0 + $0x58] sm:$0xff]
    %v55 = vld [vmem:[%s0 + $0x60] sm:$0xff]
    %v56 = vld [vmem:[%s0 + $0x68] sm:$0xff]
    %v57 = vld [vmem:[%s0 + $0x70] sm:$0xff]
    %v58 = vld [vmem:[%s0 + $0x78] sm:$0xff]
    %v59 = vld [vmem:[%s0 + $0x80] sm:$0xff]
    %v60 = vld [vmem:[%s0 + $0x88] sm:$0xff]
    %v61 = vld [vmem:[%s0 + $0x90] sm:$0xff]
    %v62 = vld [vmem:[%s0 + $0x98] sm:$0xff]
    %v63 = vld [vmem:[%s0 + $0xa0] sm:$0xff]
    %v64 = vld [vmem:[%s0 + $0xa8] sm:$0xff]
    %v65 = vld [vmem:[%s0 + $0xb0] sm:$0xff]
    %v66 = vld [vmem:[%s0 + $0xb8] sm:$0xff]
    %v67 = vld [vmem:[%s0 + $0xc0] sm:$0xff]
    %v68 = vld [vmem:[%s0 + $0xc8] sm:$0xff]
    %v69 = vld [vmem:[%s0 + $0xd0] sm:$0xff]
    %v70 = vld [vmem:[%s0 + $0xd8] sm:$0xff]
    %v71 = vld [vmem:[%s0 + $0xe0] sm:$0xff]
    %v72 = vld [vmem:[%s0 + $0xe8] sm:$0xff]
    %v73 = vld [vmem:[%s0 + $0xf0] sm:$0xff]
    %v74 = vld [vmem:[%s0 + $0xf8] sm:$0xff]
    %v75 = vld [vmem:[%s0 + $0x100] sm:$0xff]
    %v76 = vld [vmem:[%s0 + $0x108] sm:$0xff]
    %v77 = vld [vmem:[%s0 + $0x110] sm:$0xff]
    %v78 = vld [vmem:[%s0 + $0x118] sm:$0xff]
    %v79 = vld [vmem:[%s0 + $0x120] sm:$0xff]
    %v80 = vld [vmem:[%s0 + $0x128] sm:$0xff]
    %v81 = vld [vmem:[%s0 + $0x130] sm:$0xff]
    %v82 = vld [vmem:[%s0 + $0x138] sm:$0xff]
    %v83 = vld [vmem:[%s0 + $0x140] sm:$0xff]
    %v84 = vld [vmem:[%s0 + $0x148] sm:$0xff]
    %v85 = vld [vmem:[%s0 + $0x150] sm:$0xff]
    %v86 = vld [vmem:[%s0 + $0x158] sm:$0xff]
    %v87 = vld [vmem:[%s0 + $0x160] sm:$0xff]
    %v88 = vld [vmem:[%s0 + $0x168] sm:$0xff]
    %v89 = vld [vmem:[%s0 + $0x170] sm:$0xff]
    %v90 = vld [vmem:[%s0 + $0x178] sm:$0xff]
    %v91 = vld [vmem:[%s0 + $0x180] sm:$0xff]
    %v92 = vld [vmem:[%s0 + $0x188] sm:$0xff]
    %v93 = vld [vmem:[%s0 + $0x190] sm:$0xff]
    %v94 = vld [vmem:[%s0 + $0x198] sm:$0xff]
    %v95 = vld [vmem:[%s0 + $0x1a0] sm:$0xff]
    %v96 = vld [vmem:[%s0 + $0x1a8] sm:$0xff]
    %v97 = vld [vmem:[%s0 + $0x1b0] sm:$0xff]
    %v98 = vld [vmem:[%s0 + $0x1b8] sm:$0xff]
    %v99 = vld [vmem:[%s0 + $0x1c0] sm:$0xff]
    %v100 = vld [vmem:[%s0 + $0x1c8] sm:$0xff]
    %v101 = vld [vmem:[%s0 + $0x1d0] sm:$0xff]
    %v102 = vld [vmem:[%s0 + $0x1d8] sm:$0xff]
    %v103 = vld [vmem:[%s0 + $0x1e0] sm:$0xff]
    %v104 = vld [vmem:[%s0 + $0x1e8] sm:$0xff]
    %v105 = vld [vmem:[%s0 + $0x1f0] sm:$0xff]
    %v106 = vld [vmem:[%s0 + $0x1f8] sm:$0xff]
    %v107 = vld [vmem:[%s0 + $0x200] sm:$0xff]
    %v108 = vld [vmem:[%s0 + $0x208] sm:$0xff]
    %v109 = vld [vmem:[%s0 + $0x210] sm:$0xff]
    %v110 = vld [vmem:[%s0 + $0x218] sm:$0xff]
    %v111 = vld [vmem:[%s0 + $0x220] sm:$0xff]
    %v112 = vld [vmem:[%s0 + $0x228] sm:$0xff]
    %v113 = vld [vmem:[%s0 + $0x230] sm:$0xff]
    %v114 = vld [vmem:[%s0 + $0x238] sm:$0xff]
    %v115 = vld [vmem:[%s0 + $0x240] sm:$0xff]
    %v116 = vld [vmem:[%s0 + $0x248] sm:$0xff]
    %v117 = vld [vmem:[%s0 + $0x250] sm:$0xff]
    %v118 = vld [vmem:[%s0 + $0x258] sm:$0xff]
    %v119 = vld [vmem:[%s0 + $0x260] sm:$0xff]
    %v120 = vld [vmem:[%s0 + $0x268] sm:$0xff]
    %v121 = vld [vmem:[%s0 + $0x270] sm:$0xff]
    %v122 = vld [vmem:[%s0 + $0x278] sm:$0xff]
    %v123 = vld [vmem:[%s0 + $0x280] sm:$0xff]
    %v124 = vld [vmem:[%s0 + $0x288] sm:$0xff]
    %v125 = vld [vmem:[%s0 + $0x290] sm:$0xff]
    %v126 = vld [vmem:[%s0 + $0x298] sm:$0xff]
    %v127 = vld [vmem:[%s0 + $0x2a0] sm:$0xff]
    %v128 = vld [vmem:[%s0 + $0x2a8] sm:$0xff]
    %v129 = vld [vmem:[%s0 + $0x2b0] sm:$0xff]
    %v130 = vld [vmem:[%s0 + $0x2b8] sm:$0xff]
    %v131 = vld [vmem:[%s0 + $0x2c0] sm:$0xff]
    %v132 = vld [vmem:[%s0 + $0x2c8] sm:$0xff]
    %v133 = vld [vmem:[%s0 + $0x2d0] sm:$0xff]
    %v134 = vld [vmem:[%s0 + $0x2d8] sm:$0xff]
    %v135 = vld [vmem:[%s0 + $0x2e0] sm:$0xff]
    %v136 = vld [vmem:[%s0 + $0x2e8] sm:$0xff]
    %v137 = vld [vmem:[%s0 + $0x2f0] sm:$0xff]
    %v138 = vld [vmem:[%s0 + $0x2f8] sm:$0xff]
    %v139 = vld [vmem:[%s0 + $0x300] sm:$0xff]
    %v140 = vld [vmem:[%s0 + $0x308] sm:$0xff]
    %v141 = vld [vmem:[%s0 + $0x310] sm:$0xff]
    %v142 = vld [vmem:[%s0 + $0x318] sm:$0xff]
    %v143 = vld [vmem:[%s0 + $0x320] sm:$0xff]
    %v144 = vld [vmem:[%s0 + $0x328] sm:$0xff]
    %v145 = vld [vmem:[%s0 + $0x330] sm:$0xff]
    %v146 = vld [vmem:[%s0 + $0x338] sm:$0xff]
    %v147 = vld [vmem:[%s0 + $0x340] sm:$0xff]
    %v148 = vld [vmem:[%s0 + $0x348] sm:$0xff]
    %v149 = vld [vmem:[%s0 + $0x350] sm:$0xff]
    %v150 = vld [vmem:[%s0 + $0x358] sm:$0xff]
    %v151 = vld [vmem:[%s0 + $0x360] sm:$0xff]
    %v152 = vld [vmem:[%s0 + $0x368] sm:$0xff]
    %v153 = vld [vmem:[%s0 + $0x370] sm:$0xff]
    %v154 = vld [vmem:[%s0 + $0x378] sm:$0xff]
    %v155 = vld [vmem:[%s0 + $0x380] sm:$0xff]
    %v156 = vld [vmem:[%s0 + $0x388] sm:$0xff]
    %v157 = vld [vmem:[%s0 + $0x390] sm:$0xff]
    %v158 = vld [vmem:[%s0 + $0x398] sm:$0xff]
    %v159 = vld [vmem:[%s0 + $0x3a0] sm:$0xff]
    %v160 = vld [vmem:[%s0 + $0x3a8] sm:$0xff]
    %v161 = vld [vmem:[%s0 + $0x3b0] sm:$0xff]
    %v162 = vld [vmem:[%s0 + $0x3b8] sm:$0xff]
    %v163 = vld [vmem:[%s0 + $0x3c0] sm:$0xff]
    %v164 = vld [vmem:[%s0 + $0x3c8] sm:$0xff]
    %v165 = vld [vmem:[%s0 + $0x3d0] sm:$0xff]
    %v166 = vld [vmem:[%s0 + $0x3d8] sm:$0xff]
    %v167 = vld [vmem:[%s0 + $0x3e0] sm:$0xff]
    %v168 = vld [vmem:[%s0 + $0x3e8] sm:$0xff]
    %v169 = vld [vmem:[%s0 + $0x3f0] sm:$0xff]
    %v170 = vld [vmem:[%s0 + $0x3f8] sm:$0xff]
    %v171 = vld [vmem:[%s0 + $0x400] sm:$0xff]
    %v172 = vld [vmem:[%s0 + $0x408] sm:$0xff]
    %v173 = vld [vmem:[%s0 + $0x410] sm:$0xff]
    %v174 = vld [vmem:[%s0 + $0x418] sm:$0xff]
    %v175 = vld [vmem:[%s0 + $0x420] sm:$0xff]
    %v176 = vld [vmem:[%s0 + $0x428] sm:$0xff]
    %v177 = vld [vmem:[%s0 + $0x430] sm:$0xff]
    %v178 = vld [vmem:[%s0 + $0x438] sm:$0xff]
    %v179 = vld [vmem:[%s0 + $0x440] sm:$0xff]
    %v180 = vld [vmem:[%s0 + $0x448] sm:$0xff]
    %v181 = vld [vmem:[%s0 + $0x450] sm:$0xff]
    %v182 = vld [vmem:[%s0 + $0x458] sm:$0xff]
    %v183 = vld [vmem:[%s0 + $0x460] sm:$0xff]
    %v184 = vld [vmem:[%s0 + $0x468] sm:$0xff]
    %v185 = vld [vmem:[%s0 + $0x470] sm:$0xff]
    %v186 = vld [vmem:[%s0 + $0x478] sm:$0xff]
    %v187 = vld [vmem:[%s0 + $0x480] sm:$0xff]
    %v188 = vld [vmem:[%s0 + $0x488] sm:$0xff]
    %v189 = vld [vmem:[%s0 + $0x490] sm:$0xff]
    %v190 = vld [vmem:[%s0 + $0x498] sm:$0xff]
    %v191 = vld [vmem:[%s0 + $0x4a0] sm:$0xff]
    %v192 = vld [vmem:[%s0 + $0x4a8] sm:$0xff]
    %v193 = vld [vmem:[%s0 + $0x4b0] sm:$0xff]
    %v194 = vld [vmem:[%s0 + $0x4b8] sm:$0xff]
    %v195 = vld [vmem:[%s0 + $0x4c0] sm:$0xff]
    %v196 = vld [vmem:[%s0 + $0x4c8] sm:$0xff]
    %v197 = vld [vmem:[%s0 + $0x4d0] sm:$0xff]
    %v198 = vld [vmem:[%s0 + $0x4d8] sm:$0xff]
    %v199 = vld [vmem:[%s0 + $0x4e0] sm:$0xff]
    %v200 = vld [vmem:[%s0 + $0x4e8] sm:$0xff]
    %v201 = vld [vmem:[%s0 + $0x4f0] sm:$0xff]
    %v202 = vld [vmem:[%s0 + $0x4f8] sm:$0xff]
    %v203 = vld [vmem:[%s0 + $0x500] sm:$0xff]
    %v204 = vld [vmem:[%s0 + $0x508] sm:$0xff]
    %v205 = vld [vmem:[%s0 + $0x510] sm:$0xff]
    %v206 = vld [vmem:[%s0 + $0x518] sm:$0xff]
    %v207 = vld [vmem:[%s0 + $0x520] sm:$0xff]
    %v208 = vld [vmem:[%s0 + $0x528] sm:$0xff]
    %v209 = vld [vmem:[%s0 + $0x530] sm:$0xff]
    %v210 = vld [vmem:[%s0 + $0x538] sm:$0xff]
    %v211 = vld [vmem:[%s0 + $0x540] sm:$0xff]
    %v212 = vld [vmem:[%s0 + $0x548] sm:$0xff]
    %v213 = vld [vmem:[%s0 + $0x550] sm:$0xff]
    %v214 = vld [vmem:[%s0 + $0x558] sm:$0xff]
    %v215 = vld [vmem:[%s0 + $0x560] sm:$0xff]
    %v216 = vld [vmem:[%s0 + $0x568] sm:$0xff]
    %v217 = vld [vmem:[%s0 + $0x570] sm:$0xff]
    %v218 = vld [vmem:[%s0 + $0x578] sm:$0xff]
    %v219 = vld [vmem:[%s0 + $0x580] sm:$0xff]
    %v220 = vld [vmem:[%s0 + $0x588] sm:$0xff]
    %v221 = vld [vmem:[%s0 + $0x590] sm:$0xff]
    %v222 = vld [vmem:[%s0 + $0x598] sm:$0xff]
    %v223 = vld [vmem:[%s0 + $0x5a0] sm:$0xff]
    %v224 = vld [vmem:[%s0 + $0x5a8] sm:$0xff]
    %v225 = vld [vmem:[%s0 + $0x5b0] sm:$0xff]
    %v226 = vld [vmem:[%s0 + $0x5b8] sm:$0xff]
    %v227 = vld [vmem:[%s0 + $0x5c0] sm:$0xff]
    %v228 = vld [vmem:[%s0 + $0x5c8] sm:$0xff]
    %v229 = vld [vmem:[%s0 + $0x5d0] sm:$0xff]
    %v230 = vld [vmem:[%s0 + $0x5d8] sm:$0xff]
    %v231 = vld [vmem:[%s0 + $0x5e0] sm:$0xff]
    %v232 = vld [vmem:[%s0 + $0x5e8] sm:$0xff]
    %v233 = vld [vmem:[%s0 + $0x5f0] sm:$0xff]
    %v234 = vld [vmem:[%s0 + $0x5f8] sm:$0xff]
    %v235 = vld [vmem:[%s0 + $0x600] sm:$0xff]
    %v236 = vld [vmem:[%s0 + $0x608] sm:$0xff]
    %v237 = vld [vmem:[%s0 + $0x610] sm:$0xff]
    %v238 = vld [vmem:[%s0 + $0x618] sm:$0xff]
    %v239 = vld [vmem:[%s0 + $0x620] sm:$0xff]
    %v240 = vld [vmem:[%s0 + $0x628] sm:$0xff]
    %v241 = vld [vmem:[%s0 + $0x630] sm:$0xff]
    %v242 = vld [vmem:[%s0 + $0x638] sm:$0xff]
    %v243 = vld [vmem:[%s0 + $0x640] sm:$0xff]
    %v244 = vld [vmem:[%s0 + $0x648] sm:$0xff]
    %v245 = vld [vmem:[%s0 + $0x650] sm:$0xff]
    %v246 = vld [vmem:[%s0 + $0x658] sm:$0xff]
    %v247 = vld [vmem:[%s0 + $0x660] sm:$0xff]
    %v248 = vld [vmem:[%s0 + $0x668] sm:$0xff]
    %v249 = vld [vmem:[%s0 + $0x670] sm:$0xff]
    %v250 = vld [vmem:[%s0 + $0x678] sm:$0xff]
    %v251 = vld [vmem:[%s0 + $0x680] sm:$0xff]
    %v252 = vld [vmem:[%s0 + $0x688] sm:$0xff]
    %v253 = vld [vmem:[%s0 + $0x690] sm:$0xff]
    %v254 = vld [vmem:[%s0 + $0x698] sm:$0xff]
    %v255 = vld [vmem:[%s0 + $0x6a0] sm:$0xff]
    %v256 = vld [vmem:[%s0 + $0x6a8] sm:$0xff]
    %v257 = vld [vmem:[%s0 + $0x6b0] sm:$0xff]
    %v258 = vld [vmem:[%s0 + $0x6b8] sm:$0xff]
    %v259 = vld [vmem:[%s0 + $0x6c0] sm:$0xff]
    %v260 = vld [vmem:[%s0 + $0x6c8] sm:$0xff]
    %v261 = vld [vmem:[%s0 + $0x6d0] sm:$0xff]
    %v262 = vld [vmem:[%s0 + $0x6d8] sm:$0xff]
    %v263 = vld [vmem:[%s0 + $0x6e0] sm:$0xff]
    %v264 = vld [vmem:[%s0 + $0x6e8] sm:$0xff]
    %v265 = vld [vmem:[%s0 + $0x6f0] sm:$0xff]
    %v266 = vld [vmem:[%s0 + $0x6f8] sm:$0xff]
    %v267 = vld [vmem:[%s0 + $0x700] sm:$0xff]
    %v268 = vld [vmem:[%s0 + $0x708] sm:$0xff]
    %v269 = vld [vmem:[%s0 + $0x710] sm:$0xff]
    %v270 = vld [vmem:[%s0 + $0x718] sm:$0xff]
    %v271 = vld [vmem:[%s0 + $0x720] sm:$0xff]
    %v272 = vld [vmem:[%s0 + $0x728] sm:$0xff]
    %v273 = vld [vmem:[%s0 + $0x730] sm:$0xff]
    %v274 = vld [vmem:[%s0 + $0x738] sm:$0xff]
    %v275 = vld [vmem:[%s0 + $0x740] sm:$0xff]
    %v276 = vld [vmem:[%s0 + $0x748] sm:$0xff]
    %v277 = vld [vmem:[%s0 + $0x750] sm:$0xff]
    %v278 = vld [vmem:[%s0 + $0x758] sm:$0xff]
    %v279 = vld [vmem:[%s0 + $0x760] sm:$0xff]
    %v280 = vld [vmem:[%s0 + $0x768] sm:$0xff]
    %v281 = vld [vmem:[%s0 + $0x770] sm:$0xff]
    %v282 = vld [vmem:[%s0 + $0x778] sm:$0xff]
    %v283 = vld [vmem:[%s0 + $0x780] sm:$0xff]
    %v284 = vld [vmem:[%s0 + $0x788] sm:$0xff]
    %v285 = vld [vmem:[%s0 + $0x790] sm:$0xff]
    %v286 = vld [vmem:[%s0 + $0x798] sm:$0xff]
    %v287 = vld [vmem:[%s0 + $0x7a0] sm:$0xff]
    %v288 = vld [vmem:[%s0 + $0x7a8] sm:$0xff]
    %v289 = vld [vmem:[%s0 + $0x7b0] sm:$0xff]
    %v290 = vld [vmem:[%s0 + $0x7b8] sm:$0xff]
    %v291 = vld [vmem:[%s0 + $0x7c0] sm:$0xff]
    %v292 = vld [vmem:[%s0 + $0x7c8] sm:$0xff]
    %v293 = vld [vmem:[%s0 + $0x7d0] sm:$0xff]
    %v294 = vld [vmem:[%s0 + $0x7d8] sm:$0xff]
    %v295 = vld [vmem:[%s0 + $0x7e0] sm:$0xff]
    %v296 = vld [vmem:[%s0 + $0x7e8] sm:$0xff]
    %v297 = vld [vmem:[%s0 + $0x7f0] sm:$0xff]
    %v298 = vld [vmem:[%s0 + $0x7f8] sm:$0xff]
    %v299 = vld [vmem:[%s2] sm:$0x1]
    %vm300 = vcmask 72704
    %301 = vst.msk [vmem:[#allocation2] sm:$0xff] %vm300, 0.0
    %302 = vst.msk [vmem:[#allocation2 + $0x8] sm:$0xff] %vm300, 0.0
    %303 = vst.msk [vmem:[#allocation2 + $0x10] sm:$0xff] %vm300, 0.0
    %304 = vst.msk [vmem:[#allocation2 + $0x18] sm:$0xff] %vm300, 0.0
    %305 = vst.msk [vmem:[#allocation2 + $0x20] sm:$0xff] %vm300, 0.0
    %306 = vst.msk [vmem:[#allocation2 + $0x28] sm:$0xff] %vm300, 0.0
    %307 = vst.msk [vmem:[#allocation2 + $0x30] sm:$0xff] %vm300, 0.0
    %308 = vst.msk [vmem:[#allocation2 + $0x38] sm:$0xff] %vm300, 0.0
    %309 = vst.msk [vmem:[#allocation2 + $0x40] sm:$0xff] %vm300, 0.0
    %310 = vst.msk [vmem:[#allocation2 + $0x48] sm:$0xff] %vm300, 0.0
    %311 = vst.msk [vmem:[#allocation2 + $0x50] sm:$0xff] %vm300, 0.0
    %312 = vst.msk [vmem:[#allocation2 + $0x58] sm:$0xff] %vm300, 0.0
    %313 = vst.msk [vmem:[#allocation2 + $0x60] sm:$0xff] %vm300, 0.0
    %314 = vst.msk [vmem:[#allocation2 + $0x68] sm:$0xff] %vm300, 0.0
    %315 = vst.msk [vmem:[#allocation2 + $0x70] sm:$0xff] %vm300, 0.0
    %316 = vst.msk [vmem:[#allocation2 + $0x78] sm:$0xff] %vm300, 0.0
    %s317 = scalar_lea.vmem [#allocation2], 2176
    %318 = vst.msk [vmem:[%s317] sm:$0xff] %vm300, 0.0
    %319 = vst.msk [vmem:[%s317 + $0x8] sm:$0xff] %vm300, 0.0
    %320 = vst.msk [vmem:[%s317 + $0x10] sm:$0xff] %vm300, 0.0
    %321 = vst.msk [vmem:[%s317 + $0x18] sm:$0xff] %vm300, 0.0
    %322 = vst.msk [vmem:[%s317 + $0x20] sm:$0xff] %vm300, 0.0
    %323 = vst.msk [vmem:[%s317 + $0x28] sm:$0xff] %vm300, 0.0
    %324 = vst.msk [vmem:[%s317 + $0x30] sm:$0xff] %vm300, 0.0
    %325 = vst.msk [vmem:[%s317 + $0x38] sm:$0xff] %vm300, 0.0
    %326 = vst.msk [vmem:[%s317 + $0x40] sm:$0xff] %vm300, 0.0
    %327 = vst.msk [vmem:[%s317 + $0x48] sm:$0xff] %vm300, 0.0
    %328 = vst.msk [vmem:[%s317 + $0x50] sm:$0xff] %vm300, 0.0
    %329 = vst.msk [vmem:[%s317 + $0x58] sm:$0xff] %vm300, 0.0
    %330 = vst.msk [vmem:[%s317 + $0x60] sm:$0xff] %vm300, 0.0
    %331 = vst.msk [vmem:[%s317 + $0x68] sm:$0xff] %vm300, 0.0
    %332 = vst.msk [vmem:[%s317 + $0x70] sm:$0xff] %vm300, 0.0
    %333 = vst.msk [vmem:[%s317 + $0x78] sm:$0xff] %vm300, 0.0
    %s334 = scalar_lea.vmem [#allocation2], 128
    %vm335 = vcmask 23552
    %336 = vst.msk [vmem:[%s334] sm:$0xff] %vm335, 0.0
    %337 = vst.msk [vmem:[%s334 + $0x80] sm:$0xff] %vm335, 0.0
    %338 = vst.msk [vmem:[%s334 + $0x100] sm:$0xff] %vm335, 0.0
    %339 = vst.msk [vmem:[%s334 + $0x180] sm:$0xff] %vm335, 0.0
    %340 = vst.msk [vmem:[%s334 + $0x200] sm:$0xff] %vm335, 0.0
    %341 = vst.msk [vmem:[%s334 + $0x280] sm:$0xff] %vm335, 0.0
    %342 = vst.msk [vmem:[%s334 + $0x300] sm:$0xff] %vm335, 0.0
    %343 = vst.msk [vmem:[%s334 + $0x380] sm:$0xff] %vm335, 0.0
    %344 = vst.msk [vmem:[%s334 + $0x400] sm:$0xff] %vm335, 0.0
    %345 = vst.msk [vmem:[%s334 + $0x480] sm:$0xff] %vm335, 0.0
    %346 = vst.msk [vmem:[%s334 + $0x500] sm:$0xff] %vm335, 0.0
    %347 = vst.msk [vmem:[%s334 + $0x580] sm:$0xff] %vm335, 0.0
    %348 = vst.msk [vmem:[%s334 + $0x600] sm:$0xff] %vm335, 0.0
    %349 = vst.msk [vmem:[%s334 + $0x680] sm:$0xff] %vm335, 0.0
    %350 = vst.msk [vmem:[%s334 + $0x700] sm:$0xff] %vm335, 0.0
    %351 = vst.msk [vmem:[%s334 + $0x780] sm:$0xff] %vm335, 0.0
    %s352 = scalar_lea.vmem [#allocation2], 248
    %vm353 = vcmask 72752
    %354 = vst.msk [vmem:[%s352] sm:$0xff] %vm353, 0.0
    %355 = vst.msk [vmem:[%s352 + $0x80] sm:$0xff] %vm353, 0.0
    %356 = vst.msk [vmem:[%s352 + $0x100] sm:$0xff] %vm353, 0.0
    %357 = vst.msk [vmem:[%s352 + $0x180] sm:$0xff] %vm353, 0.0
    %358 = vst.msk [vmem:[%s352 + $0x200] sm:$0xff] %vm353, 0.0
    %359 = vst.msk [vmem:[%s352 + $0x280] sm:$0xff] %vm353, 0.0
    %360 = vst.msk [vmem:[%s352 + $0x300] sm:$0xff] %vm353, 0.0
    %361 = vst.msk [vmem:[%s352 + $0x380] sm:$0xff] %vm353, 0.0
    %362 = vst.msk [vmem:[%s352 + $0x400] sm:$0xff] %vm353, 0.0
    %363 = vst.msk [vmem:[%s352 + $0x480] sm:$0xff] %vm353, 0.0
    %364 = vst.msk [vmem:[%s352 + $0x500] sm:$0xff] %vm353, 0.0
    %365 = vst.msk [vmem:[%s352 + $0x580] sm:$0xff] %vm353, 0.0
    %366 = vst.msk [vmem:[%s352 + $0x600] sm:$0xff] %vm353, 0.0
    %367 = vst.msk [vmem:[%s352 + $0x680] sm:$0xff] %vm353, 0.0
    %368 = vst.msk [vmem:[%s352 + $0x700] sm:$0xff] %vm353, 0.0
    %369 = vst.msk [vmem:[%s352 + $0x780] sm:$0xff] %vm353, 0.0
    %s370 = scalar_lea.vmem [#allocation2], 136
    %371 = vst.msk [vmem:[%s370] sm:$0xff] %vm335, %v43
    %372 = vst.msk [vmem:[%s370 + $0x8] sm:$0xff] %vm335, %v44
    %373 = vst.msk [vmem:[%s370 + $0x10] sm:$0xff] %vm335, %v45
    %374 = vst.msk [vmem:[%s370 + $0x18] sm:$0xff] %vm335, %v46
    %375 = vst.msk [vmem:[%s370 + $0x20] sm:$0xff] %vm335, %v47
    %376 = vst.msk [vmem:[%s370 + $0x28] sm:$0xff] %vm335, %v48
    %377 = vst.msk [vmem:[%s370 + $0x30] sm:$0xff] %vm335, %v49
    %378 = vst.msk [vmem:[%s370 + $0x38] sm:$0xff] %vm335, %v50
    %379 = vst.msk [vmem:[%s370 + $0x40] sm:$0xff] %vm335, %v51
    %380 = vst.msk [vmem:[%s370 + $0x48] sm:$0xff] %vm335, %v52
    %381 = vst.msk [vmem:[%s370 + $0x50] sm:$0xff] %vm335, %v53
    %382 = vst.msk [vmem:[%s370 + $0x58] sm:$0xff] %vm335, %v54
    %383 = vst.msk [vmem:[%s370 + $0x60] sm:$0xff] %vm335, %v55
    %384 = vst.msk [vmem:[%s370 + $0x68] sm:$0xff] %vm335, %v56
    %385 = vst.msk [vmem:[%s370 + $0x70] sm:$0xff] %vm335, %v57
    %386 = vst.msk [vmem:[%s370 + $0x80] sm:$0xff] %vm335, %v59
    %387 = vst.msk [vmem:[%s370 + $0x88] sm:$0xff] %vm335, %v60
    %388 = vst.msk [vmem:[%s370 + $0x90] sm:$0xff] %vm335, %v61
    %389 = vst.msk [vmem:[%s370 + $0x98] sm:$0xff] %vm335, %v62
    %390 = vst.msk [vmem:[%s370 + $0xa0] sm:$0xff] %vm335, %v63
    %391 = vst.msk [vmem:[%s370 + $0xa8] sm:$0xff] %vm335, %v64
    %392 = vst.msk [vmem:[%s370 + $0xb0] sm:$0xff] %vm335, %v65
    %393 = vst.msk [vmem:[%s370 + $0xb8] sm:$0xff] %vm335, %v66
    %394 = vst.msk [vmem:[%s370 + $0xc0] sm:$0xff] %vm335, %v67
    %395 = vst.msk [vmem:[%s370 + $0xc8] sm:$0xff] %vm335, %v68
    %396 = vst.msk [vmem:[%s370 + $0xd0] sm:$0xff] %vm335, %v69
    %397 = vst.msk [vmem:[%s370 + $0xd8] sm:$0xff] %vm335, %v70
    %398 = vst.msk [vmem:[%s370 + $0xe0] sm:$0xff] %vm335, %v71
    %399 = vst.msk [vmem:[%s370 + $0xe8] sm:$0xff] %vm335, %v72
    %400 = vst.msk [vmem:[%s370 + $0xf0] sm:$0xff] %vm335, %v73
    %401 = vst.msk [vmem:[%s370 + $0x100] sm:$0xff] %vm335, %v75
    %402 = vst.msk [vmem:[%s370 + $0x108] sm:$0xff] %vm335, %v76
    %403 = vst.msk [vmem:[%s370 + $0x110] sm:$0xff] %vm335, %v77
    %404 = vst.msk [vmem:[%s370 + $0x118] sm:$0xff] %vm335, %v78
    %405 = vst.msk [vmem:[%s370 + $0x120] sm:$0xff] %vm335, %v79
    %406 = vst.msk [vmem:[%s370 + $0x128] sm:$0xff] %vm335, %v80
    %407 = vst.msk [vmem:[%s370 + $0x130] sm:$0xff] %vm335, %v81
    %408 = vst.msk [vmem:[%s370 + $0x138] sm:$0xff] %vm335, %v82
    %409 = vst.msk [vmem:[%s370 + $0x140] sm:$0xff] %vm335, %v83
    %410 = vst.msk [vmem:[%s370 + $0x148] sm:$0xff] %vm335, %v84
    %411 = vst.msk [vmem:[%s370 + $0x150] sm:$0xff] %vm335, %v85
    %412 = vst.msk [vmem:[%s370 + $0x158] sm:$0xff] %vm335, %v86
    %413 = vst.msk [vmem:[%s370 + $0x160] sm:$0xff] %vm335, %v87
    %414 = vst.msk [vmem:[%s370 + $0x168] sm:$0xff] %vm335, %v88
    %415 = vst.msk [vmem:[%s370 + $0x170] sm:$0xff] %vm335, %v89
    %416 = vst.msk [vmem:[%s370 + $0x180] sm:$0xff] %vm335, %v91
    %417 = vst.msk [vmem:[%s370 + $0x188] sm:$0xff] %vm335, %v92
    %418 = vst.msk [vmem:[%s370 + $0x190] sm:$0xff] %vm335, %v93
    %419 = vst.msk [vmem:[%s370 + $0x198] sm:$0xff] %vm335, %v94
    %420 = vst.msk [vmem:[%s370 + $0x1a0] sm:$0xff] %vm335, %v95
    %421 = vst.msk [vmem:[%s370 + $0x1a8] sm:$0xff] %vm335, %v96
    %422 = vst.msk [vmem:[%s370 + $0x1b0] sm:$0xff] %vm335, %v97
    %423 = vst.msk [vmem:[%s370 + $0x1b8] sm:$0xff] %vm335, %v98
    %424 = vst.msk [vmem:[%s370 + $0x1c0] sm:$0xff] %vm335, %v99
    %425 = vst.msk [vmem:[%s370 + $0x1c8] sm:$0xff] %vm335, %v100
    %426 = vst.msk [vmem:[%s370 + $0x1d0] sm:$0xff] %vm335, %v101
    %427 = vst.msk [vmem:[%s370 + $0x1d8] sm:$0xff] %vm335, %v102
    %428 = vst.msk [vmem:[%s370 + $0x1e0] sm:$0xff] %vm335, %v103
    %429 = vst.msk [vmem:[%s370 + $0x1e8] sm:$0xff] %vm335, %v104
    %430 = vst.msk [vmem:[%s370 + $0x1f0] sm:$0xff] %vm335, %v105
    %431 = vst.msk [vmem:[%s370 + $0x200] sm:$0xff] %vm335, %v107
    %432 = vst.msk [vmem:[%s370 + $0x208] sm:$0xff] %vm335, %v108
    %433 = vst.msk [vmem:[%s370 + $0x210] sm:$0xff] %vm335, %v109
    %434 = vst.msk [vmem:[%s370 + $0x218] sm:$0xff] %vm335, %v110
    %435 = vst.msk [vmem:[%s370 + $0x220] sm:$0xff] %vm335, %v111
    %436 = vst.msk [vmem:[%s370 + $0x228] sm:$0xff] %vm335, %v112
    %437 = vst.msk [vmem:[%s370 + $0x230] sm:$0xff] %vm335, %v113
    %438 = vst.msk [vmem:[%s370 + $0x238] sm:$0xff] %vm335, %v114
    %439 = vst.msk [vmem:[%s370 + $0x240] sm:$0xff] %vm335, %v115
    %440 = vst.msk [vmem:[%s370 + $0x248] sm:$0xff] %vm335, %v116
    %441 = vst.msk [vmem:[%s370 + $0x250] sm:$0xff] %vm335, %v117
    %442 = vst.msk [vmem:[%s370 + $0x258] sm:$0xff] %vm335, %v118
    %443 = vst.msk [vmem:[%s370 + $0x260] sm:$0xff] %vm335, %v119
    %444 = vst.msk [vmem:[%s370 + $0x268] sm:$0xff] %vm335, %v120
    %445 = vst.msk [vmem:[%s370 + $0x270] sm:$0xff] %vm335, %v121
    %446 = vst.msk [vmem:[%s370 + $0x280] sm:$0xff] %vm335, %v123
    %447 = vst.msk [vmem:[%s370 + $0x288] sm:$0xff] %vm335, %v124
    %448 = vst.msk [vmem:[%s370 + $0x290] sm:$0xff] %vm335, %v125
    %449 = vst.msk [vmem:[%s370 + $0x298] sm:$0xff] %vm335, %v126
    %450 = vst.msk [vmem:[%s370 + $0x2a0] sm:$0xff] %vm335, %v127
    %451 = vst.msk [vmem:[%s370 + $0x2a8] sm:$0xff] %vm335, %v128
    %452 = vst.msk [vmem:[%s370 + $0x2b0] sm:$0xff] %vm335, %v129
    %453 = vst.msk [vmem:[%s370 + $0x2b8] sm:$0xff] %vm335, %v130
    %454 = vst.msk [vmem:[%s370 + $0x2c0] sm:$0xff] %vm335, %v131
    %455 = vst.msk [vmem:[%s370 + $0x2c8] sm:$0xff] %vm335, %v132
    %456 = vst.msk [vmem:[%s370 + $0x2d0] sm:$0xff] %vm335, %v133
    %457 = vst.msk [vmem:[%s370 + $0x2d8] sm:$0xff] %vm335, %v134
    %458 = vst.msk [vmem:[%s370 + $0x2e0] sm:$0xff] %vm335, %v135
    %459 = vst.msk [vmem:[%s370 + $0x2e8] sm:$0xff] %vm335, %v136
    %460 = vst.msk [vmem:[%s370 + $0x2f0] sm:$0xff] %vm335, %v137
    %461 = vst.msk [vmem:[%s370 + $0x300] sm:$0xff] %vm335, %v139
    %462 = vst.msk [vmem:[%s370 + $0x308] sm:$0xff] %vm335, %v140
    %463 = vst.msk [vmem:[%s370 + $0x310] sm:$0xff] %vm335, %v141
    %464 = vst.msk [vmem:[%s370 + $0x318] sm:$0xff] %vm335, %v142
    %465 = vst.msk [vmem:[%s370 + $0x320] sm:$0xff] %vm335, %v143
    %466 = vst.msk [vmem:[%s370 + $0x328] sm:$0xff] %vm335, %v144
    %467 = vst.msk [vmem:[%s370 + $0x330] sm:$0xff] %vm335, %v145
    %468 = vst.msk [vmem:[%s370 + $0x338] sm:$0xff] %vm335, %v146
    %469 = vst.msk [vmem:[%s370 + $0x340] sm:$0xff] %vm335, %v147
    %470 = vst.msk [vmem:[%s370 + $0x348] sm:$0xff] %vm335, %v148
    %471 = vst.msk [vmem:[%s370 + $0x350] sm:$0xff] %vm335, %v149
    %472 = vst.msk [vmem:[%s370 + $0x358] sm:$0xff] %vm335, %v150
    %473 = vst.msk [vmem:[%s370 + $0x360] sm:$0xff] %vm335, %v151
    %474 = vst.msk [vmem:[%s370 + $0x368] sm:$0xff] %vm335, %v152
    %475 = vst.msk [vmem:[%s370 + $0x370] sm:$0xff] %vm335, %v153
    %476 = vst.msk [vmem:[%s370 + $0x380] sm:$0xff] %vm335, %v155
    %477 = vst.msk [vmem:[%s370 + $0x388] sm:$0xff] %vm335, %v156
    %478 = vst.msk [vmem:[%s370 + $0x390] sm:$0xff] %vm335, %v157
    %479 = vst.msk [vmem:[%s370 + $0x398] sm:$0xff] %vm335, %v158
    %480 = vst.msk [vmem:[%s370 + $0x3a0] sm:$0xff] %vm335, %v159
    %481 = vst.msk [vmem:[%s370 + $0x3a8] sm:$0xff] %vm335, %v160
    %482 = vst.msk [vmem:[%s370 + $0x3b0] sm:$0xff] %vm335, %v161
    %483 = vst.msk [vmem:[%s370 + $0x3b8] sm:$0xff] %vm335, %v162
    %484 = vst.msk [vmem:[%s370 + $0x3c0] sm:$0xff] %vm335, %v163
    %485 = vst.msk [vmem:[%s370 + $0x3c8] sm:$0xff] %vm335, %v164
    %486 = vst.msk [vmem:[%s370 + $0x3d0] sm:$0xff] %vm335, %v165
    %487 = vst.msk [vmem:[%s370 + $0x3d8] sm:$0xff] %vm335, %v166
    %488 = vst.msk [vmem:[%s370 + $0x3e0] sm:$0xff] %vm335, %v167
    %489 = vst.msk [vmem:[%s370 + $0x3e8] sm:$0xff] %vm335, %v168
    %490 = vst.msk [vmem:[%s370 + $0x3f0] sm:$0xff] %vm335, %v169
    %491 = vst.msk [vmem:[%s370 + $0x400] sm:$0xff] %vm335, %v171
    %492 = vst.msk [vmem:[%s370 + $0x408] sm:$0xff] %vm335, %v172
    %493 = vst.msk [vmem:[%s370 + $0x410] sm:$0xff] %vm335, %v173
    %494 = vst.msk [vmem:[%s370 + $0x418] sm:$0xff] %vm335, %v174
    %495 = vst.msk [vmem:[%s370 + $0x420] sm:$0xff] %vm335, %v175
    %496 = vst.msk [vmem:[%s370 + $0x428] sm:$0xff] %vm335, %v176
    %497 = vst.msk [vmem:[%s370 + $0x430] sm:$0xff] %vm335, %v177
    %498 = vst.msk [vmem:[%s370 + $0x438] sm:$0xff] %vm335, %v178
    %499 = vst.msk [vmem:[%s370 + $0x440] sm:$0xff] %vm335, %v179
    %500 = vst.msk [vmem:[%s370 + $0x448] sm:$0xff] %vm335, %v180
    %501 = vst.msk [vmem:[%s370 + $0x450] sm:$0xff] %vm335, %v181
    %502 = vst.msk [vmem:[%s370 + $0x458] sm:$0xff] %vm335, %v182
    %503 = vst.msk [vmem:[%s370 + $0x460] sm:$0xff] %vm335, %v183
    %504 = vst.msk [vmem:[%s370 + $0x468] sm:$0xff] %vm335, %v184
    %505 = vst.msk [vmem:[%s370 + $0x470] sm:$0xff] %vm335, %v185
    %506 = vst.msk [vmem:[%s370 + $0x480] sm:$0xff] %vm335, %v187
    %507 = vst.msk [vmem:[%s370 + $0x488] sm:$0xff] %vm335, %v188
    %508 = vst.msk [vmem:[%s370 + $0x490] sm:$0xff] %vm335, %v189
    %509 = vst.msk [vmem:[%s370 + $0x498] sm:$0xff] %vm335, %v190
    %510 = vst.msk [vmem:[%s370 + $0x4a0] sm:$0xff] %vm335, %v191
    %511 = vst.msk [vmem:[%s370 + $0x4a8] sm:$0xff] %vm335, %v192
    %512 = vst.msk [vmem:[%s370 + $0x4b0] sm:$0xff] %vm335, %v193
    %513 = vst.msk [vmem:[%s370 + $0x4b8] sm:$0xff] %vm335, %v194
    %514 = vst.msk [vmem:[%s370 + $0x4c0] sm:$0xff] %vm335, %v195
    %515 = vst.msk [vmem:[%s370 + $0x4c8] sm:$0xff] %vm335, %v196
    %516 = vst.msk [vmem:[%s370 + $0x4d0] sm:$0xff] %vm335, %v197
    %517 = vst.msk [vmem:[%s370 + $0x4d8] sm:$0xff] %vm335, %v198
    %518 = vst.msk [vmem:[%s370 + $0x4e0] sm:$0xff] %vm335, %v199
    %519 = vst.msk [vmem:[%s370 + $0x4e8] sm:$0xff] %vm335, %v200
    %520 = vst.msk [vmem:[%s370 + $0x4f0] sm:$0xff] %vm335, %v201
    %521 = vst.msk [vmem:[%s370 + $0x500] sm:$0xff] %vm335, %v203
    %522 = vst.msk [vmem:[%s370 + $0x508] sm:$0xff] %vm335, %v204
    %523 = vst.msk [vmem:[%s370 + $0x510] sm:$0xff] %vm335, %v205
    %524 = vst.msk [vmem:[%s370 + $0x518] sm:$0xff] %vm335, %v206
    %525 = vst.msk [vmem:[%s370 + $0x520] sm:$0xff] %vm335, %v207
    %526 = vst.msk [vmem:[%s370 + $0x528] sm:$0xff] %vm335, %v208
    %527 = vst.msk [vmem:[%s370 + $0x530] sm:$0xff] %vm335, %v209
    %528 = vst.msk [vmem:[%s370 + $0x538] sm:$0xff] %vm335, %v210
    %529 = vst.msk [vmem:[%s370 + $0x540] sm:$0xff] %vm335, %v211
    %530 = vst.msk [vmem:[%s370 + $0x548] sm:$0xff] %vm335, %v212
    %531 = vst.msk [vmem:[%s370 + $0x550] sm:$0xff] %vm335, %v213
    %532 = vst.msk [vmem:[%s370 + $0x558] sm:$0xff] %vm335, %v214
    %533 = vst.msk [vmem:[%s370 + $0x560] sm:$0xff] %vm335, %v215
    %534 = vst.msk [vmem:[%s370 + $0x568] sm:$0xff] %vm335, %v216
    %535 = vst.msk [vmem:[%s370 + $0x570] sm:$0xff] %vm335, %v217
    %536 = vst.msk [vmem:[%s370 + $0x580] sm:$0xff] %vm335, %v219
    %537 = vst.msk [vmem:[%s370 + $0x588] sm:$0xff] %vm335, %v220
    %538 = vst.msk [vmem:[%s370 + $0x590] sm:$0xff] %vm335, %v221
    %539 = vst.msk [vmem:[%s370 + $0x598] sm:$0xff] %vm335, %v222
    %540 = vst.msk [vmem:[%s370 + $0x5a0] sm:$0xff] %vm335, %v223
    %541 = vst.msk [vmem:[%s370 + $0x5a8] sm:$0xff] %vm335, %v224
    %542 = vst.msk [vmem:[%s370 + $0x5b0] sm:$0xff] %vm335, %v225
    %543 = vst.msk [vmem:[%s370 + $0x5b8] sm:$0xff] %vm335, %v226
    %544 = vst.msk [vmem:[%s370 + $0x5c0] sm:$0xff] %vm335, %v227
    %545 = vst.msk [vmem:[%s370 + $0x5c8] sm:$0xff] %vm335, %v228
    %546 = vst.msk [vmem:[%s370 + $0x5d0] sm:$0xff] %vm335, %v229
    %547 = vst.msk [vmem:[%s370 + $0x5d8] sm:$0xff] %vm335, %v230
    %548 = vst.msk [vmem:[%s370 + $0x5e0] sm:$0xff] %vm335, %v231
    %549 = vst.msk [vmem:[%s370 + $0x5e8] sm:$0xff] %vm335, %v232
    %550 = vst.msk [vmem:[%s370 + $0x5f0] sm:$0xff] %vm335, %v233
    %551 = vst.msk [vmem:[%s370 + $0x600] sm:$0xff] %vm335, %v235
    %552 = vst.msk [vmem:[%s370 + $0x608] sm:$0xff] %vm335, %v236
    %553 = vst.msk [vmem:[%s370 + $0x610] sm:$0xff] %vm335, %v237
    %554 = vst.msk [vmem:[%s370 + $0x618] sm:$0xff] %vm335, %v238
    %555 = vst.msk [vmem:[%s370 + $0x620] sm:$0xff] %vm335, %v239
    %556 = vst.msk [vmem:[%s370 + $0x628] sm:$0xff] %vm335, %v240
    %557 = vst.msk [vmem:[%s370 + $0x630] sm:$0xff] %vm335, %v241
    %558 = vst.msk [vmem:[%s370 + $0x638] sm:$0xff] %vm335, %v242
    %559 = vst.msk [vmem:[%s370 + $0x640] sm:$0xff] %vm335, %v243
    %560 = vst.msk [vmem:[%s370 + $0x648] sm:$0xff] %vm335, %v244
    %561 = vst.msk [vmem:[%s370 + $0x650] sm:$0xff] %vm335, %v245
    %562 = vst.msk [vmem:[%s370 + $0x658] sm:$0xff] %vm335, %v246
    %563 = vst.msk [vmem:[%s370 + $0x660] sm:$0xff] %vm335, %v247
    %564 = vst.msk [vmem:[%s370 + $0x668] sm:$0xff] %vm335, %v248
    %565 = vst.msk [vmem:[%s370 + $0x670] sm:$0xff] %vm335, %v249
    %566 = vst.msk [vmem:[%s370 + $0x680] sm:$0xff] %vm335, %v251
    %567 = vst.msk [vmem:[%s370 + $0x688] sm:$0xff] %vm335, %v252
    %568 = vst.msk [vmem:[%s370 + $0x690] sm:$0xff] %vm335, %v253
    %569 = vst.msk [vmem:[%s370 + $0x698] sm:$0xff] %vm335, %v254
    %570 = vst.msk [vmem:[%s370 + $0x6a0] sm:$0xff] %vm335, %v255
    %571 = vst.msk [vmem:[%s370 + $0x6a8] sm:$0xff] %vm335, %v256
    %572 = vst.msk [vmem:[%s370 + $0x6b0] sm:$0xff] %vm335, %v257
    %573 = vst.msk [vmem:[%s370 + $0x6b8] sm:$0xff] %vm335, %v258
    %574 = vst.msk [vmem:[%s370 + $0x6c0] sm:$0xff] %vm335, %v259
    %575 = vst.msk [vmem:[%s370 + $0x6c8] sm:$0xff] %vm335, %v260
    %576 = vst.msk [vmem:[%s370 + $0x6d0] sm:$0xff] %vm335, %v261
    %577 = vst.msk [vmem:[%s370 + $0x6d8] sm:$0xff] %vm335, %v262
    %578 = vst.msk [vmem:[%s370 + $0x6e0] sm:$0xff] %vm335, %v263
    %579 = vst.msk [vmem:[%s370 + $0x6e8] sm:$0xff] %vm335, %v264
    %580 = vst.msk [vmem:[%s370 + $0x6f0] sm:$0xff] %vm335, %v265
    %581 = vst.msk [vmem:[%s370 + $0x700] sm:$0xff] %vm335, %v267
    %582 = vst.msk [vmem:[%s370 + $0x708] sm:$0xff] %vm335, %v268
    %583 = vst.msk [vmem:[%s370 + $0x710] sm:$0xff] %vm335, %v269
    %584 = vst.msk [vmem:[%s370 + $0x718] sm:$0xff] %vm335, %v270
    %585 = vst.msk [vmem:[%s370 + $0x720] sm:$0xff] %vm335, %v271
    %586 = vst.msk [vmem:[%s370 + $0x728] sm:$0xff] %vm335, %v272
    %587 = vst.msk [vmem:[%s370 + $0x730] sm:$0xff] %vm335, %v273
    %588 = vst.msk [vmem:[%s370 + $0x738] sm:$0xff] %vm335, %v274
    %589 = vst.msk [vmem:[%s370 + $0x740] sm:$0xff] %vm335, %v275
    %590 = vst.msk [vmem:[%s370 + $0x748] sm:$0xff] %vm335, %v276
    %591 = vst.msk [vmem:[%s370 + $0x750] sm:$0xff] %vm335, %v277
    %592 = vst.msk [vmem:[%s370 + $0x758] sm:$0xff] %vm335, %v278
    %593 = vst.msk [vmem:[%s370 + $0x760] sm:$0xff] %vm335, %v279
    %594 = vst.msk [vmem:[%s370 + $0x768] sm:$0xff] %vm335, %v280
    %595 = vst.msk [vmem:[%s370 + $0x770] sm:$0xff] %vm335, %v281
    %596 = vst.msk [vmem:[%s370 + $0x780] sm:$0xff] %vm335, %v283
    %597 = vst.msk [vmem:[%s370 + $0x788] sm:$0xff] %vm335, %v284
    %598 = vst.msk [vmem:[%s370 + $0x790] sm:$0xff] %vm335, %v285
    %599 = vst.msk [vmem:[%s370 + $0x798] sm:$0xff] %vm335, %v286
    %600 = vst.msk [vmem:[%s370 + $0x7a0] sm:$0xff] %vm335, %v287
    %601 = vst.msk [vmem:[%s370 + $0x7a8] sm:$0xff] %vm335, %v288
    %602 = vst.msk [vmem:[%s370 + $0x7b0] sm:$0xff] %vm335, %v289
    %603 = vst.msk [vmem:[%s370 + $0x7b8] sm:$0xff] %vm335, %v290
    %604 = vst.msk [vmem:[%s370 + $0x7c0] sm:$0xff] %vm335, %v291
    %605 = vst.msk [vmem:[%s370 + $0x7c8] sm:$0xff] %vm335, %v292
    %606 = vst.msk [vmem:[%s370 + $0x7d0] sm:$0xff] %vm335, %v293
    %607 = vst.msk [vmem:[%s370 + $0x7d8] sm:$0xff] %vm335, %v294
    %608 = vst.msk [vmem:[%s370 + $0x7e0] sm:$0xff] %vm335, %v295
    %609 = vst.msk [vmem:[%s370 + $0x7e8] sm:$0xff] %vm335, %v296
    %610 = vst.msk [vmem:[%s370 + $0x7f0] sm:$0xff] %vm335, %v297
    %867 = vrot.lane.b32.xlu0 %v43, 3
    %v868 = vpop.permute.xlu0 %867
    %869 = vrot.lane.b32.xlu0 %v44, 3
    %v870 = vpop.permute.xlu0 %869
    %871 = vrot.lane.b32.xlu0 %v45, 3
    %v872 = vpop.permute.xlu0 %871
    %873 = vrot.lane.b32.xlu0 %v46, 3
    %v874 = vpop.permute.xlu0 %873
    %875 = vrot.lane.b32.xlu0 %v47, 3
    %v876 = vpop.permute.xlu0 %875
    %877 = vrot.lane.b32.xlu0 %v48, 3
    %v878 = vpop.permute.xlu0 %877
    %879 = vrot.lane.b32.xlu0 %v49, 3
    %v880 = vpop.permute.xlu0 %879
    %881 = vrot.lane.b32.xlu0 %v50, 3
    %v882 = vpop.permute.xlu0 %881
    %883 = vrot.lane.b32.xlu0 %v51, 3
    %v884 = vpop.permute.xlu0 %883
    %885 = vrot.lane.b32.xlu0 %v52, 3
    %v886 = vpop.permute.xlu0 %885
    %887 = vrot.lane.b32.xlu0 %v53, 3
    %v888 = vpop.permute.xlu0 %887
    %889 = vrot.lane.b32.xlu0 %v54, 3
    %v890 = vpop.permute.xlu0 %889
    %891 = vrot.lane.b32.xlu0 %v55, 3
    %v892 = vpop.permute.xlu0 %891
    %893 = vrot.lane.b32.xlu0 %v56, 3
    %v894 = vpop.permute.xlu0 %893
    %895 = vrot.lane.b32.xlu0 %v57, 3
    %v896 = vpop.permute.xlu0 %895
    %897 = vrot.lane.b32.xlu0 %v58, 3
    %v898 = vpop.permute.xlu0 %897
    %899 = vrot.lane.b32.xlu0 %v59, 3
    %v900 = vpop.permute.xlu0 %899
    %901 = vrot.lane.b32.xlu0 %v60, 3
    %v902 = vpop.permute.xlu0 %901
    %903 = vrot.lane.b32.xlu0 %v61, 3
    %v904 = vpop.permute.xlu0 %903
    %905 = vrot.lane.b32.xlu0 %v62, 3
    %v906 = vpop.permute.xlu0 %905
    %907 = vrot.lane.b32.xlu0 %v63, 3
    %v908 = vpop.permute.xlu0 %907
    %909 = vrot.lane.b32.xlu0 %v64, 3
    %v910 = vpop.permute.xlu0 %909
    %911 = vrot.lane.b32.xlu0 %v65, 3
    %v912 = vpop.permute.xlu0 %911
    %913 = vrot.lane.b32.xlu0 %v66, 3
    %v914 = vpop.permute.xlu0 %913
    %915 = vrot.lane.b32.xlu0 %v67, 3
    %v916 = vpop.permute.xlu0 %915
    %917 = vrot.lane.b32.xlu0 %v68, 3
    %v918 = vpop.permute.xlu0 %917
    %919 = vrot.lane.b32.xlu0 %v69, 3
    %v920 = vpop.permute.xlu0 %919
    %921 = vrot.lane.b32.xlu0 %v70, 3
    %v922 = vpop.permute.xlu0 %921
    %923 = vrot.lane.b32.xlu0 %v71, 3
    %v924 = vpop.permute.xlu0 %923
    %925 = vrot.lane.b32.xlu0 %v72, 3
    %v926 = vpop.permute.xlu0 %925
    %927 = vrot.lane.b32.xlu0 %v73, 3
    %v928 = vpop.permute.xlu0 %927
    %929 = vrot.lane.b32.xlu0 %v74, 3
    %v930 = vpop.permute.xlu0 %929
    %931 = vrot.lane.b32.xlu0 %v75, 3
    %v932 = vpop.permute.xlu0 %931
    %933 = vrot.lane.b32.xlu0 %v76, 3
    %v934 = vpop.permute.xlu0 %933
    %935 = vrot.lane.b32.xlu0 %v77, 3
    %v936 = vpop.permute.xlu0 %935
    %937 = vrot.lane.b32.xlu0 %v78, 3
    %v938 = vpop.permute.xlu0 %937
    %939 = vrot.lane.b32.xlu0 %v79, 3
    %v940 = vpop.permute.xlu0 %939
    %941 = vrot.lane.b32.xlu0 %v80, 3
    %v942 = vpop.permute.xlu0 %941
    %943 = vrot.lane.b32.xlu0 %v81, 3
    %v944 = vpop.permute.xlu0 %943
    %945 = vrot.lane.b32.xlu0 %v82, 3
    %v946 = vpop.permute.xlu0 %945
    %947 = vrot.lane.b32.xlu0 %v83, 3
    %v948 = vpop.permute.xlu0 %947
    %949 = vrot.lane.b32.xlu0 %v84, 3
    %v950 = vpop.permute.xlu0 %949
    %951 = vrot.lane.b32.xlu0 %v85, 3
    %v952 = vpop.permute.xlu0 %951
    %953 = vrot.lane.b32.xlu0 %v86, 3
    %v954 = vpop.permute.xlu0 %953
    %955 = vrot.lane.b32.xlu0 %v87, 3
    %v956 = vpop.permute.xlu0 %955
    %957 = vrot.lane.b32.xlu0 %v88, 3
    %v958 = vpop.permute.xlu0 %957
    %959 = vrot.lane.b32.xlu0 %v89, 3
    %v960 = vpop.permute.xlu0 %959
    %961 = vrot.lane.b32.xlu0 %v90, 3
    %v962 = vpop.permute.xlu0 %961
    %963 = vrot.lane.b32.xlu0 %v91, 3
    %v964 = vpop.permute.xlu0 %963
    %965 = vrot.lane.b32.xlu0 %v92, 3
    %v966 = vpop.permute.xlu0 %965
    %967 = vrot.lane.b32.xlu0 %v93, 3
    %v968 = vpop.permute.xlu0 %967
    %969 = vrot.lane.b32.xlu0 %v94, 3
    %v970 = vpop.permute.xlu0 %969
    %971 = vrot.lane.b32.xlu0 %v95, 3
    %v972 = vpop.permute.xlu0 %971
    %973 = vrot.lane.b32.xlu0 %v96, 3
    %v974 = vpop.permute.xlu0 %973
    %975 = vrot.lane.b32.xlu0 %v97, 3
    %v976 = vpop.permute.xlu0 %975
    %977 = vrot.lane.b32.xlu0 %v98, 3
    %v978 = vpop.permute.xlu0 %977
    %979 = vrot.lane.b32.xlu0 %v99, 3
    %v980 = vpop.permute.xlu0 %979
    %981 = vrot.lane.b32.xlu0 %v100, 3
    %v982 = vpop.permute.xlu0 %981
    %983 = vrot.lane.b32.xlu0 %v101, 3
    %v984 = vpop.permute.xlu0 %983
    %985 = vrot.lane.b32.xlu0 %v102, 3
    %v986 = vpop.permute.xlu0 %985
    %987 = vrot.lane.b32.xlu0 %v103, 3
    %v988 = vpop.permute.xlu0 %987
    %989 = vrot.lane.b32.xlu0 %v104, 3
    %v990 = vpop.permute.xlu0 %989
    %991 = vrot.lane.b32.xlu0 %v105, 3
    %v992 = vpop.permute.xlu0 %991
    %993 = vrot.lane.b32.xlu0 %v106, 3
    %v994 = vpop.permute.xlu0 %993
    %995 = vrot.lane.b32.xlu0 %v107, 3
    %v996 = vpop.permute.xlu0 %995
    %997 = vrot.lane.b32.xlu0 %v108, 3
    %v998 = vpop.permute.xlu0 %997
    %999 = vrot.lane.b32.xlu0 %v109, 3
    %v1000 = vpop.permute.xlu0 %999
    %1001 = vrot.lane.b32.xlu0 %v110, 3
    %v1002 = vpop.permute.xlu0 %1001
    %1003 = vrot.lane.b32.xlu0 %v111, 3
    %v1004 = vpop.permute.xlu0 %1003
    %1005 = vrot.lane.b32.xlu0 %v112, 3
    %v1006 = vpop.permute.xlu0 %1005
    %1007 = vrot.lane.b32.xlu0 %v113, 3
    %v1008 = vpop.permute.xlu0 %1007
    %1009 = vrot.lane.b32.xlu0 %v114, 3
    %v1010 = vpop.permute.xlu0 %1009
    %1011 = vrot.lane.b32.xlu0 %v115, 3
    %v1012 = vpop.permute.xlu0 %1011
    %1013 = vrot.lane.b32.xlu0 %v116, 3
    %v1014 = vpop.permute.xlu0 %1013
    %1015 = vrot.lane.b32.xlu0 %v117, 3
    %v1016 = vpop.permute.xlu0 %1015
    %1017 = vrot.lane.b32.xlu0 %v118, 3
    %v1018 = vpop.permute.xlu0 %1017
    %1019 = vrot.lane.b32.xlu0 %v119, 3
    %v1020 = vpop.permute.xlu0 %1019
    %1021 = vrot.lane.b32.xlu0 %v120, 3
    %v1022 = vpop.permute.xlu0 %1021
    %1023 = vrot.lane.b32.xlu0 %v121, 3
    %v1024 = vpop.permute.xlu0 %1023
    %1025 = vrot.lane.b32.xlu0 %v122, 3
    %v1026 = vpop.permute.xlu0 %1025
    %1027 = vrot.lane.b32.xlu0 %v123, 3
    %v1028 = vpop.permute.xlu0 %1027
    %1029 = vrot.lane.b32.xlu0 %v124, 3
    %v1030 = vpop.permute.xlu0 %1029
    %1031 = vrot.lane.b32.xlu0 %v125, 3
    %v1032 = vpop.permute.xlu0 %1031
    %1033 = vrot.lane.b32.xlu0 %v126, 3
    %v1034 = vpop.permute.xlu0 %1033
    %1035 = vrot.lane.b32.xlu0 %v127, 3
    %v1036 = vpop.permute.xlu0 %1035
    %1037 = vrot.lane.b32.xlu0 %v128, 3
    %v1038 = vpop.permute.xlu0 %1037
    %1039 = vrot.lane.b32.xlu0 %v129, 3
    %v1040 = vpop.permute.xlu0 %1039
    %1041 = vrot.lane.b32.xlu0 %v130, 3
    %v1042 = vpop.permute.xlu0 %1041
    %1043 = vrot.lane.b32.xlu0 %v131, 3
    %v1044 = vpop.permute.xlu0 %1043
    %1045 = vrot.lane.b32.xlu0 %v132, 3
    %v1046 = vpop.permute.xlu0 %1045
    %1047 = vrot.lane.b32.xlu0 %v133, 3
    %v1048 = vpop.permute.xlu0 %1047
    %1049 = vrot.lane.b32.xlu0 %v134, 3
    %v1050 = vpop.permute.xlu0 %1049
    %1051 = vrot.lane.b32.xlu0 %v135, 3
    %v1052 = vpop.permute.xlu0 %1051
    %1053 = vrot.lane.b32.xlu0 %v136, 3
    %v1054 = vpop.permute.xlu0 %1053
    %1055 = vrot.lane.b32.xlu0 %v137, 3
    %v1056 = vpop.permute.xlu0 %1055
    %1057 = vrot.lane.b32.xlu0 %v138, 3
    %v1058 = vpop.permute.xlu0 %1057
    %1059 = vrot.lane.b32.xlu0 %v139, 3
    %v1060 = vpop.permute.xlu0 %1059
    %1061 = vrot.lane.b32.xlu0 %v140, 3
    %v1062 = vpop.permute.xlu0 %1061
    %1063 = vrot.lane.b32.xlu0 %v141, 3
    %v1064 = vpop.permute.xlu0 %1063
    %1065 = vrot.lane.b32.xlu0 %v142, 3
    %v1066 = vpop.permute.xlu0 %1065
    %1067 = vrot.lane.b32.xlu0 %v143, 3
    %v1068 = vpop.permute.xlu0 %1067
    %1069 = vrot.lane.b32.xlu0 %v144, 3
    %v1070 = vpop.permute.xlu0 %1069
    %1071 = vrot.lane.b32.xlu0 %v145, 3
    %v1072 = vpop.permute.xlu0 %1071
    %1073 = vrot.lane.b32.xlu0 %v146, 3
    %v1074 = vpop.permute.xlu0 %1073
    %1075 = vrot.lane.b32.xlu0 %v147, 3
    %v1076 = vpop.permute.xlu0 %1075
    %1077 = vrot.lane.b32.xlu0 %v148, 3
    %v1078 = vpop.permute.xlu0 %1077
    %1079 = vrot.lane.b32.xlu0 %v149, 3
    %v1080 = vpop.permute.xlu0 %1079
    %1081 = vrot.lane.b32.xlu0 %v150, 3
    %v1082 = vpop.permute.xlu0 %1081
    %1083 = vrot.lane.b32.xlu0 %v151, 3
    %v1084 = vpop.permute.xlu0 %1083
    %1085 = vrot.lane.b32.xlu0 %v152, 3
    %v1086 = vpop.permute.xlu0 %1085
    %1087 = vrot.lane.b32.xlu0 %v153, 3
    %v1088 = vpop.permute.xlu0 %1087
    %1089 = vrot.lane.b32.xlu0 %v154, 3
    %v1090 = vpop.permute.xlu0 %1089
    %1091 = vrot.lane.b32.xlu0 %v155, 3
    %v1092 = vpop.permute.xlu0 %1091
    %1093 = vrot.lane.b32.xlu0 %v156, 3
    %v1094 = vpop.permute.xlu0 %1093
    %1095 = vrot.lane.b32.xlu0 %v157, 3
    %v1096 = vpop.permute.xlu0 %1095
    %1097 = vrot.lane.b32.xlu0 %v158, 3
    %v1098 = vpop.permute.xlu0 %1097
    %1099 = vrot.lane.b32.xlu0 %v159, 3
    %v1100 = vpop.permute.xlu0 %1099
    %1101 = vrot.lane.b32.xlu0 %v160, 3
    %v1102 = vpop.permute.xlu0 %1101
    %1103 = vrot.lane.b32.xlu0 %v161, 3
    %v1104 = vpop.permute.xlu0 %1103
    %1105 = vrot.lane.b32.xlu0 %v162, 3
    %v1106 = vpop.permute.xlu0 %1105
    %1107 = vrot.lane.b32.xlu0 %v163, 3
    %v1108 = vpop.permute.xlu0 %1107
    %1109 = vrot.lane.b32.xlu0 %v164, 3
    %v1110 = vpop.permute.xlu0 %1109
    %1111 = vrot.lane.b32.xlu0 %v165, 3
    %v1112 = vpop.permute.xlu0 %1111
    %1113 = vrot.lane.b32.xlu0 %v166, 3
    %v1114 = vpop.permute.xlu0 %1113
    %1115 = vrot.lane.b32.xlu0 %v167, 3
    %v1116 = vpop.permute.xlu0 %1115
    %1117 = vrot.lane.b32.xlu0 %v168, 3
    %v1118 = vpop.permute.xlu0 %1117
    %1119 = vrot.lane.b32.xlu0 %v169, 3
    %v1120 = vpop.permute.xlu0 %1119
    %1121 = vrot.lane.b32.xlu0 %v170, 3
    %v1122 = vpop.permute.xlu0 %1121
    %1123 = vrot.lane.b32.xlu0 %v171, 3
    %v1124 = vpop.permute.xlu0 %1123
    %1125 = vrot.lane.b32.xlu0 %v172, 3
    %v1126 = vpop.permute.xlu0 %1125
    %1127 = vrot.lane.b32.xlu0 %v173, 3
    %v1128 = vpop.permute.xlu0 %1127
    %1129 = vrot.lane.b32.xlu0 %v174, 3
    %v1130 = vpop.permute.xlu0 %1129
    %1131 = vrot.lane.b32.xlu0 %v175, 3
    %v1132 = vpop.permute.xlu0 %1131
    %1133 = vrot.lane.b32.xlu0 %v176, 3
    %v1134 = vpop.permute.xlu0 %1133
    %1135 = vrot.lane.b32.xlu0 %v177, 3
    %v1136 = vpop.permute.xlu0 %1135
    %1137 = vrot.lane.b32.xlu0 %v178, 3
    %v1138 = vpop.permute.xlu0 %1137
    %1139 = vrot.lane.b32.xlu0 %v179, 3
    %v1140 = vpop.permute.xlu0 %1139
    %1141 = vrot.lane.b32.xlu0 %v180, 3
    %v1142 = vpop.permute.xlu0 %1141
    %1143 = vrot.lane.b32.xlu0 %v181, 3
    %v1144 = vpop.permute.xlu0 %1143
    %1145 = vrot.lane.b32.xlu0 %v182, 3
    %v1146 = vpop.permute.xlu0 %1145
    %1147 = vrot.lane.b32.xlu0 %v183, 3
    %v1148 = vpop.permute.xlu0 %1147
    %1149 = vrot.lane.b32.xlu0 %v184, 3
    %v1150 = vpop.permute.xlu0 %1149
    %1151 = vrot.lane.b32.xlu0 %v185, 3
    %v1152 = vpop.permute.xlu0 %1151
    %1153 = vrot.lane.b32.xlu0 %v186, 3
    %v1154 = vpop.permute.xlu0 %1153
    %1155 = vrot.lane.b32.xlu0 %v187, 3
    %v1156 = vpop.permute.xlu0 %1155
    %1157 = vrot.lane.b32.xlu0 %v188, 3
    %v1158 = vpop.permute.xlu0 %1157
    %1159 = vrot.lane.b32.xlu0 %v189, 3
    %v1160 = vpop.permute.xlu0 %1159
    %1161 = vrot.lane.b32.xlu0 %v190, 3
    %v1162 = vpop.permute.xlu0 %1161
    %1163 = vrot.lane.b32.xlu0 %v191, 3
    %v1164 = vpop.permute.xlu0 %1163
    %1165 = vrot.lane.b32.xlu0 %v192, 3
    %v1166 = vpop.permute.xlu0 %1165
    %1167 = vrot.lane.b32.xlu0 %v193, 3
    %v1168 = vpop.permute.xlu0 %1167
    %1169 = vrot.lane.b32.xlu0 %v194, 3
    %v1170 = vpop.permute.xlu0 %1169
    %1171 = vrot.lane.b32.xlu0 %v195, 3
    %v1172 = vpop.permute.xlu0 %1171
    %1173 = vrot.lane.b32.xlu0 %v196, 3
    %v1174 = vpop.permute.xlu0 %1173
    %1175 = vrot.lane.b32.xlu0 %v197, 3
    %v1176 = vpop.permute.xlu0 %1175
    %1177 = vrot.lane.b32.xlu0 %v198, 3
    %v1178 = vpop.permute.xlu0 %1177
    %1179 = vrot.lane.b32.xlu0 %v199, 3
    %v1180 = vpop.permute.xlu0 %1179
    %1181 = vrot.lane.b32.xlu0 %v200, 3
    %v1182 = vpop.permute.xlu0 %1181
    %1183 = vrot.lane.b32.xlu0 %v201, 3
    %v1184 = vpop.permute.xlu0 %1183
    %1185 = vrot.lane.b32.xlu0 %v202, 3
    %v1186 = vpop.permute.xlu0 %1185
    %1187 = vrot.lane.b32.xlu0 %v203, 3
    %v1188 = vpop.permute.xlu0 %1187
    %1189 = vrot.lane.b32.xlu0 %v204, 3
    %v1190 = vpop.permute.xlu0 %1189
    %1191 = vrot.lane.b32.xlu0 %v205, 3
    %v1192 = vpop.permute.xlu0 %1191
    %1193 = vrot.lane.b32.xlu0 %v206, 3
    %v1194 = vpop.permute.xlu0 %1193
    %1195 = vrot.lane.b32.xlu0 %v207, 3
    %v1196 = vpop.permute.xlu0 %1195
    %1197 = vrot.lane.b32.xlu0 %v208, 3
    %v1198 = vpop.permute.xlu0 %1197
    %1199 = vrot.lane.b32.xlu0 %v209, 3
    %v1200 = vpop.permute.xlu0 %1199
    %1201 = vrot.lane.b32.xlu0 %v210, 3
    %v1202 = vpop.permute.xlu0 %1201
    %1203 = vrot.lane.b32.xlu0 %v211, 3
    %v1204 = vpop.permute.xlu0 %1203
    %1205 = vrot.lane.b32.xlu0 %v212, 3
    %v1206 = vpop.permute.xlu0 %1205
    %1207 = vrot.lane.b32.xlu0 %v213, 3
    %v1208 = vpop.permute.xlu0 %1207
    %1209 = vrot.lane.b32.xlu0 %v214, 3
    %v1210 = vpop.permute.xlu0 %1209
    %1211 = vrot.lane.b32.xlu0 %v215, 3
    %v1212 = vpop.permute.xlu0 %1211
    %1213 = vrot.lane.b32.xlu0 %v216, 3
    %v1214 = vpop.permute.xlu0 %1213
    %1215 = vrot.lane.b32.xlu0 %v217, 3
    %v1216 = vpop.permute.xlu0 %1215
    %1217 = vrot.lane.b32.xlu0 %v218, 3
    %v1218 = vpop.permute.xlu0 %1217
    %1219 = vrot.lane.b32.xlu0 %v219, 3
    %v1220 = vpop.permute.xlu0 %1219
    %1221 = vrot.lane.b32.xlu0 %v220, 3
    %v1222 = vpop.permute.xlu0 %1221
    %1223 = vrot.lane.b32.xlu0 %v221, 3
    %v1224 = vpop.permute.xlu0 %1223
    %1225 = vrot.lane.b32.xlu0 %v222, 3
    %v1226 = vpop.permute.xlu0 %1225
    %1227 = vrot.lane.b32.xlu0 %v223, 3
    %v1228 = vpop.permute.xlu0 %1227
    %1229 = vrot.lane.b32.xlu0 %v224, 3
    %v1230 = vpop.permute.xlu0 %1229
    %1231 = vrot.lane.b32.xlu0 %v225, 3
    %v1232 = vpop.permute.xlu0 %1231
    %1233 = vrot.lane.b32.xlu0 %v226, 3
    %v1234 = vpop.permute.xlu0 %1233
    %1235 = vrot.lane.b32.xlu0 %v227, 3
    %v1236 = vpop.permute.xlu0 %1235
    %1237 = vrot.lane.b32.xlu0 %v228, 3
    %v1238 = vpop.permute.xlu0 %1237
    %1239 = vrot.lane.b32.xlu0 %v229, 3
    %v1240 = vpop.permute.xlu0 %1239
    %1241 = vrot.lane.b32.xlu0 %v230, 3
    %v1242 = vpop.permute.xlu0 %1241
    %1243 = vrot.lane.b32.xlu0 %v231, 3
    %v1244 = vpop.permute.xlu0 %1243
    %1245 = vrot.lane.b32.xlu0 %v232, 3
    %v1246 = vpop.permute.xlu0 %1245
    %1247 = vrot.lane.b32.xlu0 %v233, 3
    %v1248 = vpop.permute.xlu0 %1247
    %1249 = vrot.lane.b32.xlu0 %v234, 3
    %v1250 = vpop.permute.xlu0 %1249
    %1251 = vrot.lane.b32.xlu0 %v235, 3
    %v1252 = vpop.permute.xlu0 %1251
    %1253 = vrot.lane.b32.xlu0 %v236, 3
    %v1254 = vpop.permute.xlu0 %1253
    %1255 = vrot.lane.b32.xlu0 %v237, 3
    %v1256 = vpop.permute.xlu0 %1255
    %1257 = vrot.lane.b32.xlu0 %v238, 3
    %v1258 = vpop.permute.xlu0 %1257
    %1259 = vrot.lane.b32.xlu0 %v239, 3
    %v1260 = vpop.permute.xlu0 %1259
    %1261 = vrot.lane.b32.xlu0 %v240, 3
    %v1262 = vpop.permute.xlu0 %1261
    %1263 = vrot.lane.b32.xlu0 %v241, 3
    %v1264 = vpop.permute.xlu0 %1263
    %1265 = vrot.lane.b32.xlu0 %v242, 3
    %v1266 = vpop.permute.xlu0 %1265
    %1267 = vrot.lane.b32.xlu0 %v243, 3
    %v1268 = vpop.permute.xlu0 %1267
    %1269 = vrot.lane.b32.xlu0 %v244, 3
    %v1270 = vpop.permute.xlu0 %1269
    %1271 = vrot.lane.b32.xlu0 %v245, 3
    %v1272 = vpop.permute.xlu0 %1271
    %1273 = vrot.lane.b32.xlu0 %v246, 3
    %v1274 = vpop.permute.xlu0 %1273
    %1275 = vrot.lane.b32.xlu0 %v247, 3
    %v1276 = vpop.permute.xlu0 %1275
    %1277 = vrot.lane.b32.xlu0 %v248, 3
    %v1278 = vpop.permute.xlu0 %1277
    %1279 = vrot.lane.b32.xlu0 %v249, 3
    %v1280 = vpop.permute.xlu0 %1279
    %1281 = vrot.lane.b32.xlu0 %v250, 3
    %v1282 = vpop.permute.xlu0 %1281
    %1283 = vrot.lane.b32.xlu0 %v251, 3
    %v1284 = vpop.permute.xlu0 %1283
    %1285 = vrot.lane.b32.xlu0 %v252, 3
    %v1286 = vpop.permute.xlu0 %1285
    %1287 = vrot.lane.b32.xlu0 %v253, 3
    %v1288 = vpop.permute.xlu0 %1287
    %1289 = vrot.lane.b32.xlu0 %v254, 3
    %v1290 = vpop.permute.xlu0 %1289
    %1291 = vrot.lane.b32.xlu0 %v255, 3
    %v1292 = vpop.permute.xlu0 %1291
    %1293 = vrot.lane.b32.xlu0 %v256, 3
    %v1294 = vpop.permute.xlu0 %1293
    %1295 = vrot.lane.b32.xlu0 %v257, 3
    %v1296 = vpop.permute.xlu0 %1295
    %1297 = vrot.lane.b32.xlu0 %v258, 3
    %v1298 = vpop.permute.xlu0 %1297
    %1299 = vrot.lane.b32.xlu0 %v259, 3
    %v1300 = vpop.permute.xlu0 %1299
    %1301 = vrot.lane.b32.xlu0 %v260, 3
    %v1302 = vpop.permute.xlu0 %1301
    %1303 = vrot.lane.b32.xlu0 %v261, 3
    %v1304 = vpop.permute.xlu0 %1303
    %1305 = vrot.lane.b32.xlu0 %v262, 3
    %v1306 = vpop.permute.xlu0 %1305
    %1307 = vrot.lane.b32.xlu0 %v263, 3
    %v1308 = vpop.permute.xlu0 %1307
    %1309 = vrot.lane.b32.xlu0 %v264, 3
    %v1310 = vpop.permute.xlu0 %1309
    %1311 = vrot.lane.b32.xlu0 %v265, 3
    %v1312 = vpop.permute.xlu0 %1311
    %1313 = vrot.lane.b32.xlu0 %v266, 3
    %v1314 = vpop.permute.xlu0 %1313
    %1315 = vrot.lane.b32.xlu0 %v267, 3
    %v1316 = vpop.permute.xlu0 %1315
    %1317 = vrot.lane.b32.xlu0 %v268, 3
    %v1318 = vpop.permute.xlu0 %1317
    %1319 = vrot.lane.b32.xlu0 %v269, 3
    %v1320 = vpop.permute.xlu0 %1319
    %1321 = vrot.lane.b32.xlu0 %v270, 3
    %v1322 = vpop.permute.xlu0 %1321
    %1323 = vrot.lane.b32.xlu0 %v271, 3
    %v1324 = vpop.permute.xlu0 %1323
    %1325 = vrot.lane.b32.xlu0 %v272, 3
    %v1326 = vpop.permute.xlu0 %1325
    %1327 = vrot.lane.b32.xlu0 %v273, 3
    %v1328 = vpop.permute.xlu0 %1327
    %1329 = vrot.lane.b32.xlu0 %v274, 3
    %v1330 = vpop.permute.xlu0 %1329
    %1331 = vrot.lane.b32.xlu0 %v275, 3
    %v1332 = vpop.permute.xlu0 %1331
    %1333 = vrot.lane.b32.xlu0 %v276, 3
    %v1334 = vpop.permute.xlu0 %1333
    %1335 = vrot.lane.b32.xlu0 %v277, 3
    %v1336 = vpop.permute.xlu0 %1335
    %1337 = vrot.lane.b32.xlu0 %v278, 3
    %v1338 = vpop.permute.xlu0 %1337
    %1339 = vrot.lane.b32.xlu0 %v279, 3
    %v1340 = vpop.permute.xlu0 %1339
    %1341 = vrot.lane.b32.xlu0 %v280, 3
    %v1342 = vpop.permute.xlu0 %1341
    %1343 = vrot.lane.b32.xlu0 %v281, 3
    %v1344 = vpop.permute.xlu0 %1343
    %1345 = vrot.lane.b32.xlu0 %v282, 3
    %v1346 = vpop.permute.xlu0 %1345
    %1347 = vrot.lane.b32.xlu0 %v283, 3
    %v1348 = vpop.permute.xlu0 %1347
    %1349 = vrot.lane.b32.xlu0 %v284, 3
    %v1350 = vpop.permute.xlu0 %1349
    %1351 = vrot.lane.b32.xlu0 %v285, 3
    %v1352 = vpop.permute.xlu0 %1351
    %1353 = vrot.lane.b32.xlu0 %v286, 3
    %v1354 = vpop.permute.xlu0 %1353
    %1355 = vrot.lane.b32.xlu0 %v287, 3
    %v1356 = vpop.permute.xlu0 %1355
    %1357 = vrot.lane.b32.xlu0 %v288, 3
    %v1358 = vpop.permute.xlu0 %1357
    %1359 = vrot.lane.b32.xlu0 %v289, 3
    %v1360 = vpop.permute.xlu0 %1359
    %1361 = vrot.lane.b32.xlu0 %v290, 3
    %v1362 = vpop.permute.xlu0 %1361
    %1363 = vrot.lane.b32.xlu0 %v291, 3
    %v1364 = vpop.permute.xlu0 %1363
    %1365 = vrot.lane.b32.xlu0 %v292, 3
    %v1366 = vpop.permute.xlu0 %1365
    %1367 = vrot.lane.b32.xlu0 %v293, 3
    %v1368 = vpop.permute.xlu0 %1367
    %1369 = vrot.lane.b32.xlu0 %v294, 3
    %v1370 = vpop.permute.xlu0 %1369
    %1371 = vrot.lane.b32.xlu0 %v295, 3
    %v1372 = vpop.permute.xlu0 %1371
    %1373 = vrot.lane.b32.xlu0 %v296, 3
    %v1374 = vpop.permute.xlu0 %1373
    %1375 = vrot.lane.b32.xlu0 %v297, 3
    %v1376 = vpop.permute.xlu0 %1375
    %1377 = vrot.lane.b32.xlu0 %v298, 3
    %v1378 = vpop.permute.xlu0 %1377
    %vm1635 = vcmask 48152
    %1636 = vst.msk [vmem:[%s334] sm:$0xff] %vm1635, %v868
    %1637 = vst.msk [vmem:[%s334 + $0x8] sm:$0xff] %vm1635, %v870
    %1638 = vst.msk [vmem:[%s334 + $0x10] sm:$0xff] %vm1635, %v872
    %1639 = vst.msk [vmem:[%s334 + $0x18] sm:$0xff] %vm1635, %v874
    %1640 = vst.msk [vmem:[%s334 + $0x20] sm:$0xff] %vm1635, %v876
    %1641 = vst.msk [vmem:[%s334 + $0x28] sm:$0xff] %vm1635, %v878
    %1642 = vst.msk [vmem:[%s334 + $0x30] sm:$0xff] %vm1635, %v880
    %1643 = vst.msk [vmem:[%s334 + $0x38] sm:$0xff] %vm1635, %v882
    %1644 = vst.msk [vmem:[%s334 + $0x40] sm:$0xff] %vm1635, %v884
    %1645 = vst.msk [vmem:[%s334 + $0x48] sm:$0xff] %vm1635, %v886
    %1646 = vst.msk [vmem:[%s334 + $0x50] sm:$0xff] %vm1635, %v888
    %1647 = vst.msk [vmem:[%s334 + $0x58] sm:$0xff] %vm1635, %v890
    %1648 = vst.msk [vmem:[%s334 + $0x60] sm:$0xff] %vm1635, %v892
    %1649 = vst.msk [vmem:[%s334 + $0x68] sm:$0xff] %vm1635, %v894
    %1650 = vst.msk [vmem:[%s334 + $0x70] sm:$0xff] %vm1635, %v896
    %1651 = vst.msk [vmem:[%s334 + $0x78] sm:$0xff] %vm1635, %v898
    %1652 = vst.msk [vmem:[%s334 + $0x80] sm:$0xff] %vm1635, %v900
    %1653 = vst.msk [vmem:[%s334 + $0x88] sm:$0xff] %vm1635, %v902
    %1654 = vst.msk [vmem:[%s334 + $0x90] sm:$0xff] %vm1635, %v904
    %1655 = vst.msk [vmem:[%s334 + $0x98] sm:$0xff] %vm1635, %v906
    %1656 = vst.msk [vmem:[%s334 + $0xa0] sm:$0xff] %vm1635, %v908
    %1657 = vst.msk [vmem:[%s334 + $0xa8] sm:$0xff] %vm1635, %v910
    %1658 = vst.msk [vmem:[%s334 + $0xb0] sm:$0xff] %vm1635, %v912
    %1659 = vst.msk [vmem:[%s334 + $0xb8] sm:$0xff] %vm1635, %v914
    %1660 = vst.msk [vmem:[%s334 + $0xc0] sm:$0xff] %vm1635, %v916
    %1661 = vst.msk [vmem:[%s334 + $0xc8] sm:$0xff] %vm1635, %v918
    %1662 = vst.msk [vmem:[%s334 + $0xd0] sm:$0xff] %vm1635, %v920
    %1663 = vst.msk [vmem:[%s334 + $0xd8] sm:$0xff] %vm1635, %v922
    %1664 = vst.msk [vmem:[%s334 + $0xe0] sm:$0xff] %vm1635, %v924
    %1665 = vst.msk [vmem:[%s334 + $0xe8] sm:$0xff] %vm1635, %v926
    %1666 = vst.msk [vmem:[%s334 + $0xf0] sm:$0xff] %vm1635, %v928
    %1667 = vst.msk [vmem:[%s334 + $0xf8] sm:$0xff] %vm1635, %v930
    %1668 = vst.msk [vmem:[%s334 + $0x100] sm:$0xff] %vm1635, %v932
    %1669 = vst.msk [vmem:[%s334 + $0x108] sm:$0xff] %vm1635, %v934
    %1670 = vst.msk [vmem:[%s334 + $0x110] sm:$0xff] %vm1635, %v936
    %1671 = vst.msk [vmem:[%s334 + $0x118] sm:$0xff] %vm1635, %v938
    %1672 = vst.msk [vmem:[%s334 + $0x120] sm:$0xff] %vm1635, %v940
    %1673 = vst.msk [vmem:[%s334 + $0x128] sm:$0xff] %vm1635, %v942
    %1674 = vst.msk [vmem:[%s334 + $0x130] sm:$0xff] %vm1635, %v944
    %1675 = vst.msk [vmem:[%s334 + $0x138] sm:$0xff] %vm1635, %v946
    %1676 = vst.msk [vmem:[%s334 + $0x140] sm:$0xff] %vm1635, %v948
    %1677 = vst.msk [vmem:[%s334 + $0x148] sm:$0xff] %vm1635, %v950
    %1678 = vst.msk [vmem:[%s334 + $0x150] sm:$0xff] %vm1635, %v952
    %1679 = vst.msk [vmem:[%s334 + $0x158] sm:$0xff] %vm1635, %v954
    %1680 = vst.msk [vmem:[%s334 + $0x160] sm:$0xff] %vm1635, %v956
    %1681 = vst.msk [vmem:[%s334 + $0x168] sm:$0xff] %vm1635, %v958
    %1682 = vst.msk [vmem:[%s334 + $0x170] sm:$0xff] %vm1635, %v960
    %1683 = vst.msk [vmem:[%s334 + $0x178] sm:$0xff] %vm1635, %v962
    %1684 = vst.msk [vmem:[%s334 + $0x180] sm:$0xff] %vm1635, %v964
    %1685 = vst.msk [vmem:[%s334 + $0x188] sm:$0xff] %vm1635, %v966
    %1686 = vst.msk [vmem:[%s334 + $0x190] sm:$0xff] %vm1635, %v968
    %1687 = vst.msk [vmem:[%s334 + $0x198] sm:$0xff] %vm1635, %v970
    %1688 = vst.msk [vmem:[%s334 + $0x1a0] sm:$0xff] %vm1635, %v972
    %1689 = vst.msk [vmem:[%s334 + $0x1a8] sm:$0xff] %vm1635, %v974
    %1690 = vst.msk [vmem:[%s334 + $0x1b0] sm:$0xff] %vm1635, %v976
    %1691 = vst.msk [vmem:[%s334 + $0x1b8] sm:$0xff] %vm1635, %v978
    %1692 = vst.msk [vmem:[%s334 + $0x1c0] sm:$0xff] %vm1635, %v980
    %1693 = vst.msk [vmem:[%s334 + $0x1c8] sm:$0xff] %vm1635, %v982
    %1694 = vst.msk [vmem:[%s334 + $0x1d0] sm:$0xff] %vm1635, %v984
    %1695 = vst.msk [vmem:[%s334 + $0x1d8] sm:$0xff] %vm1635, %v986
    %1696 = vst.msk [vmem:[%s334 + $0x1e0] sm:$0xff] %vm1635, %v988
    %1697 = vst.msk [vmem:[%s334 + $0x1e8] sm:$0xff] %vm1635, %v990
    %1698 = vst.msk [vmem:[%s334 + $0x1f0] sm:$0xff] %vm1635, %v992
    %1699 = vst.msk [vmem:[%s334 + $0x1f8] sm:$0xff] %vm1635, %v994
    %1700 = vst.msk [vmem:[%s334 + $0x200] sm:$0xff] %vm1635, %v996
    %1701 = vst.msk [vmem:[%s334 + $0x208] sm:$0xff] %vm1635, %v998
    %1702 = vst.msk [vmem:[%s334 + $0x210] sm:$0xff] %vm1635, %v1000
    %1703 = vst.msk [vmem:[%s334 + $0x218] sm:$0xff] %vm1635, %v1002
    %1704 = vst.msk [vmem:[%s334 + $0x220] sm:$0xff] %vm1635, %v1004
    %1705 = vst.msk [vmem:[%s334 + $0x228] sm:$0xff] %vm1635, %v1006
    %1706 = vst.msk [vmem:[%s334 + $0x230] sm:$0xff] %vm1635, %v1008
    %1707 = vst.msk [vmem:[%s334 + $0x238] sm:$0xff] %vm1635, %v1010
    %1708 = vst.msk [vmem:[%s334 + $0x240] sm:$0xff] %vm1635, %v1012
    %1709 = vst.msk [vmem:[%s334 + $0x248] sm:$0xff] %vm1635, %v1014
    %1710 = vst.msk [vmem:[%s334 + $0x250] sm:$0xff] %vm1635, %v1016
    %1711 = vst.msk [vmem:[%s334 + $0x258] sm:$0xff] %vm1635, %v1018
    %1712 = vst.msk [vmem:[%s334 + $0x260] sm:$0xff] %vm1635, %v1020
    %1713 = vst.msk [vmem:[%s334 + $0x268] sm:$0xff] %vm1635, %v1022
    %1714 = vst.msk [vmem:[%s334 + $0x270] sm:$0xff] %vm1635, %v1024
    %1715 = vst.msk [vmem:[%s334 + $0x278] sm:$0xff] %vm1635, %v1026
    %1716 = vst.msk [vmem:[%s334 + $0x280] sm:$0xff] %vm1635, %v1028
    %1717 = vst.msk [vmem:[%s334 + $0x288] sm:$0xff] %vm1635, %v1030
    %1718 = vst.msk [vmem:[%s334 + $0x290] sm:$0xff] %vm1635, %v1032
    %1719 = vst.msk [vmem:[%s334 + $0x298] sm:$0xff] %vm1635, %v1034
    %1720 = vst.msk [vmem:[%s334 + $0x2a0] sm:$0xff] %vm1635, %v1036
    %1721 = vst.msk [vmem:[%s334 + $0x2a8] sm:$0xff] %vm1635, %v1038
    %1722 = vst.msk [vmem:[%s334 + $0x2b0] sm:$0xff] %vm1635, %v1040
    %1723 = vst.msk [vmem:[%s334 + $0x2b8] sm:$0xff] %vm1635, %v1042
    %1724 = vst.msk [vmem:[%s334 + $0x2c0] sm:$0xff] %vm1635, %v1044
    %1725 = vst.msk [vmem:[%s334 + $0x2c8] sm:$0xff] %vm1635, %v1046
    %1726 = vst.msk [vmem:[%s334 + $0x2d0] sm:$0xff] %vm1635, %v1048
    %1727 = vst.msk [vmem:[%s334 + $0x2d8] sm:$0xff] %vm1635, %v1050
    %1728 = vst.msk [vmem:[%s334 + $0x2e0] sm:$0xff] %vm1635, %v1052
    %1729 = vst.msk [vmem:[%s334 + $0x2e8] sm:$0xff] %vm1635, %v1054
    %1730 = vst.msk [vmem:[%s334 + $0x2f0] sm:$0xff] %vm1635, %v1056
    %1731 = vst.msk [vmem:[%s334 + $0x2f8] sm:$0xff] %vm1635, %v1058
    %1732 = vst.msk [vmem:[%s334 + $0x300] sm:$0xff] %vm1635, %v1060
    %1733 = vst.msk [vmem:[%s334 + $0x308] sm:$0xff] %vm1635, %v1062
    %1734 = vst.msk [vmem:[%s334 + $0x310] sm:$0xff] %vm1635, %v1064
    %1735 = vst.msk [vmem:[%s334 + $0x318] sm:$0xff] %vm1635, %v1066
    %1736 = vst.msk [vmem:[%s334 + $0x320] sm:$0xff] %vm1635, %v1068
    %1737 = vst.msk [vmem:[%s334 + $0x328] sm:$0xff] %vm1635, %v1070
    %1738 = vst.msk [vmem:[%s334 + $0x330] sm:$0xff] %vm1635, %v1072
    %1739 = vst.msk [vmem:[%s334 + $0x338] sm:$0xff] %vm1635, %v1074
    %1740 = vst.msk [vmem:[%s334 + $0x340] sm:$0xff] %vm1635, %v1076
    %1741 = vst.msk [vmem:[%s334 + $0x348] sm:$0xff] %vm1635, %v1078
    %1742 = vst.msk [vmem:[%s334 + $0x350] sm:$0xff] %vm1635, %v1080
    %1743 = vst.msk [vmem:[%s334 + $0x358] sm:$0xff] %vm1635, %v1082
    %1744 = vst.msk [vmem:[%s334 + $0x360] sm:$0xff] %vm1635, %v1084
    %1745 = vst.msk [vmem:[%s334 + $0x368] sm:$0xff] %vm1635, %v1086
    %1746 = vst.msk [vmem:[%s334 + $0x370] sm:$0xff] %vm1635, %v1088
    %1747 = vst.msk [vmem:[%s334 + $0x378] sm:$0xff] %vm1635, %v1090
    %1748 = vst.msk [vmem:[%s334 + $0x380] sm:$0xff] %vm1635, %v1092
    %1749 = vst.msk [vmem:[%s334 + $0x388] sm:$0xff] %vm1635, %v1094
    %1750 = vst.msk [vmem:[%s334 + $0x390] sm:$0xff] %vm1635, %v1096
    %1751 = vst.msk [vmem:[%s334 + $0x398] sm:$0xff] %vm1635, %v1098
    %1752 = vst.msk [vmem:[%s334 + $0x3a0] sm:$0xff] %vm1635, %v1100
    %1753 = vst.msk [vmem:[%s334 + $0x3a8] sm:$0xff] %vm1635, %v1102
    %1754 = vst.msk [vmem:[%s334 + $0x3b0] sm:$0xff] %vm1635, %v1104
    %1755 = vst.msk [vmem:[%s334 + $0x3b8] sm:$0xff] %vm1635, %v1106
    %1756 = vst.msk [vmem:[%s334 + $0x3c0] sm:$0xff] %vm1635, %v1108
    %1757 = vst.msk [vmem:[%s334 + $0x3c8] sm:$0xff] %vm1635, %v1110
    %1758 = vst.msk [vmem:[%s334 + $0x3d0] sm:$0xff] %vm1635, %v1112
    %1759 = vst.msk [vmem:[%s334 + $0x3d8] sm:$0xff] %vm1635, %v1114
    %1760 = vst.msk [vmem:[%s334 + $0x3e0] sm:$0xff] %vm1635, %v1116
    %1761 = vst.msk [vmem:[%s334 + $0x3e8] sm:$0xff] %vm1635, %v1118
    %1762 = vst.msk [vmem:[%s334 + $0x3f0] sm:$0xff] %vm1635, %v1120
    %1763 = vst.msk [vmem:[%s334 + $0x3f8] sm:$0xff] %vm1635, %v1122
    %1764 = vst.msk [vmem:[%s334 + $0x400] sm:$0xff] %vm1635, %v1124
    %1765 = vst.msk [vmem:[%s334 + $0x408] sm:$0xff] %vm1635, %v1126
    %1766 = vst.msk [vmem:[%s334 + $0x410] sm:$0xff] %vm1635, %v1128
    %1767 = vst.msk [vmem:[%s334 + $0x418] sm:$0xff] %vm1635, %v1130
    %1768 = vst.msk [vmem:[%s334 + $0x420] sm:$0xff] %vm1635, %v1132
    %1769 = vst.msk [vmem:[%s334 + $0x428] sm:$0xff] %vm1635, %v1134
    %1770 = vst.msk [vmem:[%s334 + $0x430] sm:$0xff] %vm1635, %v1136
    %1771 = vst.msk [vmem:[%s334 + $0x438] sm:$0xff] %vm1635, %v1138
    %1772 = vst.msk [vmem:[%s334 + $0x440] sm:$0xff] %vm1635, %v1140
    %1773 = vst.msk [vmem:[%s334 + $0x448] sm:$0xff] %vm1635, %v1142
    %1774 = vst.msk [vmem:[%s334 + $0x450] sm:$0xff] %vm1635, %v1144
    %1775 = vst.msk [vmem:[%s334 + $0x458] sm:$0xff] %vm1635, %v1146
    %1776 = vst.msk [vmem:[%s334 + $0x460] sm:$0xff] %vm1635, %v1148
    %1777 = vst.msk [vmem:[%s334 + $0x468] sm:$0xff] %vm1635, %v1150
    %1778 = vst.msk [vmem:[%s334 + $0x470] sm:$0xff] %vm1635, %v1152
    %1779 = vst.msk [vmem:[%s334 + $0x478] sm:$0xff] %vm1635, %v1154
    %1780 = vst.msk [vmem:[%s334 + $0x480] sm:$0xff] %vm1635, %v1156
    %1781 = vst.msk [vmem:[%s334 + $0x488] sm:$0xff] %vm1635, %v1158
    %1782 = vst.msk [vmem:[%s334 + $0x490] sm:$0xff] %vm1635, %v1160
    %1783 = vst.msk [vmem:[%s334 + $0x498] sm:$0xff] %vm1635, %v1162
    %1784 = vst.msk [vmem:[%s334 + $0x4a0] sm:$0xff] %vm1635, %v1164
    %1785 = vst.msk [vmem:[%s334 + $0x4a8] sm:$0xff] %vm1635, %v1166
    %1786 = vst.msk [vmem:[%s334 + $0x4b0] sm:$0xff] %vm1635, %v1168
    %1787 = vst.msk [vmem:[%s334 + $0x4b8] sm:$0xff] %vm1635, %v1170
    %1788 = vst.msk [vmem:[%s334 + $0x4c0] sm:$0xff] %vm1635, %v1172
    %1789 = vst.msk [vmem:[%s334 + $0x4c8] sm:$0xff] %vm1635, %v1174
    %1790 = vst.msk [vmem:[%s334 + $0x4d0] sm:$0xff] %vm1635, %v1176
    %1791 = vst.msk [vmem:[%s334 + $0x4d8] sm:$0xff] %vm1635, %v1178
    %1792 = vst.msk [vmem:[%s334 + $0x4e0] sm:$0xff] %vm1635, %v1180
    %1793 = vst.msk [vmem:[%s334 + $0x4e8] sm:$0xff] %vm1635, %v1182
    %1794 = vst.msk [vmem:[%s334 + $0x4f0] sm:$0xff] %vm1635, %v1184
    %1795 = vst.msk [vmem:[%s334 + $0x4f8] sm:$0xff] %vm1635, %v1186
    %1796 = vst.msk [vmem:[%s334 + $0x500] sm:$0xff] %vm1635, %v1188
    %1797 = vst.msk [vmem:[%s334 + $0x508] sm:$0xff] %vm1635, %v1190
    %1798 = vst.msk [vmem:[%s334 + $0x510] sm:$0xff] %vm1635, %v1192
    %1799 = vst.msk [vmem:[%s334 + $0x518] sm:$0xff] %vm1635, %v1194
    %1800 = vst.msk [vmem:[%s334 + $0x520] sm:$0xff] %vm1635, %v1196
    %1801 = vst.msk [vmem:[%s334 + $0x528] sm:$0xff] %vm1635, %v1198
    %1802 = vst.msk [vmem:[%s334 + $0x530] sm:$0xff] %vm1635, %v1200
    %1803 = vst.msk [vmem:[%s334 + $0x538] sm:$0xff] %vm1635, %v1202
    %1804 = vst.msk [vmem:[%s334 + $0x540] sm:$0xff] %vm1635, %v1204
    %1805 = vst.msk [vmem:[%s334 + $0x548] sm:$0xff] %vm1635, %v1206
    %1806 = vst.msk [vmem:[%s334 + $0x550] sm:$0xff] %vm1635, %v1208
    %1807 = vst.msk [vmem:[%s334 + $0x558] sm:$0xff] %vm1635, %v1210
    %1808 = vst.msk [vmem:[%s334 + $0x560] sm:$0xff] %vm1635, %v1212
    %1809 = vst.msk [vmem:[%s334 + $0x568] sm:$0xff] %vm1635, %v1214
    %1810 = vst.msk [vmem:[%s334 + $0x570] sm:$0xff] %vm1635, %v1216
    %1811 = vst.msk [vmem:[%s334 + $0x578] sm:$0xff] %vm1635, %v1218
    %1812 = vst.msk [vmem:[%s334 + $0x580] sm:$0xff] %vm1635, %v1220
    %1813 = vst.msk [vmem:[%s334 + $0x588] sm:$0xff] %vm1635, %v1222
    %1814 = vst.msk [vmem:[%s334 + $0x590] sm:$0xff] %vm1635, %v1224
    %1815 = vst.msk [vmem:[%s334 + $0x598] sm:$0xff] %vm1635, %v1226
    %1816 = vst.msk [vmem:[%s334 + $0x5a0] sm:$0xff] %vm1635, %v1228
    %1817 = vst.msk [vmem:[%s334 + $0x5a8] sm:$0xff] %vm1635, %v1230
    %1818 = vst.msk [vmem:[%s334 + $0x5b0] sm:$0xff] %vm1635, %v1232
    %1819 = vst.msk [vmem:[%s334 + $0x5b8] sm:$0xff] %vm1635, %v1234
    %1820 = vst.msk [vmem:[%s334 + $0x5c0] sm:$0xff] %vm1635, %v1236
    %1821 = vst.msk [vmem:[%s334 + $0x5c8] sm:$0xff] %vm1635, %v1238
    %1822 = vst.msk [vmem:[%s334 + $0x5d0] sm:$0xff] %vm1635, %v1240
    %1823 = vst.msk [vmem:[%s334 + $0x5d8] sm:$0xff] %vm1635, %v1242
    %1824 = vst.msk [vmem:[%s334 + $0x5e0] sm:$0xff] %vm1635, %v1244
    %1825 = vst.msk [vmem:[%s334 + $0x5e8] sm:$0xff] %vm1635, %v1246
    %1826 = vst.msk [vmem:[%s334 + $0x5f0] sm:$0xff] %vm1635, %v1248
    %1827 = vst.msk [vmem:[%s334 + $0x5f8] sm:$0xff] %vm1635, %v1250
    %1828 = vst.msk [vmem:[%s334 + $0x600] sm:$0xff] %vm1635, %v1252
    %1829 = vst.msk [vmem:[%s334 + $0x608] sm:$0xff] %vm1635, %v1254
    %1830 = vst.msk [vmem:[%s334 + $0x610] sm:$0xff] %vm1635, %v1256
    %1831 = vst.msk [vmem:[%s334 + $0x618] sm:$0xff] %vm1635, %v1258
    %1832 = vst.msk [vmem:[%s334 + $0x620] sm:$0xff] %vm1635, %v1260
    %1833 = vst.msk [vmem:[%s334 + $0x628] sm:$0xff] %vm1635, %v1262
    %1834 = vst.msk [vmem:[%s334 + $0x630] sm:$0xff] %vm1635, %v1264
    %1835 = vst.msk [vmem:[%s334 + $0x638] sm:$0xff] %vm1635, %v1266
    %1836 = vst.msk [vmem:[%s334 + $0x640] sm:$0xff] %vm1635, %v1268
    %1837 = vst.msk [vmem:[%s334 + $0x648] sm:$0xff] %vm1635, %v1270
    %1838 = vst.msk [vmem:[%s334 + $0x650] sm:$0xff] %vm1635, %v1272
    %1839 = vst.msk [vmem:[%s334 + $0x658] sm:$0xff] %vm1635, %v1274
    %1840 = vst.msk [vmem:[%s334 + $0x660] sm:$0xff] %vm1635, %v1276
    %1841 = vst.msk [vmem:[%s334 + $0x668] sm:$0xff] %vm1635, %v1278
    %1842 = vst.msk [vmem:[%s334 + $0x670] sm:$0xff] %vm1635, %v1280
    %1843 = vst.msk [vmem:[%s334 + $0x678] sm:$0xff] %vm1635, %v1282
    %1844 = vst.msk [vmem:[%s334 + $0x680] sm:$0xff] %vm1635, %v1284
    %1845 = vst.msk [vmem:[%s334 + $0x688] sm:$0xff] %vm1635, %v1286
    %1846 = vst.msk [vmem:[%s334 + $0x690] sm:$0xff] %vm1635, %v1288
    %1847 = vst.msk [vmem:[%s334 + $0x698] sm:$0xff] %vm1635, %v1290
    %1848 = vst.msk [vmem:[%s334 + $0x6a0] sm:$0xff] %vm1635, %v1292
    %1849 = vst.msk [vmem:[%s334 + $0x6a8] sm:$0xff] %vm1635, %v1294
    %1850 = vst.msk [vmem:[%s334 + $0x6b0] sm:$0xff] %vm1635, %v1296
    %1851 = vst.msk [vmem:[%s334 + $0x6b8] sm:$0xff] %vm1635, %v1298
    %1852 = vst.msk [vmem:[%s334 + $0x6c0] sm:$0xff] %vm1635, %v1300
    %1853 = vst.msk [vmem:[%s334 + $0x6c8] sm:$0xff] %vm1635, %v1302
    %1854 = vst.msk [vmem:[%s334 + $0x6d0] sm:$0xff] %vm1635, %v1304
    %1855 = vst.msk [vmem:[%s334 + $0x6d8] sm:$0xff] %vm1635, %v1306
    %1856 = vst.msk [vmem:[%s334 + $0x6e0] sm:$0xff] %vm1635, %v1308
    %1857 = vst.msk [vmem:[%s334 + $0x6e8] sm:$0xff] %vm1635, %v1310
    %1858 = vst.msk [vmem:[%s334 + $0x6f0] sm:$0xff] %vm1635, %v1312
    %1859 = vst.msk [vmem:[%s334 + $0x6f8] sm:$0xff] %vm1635, %v1314
    %1860 = vst.msk [vmem:[%s334 + $0x700] sm:$0xff] %vm1635, %v1316
    %1861 = vst.msk [vmem:[%s334 + $0x708] sm:$0xff] %vm1635, %v1318
    %1862 = vst.msk [vmem:[%s334 + $0x710] sm:$0xff] %vm1635, %v1320
    %1863 = vst.msk [vmem:[%s334 + $0x718] sm:$0xff] %vm1635, %v1322
    %1864 = vst.msk [vmem:[%s334 + $0x720] sm:$0xff] %vm1635, %v1324
    %1865 = vst.msk [vmem:[%s334 + $0x728] sm:$0xff] %vm1635, %v1326
    %1866 = vst.msk [vmem:[%s334 + $0x730] sm:$0xff] %vm1635, %v1328
    %1867 = vst.msk [vmem:[%s334 + $0x738] sm:$0xff] %vm1635, %v1330
    %1868 = vst.msk [vmem:[%s334 + $0x740] sm:$0xff] %vm1635, %v1332
    %1869 = vst.msk [vmem:[%s334 + $0x748] sm:$0xff] %vm1635, %v1334
    %1870 = vst.msk [vmem:[%s334 + $0x750] sm:$0xff] %vm1635, %v1336
    %1871 = vst.msk [vmem:[%s334 + $0x758] sm:$0xff] %vm1635, %v1338
    %1872 = vst.msk [vmem:[%s334 + $0x760] sm:$0xff] %vm1635, %v1340
    %1873 = vst.msk [vmem:[%s334 + $0x768] sm:$0xff] %vm1635, %v1342
    %1874 = vst.msk [vmem:[%s334 + $0x770] sm:$0xff] %vm1635, %v1344
    %1875 = vst.msk [vmem:[%s334 + $0x778] sm:$0xff] %vm1635, %v1346
    %1876 = vst.msk [vmem:[%s334 + $0x780] sm:$0xff] %vm1635, %v1348
    %1877 = vst.msk [vmem:[%s334 + $0x788] sm:$0xff] %vm1635, %v1350
    %1878 = vst.msk [vmem:[%s334 + $0x790] sm:$0xff] %vm1635, %v1352
    %1879 = vst.msk [vmem:[%s334 + $0x798] sm:$0xff] %vm1635, %v1354
    %1880 = vst.msk [vmem:[%s334 + $0x7a0] sm:$0xff] %vm1635, %v1356
    %1881 = vst.msk [vmem:[%s334 + $0x7a8] sm:$0xff] %vm1635, %v1358
    %1882 = vst.msk [vmem:[%s334 + $0x7b0] sm:$0xff] %vm1635, %v1360
    %1883 = vst.msk [vmem:[%s334 + $0x7b8] sm:$0xff] %vm1635, %v1362
    %1884 = vst.msk [vmem:[%s334 + $0x7c0] sm:$0xff] %vm1635, %v1364
    %1885 = vst.msk [vmem:[%s334 + $0x7c8] sm:$0xff] %vm1635, %v1366
    %1886 = vst.msk [vmem:[%s334 + $0x7d0] sm:$0xff] %vm1635, %v1368
    %1887 = vst.msk [vmem:[%s334 + $0x7d8] sm:$0xff] %vm1635, %v1370
    %1888 = vst.msk [vmem:[%s334 + $0x7e0] sm:$0xff] %vm1635, %v1372
    %1889 = vst.msk [vmem:[%s334 + $0x7e8] sm:$0xff] %vm1635, %v1374
    %1890 = vst.msk [vmem:[%s334 + $0x7f0] sm:$0xff] %vm1635, %v1376
    %1891 = vst.msk [vmem:[%s334 + $0x7f8] sm:$0xff] %vm1635, %v1378
    %1892 = vrot.lane.b32.xlu0 %v44, 6
    %v1893 = vpop.permute.xlu0 %1892
    %1894 = vrot.lane.b32.xlu0 %v45, 6
    %v1895 = vpop.permute.xlu0 %1894
    %1896 = vrot.lane.b32.xlu0 %v46, 6
    %v1897 = vpop.permute.xlu0 %1896
    %1898 = vrot.lane.b32.xlu0 %v47, 6
    %v1899 = vpop.permute.xlu0 %1898
    %1900 = vrot.lane.b32.xlu0 %v48, 6
    %v1901 = vpop.permute.xlu0 %1900
    %1902 = vrot.lane.b32.xlu0 %v49, 6
    %v1903 = vpop.permute.xlu0 %1902
    %1904 = vrot.lane.b32.xlu0 %v50, 6
    %v1905 = vpop.permute.xlu0 %1904
    %1906 = vrot.lane.b32.xlu0 %v51, 6
    %v1907 = vpop.permute.xlu0 %1906
    %1908 = vrot.lane.b32.xlu0 %v52, 6
    %v1909 = vpop.permute.xlu0 %1908
    %1910 = vrot.lane.b32.xlu0 %v53, 6
    %v1911 = vpop.permute.xlu0 %1910
    %1912 = vrot.lane.b32.xlu0 %v54, 6
    %v1913 = vpop.permute.xlu0 %1912
    %1914 = vrot.lane.b32.xlu0 %v55, 6
    %v1915 = vpop.permute.xlu0 %1914
    %1916 = vrot.lane.b32.xlu0 %v56, 6
    %v1917 = vpop.permute.xlu0 %1916
    %1918 = vrot.lane.b32.xlu0 %v57, 6
    %v1919 = vpop.permute.xlu0 %1918
    %1920 = vrot.lane.b32.xlu0 %v58, 6
    %v1921 = vpop.permute.xlu0 %1920
    %1922 = vrot.lane.b32.xlu0 %v60, 6
    %v1923 = vpop.permute.xlu0 %1922
    %1924 = vrot.lane.b32.xlu0 %v61, 6
    %v1925 = vpop.permute.xlu0 %1924
    %1926 = vrot.lane.b32.xlu0 %v62, 6
    %v1927 = vpop.permute.xlu0 %1926
    %1928 = vrot.lane.b32.xlu0 %v63, 6
    %v1929 = vpop.permute.xlu0 %1928
    %1930 = vrot.lane.b32.xlu0 %v64, 6
    %v1931 = vpop.permute.xlu0 %1930
    %1932 = vrot.lane.b32.xlu0 %v65, 6
    %v1933 = vpop.permute.xlu0 %1932
    %1934 = vrot.lane.b32.xlu0 %v66, 6
    %v1935 = vpop.permute.xlu0 %1934
    %1936 = vrot.lane.b32.xlu0 %v67, 6
    %v1937 = vpop.permute.xlu0 %1936
    %1938 = vrot.lane.b32.xlu0 %v68, 6
    %v1939 = vpop.permute.xlu0 %1938
    %1940 = vrot.lane.b32.xlu0 %v69, 6
    %v1941 = vpop.permute.xlu0 %1940
    %1942 = vrot.lane.b32.xlu0 %v70, 6
    %v1943 = vpop.permute.xlu0 %1942
    %1944 = vrot.lane.b32.xlu0 %v71, 6
    %v1945 = vpop.permute.xlu0 %1944
    %1946 = vrot.lane.b32.xlu0 %v72, 6
    %v1947 = vpop.permute.xlu0 %1946
    %1948 = vrot.lane.b32.xlu0 %v73, 6
    %v1949 = vpop.permute.xlu0 %1948
    %1950 = vrot.lane.b32.xlu0 %v74, 6
    %v1951 = vpop.permute.xlu0 %1950
    %1952 = vrot.lane.b32.xlu0 %v76, 6
    %v1953 = vpop.permute.xlu0 %1952
    %1954 = vrot.lane.b32.xlu0 %v77, 6
    %v1955 = vpop.permute.xlu0 %1954
    %1956 = vrot.lane.b32.xlu0 %v78, 6
    %v1957 = vpop.permute.xlu0 %1956
    %1958 = vrot.lane.b32.xlu0 %v79, 6
    %v1959 = vpop.permute.xlu0 %1958
    %1960 = vrot.lane.b32.xlu0 %v80, 6
    %v1961 = vpop.permute.xlu0 %1960
    %1962 = vrot.lane.b32.xlu0 %v81, 6
    %v1963 = vpop.permute.xlu0 %1962
    %1964 = vrot.lane.b32.xlu0 %v82, 6
    %v1965 = vpop.permute.xlu0 %1964
    %1966 = vrot.lane.b32.xlu0 %v83, 6
    %v1967 = vpop.permute.xlu0 %1966
    %1968 = vrot.lane.b32.xlu0 %v84, 6
    %v1969 = vpop.permute.xlu0 %1968
    %1970 = vrot.lane.b32.xlu0 %v85, 6
    %v1971 = vpop.permute.xlu0 %1970
    %1972 = vrot.lane.b32.xlu0 %v86, 6
    %v1973 = vpop.permute.xlu0 %1972
    %1974 = vrot.lane.b32.xlu0 %v87, 6
    %v1975 = vpop.permute.xlu0 %1974
    %1976 = vrot.lane.b32.xlu0 %v88, 6
    %v1977 = vpop.permute.xlu0 %1976
    %1978 = vrot.lane.b32.xlu0 %v89, 6
    %v1979 = vpop.permute.xlu0 %1978
    %1980 = vrot.lane.b32.xlu0 %v90, 6
    %v1981 = vpop.permute.xlu0 %1980
    %1982 = vrot.lane.b32.xlu0 %v92, 6
    %v1983 = vpop.permute.xlu0 %1982
    %1984 = vrot.lane.b32.xlu0 %v93, 6
    %v1985 = vpop.permute.xlu0 %1984
    %1986 = vrot.lane.b32.xlu0 %v94, 6
    %v1987 = vpop.permute.xlu0 %1986
    %1988 = vrot.lane.b32.xlu0 %v95, 6
    %v1989 = vpop.permute.xlu0 %1988
    %1990 = vrot.lane.b32.xlu0 %v96, 6
    %v1991 = vpop.permute.xlu0 %1990
    %1992 = vrot.lane.b32.xlu0 %v97, 6
    %v1993 = vpop.permute.xlu0 %1992
    %1994 = vrot.lane.b32.xlu0 %v98, 6
    %v1995 = vpop.permute.xlu0 %1994
    %1996 = vrot.lane.b32.xlu0 %v99, 6
    %v1997 = vpop.permute.xlu0 %1996
    %1998 = vrot.lane.b32.xlu0 %v100, 6
    %v1999 = vpop.permute.xlu0 %1998
    %2000 = vrot.lane.b32.xlu0 %v101, 6
    %v2001 = vpop.permute.xlu0 %2000
    %2002 = vrot.lane.b32.xlu0 %v102, 6
    %v2003 = vpop.permute.xlu0 %2002
    %2004 = vrot.lane.b32.xlu0 %v103, 6
    %v2005 = vpop.permute.xlu0 %2004
    %2006 = vrot.lane.b32.xlu0 %v104, 6
    %v2007 = vpop.permute.xlu0 %2006
    %2008 = vrot.lane.b32.xlu0 %v105, 6
    %v2009 = vpop.permute.xlu0 %2008
    %2010 = vrot.lane.b32.xlu0 %v106, 6
    %v2011 = vpop.permute.xlu0 %2010
    %2012 = vrot.lane.b32.xlu0 %v108, 6
    %v2013 = vpop.permute.xlu0 %2012
    %2014 = vrot.lane.b32.xlu0 %v109, 6
    %v2015 = vpop.permute.xlu0 %2014
    %2016 = vrot.lane.b32.xlu0 %v110, 6
    %v2017 = vpop.permute.xlu0 %2016
    %2018 = vrot.lane.b32.xlu0 %v111, 6
    %v2019 = vpop.permute.xlu0 %2018
    %2020 = vrot.lane.b32.xlu0 %v112, 6
    %v2021 = vpop.permute.xlu0 %2020
    %2022 = vrot.lane.b32.xlu0 %v113, 6
    %v2023 = vpop.permute.xlu0 %2022
    %2024 = vrot.lane.b32.xlu0 %v114, 6
    %v2025 = vpop.permute.xlu0 %2024
    %2026 = vrot.lane.b32.xlu0 %v115, 6
    %v2027 = vpop.permute.xlu0 %2026
    %2028 = vrot.lane.b32.xlu0 %v116, 6
    %v2029 = vpop.permute.xlu0 %2028
    %2030 = vrot.lane.b32.xlu0 %v117, 6
    %v2031 = vpop.permute.xlu0 %2030
    %2032 = vrot.lane.b32.xlu0 %v118, 6
    %v2033 = vpop.permute.xlu0 %2032
    %2034 = vrot.lane.b32.xlu0 %v119, 6
    %v2035 = vpop.permute.xlu0 %2034
    %2036 = vrot.lane.b32.xlu0 %v120, 6
    %v2037 = vpop.permute.xlu0 %2036
    %2038 = vrot.lane.b32.xlu0 %v121, 6
    %v2039 = vpop.permute.xlu0 %2038
    %2040 = vrot.lane.b32.xlu0 %v122, 6
    %v2041 = vpop.permute.xlu0 %2040
    %2042 = vrot.lane.b32.xlu0 %v124, 6
    %v2043 = vpop.permute.xlu0 %2042
    %2044 = vrot.lane.b32.xlu0 %v125, 6
    %v2045 = vpop.permute.xlu0 %2044
    %2046 = vrot.lane.b32.xlu0 %v126, 6
    %v2047 = vpop.permute.xlu0 %2046
    %2048 = vrot.lane.b32.xlu0 %v127, 6
    %v2049 = vpop.permute.xlu0 %2048
    %2050 = vrot.lane.b32.xlu0 %v128, 6
    %v2051 = vpop.permute.xlu0 %2050
    %2052 = vrot.lane.b32.xlu0 %v129, 6
    %v2053 = vpop.permute.xlu0 %2052
    %2054 = vrot.lane.b32.xlu0 %v130, 6
    %v2055 = vpop.permute.xlu0 %2054
    %2056 = vrot.lane.b32.xlu0 %v131, 6
    %v2057 = vpop.permute.xlu0 %2056
    %2058 = vrot.lane.b32.xlu0 %v132, 6
    %v2059 = vpop.permute.xlu0 %2058
    %2060 = vrot.lane.b32.xlu0 %v133, 6
    %v2061 = vpop.permute.xlu0 %2060
    %2062 = vrot.lane.b32.xlu0 %v134, 6
    %v2063 = vpop.permute.xlu0 %2062
    %2064 = vrot.lane.b32.xlu0 %v135, 6
    %v2065 = vpop.permute.xlu0 %2064
    %2066 = vrot.lane.b32.xlu0 %v136, 6
    %v2067 = vpop.permute.xlu0 %2066
    %2068 = vrot.lane.b32.xlu0 %v137, 6
    %v2069 = vpop.permute.xlu0 %2068
    %2070 = vrot.lane.b32.xlu0 %v138, 6
    %v2071 = vpop.permute.xlu0 %2070
    %2072 = vrot.lane.b32.xlu0 %v140, 6
    %v2073 = vpop.permute.xlu0 %2072
    %2074 = vrot.lane.b32.xlu0 %v141, 6
    %v2075 = vpop.permute.xlu0 %2074
    %2076 = vrot.lane.b32.xlu0 %v142, 6
    %v2077 = vpop.permute.xlu0 %2076
    %2078 = vrot.lane.b32.xlu0 %v143, 6
    %v2079 = vpop.permute.xlu0 %2078
    %2080 = vrot.lane.b32.xlu0 %v144, 6
    %v2081 = vpop.permute.xlu0 %2080
    %2082 = vrot.lane.b32.xlu0 %v145, 6
    %v2083 = vpop.permute.xlu0 %2082
    %2084 = vrot.lane.b32.xlu0 %v146, 6
    %v2085 = vpop.permute.xlu0 %2084
    %2086 = vrot.lane.b32.xlu0 %v147, 6
    %v2087 = vpop.permute.xlu0 %2086
    %2088 = vrot.lane.b32.xlu0 %v148, 6
    %v2089 = vpop.permute.xlu0 %2088
    %2090 = vrot.lane.b32.xlu0 %v149, 6
    %v2091 = vpop.permute.xlu0 %2090
    %2092 = vrot.lane.b32.xlu0 %v150, 6
    %v2093 = vpop.permute.xlu0 %2092
    %2094 = vrot.lane.b32.xlu0 %v151, 6
    %v2095 = vpop.permute.xlu0 %2094
    %2096 = vrot.lane.b32.xlu0 %v152, 6
    %v2097 = vpop.permute.xlu0 %2096
    %2098 = vrot.lane.b32.xlu0 %v153, 6
    %v2099 = vpop.permute.xlu0 %2098
    %2100 = vrot.lane.b32.xlu0 %v154, 6
    %v2101 = vpop.permute.xlu0 %2100
    %2102 = vrot.lane.b32.xlu0 %v156, 6
    %v2103 = vpop.permute.xlu0 %2102
    %2104 = vrot.lane.b32.xlu0 %v157, 6
    %v2105 = vpop.permute.xlu0 %2104
    %2106 = vrot.lane.b32.xlu0 %v158, 6
    %v2107 = vpop.permute.xlu0 %2106
    %2108 = vrot.lane.b32.xlu0 %v159, 6
    %v2109 = vpop.permute.xlu0 %2108
    %2110 = vrot.lane.b32.xlu0 %v160, 6
    %v2111 = vpop.permute.xlu0 %2110
    %2112 = vrot.lane.b32.xlu0 %v161, 6
    %v2113 = vpop.permute.xlu0 %2112
    %2114 = vrot.lane.b32.xlu0 %v162, 6
    %v2115 = vpop.permute.xlu0 %2114
    %2116 = vrot.lane.b32.xlu0 %v163, 6
    %v2117 = vpop.permute.xlu0 %2116
    %2118 = vrot.lane.b32.xlu0 %v164, 6
    %v2119 = vpop.permute.xlu0 %2118
    %2120 = vrot.lane.b32.xlu0 %v165, 6
    %v2121 = vpop.permute.xlu0 %2120
    %2122 = vrot.lane.b32.xlu0 %v166, 6
    %v2123 = vpop.permute.xlu0 %2122
    %2124 = vrot.lane.b32.xlu0 %v167, 6
    %v2125 = vpop.permute.xlu0 %2124
    %2126 = vrot.lane.b32.xlu0 %v168, 6
    %v2127 = vpop.permute.xlu0 %2126
    %2128 = vrot.lane.b32.xlu0 %v169, 6
    %v2129 = vpop.permute.xlu0 %2128
    %2130 = vrot.lane.b32.xlu0 %v170, 6
    %v2131 = vpop.permute.xlu0 %2130
    %2132 = vrot.lane.b32.xlu0 %v172, 6
    %v2133 = vpop.permute.xlu0 %2132
    %2134 = vrot.lane.b32.xlu0 %v173, 6
    %v2135 = vpop.permute.xlu0 %2134
    %2136 = vrot.lane.b32.xlu0 %v174, 6
    %v2137 = vpop.permute.xlu0 %2136
    %2138 = vrot.lane.b32.xlu0 %v175, 6
    %v2139 = vpop.permute.xlu0 %2138
    %2140 = vrot.lane.b32.xlu0 %v176, 6
    %v2141 = vpop.permute.xlu0 %2140
    %2142 = vrot.lane.b32.xlu0 %v177, 6
    %v2143 = vpop.permute.xlu0 %2142
    %2144 = vrot.lane.b32.xlu0 %v178, 6
    %v2145 = vpop.permute.xlu0 %2144
    %2146 = vrot.lane.b32.xlu0 %v179, 6
    %v2147 = vpop.permute.xlu0 %2146
    %2148 = vrot.lane.b32.xlu0 %v180, 6
    %v2149 = vpop.permute.xlu0 %2148
    %2150 = vrot.lane.b32.xlu0 %v181, 6
    %v2151 = vpop.permute.xlu0 %2150
    %2152 = vrot.lane.b32.xlu0 %v182, 6
    %v2153 = vpop.permute.xlu0 %2152
    %2154 = vrot.lane.b32.xlu0 %v183, 6
    %v2155 = vpop.permute.xlu0 %2154
    %2156 = vrot.lane.b32.xlu0 %v184, 6
    %v2157 = vpop.permute.xlu0 %2156
    %2158 = vrot.lane.b32.xlu0 %v185, 6
    %v2159 = vpop.permute.xlu0 %2158
    %2160 = vrot.lane.b32.xlu0 %v186, 6
    %v2161 = vpop.permute.xlu0 %2160
    %2162 = vrot.lane.b32.xlu0 %v188, 6
    %v2163 = vpop.permute.xlu0 %2162
    %2164 = vrot.lane.b32.xlu0 %v189, 6
    %v2165 = vpop.permute.xlu0 %2164
    %2166 = vrot.lane.b32.xlu0 %v190, 6
    %v2167 = vpop.permute.xlu0 %2166
    %2168 = vrot.lane.b32.xlu0 %v191, 6
    %v2169 = vpop.permute.xlu0 %2168
    %2170 = vrot.lane.b32.xlu0 %v192, 6
    %v2171 = vpop.permute.xlu0 %2170
    %2172 = vrot.lane.b32.xlu0 %v193, 6
    %v2173 = vpop.permute.xlu0 %2172
    %2174 = vrot.lane.b32.xlu0 %v194, 6
    %v2175 = vpop.permute.xlu0 %2174
    %2176 = vrot.lane.b32.xlu0 %v195, 6
    %v2177 = vpop.permute.xlu0 %2176
    %2178 = vrot.lane.b32.xlu0 %v196, 6
    %v2179 = vpop.permute.xlu0 %2178
    %2180 = vrot.lane.b32.xlu0 %v197, 6
    %v2181 = vpop.permute.xlu0 %2180
    %2182 = vrot.lane.b32.xlu0 %v198, 6
    %v2183 = vpop.permute.xlu0 %2182
    %2184 = vrot.lane.b32.xlu0 %v199, 6
    %v2185 = vpop.permute.xlu0 %2184
    %2186 = vrot.lane.b32.xlu0 %v200, 6
    %v2187 = vpop.permute.xlu0 %2186
    %2188 = vrot.lane.b32.xlu0 %v201, 6
    %v2189 = vpop.permute.xlu0 %2188
    %2190 = vrot.lane.b32.xlu0 %v202, 6
    %v2191 = vpop.permute.xlu0 %2190
    %2192 = vrot.lane.b32.xlu0 %v204, 6
    %v2193 = vpop.permute.xlu0 %2192
    %2194 = vrot.lane.b32.xlu0 %v205, 6
    %v2195 = vpop.permute.xlu0 %2194
    %2196 = vrot.lane.b32.xlu0 %v206, 6
    %v2197 = vpop.permute.xlu0 %2196
    %2198 = vrot.lane.b32.xlu0 %v207, 6
    %v2199 = vpop.permute.xlu0 %2198
    %2200 = vrot.lane.b32.xlu0 %v208, 6
    %v2201 = vpop.permute.xlu0 %2200
    %2202 = vrot.lane.b32.xlu0 %v209, 6
    %v2203 = vpop.permute.xlu0 %2202
    %2204 = vrot.lane.b32.xlu0 %v210, 6
    %v2205 = vpop.permute.xlu0 %2204
    %2206 = vrot.lane.b32.xlu0 %v211, 6
    %v2207 = vpop.permute.xlu0 %2206
    %2208 = vrot.lane.b32.xlu0 %v212, 6
    %v2209 = vpop.permute.xlu0 %2208
    %2210 = vrot.lane.b32.xlu0 %v213, 6
    %v2211 = vpop.permute.xlu0 %2210
    %2212 = vrot.lane.b32.xlu0 %v214, 6
    %v2213 = vpop.permute.xlu0 %2212
    %2214 = vrot.lane.b32.xlu0 %v215, 6
    %v2215 = vpop.permute.xlu0 %2214
    %2216 = vrot.lane.b32.xlu0 %v216, 6
    %v2217 = vpop.permute.xlu0 %2216
    %2218 = vrot.lane.b32.xlu0 %v217, 6
    %v2219 = vpop.permute.xlu0 %2218
    %2220 = vrot.lane.b32.xlu0 %v218, 6
    %v2221 = vpop.permute.xlu0 %2220
    %2222 = vrot.lane.b32.xlu0 %v220, 6
    %v2223 = vpop.permute.xlu0 %2222
    %2224 = vrot.lane.b32.xlu0 %v221, 6
    %v2225 = vpop.permute.xlu0 %2224
    %2226 = vrot.lane.b32.xlu0 %v222, 6
    %v2227 = vpop.permute.xlu0 %2226
    %2228 = vrot.lane.b32.xlu0 %v223, 6
    %v2229 = vpop.permute.xlu0 %2228
    %2230 = vrot.lane.b32.xlu0 %v224, 6
    %v2231 = vpop.permute.xlu0 %2230
    %2232 = vrot.lane.b32.xlu0 %v225, 6
    %v2233 = vpop.permute.xlu0 %2232
    %2234 = vrot.lane.b32.xlu0 %v226, 6
    %v2235 = vpop.permute.xlu0 %2234
    %2236 = vrot.lane.b32.xlu0 %v227, 6
    %v2237 = vpop.permute.xlu0 %2236
    %2238 = vrot.lane.b32.xlu0 %v228, 6
    %v2239 = vpop.permute.xlu0 %2238
    %2240 = vrot.lane.b32.xlu0 %v229, 6
    %v2241 = vpop.permute.xlu0 %2240
    %2242 = vrot.lane.b32.xlu0 %v230, 6
    %v2243 = vpop.permute.xlu0 %2242
    %2244 = vrot.lane.b32.xlu0 %v231, 6
    %v2245 = vpop.permute.xlu0 %2244
    %2246 = vrot.lane.b32.xlu0 %v232, 6
    %v2247 = vpop.permute.xlu0 %2246
    %2248 = vrot.lane.b32.xlu0 %v233, 6
    %v2249 = vpop.permute.xlu0 %2248
    %2250 = vrot.lane.b32.xlu0 %v234, 6
    %v2251 = vpop.permute.xlu0 %2250
    %2252 = vrot.lane.b32.xlu0 %v236, 6
    %v2253 = vpop.permute.xlu0 %2252
    %2254 = vrot.lane.b32.xlu0 %v237, 6
    %v2255 = vpop.permute.xlu0 %2254
    %2256 = vrot.lane.b32.xlu0 %v238, 6
    %v2257 = vpop.permute.xlu0 %2256
    %2258 = vrot.lane.b32.xlu0 %v239, 6
    %v2259 = vpop.permute.xlu0 %2258
    %2260 = vrot.lane.b32.xlu0 %v240, 6
    %v2261 = vpop.permute.xlu0 %2260
    %2262 = vrot.lane.b32.xlu0 %v241, 6
    %v2263 = vpop.permute.xlu0 %2262
    %2264 = vrot.lane.b32.xlu0 %v242, 6
    %v2265 = vpop.permute.xlu0 %2264
    %2266 = vrot.lane.b32.xlu0 %v243, 6
    %v2267 = vpop.permute.xlu0 %2266
    %2268 = vrot.lane.b32.xlu0 %v244, 6
    %v2269 = vpop.permute.xlu0 %2268
    %2270 = vrot.lane.b32.xlu0 %v245, 6
    %v2271 = vpop.permute.xlu0 %2270
    %2272 = vrot.lane.b32.xlu0 %v246, 6
    %v2273 = vpop.permute.xlu0 %2272
    %2274 = vrot.lane.b32.xlu0 %v247, 6
    %v2275 = vpop.permute.xlu0 %2274
    %2276 = vrot.lane.b32.xlu0 %v248, 6
    %v2277 = vpop.permute.xlu0 %2276
    %2278 = vrot.lane.b32.xlu0 %v249, 6
    %v2279 = vpop.permute.xlu0 %2278
    %2280 = vrot.lane.b32.xlu0 %v250, 6
    %v2281 = vpop.permute.xlu0 %2280
    %2282 = vrot.lane.b32.xlu0 %v252, 6
    %v2283 = vpop.permute.xlu0 %2282
    %2284 = vrot.lane.b32.xlu0 %v253, 6
    %v2285 = vpop.permute.xlu0 %2284
    %2286 = vrot.lane.b32.xlu0 %v254, 6
    %v2287 = vpop.permute.xlu0 %2286
    %2288 = vrot.lane.b32.xlu0 %v255, 6
    %v2289 = vpop.permute.xlu0 %2288
    %2290 = vrot.lane.b32.xlu0 %v256, 6
    %v2291 = vpop.permute.xlu0 %2290
    %2292 = vrot.lane.b32.xlu0 %v257, 6
    %v2293 = vpop.permute.xlu0 %2292
    %2294 = vrot.lane.b32.xlu0 %v258, 6
    %v2295 = vpop.permute.xlu0 %2294
    %2296 = vrot.lane.b32.xlu0 %v259, 6
    %v2297 = vpop.permute.xlu0 %2296
    %2298 = vrot.lane.b32.xlu0 %v260, 6
    %v2299 = vpop.permute.xlu0 %2298
    %2300 = vrot.lane.b32.xlu0 %v261, 6
    %v2301 = vpop.permute.xlu0 %2300
    %2302 = vrot.lane.b32.xlu0 %v262, 6
    %v2303 = vpop.permute.xlu0 %2302
    %2304 = vrot.lane.b32.xlu0 %v263, 6
    %v2305 = vpop.permute.xlu0 %2304
    %2306 = vrot.lane.b32.xlu0 %v264, 6
    %v2307 = vpop.permute.xlu0 %2306
    %2308 = vrot.lane.b32.xlu0 %v265, 6
    %v2309 = vpop.permute.xlu0 %2308
    %2310 = vrot.lane.b32.xlu0 %v266, 6
    %v2311 = vpop.permute.xlu0 %2310
    %2312 = vrot.lane.b32.xlu0 %v268, 6
    %v2313 = vpop.permute.xlu0 %2312
    %2314 = vrot.lane.b32.xlu0 %v269, 6
    %v2315 = vpop.permute.xlu0 %2314
    %2316 = vrot.lane.b32.xlu0 %v270, 6
    %v2317 = vpop.permute.xlu0 %2316
    %2318 = vrot.lane.b32.xlu0 %v271, 6
    %v2319 = vpop.permute.xlu0 %2318
    %2320 = vrot.lane.b32.xlu0 %v272, 6
    %v2321 = vpop.permute.xlu0 %2320
    %2322 = vrot.lane.b32.xlu0 %v273, 6
    %v2323 = vpop.permute.xlu0 %2322
    %2324 = vrot.lane.b32.xlu0 %v274, 6
    %v2325 = vpop.permute.xlu0 %2324
    %2326 = vrot.lane.b32.xlu0 %v275, 6
    %v2327 = vpop.permute.xlu0 %2326
    %2328 = vrot.lane.b32.xlu0 %v276, 6
    %v2329 = vpop.permute.xlu0 %2328
    %2330 = vrot.lane.b32.xlu0 %v277, 6
    %v2331 = vpop.permute.xlu0 %2330
    %2332 = vrot.lane.b32.xlu0 %v278, 6
    %v2333 = vpop.permute.xlu0 %2332
    %2334 = vrot.lane.b32.xlu0 %v279, 6
    %v2335 = vpop.permute.xlu0 %2334
    %2336 = vrot.lane.b32.xlu0 %v280, 6
    %v2337 = vpop.permute.xlu0 %2336
    %2338 = vrot.lane.b32.xlu0 %v281, 6
    %v2339 = vpop.permute.xlu0 %2338
    %2340 = vrot.lane.b32.xlu0 %v282, 6
    %v2341 = vpop.permute.xlu0 %2340
    %2342 = vrot.lane.b32.xlu0 %v284, 6
    %v2343 = vpop.permute.xlu0 %2342
    %2344 = vrot.lane.b32.xlu0 %v285, 6
    %v2345 = vpop.permute.xlu0 %2344
    %2346 = vrot.lane.b32.xlu0 %v286, 6
    %v2347 = vpop.permute.xlu0 %2346
    %2348 = vrot.lane.b32.xlu0 %v287, 6
    %v2349 = vpop.permute.xlu0 %2348
    %2350 = vrot.lane.b32.xlu0 %v288, 6
    %v2351 = vpop.permute.xlu0 %2350
    %2352 = vrot.lane.b32.xlu0 %v289, 6
    %v2353 = vpop.permute.xlu0 %2352
    %2354 = vrot.lane.b32.xlu0 %v290, 6
    %v2355 = vpop.permute.xlu0 %2354
    %2356 = vrot.lane.b32.xlu0 %v291, 6
    %v2357 = vpop.permute.xlu0 %2356
    %2358 = vrot.lane.b32.xlu0 %v292, 6
    %v2359 = vpop.permute.xlu0 %2358
    %2360 = vrot.lane.b32.xlu0 %v293, 6
    %v2361 = vpop.permute.xlu0 %2360
    %2362 = vrot.lane.b32.xlu0 %v294, 6
    %v2363 = vpop.permute.xlu0 %2362
    %2364 = vrot.lane.b32.xlu0 %v295, 6
    %v2365 = vpop.permute.xlu0 %2364
    %2366 = vrot.lane.b32.xlu0 %v296, 6
    %v2367 = vpop.permute.xlu0 %2366
    %2368 = vrot.lane.b32.xlu0 %v297, 6
    %v2369 = vpop.permute.xlu0 %2368
    %2370 = vrot.lane.b32.xlu0 %v298, 6
    %v2371 = vpop.permute.xlu0 %2370
    %2612 = vst.msk [vmem:[%s334] sm:$0xff] %vm353, %v1893
    %2613 = vst.msk [vmem:[%s334 + $0x8] sm:$0xff] %vm353, %v1895
    %2614 = vst.msk [vmem:[%s334 + $0x10] sm:$0xff] %vm353, %v1897
    %2615 = vst.msk [vmem:[%s334 + $0x18] sm:$0xff] %vm353, %v1899
    %2616 = vst.msk [vmem:[%s334 + $0x20] sm:$0xff] %vm353, %v1901
    %2617 = vst.msk [vmem:[%s334 + $0x28] sm:$0xff] %vm353, %v1903
    %2618 = vst.msk [vmem:[%s334 + $0x30] sm:$0xff] %vm353, %v1905
    %2619 = vst.msk [vmem:[%s334 + $0x38] sm:$0xff] %vm353, %v1907
    %2620 = vst.msk [vmem:[%s334 + $0x40] sm:$0xff] %vm353, %v1909
    %2621 = vst.msk [vmem:[%s334 + $0x48] sm:$0xff] %vm353, %v1911
    %2622 = vst.msk [vmem:[%s334 + $0x50] sm:$0xff] %vm353, %v1913
    %2623 = vst.msk [vmem:[%s334 + $0x58] sm:$0xff] %vm353, %v1915
    %2624 = vst.msk [vmem:[%s334 + $0x60] sm:$0xff] %vm353, %v1917
    %2625 = vst.msk [vmem:[%s334 + $0x68] sm:$0xff] %vm353, %v1919
    %2626 = vst.msk [vmem:[%s334 + $0x70] sm:$0xff] %vm353, %v1921
    %2627 = vst.msk [vmem:[%s334 + $0x80] sm:$0xff] %vm353, %v1923
    %2628 = vst.msk [vmem:[%s334 + $0x88] sm:$0xff] %vm353, %v1925
    %2629 = vst.msk [vmem:[%s334 + $0x90] sm:$0xff] %vm353, %v1927
    %2630 = vst.msk [vmem:[%s334 + $0x98] sm:$0xff] %vm353, %v1929
    %2631 = vst.msk [vmem:[%s334 + $0xa0] sm:$0xff] %vm353, %v1931
    %2632 = vst.msk [vmem:[%s334 + $0xa8] sm:$0xff] %vm353, %v1933
    %2633 = vst.msk [vmem:[%s334 + $0xb0] sm:$0xff] %vm353, %v1935
    %2634 = vst.msk [vmem:[%s334 + $0xb8] sm:$0xff] %vm353, %v1937
    %2635 = vst.msk [vmem:[%s334 + $0xc0] sm:$0xff] %vm353, %v1939
    %2636 = vst.msk [vmem:[%s334 + $0xc8] sm:$0xff] %vm353, %v1941
    %2637 = vst.msk [vmem:[%s334 + $0xd0] sm:$0xff] %vm353, %v1943
    %2638 = vst.msk [vmem:[%s334 + $0xd8] sm:$0xff] %vm353, %v1945
    %2639 = vst.msk [vmem:[%s334 + $0xe0] sm:$0xff] %vm353, %v1947
    %2640 = vst.msk [vmem:[%s334 + $0xe8] sm:$0xff] %vm353, %v1949
    %2641 = vst.msk [vmem:[%s334 + $0xf0] sm:$0xff] %vm353, %v1951
    %2642 = vst.msk [vmem:[%s334 + $0x100] sm:$0xff] %vm353, %v1953
    %2643 = vst.msk [vmem:[%s334 + $0x108] sm:$0xff] %vm353, %v1955
    %2644 = vst.msk [vmem:[%s334 + $0x110] sm:$0xff] %vm353, %v1957
    %2645 = vst.msk [vmem:[%s334 + $0x118] sm:$0xff] %vm353, %v1959
    %2646 = vst.msk [vmem:[%s334 + $0x120] sm:$0xff] %vm353, %v1961
    %2647 = vst.msk [vmem:[%s334 + $0x128] sm:$0xff] %vm353, %v1963
    %2648 = vst.msk [vmem:[%s334 + $0x130] sm:$0xff] %vm353, %v1965
    %2649 = vst.msk [vmem:[%s334 + $0x138] sm:$0xff] %vm353, %v1967
    %2650 = vst.msk [vmem:[%s334 + $0x140] sm:$0xff] %vm353, %v1969
    %2651 = vst.msk [vmem:[%s334 + $0x148] sm:$0xff] %vm353, %v1971
    %2652 = vst.msk [vmem:[%s334 + $0x150] sm:$0xff] %vm353, %v1973
    %2653 = vst.msk [vmem:[%s334 + $0x158] sm:$0xff] %vm353, %v1975
    %2654 = vst.msk [vmem:[%s334 + $0x160] sm:$0xff] %vm353, %v1977
    %2655 = vst.msk [vmem:[%s334 + $0x168] sm:$0xff] %vm353, %v1979
    %2656 = vst.msk [vmem:[%s334 + $0x170] sm:$0xff] %vm353, %v1981
    %2657 = vst.msk [vmem:[%s334 + $0x180] sm:$0xff] %vm353, %v1983
    %2658 = vst.msk [vmem:[%s334 + $0x188] sm:$0xff] %vm353, %v1985
    %2659 = vst.msk [vmem:[%s334 + $0x190] sm:$0xff] %vm353, %v1987
    %2660 = vst.msk [vmem:[%s334 + $0x198] sm:$0xff] %vm353, %v1989
    %2661 = vst.msk [vmem:[%s334 + $0x1a0] sm:$0xff] %vm353, %v1991
    %2662 = vst.msk [vmem:[%s334 + $0x1a8] sm:$0xff] %vm353, %v1993
    %2663 = vst.msk [vmem:[%s334 + $0x1b0] sm:$0xff] %vm353, %v1995
    %2664 = vst.msk [vmem:[%s334 + $0x1b8] sm:$0xff] %vm353, %v1997
    %2665 = vst.msk [vmem:[%s334 + $0x1c0] sm:$0xff] %vm353, %v1999
    %2666 = vst.msk [vmem:[%s334 + $0x1c8] sm:$0xff] %vm353, %v2001
    %2667 = vst.msk [vmem:[%s334 + $0x1d0] sm:$0xff] %vm353, %v2003
    %2668 = vst.msk [vmem:[%s334 + $0x1d8] sm:$0xff] %vm353, %v2005
    %2669 = vst.msk [vmem:[%s334 + $0x1e0] sm:$0xff] %vm353, %v2007
    %2670 = vst.msk [vmem:[%s334 + $0x1e8] sm:$0xff] %vm353, %v2009
    %2671 = vst.msk [vmem:[%s334 + $0x1f0] sm:$0xff] %vm353, %v2011
    %2672 = vst.msk [vmem:[%s334 + $0x200] sm:$0xff] %vm353, %v2013
    %2673 = vst.msk [vmem:[%s334 + $0x208] sm:$0xff] %vm353, %v2015
    %2674 = vst.msk [vmem:[%s334 + $0x210] sm:$0xff] %vm353, %v2017
    %2675 = vst.msk [vmem:[%s334 + $0x218] sm:$0xff] %vm353, %v2019
    %2676 = vst.msk [vmem:[%s334 + $0x220] sm:$0xff] %vm353, %v2021
    %2677 = vst.msk [vmem:[%s334 + $0x228] sm:$0xff] %vm353, %v2023
    %2678 = vst.msk [vmem:[%s334 + $0x230] sm:$0xff] %vm353, %v2025
    %2679 = vst.msk [vmem:[%s334 + $0x238] sm:$0xff] %vm353, %v2027
    %2680 = vst.msk [vmem:[%s334 + $0x240] sm:$0xff] %vm353, %v2029
    %2681 = vst.msk [vmem:[%s334 + $0x248] sm:$0xff] %vm353, %v2031
    %2682 = vst.msk [vmem:[%s334 + $0x250] sm:$0xff] %vm353, %v2033
    %2683 = vst.msk [vmem:[%s334 + $0x258] sm:$0xff] %vm353, %v2035
    %2684 = vst.msk [vmem:[%s334 + $0x260] sm:$0xff] %vm353, %v2037
    %2685 = vst.msk [vmem:[%s334 + $0x268] sm:$0xff] %vm353, %v2039
    %2686 = vst.msk [vmem:[%s334 + $0x270] sm:$0xff] %vm353, %v2041
    %2687 = vst.msk [vmem:[%s334 + $0x280] sm:$0xff] %vm353, %v2043
    %2688 = vst.msk [vmem:[%s334 + $0x288] sm:$0xff] %vm353, %v2045
    %2689 = vst.msk [vmem:[%s334 + $0x290] sm:$0xff] %vm353, %v2047
    %2690 = vst.msk [vmem:[%s334 + $0x298] sm:$0xff] %vm353, %v2049
    %2691 = vst.msk [vmem:[%s334 + $0x2a0] sm:$0xff] %vm353, %v2051
    %2692 = vst.msk [vmem:[%s334 + $0x2a8] sm:$0xff] %vm353, %v2053
    %2693 = vst.msk [vmem:[%s334 + $0x2b0] sm:$0xff] %vm353, %v2055
    %2694 = vst.msk [vmem:[%s334 + $0x2b8] sm:$0xff] %vm353, %v2057
    %2695 = vst.msk [vmem:[%s334 + $0x2c0] sm:$0xff] %vm353, %v2059
    %2696 = vst.msk [vmem:[%s334 + $0x2c8] sm:$0xff] %vm353, %v2061
    %2697 = vst.msk [vmem:[%s334 + $0x2d0] sm:$0xff] %vm353, %v2063
    %2698 = vst.msk [vmem:[%s334 + $0x2d8] sm:$0xff] %vm353, %v2065
    %2699 = vst.msk [vmem:[%s334 + $0x2e0] sm:$0xff] %vm353, %v2067
    %2700 = vst.msk [vmem:[%s334 + $0x2e8] sm:$0xff] %vm353, %v2069
    %2701 = vst.msk [vmem:[%s334 + $0x2f0] sm:$0xff] %vm353, %v2071
    %2702 = vst.msk [vmem:[%s334 + $0x300] sm:$0xff] %vm353, %v2073
    %2703 = vst.msk [vmem:[%s334 + $0x308] sm:$0xff] %vm353, %v2075
    %2704 = vst.msk [vmem:[%s334 + $0x310] sm:$0xff] %vm353, %v2077
    %2705 = vst.msk [vmem:[%s334 + $0x318] sm:$0xff] %vm353, %v2079
    %2706 = vst.msk [vmem:[%s334 + $0x320] sm:$0xff] %vm353, %v2081
    %2707 = vst.msk [vmem:[%s334 + $0x328] sm:$0xff] %vm353, %v2083
    %2708 = vst.msk [vmem:[%s334 + $0x330] sm:$0xff] %vm353, %v2085
    %2709 = vst.msk [vmem:[%s334 + $0x338] sm:$0xff] %vm353, %v2087
    %2710 = vst.msk [vmem:[%s334 + $0x340] sm:$0xff] %vm353, %v2089
    %2711 = vst.msk [vmem:[%s334 + $0x348] sm:$0xff] %vm353, %v2091
    %2712 = vst.msk [vmem:[%s334 + $0x350] sm:$0xff] %vm353, %v2093
    %2713 = vst.msk [vmem:[%s334 + $0x358] sm:$0xff] %vm353, %v2095
    %2714 = vst.msk [vmem:[%s334 + $0x360] sm:$0xff] %vm353, %v2097
    %2715 = vst.msk [vmem:[%s334 + $0x368] sm:$0xff] %vm353, %v2099
    %2716 = vst.msk [vmem:[%s334 + $0x370] sm:$0xff] %vm353, %v2101
    %2717 = vst.msk [vmem:[%s334 + $0x380] sm:$0xff] %vm353, %v2103
    %2718 = vst.msk [vmem:[%s334 + $0x388] sm:$0xff] %vm353, %v2105
    %2719 = vst.msk [vmem:[%s334 + $0x390] sm:$0xff] %vm353, %v2107
    %2720 = vst.msk [vmem:[%s334 + $0x398] sm:$0xff] %vm353, %v2109
    %2721 = vst.msk [vmem:[%s334 + $0x3a0] sm:$0xff] %vm353, %v2111
    %2722 = vst.msk [vmem:[%s334 + $0x3a8] sm:$0xff] %vm353, %v2113
    %2723 = vst.msk [vmem:[%s334 + $0x3b0] sm:$0xff] %vm353, %v2115
    %2724 = vst.msk [vmem:[%s334 + $0x3b8] sm:$0xff] %vm353, %v2117
    %2725 = vst.msk [vmem:[%s334 + $0x3c0] sm:$0xff] %vm353, %v2119
    %2726 = vst.msk [vmem:[%s334 + $0x3c8] sm:$0xff] %vm353, %v2121
    %2727 = vst.msk [vmem:[%s334 + $0x3d0] sm:$0xff] %vm353, %v2123
    %2728 = vst.msk [vmem:[%s334 + $0x3d8] sm:$0xff] %vm353, %v2125
    %2729 = vst.msk [vmem:[%s334 + $0x3e0] sm:$0xff] %vm353, %v2127
    %2730 = vst.msk [vmem:[%s334 + $0x3e8] sm:$0xff] %vm353, %v2129
    %2731 = vst.msk [vmem:[%s334 + $0x3f0] sm:$0xff] %vm353, %v2131
    %2732 = vst.msk [vmem:[%s334 + $0x400] sm:$0xff] %vm353, %v2133
    %2733 = vst.msk [vmem:[%s334 + $0x408] sm:$0xff] %vm353, %v2135
    %2734 = vst.msk [vmem:[%s334 + $0x410] sm:$0xff] %vm353, %v2137
    %2735 = vst.msk [vmem:[%s334 + $0x418] sm:$0xff] %vm353, %v2139
    %2736 = vst.msk [vmem:[%s334 + $0x420] sm:$0xff] %vm353, %v2141
    %2737 = vst.msk [vmem:[%s334 + $0x428] sm:$0xff] %vm353, %v2143
    %2738 = vst.msk [vmem:[%s334 + $0x430] sm:$0xff] %vm353, %v2145
    %2739 = vst.msk [vmem:[%s334 + $0x438] sm:$0xff] %vm353, %v2147
    %2740 = vst.msk [vmem:[%s334 + $0x440] sm:$0xff] %vm353, %v2149
    %2741 = vst.msk [vmem:[%s334 + $0x448] sm:$0xff] %vm353, %v2151
    %2742 = vst.msk [vmem:[%s334 + $0x450] sm:$0xff] %vm353, %v2153
    %2743 = vst.msk [vmem:[%s334 + $0x458] sm:$0xff] %vm353, %v2155
    %2744 = vst.msk [vmem:[%s334 + $0x460] sm:$0xff] %vm353, %v2157
    %2745 = vst.msk [vmem:[%s334 + $0x468] sm:$0xff] %vm353, %v2159
    %2746 = vst.msk [vmem:[%s334 + $0x470] sm:$0xff] %vm353, %v2161
    %2747 = vst.msk [vmem:[%s334 + $0x480] sm:$0xff] %vm353, %v2163
    %2748 = vst.msk [vmem:[%s334 + $0x488] sm:$0xff] %vm353, %v2165
    %2749 = vst.msk [vmem:[%s334 + $0x490] sm:$0xff] %vm353, %v2167
    %2750 = vst.msk [vmem:[%s334 + $0x498] sm:$0xff] %vm353, %v2169
    %2751 = vst.msk [vmem:[%s334 + $0x4a0] sm:$0xff] %vm353, %v2171
    %2752 = vst.msk [vmem:[%s334 + $0x4a8] sm:$0xff] %vm353, %v2173
    %2753 = vst.msk [vmem:[%s334 + $0x4b0] sm:$0xff] %vm353, %v2175
    %2754 = vst.msk [vmem:[%s334 + $0x4b8] sm:$0xff] %vm353, %v2177
    %2755 = vst.msk [vmem:[%s334 + $0x4c0] sm:$0xff] %vm353, %v2179
    %2756 = vst.msk [vmem:[%s334 + $0x4c8] sm:$0xff] %vm353, %v2181
    %2757 = vst.msk [vmem:[%s334 + $0x4d0] sm:$0xff] %vm353, %v2183
    %2758 = vst.msk [vmem:[%s334 + $0x4d8] sm:$0xff] %vm353, %v2185
    %2759 = vst.msk [vmem:[%s334 + $0x4e0] sm:$0xff] %vm353, %v2187
    %2760 = vst.msk [vmem:[%s334 + $0x4e8] sm:$0xff] %vm353, %v2189
    %2761 = vst.msk [vmem:[%s334 + $0x4f0] sm:$0xff] %vm353, %v2191
    %2762 = vst.msk [vmem:[%s334 + $0x500] sm:$0xff] %vm353, %v2193
    %2763 = vst.msk [vmem:[%s334 + $0x508] sm:$0xff] %vm353, %v2195
    %2764 = vst.msk [vmem:[%s334 + $0x510] sm:$0xff] %vm353, %v2197
    %2765 = vst.msk [vmem:[%s334 + $0x518] sm:$0xff] %vm353, %v2199
    %2766 = vst.msk [vmem:[%s334 + $0x520] sm:$0xff] %vm353, %v2201
    %2767 = vst.msk [vmem:[%s334 + $0x528] sm:$0xff] %vm353, %v2203
    %2768 = vst.msk [vmem:[%s334 + $0x530] sm:$0xff] %vm353, %v2205
    %2769 = vst.msk [vmem:[%s334 + $0x538] sm:$0xff] %vm353, %v2207
    %2770 = vst.msk [vmem:[%s334 + $0x540] sm:$0xff] %vm353, %v2209
    %2771 = vst.msk [vmem:[%s334 + $0x548] sm:$0xff] %vm353, %v2211
    %2772 = vst.msk [vmem:[%s334 + $0x550] sm:$0xff] %vm353, %v2213
    %2773 = vst.msk [vmem:[%s334 + $0x558] sm:$0xff] %vm353, %v2215
    %2774 = vst.msk [vmem:[%s334 + $0x560] sm:$0xff] %vm353, %v2217
    %2775 = vst.msk [vmem:[%s334 + $0x568] sm:$0xff] %vm353, %v2219
    %2776 = vst.msk [vmem:[%s334 + $0x570] sm:$0xff] %vm353, %v2221
    %2777 = vst.msk [vmem:[%s334 + $0x580] sm:$0xff] %vm353, %v2223
    %2778 = vst.msk [vmem:[%s334 + $0x588] sm:$0xff] %vm353, %v2225
    %2779 = vst.msk [vmem:[%s334 + $0x590] sm:$0xff] %vm353, %v2227
    %2780 = vst.msk [vmem:[%s334 + $0x598] sm:$0xff] %vm353, %v2229
    %2781 = vst.msk [vmem:[%s334 + $0x5a0] sm:$0xff] %vm353, %v2231
    %2782 = vst.msk [vmem:[%s334 + $0x5a8] sm:$0xff] %vm353, %v2233
    %2783 = vst.msk [vmem:[%s334 + $0x5b0] sm:$0xff] %vm353, %v2235
    %2784 = vst.msk [vmem:[%s334 + $0x5b8] sm:$0xff] %vm353, %v2237
    %2785 = vst.msk [vmem:[%s334 + $0x5c0] sm:$0xff] %vm353, %v2239
    %2786 = vst.msk [vmem:[%s334 + $0x5c8] sm:$0xff] %vm353, %v2241
    %2787 = vst.msk [vmem:[%s334 + $0x5d0] sm:$0xff] %vm353, %v2243
    %2788 = vst.msk [vmem:[%s334 + $0x5d8] sm:$0xff] %vm353, %v2245
    %2789 = vst.msk [vmem:[%s334 + $0x5e0] sm:$0xff] %vm353, %v2247
    %2790 = vst.msk [vmem:[%s334 + $0x5e8] sm:$0xff] %vm353, %v2249
    %2791 = vst.msk [vmem:[%s334 + $0x5f0] sm:$0xff] %vm353, %v2251
    %2792 = vst.msk [vmem:[%s334 + $0x600] sm:$0xff] %vm353, %v2253
    %2793 = vst.msk [vmem:[%s334 + $0x608] sm:$0xff] %vm353, %v2255
    %2794 = vst.msk [vmem:[%s334 + $0x610] sm:$0xff] %vm353, %v2257
    %2795 = vst.msk [vmem:[%s334 + $0x618] sm:$0xff] %vm353, %v2259
    %2796 = vst.msk [vmem:[%s334 + $0x620] sm:$0xff] %vm353, %v2261
    %2797 = vst.msk [vmem:[%s334 + $0x628] sm:$0xff] %vm353, %v2263
    %2798 = vst.msk [vmem:[%s334 + $0x630] sm:$0xff] %vm353, %v2265
    %2799 = vst.msk [vmem:[%s334 + $0x638] sm:$0xff] %vm353, %v2267
    %2800 = vst.msk [vmem:[%s334 + $0x640] sm:$0xff] %vm353, %v2269
    %2801 = vst.msk [vmem:[%s334 + $0x648] sm:$0xff] %vm353, %v2271
    %2802 = vst.msk [vmem:[%s334 + $0x650] sm:$0xff] %vm353, %v2273
    %2803 = vst.msk [vmem:[%s334 + $0x658] sm:$0xff] %vm353, %v2275
    %2804 = vst.msk [vmem:[%s334 + $0x660] sm:$0xff] %vm353, %v2277
    %2805 = vst.msk [vmem:[%s334 + $0x668] sm:$0xff] %vm353, %v2279
    %2806 = vst.msk [vmem:[%s334 + $0x670] sm:$0xff] %vm353, %v2281
    %2807 = vst.msk [vmem:[%s334 + $0x680] sm:$0xff] %vm353, %v2283
    %2808 = vst.msk [vmem:[%s334 + $0x688] sm:$0xff] %vm353, %v2285
    %2809 = vst.msk [vmem:[%s334 + $0x690] sm:$0xff] %vm353, %v2287
    %2810 = vst.msk [vmem:[%s334 + $0x698] sm:$0xff] %vm353, %v2289
    %2811 = vst.msk [vmem:[%s334 + $0x6a0] sm:$0xff] %vm353, %v2291
    %2812 = vst.msk [vmem:[%s334 + $0x6a8] sm:$0xff] %vm353, %v2293
    %2813 = vst.msk [vmem:[%s334 + $0x6b0] sm:$0xff] %vm353, %v2295
    %2814 = vst.msk [vmem:[%s334 + $0x6b8] sm:$0xff] %vm353, %v2297
    %2815 = vst.msk [vmem:[%s334 + $0x6c0] sm:$0xff] %vm353, %v2299
    %2816 = vst.msk [vmem:[%s334 + $0x6c8] sm:$0xff] %vm353, %v2301
    %2817 = vst.msk [vmem:[%s334 + $0x6d0] sm:$0xff] %vm353, %v2303
    %2818 = vst.msk [vmem:[%s334 + $0x6d8] sm:$0xff] %vm353, %v2305
    %2819 = vst.msk [vmem:[%s334 + $0x6e0] sm:$0xff] %vm353, %v2307
    %2820 = vst.msk [vmem:[%s334 + $0x6e8] sm:$0xff] %vm353, %v2309
    %2821 = vst.msk [vmem:[%s334 + $0x6f0] sm:$0xff] %vm353, %v2311
    %2822 = vst.msk [vmem:[%s334 + $0x700] sm:$0xff] %vm353, %v2313
    %2823 = vst.msk [vmem:[%s334 + $0x708] sm:$0xff] %vm353, %v2315
    %2824 = vst.msk [vmem:[%s334 + $0x710] sm:$0xff] %vm353, %v2317
    %2825 = vst.msk [vmem:[%s334 + $0x718] sm:$0xff] %vm353, %v2319
    %2826 = vst.msk [vmem:[%s334 + $0x720] sm:$0xff] %vm353, %v2321
    %2827 = vst.msk [vmem:[%s334 + $0x728] sm:$0xff] %vm353, %v2323
    %2828 = vst.msk [vmem:[%s334 + $0x730] sm:$0xff] %vm353, %v2325
    %2829 = vst.msk [vmem:[%s334 + $0x738] sm:$0xff] %vm353, %v2327
    %2830 = vst.msk [vmem:[%s334 + $0x740] sm:$0xff] %vm353, %v2329
    %2831 = vst.msk [vmem:[%s334 + $0x748] sm:$0xff] %vm353, %v2331
    %2832 = vst.msk [vmem:[%s334 + $0x750] sm:$0xff] %vm353, %v2333
    %2833 = vst.msk [vmem:[%s334 + $0x758] sm:$0xff] %vm353, %v2335
    %2834 = vst.msk [vmem:[%s334 + $0x760] sm:$0xff] %vm353, %v2337
    %2835 = vst.msk [vmem:[%s334 + $0x768] sm:$0xff] %vm353, %v2339
    %2836 = vst.msk [vmem:[%s334 + $0x770] sm:$0xff] %vm353, %v2341
    %2837 = vst.msk [vmem:[%s334 + $0x780] sm:$0xff] %vm353, %v2343
    %2838 = vst.msk [vmem:[%s334 + $0x788] sm:$0xff] %vm353, %v2345
    %2839 = vst.msk [vmem:[%s334 + $0x790] sm:$0xff] %vm353, %v2347
    %2840 = vst.msk [vmem:[%s334 + $0x798] sm:$0xff] %vm353, %v2349
    %2841 = vst.msk [vmem:[%s334 + $0x7a0] sm:$0xff] %vm353, %v2351
    %2842 = vst.msk [vmem:[%s334 + $0x7a8] sm:$0xff] %vm353, %v2353
    %2843 = vst.msk [vmem:[%s334 + $0x7b0] sm:$0xff] %vm353, %v2355
    %2844 = vst.msk [vmem:[%s334 + $0x7b8] sm:$0xff] %vm353, %v2357
    %2845 = vst.msk [vmem:[%s334 + $0x7c0] sm:$0xff] %vm353, %v2359
    %2846 = vst.msk [vmem:[%s334 + $0x7c8] sm:$0xff] %vm353, %v2361
    %2847 = vst.msk [vmem:[%s334 + $0x7d0] sm:$0xff] %vm353, %v2363
    %2848 = vst.msk [vmem:[%s334 + $0x7d8] sm:$0xff] %vm353, %v2365
    %2849 = vst.msk [vmem:[%s334 + $0x7e0] sm:$0xff] %vm353, %v2367
    %2850 = vst.msk [vmem:[%s334 + $0x7e8] sm:$0xff] %vm353, %v2369
    %2851 = vst.msk [vmem:[%s334 + $0x7f0] sm:$0xff] %vm353, %v2371
    %v2852 = vld [vmem:[#allocation2] sm:$0xff]
    %v2853 = vld [vmem:[#allocation2 + $0x8] sm:$0xff]
    %v2854 = vld [vmem:[#allocation2 + $0x10] sm:$0xff]
    %v2855 = vld [vmem:[#allocation2 + $0x18] sm:$0xff]
    %v2856 = vld [vmem:[#allocation2 + $0x20] sm:$0xff]
    %v2857 = vld [vmem:[#allocation2 + $0x28] sm:$0xff]
    %v2858 = vld [vmem:[#allocation2 + $0x30] sm:$0xff]
    %v2859 = vld [vmem:[#allocation2 + $0x38] sm:$0xff]
    %v2860 = vld [vmem:[#allocation2 + $0x40] sm:$0xff]
    %v2861 = vld [vmem:[#allocation2 + $0x48] sm:$0xff]
    %v2862 = vld [vmem:[#allocation2 + $0x50] sm:$0xff]
    %v2863 = vld [vmem:[#allocation2 + $0x58] sm:$0xff]
    %v2864 = vld [vmem:[#allocation2 + $0x60] sm:$0xff]
    %v2865 = vld [vmem:[#allocation2 + $0x68] sm:$0xff]
    %v2866 = vld [vmem:[#allocation2 + $0x70] sm:$0xff]
    %v2867 = vld [vmem:[#allocation2 + $0x78] sm:$0xff]
    %v2868 = vld [vmem:[#allocation2 + $0x80] sm:$0xff]
    %v2869 = vld [vmem:[#allocation2 + $0x88] sm:$0xff]
    %v2870 = vld [vmem:[#allocation2 + $0x90] sm:$0xff]
    %v2871 = vld [vmem:[#allocation2 + $0x98] sm:$0xff]
    %v2872 = vld [vmem:[#allocation2 + $0xa0] sm:$0xff]
    %v2873 = vld [vmem:[#allocation2 + $0xa8] sm:$0xff]
    %v2874 = vld [vmem:[#allocation2 + $0xb0] sm:$0xff]
    %v2875 = vld [vmem:[#allocation2 + $0xb8] sm:$0xff]
    %v2876 = vld [vmem:[#allocation2 + $0xc0] sm:$0xff]
    %v2877 = vld [vmem:[#allocation2 + $0xc8] sm:$0xff]
    %v2878 = vld [vmem:[#allocation2 + $0xd0] sm:$0xff]
    %v2879 = vld [vmem:[#allocation2 + $0xd8] sm:$0xff]
    %v2880 = vld [vmem:[#allocation2 + $0xe0] sm:$0xff]
    %v2881 = vld [vmem:[#allocation2 + $0xe8] sm:$0xff]
    %v2882 = vld [vmem:[#allocation2 + $0xf0] sm:$0xff]
    %v2883 = vld [vmem:[#allocation2 + $0xf8] sm:$0xff]
    %v2884 = vld [vmem:[#allocation2 + $0x100] sm:$0xff]
    %v2885 = vld [vmem:[#allocation2 + $0x108] sm:$0xff]
    %v2886 = vld [vmem:[#allocation2 + $0x110] sm:$0xff]
    %v2887 = vld [vmem:[#allocation2 + $0x118] sm:$0xff]
    %v2888 = vld [vmem:[#allocation2 + $0x120] sm:$0xff]
    %v2889 = vld [vmem:[#allocation2 + $0x128] sm:$0xff]
    %v2890 = vld [vmem:[#allocation2 + $0x130] sm:$0xff]
    %v2891 = vld [vmem:[#allocation2 + $0x138] sm:$0xff]
    %v2892 = vld [vmem:[#allocation2 + $0x140] sm:$0xff]
    %v2893 = vld [vmem:[#allocation2 + $0x148] sm:$0xff]
    %v2894 = vld [vmem:[#allocation2 + $0x150] sm:$0xff]
    %v2895 = vld [vmem:[#allocation2 + $0x158] sm:$0xff]
    %v2896 = vld [vmem:[#allocation2 + $0x160] sm:$0xff]
    %v2897 = vld [vmem:[#allocation2 + $0x168] sm:$0xff]
    %v2898 = vld [vmem:[#allocation2 + $0x170] sm:$0xff]
    %v2899 = vld [vmem:[#allocation2 + $0x178] sm:$0xff]
    %v2900 = vld [vmem:[#allocation2 + $0x180] sm:$0xff]
    %v2901 = vld [vmem:[#allocation2 + $0x188] sm:$0xff]
    %v2902 = vld [vmem:[#allocation2 + $0x190] sm:$0xff]
    %v2903 = vld [vmem:[#allocation2 + $0x198] sm:$0xff]
    %v2904 = vld [vmem:[#allocation2 + $0x1a0] sm:$0xff]
    %v2905 = vld [vmem:[#allocation2 + $0x1a8] sm:$0xff]
    %v2906 = vld [vmem:[#allocation2 + $0x1b0] sm:$0xff]
    %v2907 = vld [vmem:[#allocation2 + $0x1b8] sm:$0xff]
    %v2908 = vld [vmem:[#allocation2 + $0x1c0] sm:$0xff]
    %v2909 = vld [vmem:[#allocation2 + $0x1c8] sm:$0xff]
    %v2910 = vld [vmem:[#allocation2 + $0x1d0] sm:$0xff]
    %v2911 = vld [vmem:[#allocation2 + $0x1d8] sm:$0xff]
    %v2912 = vld [vmem:[#allocation2 + $0x1e0] sm:$0xff]
    %v2913 = vld [vmem:[#allocation2 + $0x1e8] sm:$0xff]
    %v2914 = vld [vmem:[#allocation2 + $0x1f0] sm:$0xff]
    %v2915 = vld [vmem:[#allocation2 + $0x1f8] sm:$0xff]
    %v2916 = vld [vmem:[#allocation2 + $0x200] sm:$0xff]
    %v2917 = vld [vmem:[#allocation2 + $0x208] sm:$0xff]
    %v2918 = vld [vmem:[#allocation2 + $0x210] sm:$0xff]
    %v2919 = vld [vmem:[#allocation2 + $0x218] sm:$0xff]
    %v2920 = vld [vmem:[#allocation2 + $0x220] sm:$0xff]
    %v2921 = vld [vmem:[#allocation2 + $0x228] sm:$0xff]
    %v2922 = vld [vmem:[#allocation2 + $0x230] sm:$0xff]
    %v2923 = vld [vmem:[#allocation2 + $0x238] sm:$0xff]
    %v2924 = vld [vmem:[#allocation2 + $0x240] sm:$0xff]
    %v2925 = vld [vmem:[#allocation2 + $0x248] sm:$0xff]
    %v2926 = vld [vmem:[#allocation2 + $0x250] sm:$0xff]
    %v2927 = vld [vmem:[#allocation2 + $0x258] sm:$0xff]
    %v2928 = vld [vmem:[#allocation2 + $0x260] sm:$0xff]
    %v2929 = vld [vmem:[#allocation2 + $0x268] sm:$0xff]
    %v2930 = vld [vmem:[#allocation2 + $0x270] sm:$0xff]
    %v2931 = vld [vmem:[#allocation2 + $0x278] sm:$0xff]
    %v2932 = vld [vmem:[#allocation2 + $0x280] sm:$0xff]
    %v2933 = vld [vmem:[#allocation2 + $0x288] sm:$0xff]
    %v2934 = vld [vmem:[#allocation2 + $0x290] sm:$0xff]
    %v2935 = vld [vmem:[#allocation2 + $0x298] sm:$0xff]
    %v2936 = vld [vmem:[#allocation2 + $0x2a0] sm:$0xff]
    %v2937 = vld [vmem:[#allocation2 + $0x2a8] sm:$0xff]
    %v2938 = vld [vmem:[#allocation2 + $0x2b0] sm:$0xff]
    %v2939 = vld [vmem:[#allocation2 + $0x2b8] sm:$0xff]
    %v2940 = vld [vmem:[#allocation2 + $0x2c0] sm:$0xff]
    %v2941 = vld [vmem:[#allocation2 + $0x2c8] sm:$0xff]
    %v2942 = vld [vmem:[#allocation2 + $0x2d0] sm:$0xff]
    %v2943 = vld [vmem:[#allocation2 + $0x2d8] sm:$0xff]
    %v2944 = vld [vmem:[#allocation2 + $0x2e0] sm:$0xff]
    %v2945 = vld [vmem:[#allocation2 + $0x2e8] sm:$0xff]
    %v2946 = vld [vmem:[#allocation2 + $0x2f0] sm:$0xff]
    %v2947 = vld [vmem:[#allocation2 + $0x2f8] sm:$0xff]
    %v2948 = vld [vmem:[#allocation2 + $0x300] sm:$0xff]
    %v2949 = vld [vmem:[#allocation2 + $0x308] sm:$0xff]
    %v2950 = vld [vmem:[#allocation2 + $0x310] sm:$0xff]
    %v2951 = vld [vmem:[#allocation2 + $0x318] sm:$0xff]
    %v2952 = vld [vmem:[#allocation2 + $0x320] sm:$0xff]
    %v2953 = vld [vmem:[#allocation2 + $0x328] sm:$0xff]
    %v2954 = vld [vmem:[#allocation2 + $0x330] sm:$0xff]
    %v2955 = vld [vmem:[#allocation2 + $0x338] sm:$0xff]
    %v2956 = vld [vmem:[#allocation2 + $0x340] sm:$0xff]
    %v2957 = vld [vmem:[#allocation2 + $0x348] sm:$0xff]
    %v2958 = vld [vmem:[#allocation2 + $0x350] sm:$0xff]
    %v2959 = vld [vmem:[#allocation2 + $0x358] sm:$0xff]
    %v2960 = vld [vmem:[#allocation2 + $0x360] sm:$0xff]
    %v2961 = vld [vmem:[#allocation2 + $0x368] sm:$0xff]
    %v2962 = vld [vmem:[#allocation2 + $0x370] sm:$0xff]
    %v2963 = vld [vmem:[#allocation2 + $0x378] sm:$0xff]
    %v2964 = vld [vmem:[#allocation2 + $0x380] sm:$0xff]
    %v2965 = vld [vmem:[#allocation2 + $0x388] sm:$0xff]
    %v2966 = vld [vmem:[#allocation2 + $0x390] sm:$0xff]
    %v2967 = vld [vmem:[#allocation2 + $0x398] sm:$0xff]
    %v2968 = vld [vmem:[#allocation2 + $0x3a0] sm:$0xff]
    %v2969 = vld [vmem:[#allocation2 + $0x3a8] sm:$0xff]
    %v2970 = vld [vmem:[#allocation2 + $0x3b0] sm:$0xff]
    %v2971 = vld [vmem:[#allocation2 + $0x3b8] sm:$0xff]
    %v2972 = vld [vmem:[#allocation2 + $0x3c0] sm:$0xff]
    %v2973 = vld [vmem:[#allocation2 + $0x3c8] sm:$0xff]
    %v2974 = vld [vmem:[#allocation2 + $0x3d0] sm:$0xff]
    %v2975 = vld [vmem:[#allocation2 + $0x3d8] sm:$0xff]
    %v2976 = vld [vmem:[#allocation2 + $0x3e0] sm:$0xff]
    %v2977 = vld [vmem:[#allocation2 + $0x3e8] sm:$0xff]
    %v2978 = vld [vmem:[#allocation2 + $0x3f0] sm:$0xff]
    %v2979 = vld [vmem:[#allocation2 + $0x3f8] sm:$0xff]
    %v2980 = vld [vmem:[#allocation2 + $0x400] sm:$0xff]
    %v2981 = vld [vmem:[#allocation2 + $0x408] sm:$0xff]
    %v2982 = vld [vmem:[#allocation2 + $0x410] sm:$0xff]
    %v2983 = vld [vmem:[#allocation2 + $0x418] sm:$0xff]
    %v2984 = vld [vmem:[#allocation2 + $0x420] sm:$0xff]
    %v2985 = vld [vmem:[#allocation2 + $0x428] sm:$0xff]
    %v2986 = vld [vmem:[#allocation2 + $0x430] sm:$0xff]
    %v2987 = vld [vmem:[#allocation2 + $0x438] sm:$0xff]
    %v2988 = vld [vmem:[#allocation2 + $0x440] sm:$0xff]
    %v2989 = vld [vmem:[#allocation2 + $0x448] sm:$0xff]
    %v2990 = vld [vmem:[#allocation2 + $0x450] sm:$0xff]
    %v2991 = vld [vmem:[#allocation2 + $0x458] sm:$0xff]
    %v2992 = vld [vmem:[#allocation2 + $0x460] sm:$0xff]
    %v2993 = vld [vmem:[#allocation2 + $0x468] sm:$0xff]
    %v2994 = vld [vmem:[#allocation2 + $0x470] sm:$0xff]
    %v2995 = vld [vmem:[#allocation2 + $0x478] sm:$0xff]
    %v2996 = vld [vmem:[#allocation2 + $0x480] sm:$0xff]
    %v2997 = vld [vmem:[#allocation2 + $0x488] sm:$0xff]
    %v2998 = vld [vmem:[#allocation2 + $0x490] sm:$0xff]
    %v2999 = vld [vmem:[#allocation2 + $0x498] sm:$0xff]
    %v3000 = vld [vmem:[#allocation2 + $0x4a0] sm:$0xff]
    %v3001 = vld [vmem:[#allocation2 + $0x4a8] sm:$0xff]
    %v3002 = vld [vmem:[#allocation2 + $0x4b0] sm:$0xff]
    %v3003 = vld [vmem:[#allocation2 + $0x4b8] sm:$0xff]
    %v3004 = vld [vmem:[#allocation2 + $0x4c0] sm:$0xff]
    %v3005 = vld [vmem:[#allocation2 + $0x4c8] sm:$0xff]
    %v3006 = vld [vmem:[#allocation2 + $0x4d0] sm:$0xff]
    %v3007 = vld [vmem:[#allocation2 + $0x4d8] sm:$0xff]
    %v3008 = vld [vmem:[#allocation2 + $0x4e0] sm:$0xff]
    %v3009 = vld [vmem:[#allocation2 + $0x4e8] sm:$0xff]
    %v3010 = vld [vmem:[#allocation2 + $0x4f0] sm:$0xff]
    %v3011 = vld [vmem:[#allocation2 + $0x4f8] sm:$0xff]
    %v3012 = vld [vmem:[#allocation2 + $0x500] sm:$0xff]
    %v3013 = vld [vmem:[#allocation2 + $0x508] sm:$0xff]
    %v3014 = vld [vmem:[#allocation2 + $0x510] sm:$0xff]
    %v3015 = vld [vmem:[#allocation2 + $0x518] sm:$0xff]
    %v3016 = vld [vmem:[#allocation2 + $0x520] sm:$0xff]
    %v3017 = vld [vmem:[#allocation2 + $0x528] sm:$0xff]
    %v3018 = vld [vmem:[#allocation2 + $0x530] sm:$0xff]
    %v3019 = vld [vmem:[#allocation2 + $0x538] sm:$0xff]
    %v3020 = vld [vmem:[#allocation2 + $0x540] sm:$0xff]
    %v3021 = vld [vmem:[#allocation2 + $0x548] sm:$0xff]
    %v3022 = vld [vmem:[#allocation2 + $0x550] sm:$0xff]
    %v3023 = vld [vmem:[#allocation2 + $0x558] sm:$0xff]
    %v3024 = vld [vmem:[#allocation2 + $0x560] sm:$0xff]
    %v3025 = vld [vmem:[#allocation2 + $0x568] sm:$0xff]
    %v3026 = vld [vmem:[#allocation2 + $0x570] sm:$0xff]
    %v3027 = vld [vmem:[#allocation2 + $0x578] sm:$0xff]
    %v3028 = vld [vmem:[#allocation2 + $0x580] sm:$0xff]
    %v3029 = vld [vmem:[#allocation2 + $0x588] sm:$0xff]
    %v3030 = vld [vmem:[#allocation2 + $0x590] sm:$0xff]
    %v3031 = vld [vmem:[#allocation2 + $0x598] sm:$0xff]
    %v3032 = vld [vmem:[#allocation2 + $0x5a0] sm:$0xff]
    %v3033 = vld [vmem:[#allocation2 + $0x5a8] sm:$0xff]
    %v3034 = vld [vmem:[#allocation2 + $0x5b0] sm:$0xff]
    %v3035 = vld [vmem:[#allocation2 + $0x5b8] sm:$0xff]
    %v3036 = vld [vmem:[#allocation2 + $0x5c0] sm:$0xff]
    %v3037 = vld [vmem:[#allocation2 + $0x5c8] sm:$0xff]
    %v3038 = vld [vmem:[#allocation2 + $0x5d0] sm:$0xff]
    %v3039 = vld [vmem:[#allocation2 + $0x5d8] sm:$0xff]
    %v3040 = vld [vmem:[#allocation2 + $0x5e0] sm:$0xff]
    %v3041 = vld [vmem:[#allocation2 + $0x5e8] sm:$0xff]
    %v3042 = vld [vmem:[#allocation2 + $0x5f0] sm:$0xff]
    %v3043 = vld [vmem:[#allocation2 + $0x5f8] sm:$0xff]
    %v3044 = vld [vmem:[#allocation2 + $0x600] sm:$0xff]
    %v3045 = vld [vmem:[#allocation2 + $0x608] sm:$0xff]
    %v3046 = vld [vmem:[#allocation2 + $0x610] sm:$0xff]
    %v3047 = vld [vmem:[#allocation2 + $0x618] sm:$0xff]
    %v3048 = vld [vmem:[#allocation2 + $0x620] sm:$0xff]
    %v3049 = vld [vmem:[#allocation2 + $0x628] sm:$0xff]
    %v3050 = vld [vmem:[#allocation2 + $0x630] sm:$0xff]
    %v3051 = vld [vmem:[#allocation2 + $0x638] sm:$0xff]
    %v3052 = vld [vmem:[#allocation2 + $0x640] sm:$0xff]
    %v3053 = vld [vmem:[#allocation2 + $0x648] sm:$0xff]
    %v3054 = vld [vmem:[#allocation2 + $0x650] sm:$0xff]
    %v3055 = vld [vmem:[#allocation2 + $0x658] sm:$0xff]
    %v3056 = vld [vmem:[#allocation2 + $0x660] sm:$0xff]
    %v3057 = vld [vmem:[#allocation2 + $0x668] sm:$0xff]
    %v3058 = vld [vmem:[#allocation2 + $0x670] sm:$0xff]
    %v3059 = vld [vmem:[#allocation2 + $0x678] sm:$0xff]
    %v3060 = vld [vmem:[#allocation2 + $0x680] sm:$0xff]
    %v3061 = vld [vmem:[#allocation2 + $0x688] sm:$0xff]
    %v3062 = vld [vmem:[#allocation2 + $0x690] sm:$0xff]
    %v3063 = vld [vmem:[#allocation2 + $0x698] sm:$0xff]
    %v3064 = vld [vmem:[#allocation2 + $0x6a0] sm:$0xff]
    %v3065 = vld [vmem:[#allocation2 + $0x6a8] sm:$0xff]
    %v3066 = vld [vmem:[#allocation2 + $0x6b0] sm:$0xff]
    %v3067 = vld [vmem:[#allocation2 + $0x6b8] sm:$0xff]
    %v3068 = vld [vmem:[#allocation2 + $0x6c0] sm:$0xff]
    %v3069 = vld [vmem:[#allocation2 + $0x6c8] sm:$0xff]
    %v3070 = vld [vmem:[#allocation2 + $0x6d0] sm:$0xff]
    %v3071 = vld [vmem:[#allocation2 + $0x6d8] sm:$0xff]
    %v3072 = vld [vmem:[#allocation2 + $0x6e0] sm:$0xff]
    %v3073 = vld [vmem:[#allocation2 + $0x6e8] sm:$0xff]
    %v3074 = vld [vmem:[#allocation2 + $0x6f0] sm:$0xff]
    %v3075 = vld [vmem:[#allocation2 + $0x6f8] sm:$0xff]
    %v3076 = vld [vmem:[#allocation2 + $0x700] sm:$0xff]
    %v3077 = vld [vmem:[#allocation2 + $0x708] sm:$0xff]
    %v3078 = vld [vmem:[#allocation2 + $0x710] sm:$0xff]
    %v3079 = vld [vmem:[#allocation2 + $0x718] sm:$0xff]
    %v3080 = vld [vmem:[#allocation2 + $0x720] sm:$0xff]
    %v3081 = vld [vmem:[#allocation2 + $0x728] sm:$0xff]
    %v3082 = vld [vmem:[#allocation2 + $0x730] sm:$0xff]
    %v3083 = vld [vmem:[#allocation2 + $0x738] sm:$0xff]
    %v3084 = vld [vmem:[#allocation2 + $0x740] sm:$0xff]
    %v3085 = vld [vmem:[#allocation2 + $0x748] sm:$0xff]
    %v3086 = vld [vmem:[#allocation2 + $0x750] sm:$0xff]
    %v3087 = vld [vmem:[#allocation2 + $0x758] sm:$0xff]
    %v3088 = vld [vmem:[#allocation2 + $0x760] sm:$0xff]
    %v3089 = vld [vmem:[#allocation2 + $0x768] sm:$0xff]
    %v3090 = vld [vmem:[#allocation2 + $0x770] sm:$0xff]
    %v3091 = vld [vmem:[#allocation2 + $0x778] sm:$0xff]
    %v3092 = vld [vmem:[#allocation2 + $0x780] sm:$0xff]
    %v3093 = vld [vmem:[#allocation2 + $0x788] sm:$0xff]
    %v3094 = vld [vmem:[#allocation2 + $0x790] sm:$0xff]
    %v3095 = vld [vmem:[#allocation2 + $0x798] sm:$0xff]
    %v3096 = vld [vmem:[#allocation2 + $0x7a0] sm:$0xff]
    %v3097 = vld [vmem:[#allocation2 + $0x7a8] sm:$0xff]
    %v3098 = vld [vmem:[#allocation2 + $0x7b0] sm:$0xff]
    %v3099 = vld [vmem:[#allocation2 + $0x7b8] sm:$0xff]
    %v3100 = vld [vmem:[#allocation2 + $0x7c0] sm:$0xff]
    %v3101 = vld [vmem:[#allocation2 + $0x7c8] sm:$0xff]
    %v3102 = vld [vmem:[#allocation2 + $0x7d0] sm:$0xff]
    %v3103 = vld [vmem:[#allocation2 + $0x7d8] sm:$0xff]
    %v3104 = vld [vmem:[#allocation2 + $0x7e0] sm:$0xff]
    %v3105 = vld [vmem:[#allocation2 + $0x7e8] sm:$0xff]
    %v3106 = vld [vmem:[#allocation2 + $0x7f0] sm:$0xff]
    %v3107 = vld [vmem:[#allocation2 + $0x7f8] sm:$0xff]
    %v3108 = vpack.c.bf16 %v2853, %v2852
    %v3109 = vpack.c.bf16 %v2855, %v2854
    %v3110 = vpack.c.bf16 %v2857, %v2856
    %v3111 = vpack.c.bf16 %v2859, %v2858
    %v3112 = vpack.c.bf16 %v2861, %v2860
    %v3113 = vpack.c.bf16 %v2863, %v2862
    %v3114 = vpack.c.bf16 %v2865, %v2864
    %v3115 = vpack.c.bf16 %v2867, %v2866
    %v3116 = vpack.c.bf16 %v2869, %v2868
    %v3117 = vpack.c.bf16 %v2871, %v2870
    %v3118 = vpack.c.bf16 %v2873, %v2872
    %v3119 = vpack.c.bf16 %v2875, %v2874
    %v3120 = vpack.c.bf16 %v2877, %v2876
    %v3121 = vpack.c.bf16 %v2879, %v2878
    %v3122 = vpack.c.bf16 %v2881, %v2880
    %v3123 = vpack.c.bf16 %v2883, %v2882
    %v3124 = vpack.c.bf16 %v2885, %v2884
    %v3125 = vpack.c.bf16 %v2887, %v2886
    %v3126 = vpack.c.bf16 %v2889, %v2888
    %v3127 = vpack.c.bf16 %v2891, %v2890
    %v3128 = vpack.c.bf16 %v2893, %v2892
    %v3129 = vpack.c.bf16 %v2895, %v2894
    %v3130 = vpack.c.bf16 %v2897, %v2896
    %v3131 = vpack.c.bf16 %v2899, %v2898
    %v3132 = vpack.c.bf16 %v2901, %v2900
    %v3133 = vpack.c.bf16 %v2903, %v2902
    %v3134 = vpack.c.bf16 %v2905, %v2904
    %v3135 = vpack.c.bf16 %v2907, %v2906
    %v3136 = vpack.c.bf16 %v2909, %v2908
    %v3137 = vpack.c.bf16 %v2911, %v2910
    %v3138 = vpack.c.bf16 %v2913, %v2912
    %v3139 = vpack.c.bf16 %v2915, %v2914
    %v3140 = vpack.c.bf16 %v2917, %v2916
    %v3141 = vpack.c.bf16 %v2919, %v2918
    %v3142 = vpack.c.bf16 %v2921, %v2920
    %v3143 = vpack.c.bf16 %v2923, %v2922
    %v3144 = vpack.c.bf16 %v2925, %v2924
    %v3145 = vpack.c.bf16 %v2927, %v2926
    %v3146 = vpack.c.bf16 %v2929, %v2928
    %v3147 = vpack.c.bf16 %v2931, %v2930
    %v3148 = vpack.c.bf16 %v2933, %v2932
    %v3149 = vpack.c.bf16 %v2935, %v2934
    %v3150 = vpack.c.bf16 %v2937, %v2936
    %v3151 = vpack.c.bf16 %v2939, %v2938
    %v3152 = vpack.c.bf16 %v2941, %v2940
    %v3153 = vpack.c.bf16 %v2943, %v2942
    %v3154 = vpack.c.bf16 %v2945, %v2944
    %v3155 = vpack.c.bf16 %v2947, %v2946
    %v3156 = vpack.c.bf16 %v2949, %v2948
    %v3157 = vpack.c.bf16 %v2951, %v2950
    %v3158 = vpack.c.bf16 %v2953, %v2952
    %v3159 = vpack.c.bf16 %v2955, %v2954
    %v3160 = vpack.c.bf16 %v2957, %v2956
    %v3161 = vpack.c.bf16 %v2959, %v2958
    %v3162 = vpack.c.bf16 %v2961, %v2960
    %v3163 = vpack.c.bf16 %v2963, %v2962
    %v3164 = vpack.c.bf16 %v2965, %v2964
    %v3165 = vpack.c.bf16 %v2967, %v2966
    %v3166 = vpack.c.bf16 %v2969, %v2968
    %v3167 = vpack.c.bf16 %v2971, %v2970
    %v3168 = vpack.c.bf16 %v2973, %v2972
    %v3169 = vpack.c.bf16 %v2975, %v2974
    %v3170 = vpack.c.bf16 %v2977, %v2976
    %v3171 = vpack.c.bf16 %v2979, %v2978
    %v3172 = vpack.c.bf16 %v2981, %v2980
    %v3173 = vpack.c.bf16 %v2983, %v2982
    %v3174 = vpack.c.bf16 %v2985, %v2984
    %v3175 = vpack.c.bf16 %v2987, %v2986
    %v3176 = vpack.c.bf16 %v2989, %v2988
    %v3177 = vpack.c.bf16 %v2991, %v2990
    %v3178 = vpack.c.bf16 %v2993, %v2992
    %v3179 = vpack.c.bf16 %v2995, %v2994
    %v3180 = vpack.c.bf16 %v2997, %v2996
    %v3181 = vpack.c.bf16 %v2999, %v2998
    %v3182 = vpack.c.bf16 %v3001, %v3000
    %v3183 = vpack.c.bf16 %v3003, %v3002
    %v3184 = vpack.c.bf16 %v3005, %v3004
    %v3185 = vpack.c.bf16 %v3007, %v3006
    %v3186 = vpack.c.bf16 %v3009, %v3008
    %v3187 = vpack.c.bf16 %v3011, %v3010
    %v3188 = vpack.c.bf16 %v3013, %v3012
    %v3189 = vpack.c.bf16 %v3015, %v3014
    %v3190 = vpack.c.bf16 %v3017, %v3016
    %v3191 = vpack.c.bf16 %v3019, %v3018
    %v3192 = vpack.c.bf16 %v3021, %v3020
    %v3193 = vpack.c.bf16 %v3023, %v3022
    %v3194 = vpack.c.bf16 %v3025, %v3024
    %v3195 = vpack.c.bf16 %v3027, %v3026
    %v3196 = vpack.c.bf16 %v3029, %v3028
    %v3197 = vpack.c.bf16 %v3031, %v3030
    %v3198 = vpack.c.bf16 %v3033, %v3032
    %v3199 = vpack.c.bf16 %v3035, %v3034
    %v3200 = vpack.c.bf16 %v3037, %v3036
    %v3201 = vpack.c.bf16 %v3039, %v3038
    %v3202 = vpack.c.bf16 %v3041, %v3040
    %v3203 = vpack.c.bf16 %v3043, %v3042
    %v3204 = vpack.c.bf16 %v3045, %v3044
    %v3205 = vpack.c.bf16 %v3047, %v3046
    %v3206 = vpack.c.bf16 %v3049, %v3048
    %v3207 = vpack.c.bf16 %v3051, %v3050
    %v3208 = vpack.c.bf16 %v3053, %v3052
    %v3209 = vpack.c.bf16 %v3055, %v3054
    %v3210 = vpack.c.bf16 %v3057, %v3056
    %v3211 = vpack.c.bf16 %v3059, %v3058
    %v3212 = vpack.c.bf16 %v3061, %v3060
    %v3213 = vpack.c.bf16 %v3063, %v3062
    %v3214 = vpack.c.bf16 %v3065, %v3064
    %v3215 = vpack.c.bf16 %v3067, %v3066
    %v3216 = vpack.c.bf16 %v3069, %v3068
    %v3217 = vpack.c.bf16 %v3071, %v3070
    %v3218 = vpack.c.bf16 %v3073, %v3072
    %v3219 = vpack.c.bf16 %v3075, %v3074
    %v3220 = vpack.c.bf16 %v3077, %v3076
    %v3221 = vpack.c.bf16 %v3079, %v3078
    %v3222 = vpack.c.bf16 %v3081, %v3080
    %v3223 = vpack.c.bf16 %v3083, %v3082
    %v3224 = vpack.c.bf16 %v3085, %v3084
    %v3225 = vpack.c.bf16 %v3087, %v3086
    %v3226 = vpack.c.bf16 %v3089, %v3088
    %v3227 = vpack.c.bf16 %v3091, %v3090
    %v3228 = vpack.c.bf16 %v3093, %v3092
    %v3229 = vpack.c.bf16 %v3095, %v3094
    %v3230 = vpack.c.bf16 %v3097, %v3096
    %v3231 = vpack.c.bf16 %v3099, %v3098
    %v3232 = vpack.c.bf16 %v3101, %v3100
    %v3233 = vpack.c.bf16 %v3103, %v3102
    %v3234 = vpack.c.bf16 %v3105, %v3104
    %v3235 = vpack.c.bf16 %v3107, %v3106
    %v3236 = vld [vmem:[%s1] sm:$0xf]
    %v3237 = vld [vmem:[%s1 + $0x4] sm:$0x1]
    %v3238 = vld [vmem:[%s334] sm:$0xff]
    %v3239 = vld [vmem:[%s334 + $0x8] sm:$0xff]
    %v3240 = vld [vmem:[%s334 + $0x10] sm:$0xff]
    %v3241 = vld [vmem:[%s334 + $0x18] sm:$0xff]
    %v3242 = vld [vmem:[%s334 + $0x20] sm:$0xff]
    %v3243 = vld [vmem:[%s334 + $0x28] sm:$0xff]
    %v3244 = vld [vmem:[%s334 + $0x30] sm:$0xff]
    %v3245 = vld [vmem:[%s334 + $0x38] sm:$0xff]
    %v3246 = vld [vmem:[%s334 + $0x40] sm:$0xff]
    %v3247 = vld [vmem:[%s334 + $0x48] sm:$0xff]
    %v3248 = vld [vmem:[%s334 + $0x50] sm:$0xff]
    %v3249 = vld [vmem:[%s334 + $0x58] sm:$0xff]
    %v3250 = vld [vmem:[%s334 + $0x60] sm:$0xff]
    %v3251 = vld [vmem:[%s334 + $0x68] sm:$0xff]
    %v3252 = vld [vmem:[%s334 + $0x70] sm:$0xff]
    %v3253 = vld [vmem:[%s334 + $0x78] sm:$0xff]
    %v3254 = vld [vmem:[%s334 + $0x80] sm:$0xff]
    %v3255 = vld [vmem:[%s334 + $0x88] sm:$0xff]
    %v3256 = vld [vmem:[%s334 + $0x90] sm:$0xff]
    %v3257 = vld [vmem:[%s334 + $0x98] sm:$0xff]
    %v3258 = vld [vmem:[%s334 + $0xa0] sm:$0xff]
    %v3259 = vld [vmem:[%s334 + $0xa8] sm:$0xff]
    %v3260 = vld [vmem:[%s334 + $0xb0] sm:$0xff]
    %v3261 = vld [vmem:[%s334 + $0xb8] sm:$0xff]
    %v3262 = vld [vmem:[%s334 + $0xc0] sm:$0xff]
    %v3263 = vld [vmem:[%s334 + $0xc8] sm:$0xff]
    %v3264 = vld [vmem:[%s334 + $0xd0] sm:$0xff]
    %v3265 = vld [vmem:[%s334 + $0xd8] sm:$0xff]
    %v3266 = vld [vmem:[%s334 + $0xe0] sm:$0xff]
    %v3267 = vld [vmem:[%s334 + $0xe8] sm:$0xff]
    %v3268 = vld [vmem:[%s334 + $0xf0] sm:$0xff]
    %v3269 = vld [vmem:[%s334 + $0xf8] sm:$0xff]
    %v3270 = vld [vmem:[%s334 + $0x100] sm:$0xff]
    %v3271 = vld [vmem:[%s334 + $0x108] sm:$0xff]
    %v3272 = vld [vmem:[%s334 + $0x110] sm:$0xff]
    %v3273 = vld [vmem:[%s334 + $0x118] sm:$0xff]
    %v3274 = vld [vmem:[%s334 + $0x120] sm:$0xff]
    %v3275 = vld [vmem:[%s334 + $0x128] sm:$0xff]
    %v3276 = vld [vmem:[%s334 + $0x130] sm:$0xff]
    %v3277 = vld [vmem:[%s334 + $0x138] sm:$0xff]
    %v3278 = vld [vmem:[%s334 + $0x140] sm:$0xff]
    %v3279 = vld [vmem:[%s334 + $0x148] sm:$0xff]
    %v3280 = vld [vmem:[%s334 + $0x150] sm:$0xff]
    %v3281 = vld [vmem:[%s334 + $0x158] sm:$0xff]
    %v3282 = vld [vmem:[%s334 + $0x160] sm:$0xff]
    %v3283 = vld [vmem:[%s334 + $0x168] sm:$0xff]
    %v3284 = vld [vmem:[%s334 + $0x170] sm:$0xff]
    %v3285 = vld [vmem:[%s334 + $0x178] sm:$0xff]
    %v3286 = vld [vmem:[%s334 + $0x180] sm:$0xff]
    %v3287 = vld [vmem:[%s334 + $0x188] sm:$0xff]
    %v3288 = vld [vmem:[%s334 + $0x190] sm:$0xff]
    %v3289 = vld [vmem:[%s334 + $0x198] sm:$0xff]
    %v3290 = vld [vmem:[%s334 + $0x1a0] sm:$0xff]
    %v3291 = vld [vmem:[%s334 + $0x1a8] sm:$0xff]
    %v3292 = vld [vmem:[%s334 + $0x1b0] sm:$0xff]
    %v3293 = vld [vmem:[%s334 + $0x1b8] sm:$0xff]
    %v3294 = vld [vmem:[%s334 + $0x1c0] sm:$0xff]
    %v3295 = vld [vmem:[%s334 + $0x1c8] sm:$0xff]
    %v3296 = vld [vmem:[%s334 + $0x1d0] sm:$0xff]
    %v3297 = vld [vmem:[%s334 + $0x1d8] sm:$0xff]
    %v3298 = vld [vmem:[%s334 + $0x1e0] sm:$0xff]
    %v3299 = vld [vmem:[%s334 + $0x1e8] sm:$0xff]
    %v3300 = vld [vmem:[%s334 + $0x1f0] sm:$0xff]
    %v3301 = vld [vmem:[%s334 + $0x1f8] sm:$0xff]
    %v3302 = vld [vmem:[%s334 + $0x200] sm:$0xff]
    %v3303 = vld [vmem:[%s334 + $0x208] sm:$0xff]
    %v3304 = vld [vmem:[%s334 + $0x210] sm:$0xff]
    %v3305 = vld [vmem:[%s334 + $0x218] sm:$0xff]
    %v3306 = vld [vmem:[%s334 + $0x220] sm:$0xff]
    %v3307 = vld [vmem:[%s334 + $0x228] sm:$0xff]
    %v3308 = vld [vmem:[%s334 + $0x230] sm:$0xff]
    %v3309 = vld [vmem:[%s334 + $0x238] sm:$0xff]
    %v3310 = vld [vmem:[%s334 + $0x240] sm:$0xff]
    %v3311 = vld [vmem:[%s334 + $0x248] sm:$0xff]
    %v3312 = vld [vmem:[%s334 + $0x250] sm:$0xff]
    %v3313 = vld [vmem:[%s334 + $0x258] sm:$0xff]
    %v3314 = vld [vmem:[%s334 + $0x260] sm:$0xff]
    %v3315 = vld [vmem:[%s334 + $0x268] sm:$0xff]
    %v3316 = vld [vmem:[%s334 + $0x270] sm:$0xff]
    %v3317 = vld [vmem:[%s334 + $0x278] sm:$0xff]
    %v3318 = vld [vmem:[%s334 + $0x280] sm:$0xff]
    %v3319 = vld [vmem:[%s334 + $0x288] sm:$0xff]
    %v3320 = vld [vmem:[%s334 + $0x290] sm:$0xff]
    %v3321 = vld [vmem:[%s334 + $0x298] sm:$0xff]
    %v3322 = vld [vmem:[%s334 + $0x2a0] sm:$0xff]
    %v3323 = vld [vmem:[%s334 + $0x2a8] sm:$0xff]
    %v3324 = vld [vmem:[%s334 + $0x2b0] sm:$0xff]
    %v3325 = vld [vmem:[%s334 + $0x2b8] sm:$0xff]
    %v3326 = vld [vmem:[%s334 + $0x2c0] sm:$0xff]
    %v3327 = vld [vmem:[%s334 + $0x2c8] sm:$0xff]
    %v3328 = vld [vmem:[%s334 + $0x2d0] sm:$0xff]
    %v3329 = vld [vmem:[%s334 + $0x2d8] sm:$0xff]
    %v3330 = vld [vmem:[%s334 + $0x2e0] sm:$0xff]
    %v3331 = vld [vmem:[%s334 + $0x2e8] sm:$0xff]
    %v3332 = vld [vmem:[%s334 + $0x2f0] sm:$0xff]
    %v3333 = vld [vmem:[%s334 + $0x2f8] sm:$0xff]
    %v3334 = vld [vmem:[%s334 + $0x300] sm:$0xff]
    %v3335 = vld [vmem:[%s334 + $0x308] sm:$0xff]
    %v3336 = vld [vmem:[%s334 + $0x310] sm:$0xff]
    %v3337 = vld [vmem:[%s334 + $0x318] sm:$0xff]
    %v3338 = vld [vmem:[%s334 + $0x320] sm:$0xff]
    %v3339 = vld [vmem:[%s334 + $0x328] sm:$0xff]
    %v3340 = vld [vmem:[%s334 + $0x330] sm:$0xff]
    %v3341 = vld [vmem:[%s334 + $0x338] sm:$0xff]
    %v3342 = vld [vmem:[%s334 + $0x340] sm:$0xff]
    %v3343 = vld [vmem:[%s334 + $0x348] sm:$0xff]
    %v3344 = vld [vmem:[%s334 + $0x350] sm:$0xff]
    %v3345 = vld [vmem:[%s334 + $0x358] sm:$0xff]
    %v3346 = vld [vmem:[%s334 + $0x360] sm:$0xff]
    %v3347 = vld [vmem:[%s334 + $0x368] sm:$0xff]
    %v3348 = vld [vmem:[%s334 + $0x370] sm:$0xff]
    %v3349 = vld [vmem:[%s334 + $0x378] sm:$0xff]
    %v3350 = vld [vmem:[%s334 + $0x380] sm:$0xff]
    %v3351 = vld [vmem:[%s334 + $0x388] sm:$0xff]
    %v3352 = vld [vmem:[%s334 + $0x390] sm:$0xff]
    %v3353 = vld [vmem:[%s334 + $0x398] sm:$0xff]
    %v3354 = vld [vmem:[%s334 + $0x3a0] sm:$0xff]
    %v3355 = vld [vmem:[%s334 + $0x3a8] sm:$0xff]
    %v3356 = vld [vmem:[%s334 + $0x3b0] sm:$0xff]
    %v3357 = vld [vmem:[%s334 + $0x3b8] sm:$0xff]
    %v3358 = vld [vmem:[%s334 + $0x3c0] sm:$0xff]
    %v3359 = vld [vmem:[%s334 + $0x3c8] sm:$0xff]
    %v3360 = vld [vmem:[%s334 + $0x3d0] sm:$0xff]
    %v3361 = vld [vmem:[%s334 + $0x3d8] sm:$0xff]
    %v3362 = vld [vmem:[%s334 + $0x3e0] sm:$0xff]
    %v3363 = vld [vmem:[%s334 + $0x3e8] sm:$0xff]
    %v3364 = vld [vmem:[%s334 + $0x3f0] sm:$0xff]
    %v3365 = vld [vmem:[%s334 + $0x3f8] sm:$0xff]
    %v3366 = vld [vmem:[%s334 + $0x400] sm:$0xff]
    %v3367 = vld [vmem:[%s334 + $0x408] sm:$0xff]
    %v3368 = vld [vmem:[%s334 + $0x410] sm:$0xff]
    %v3369 = vld [vmem:[%s334 + $0x418] sm:$0xff]
    %v3370 = vld [vmem:[%s334 + $0x420] sm:$0xff]
    %v3371 = vld [vmem:[%s334 + $0x428] sm:$0xff]
    %v3372 = vld [vmem:[%s334 + $0x430] sm:$0xff]
    %v3373 = vld [vmem:[%s334 + $0x438] sm:$0xff]
    %v3374 = vld [vmem:[%s334 + $0x440] sm:$0xff]
    %v3375 = vld [vmem:[%s334 + $0x448] sm:$0xff]
    %v3376 = vld [vmem:[%s334 + $0x450] sm:$0xff]
    %v3377 = vld [vmem:[%s334 + $0x458] sm:$0xff]
    %v3378 = vld [vmem:[%s334 + $0x460] sm:$0xff]
    %v3379 = vld [vmem:[%s334 + $0x468] sm:$0xff]
    %v3380 = vld [vmem:[%s334 + $0x470] sm:$0xff]
    %v3381 = vld [vmem:[%s334 + $0x478] sm:$0xff]
    %v3382 = vld [vmem:[%s334 + $0x480] sm:$0xff]
    %v3383 = vld [vmem:[%s334 + $0x488] sm:$0xff]
    %v3384 = vld [vmem:[%s334 + $0x490] sm:$0xff]
    %v3385 = vld [vmem:[%s334 + $0x498] sm:$0xff]
    %v3386 = vld [vmem:[%s334 + $0x4a0] sm:$0xff]
    %v3387 = vld [vmem:[%s334 + $0x4a8] sm:$0xff]
    %v3388 = vld [vmem:[%s334 + $0x4b0] sm:$0xff]
    %v3389 = vld [vmem:[%s334 + $0x4b8] sm:$0xff]
    %v3390 = vld [vmem:[%s334 + $0x4c0] sm:$0xff]
    %v3391 = vld [vmem:[%s334 + $0x4c8] sm:$0xff]
    %v3392 = vld [vmem:[%s334 + $0x4d0] sm:$0xff]
    %v3393 = vld [vmem:[%s334 + $0x4d8] sm:$0xff]
    %v3394 = vld [vmem:[%s334 + $0x4e0] sm:$0xff]
    %v3395 = vld [vmem:[%s334 + $0x4e8] sm:$0xff]
    %v3396 = vld [vmem:[%s334 + $0x4f0] sm:$0xff]
    %v3397 = vld [vmem:[%s334 + $0x4f8] sm:$0xff]
    %v3398 = vld [vmem:[%s334 + $0x500] sm:$0xff]
    %v3399 = vld [vmem:[%s334 + $0x508] sm:$0xff]
    %v3400 = vld [vmem:[%s334 + $0x510] sm:$0xff]
    %v3401 = vld [vmem:[%s334 + $0x518] sm:$0xff]
    %v3402 = vld [vmem:[%s334 + $0x520] sm:$0xff]
    %v3403 = vld [vmem:[%s334 + $0x528] sm:$0xff]
    %v3404 = vld [vmem:[%s334 + $0x530] sm:$0xff]
    %v3405 = vld [vmem:[%s334 + $0x538] sm:$0xff]
    %v3406 = vld [vmem:[%s334 + $0x540] sm:$0xff]
    %v3407 = vld [vmem:[%s334 + $0x548] sm:$0xff]
    %v3408 = vld [vmem:[%s334 + $0x550] sm:$0xff]
    %v3409 = vld [vmem:[%s334 + $0x558] sm:$0xff]
    %v3410 = vld [vmem:[%s334 + $0x560] sm:$0xff]
    %v3411 = vld [vmem:[%s334 + $0x568] sm:$0xff]
    %v3412 = vld [vmem:[%s334 + $0x570] sm:$0xff]
    %v3413 = vld [vmem:[%s334 + $0x578] sm:$0xff]
    %v3414 = vld [vmem:[%s334 + $0x580] sm:$0xff]
    %v3415 = vld [vmem:[%s334 + $0x588] sm:$0xff]
    %v3416 = vld [vmem:[%s334 + $0x590] sm:$0xff]
    %v3417 = vld [vmem:[%s334 + $0x598] sm:$0xff]
    %v3418 = vld [vmem:[%s334 + $0x5a0] sm:$0xff]
    %v3419 = vld [vmem:[%s334 + $0x5a8] sm:$0xff]
    %v3420 = vld [vmem:[%s334 + $0x5b0] sm:$0xff]
    %v3421 = vld [vmem:[%s334 + $0x5b8] sm:$0xff]
    %v3422 = vld [vmem:[%s334 + $0x5c0] sm:$0xff]
    %v3423 = vld [vmem:[%s334 + $0x5c8] sm:$0xff]
    %v3424 = vld [vmem:[%s334 + $0x5d0] sm:$0xff]
    %v3425 = vld [vmem:[%s334 + $0x5d8] sm:$0xff]
    %v3426 = vld [vmem:[%s334 + $0x5e0] sm:$0xff]
    %v3427 = vld [vmem:[%s334 + $0x5e8] sm:$0xff]
    %v3428 = vld [vmem:[%s334 + $0x5f0] sm:$0xff]
    %v3429 = vld [vmem:[%s334 + $0x5f8] sm:$0xff]
    %v3430 = vld [vmem:[%s334 + $0x600] sm:$0xff]
    %v3431 = vld [vmem:[%s334 + $0x608] sm:$0xff]
    %v3432 = vld [vmem:[%s334 + $0x610] sm:$0xff]
    %v3433 = vld [vmem:[%s334 + $0x618] sm:$0xff]
    %v3434 = vld [vmem:[%s334 + $0x620] sm:$0xff]
    %v3435 = vld [vmem:[%s334 + $0x628] sm:$0xff]
    %v3436 = vld [vmem:[%s334 + $0x630] sm:$0xff]
    %v3437 = vld [vmem:[%s334 + $0x638] sm:$0xff]
    %v3438 = vld [vmem:[%s334 + $0x640] sm:$0xff]
    %v3439 = vld [vmem:[%s334 + $0x648] sm:$0xff]
    %v3440 = vld [vmem:[%s334 + $0x650] sm:$0xff]
    %v3441 = vld [vmem:[%s334 + $0x658] sm:$0xff]
    %v3442 = vld [vmem:[%s334 + $0x660] sm:$0xff]
    %v3443 = vld [vmem:[%s334 + $0x668] sm:$0xff]
    %v3444 = vld [vmem:[%s334 + $0x670] sm:$0xff]
    %v3445 = vld [vmem:[%s334 + $0x678] sm:$0xff]
    %v3446 = vld [vmem:[%s334 + $0x680] sm:$0xff]
    %v3447 = vld [vmem:[%s334 + $0x688] sm:$0xff]
    %v3448 = vld [vmem:[%s334 + $0x690] sm:$0xff]
    %v3449 = vld [vmem:[%s334 + $0x698] sm:$0xff]
    %v3450 = vld [vmem:[%s334 + $0x6a0] sm:$0xff]
    %v3451 = vld [vmem:[%s334 + $0x6a8] sm:$0xff]
    %v3452 = vld [vmem:[%s334 + $0x6b0] sm:$0xff]
    %v3453 = vld [vmem:[%s334 + $0x6b8] sm:$0xff]
    %v3454 = vld [vmem:[%s334 + $0x6c0] sm:$0xff]
    %v3455 = vld [vmem:[%s334 + $0x6c8] sm:$0xff]
    %v3456 = vld [vmem:[%s334 + $0x6d0] sm:$0xff]
    %v3457 = vld [vmem:[%s334 + $0x6d8] sm:$0xff]
    %v3458 = vld [vmem:[%s334 + $0x6e0] sm:$0xff]
    %v3459 = vld [vmem:[%s334 + $0x6e8] sm:$0xff]
    %v3460 = vld [vmem:[%s334 + $0x6f0] sm:$0xff]
    %v3461 = vld [vmem:[%s334 + $0x6f8] sm:$0xff]
    %v3462 = vld [vmem:[%s334 + $0x700] sm:$0xff]
    %v3463 = vld [vmem:[%s334 + $0x708] sm:$0xff]
    %v3464 = vld [vmem:[%s334 + $0x710] sm:$0xff]
    %v3465 = vld [vmem:[%s334 + $0x718] sm:$0xff]
    %v3466 = vld [vmem:[%s334 + $0x720] sm:$0xff]
    %v3467 = vld [vmem:[%s334 + $0x728] sm:$0xff]
    %v3468 = vld [vmem:[%s334 + $0x730] sm:$0xff]
    %v3469 = vld [vmem:[%s334 + $0x738] sm:$0xff]
    %v3470 = vld [vmem:[%s334 + $0x740] sm:$0xff]
    %v3471 = vld [vmem:[%s334 + $0x748] sm:$0xff]
    %v3472 = vld [vmem:[%s334 + $0x750] sm:$0xff]
    %v3473 = vld [vmem:[%s334 + $0x758] sm:$0xff]
    %v3474 = vld [vmem:[%s334 + $0x760] sm:$0xff]
    %v3475 = vld [vmem:[%s334 + $0x768] sm:$0xff]
    %v3476 = vld [vmem:[%s334 + $0x770] sm:$0xff]
    %v3477 = vld [vmem:[%s334 + $0x778] sm:$0xff]
    %v3478 = vld [vmem:[%s334 + $0x780] sm:$0xff]
    %v3479 = vld [vmem:[%s334 + $0x788] sm:$0xff]
    %v3480 = vld [vmem:[%s334 + $0x790] sm:$0xff]
    %v3481 = vld [vmem:[%s334 + $0x798] sm:$0xff]
    %v3482 = vld [vmem:[%s334 + $0x7a0] sm:$0xff]
    %v3483 = vld [vmem:[%s334 + $0x7a8] sm:$0xff]
    %v3484 = vld [vmem:[%s334 + $0x7b0] sm:$0xff]
    %v3485 = vld [vmem:[%s334 + $0x7b8] sm:$0xff]
    %v3486 = vld [vmem:[%s334 + $0x7c0] sm:$0xff]
    %v3487 = vld [vmem:[%s334 + $0x7c8] sm:$0xff]
    %v3488 = vld [vmem:[%s334 + $0x7d0] sm:$0xff]
    %v3489 = vld [vmem:[%s334 + $0x7d8] sm:$0xff]
    %v3490 = vld [vmem:[%s334 + $0x7e0] sm:$0xff]
    %v3491 = vld [vmem:[%s334 + $0x7e8] sm:$0xff]
    %v3492 = vld [vmem:[%s334 + $0x7f0] sm:$0xff]
    %v3493 = vld [vmem:[%s334 + $0x7f8] sm:$0xff]
    %v3494 = vpack.c.bf16 %v3239, %v3238
    %v3495 = vpack.c.bf16 %v3241, %v3240
    %v3496 = vpack.c.bf16 %v3243, %v3242
    %v3497 = vpack.c.bf16 %v3245, %v3244
    %v3498 = vpack.c.bf16 %v3247, %v3246
    %v3499 = vpack.c.bf16 %v3249, %v3248
    %v3500 = vpack.c.bf16 %v3251, %v3250
    %v3501 = vpack.c.bf16 %v3253, %v3252
    %v3502 = vpack.c.bf16 %v3255, %v3254
    %v3503 = vpack.c.bf16 %v3257, %v3256
    %v3504 = vpack.c.bf16 %v3259, %v3258
    %v3505 = vpack.c.bf16 %v3261, %v3260
    %v3506 = vpack.c.bf16 %v3263, %v3262
    %v3507 = vpack.c.bf16 %v3265, %v3264
    %v3508 = vpack.c.bf16 %v3267, %v3266
    %v3509 = vpack.c.bf16 %v3269, %v3268
    %v3510 = vpack.c.bf16 %v3271, %v3270
    %v3511 = vpack.c.bf16 %v3273, %v3272
    %v3512 = vpack.c.bf16 %v3275, %v3274
    %v3513 = vpack.c.bf16 %v3277, %v3276
    %v3514 = vpack.c.bf16 %v3279, %v3278
    %v3515 = vpack.c.bf16 %v3281, %v3280
    %v3516 = vpack.c.bf16 %v3283, %v3282
    %v3517 = vpack.c.bf16 %v3285, %v3284
    %v3518 = vpack.c.bf16 %v3287, %v3286
    %v3519 = vpack.c.bf16 %v3289, %v3288
    %v3520 = vpack.c.bf16 %v3291, %v3290
    %v3521 = vpack.c.bf16 %v3293, %v3292
    %v3522 = vpack.c.bf16 %v3295, %v3294
    %v3523 = vpack.c.bf16 %v3297, %v3296
    %v3524 = vpack.c.bf16 %v3299, %v3298
    %v3525 = vpack.c.bf16 %v3301, %v3300
    %v3526 = vpack.c.bf16 %v3303, %v3302
    %v3527 = vpack.c.bf16 %v3305, %v3304
    %v3528 = vpack.c.bf16 %v3307, %v3306
    %v3529 = vpack.c.bf16 %v3309, %v3308
    %v3530 = vpack.c.bf16 %v3311, %v3310
    %v3531 = vpack.c.bf16 %v3313, %v3312
    %v3532 = vpack.c.bf16 %v3315, %v3314
    %v3533 = vpack.c.bf16 %v3317, %v3316
    %v3534 = vpack.c.bf16 %v3319, %v3318
    %v3535 = vpack.c.bf16 %v3321, %v3320
    %v3536 = vpack.c.bf16 %v3323, %v3322
    %v3537 = vpack.c.bf16 %v3325, %v3324
    %v3538 = vpack.c.bf16 %v3327, %v3326
    %v3539 = vpack.c.bf16 %v3329, %v3328
    %v3540 = vpack.c.bf16 %v3331, %v3330
    %v3541 = vpack.c.bf16 %v3333, %v3332
    %v3542 = vpack.c.bf16 %v3335, %v3334
    %v3543 = vpack.c.bf16 %v3337, %v3336
    %v3544 = vpack.c.bf16 %v3339, %v3338
    %v3545 = vpack.c.bf16 %v3341, %v3340
    %v3546 = vpack.c.bf16 %v3343, %v3342
    %v3547 = vpack.c.bf16 %v3345, %v3344
    %v3548 = vpack.c.bf16 %v3347, %v3346
    %v3549 = vpack.c.bf16 %v3349, %v3348
    %v3550 = vpack.c.bf16 %v3351, %v3350
    %v3551 = vpack.c.bf16 %v3353, %v3352
    %v3552 = vpack.c.bf16 %v3355, %v3354
    %v3553 = vpack.c.bf16 %v3357, %v3356
    %v3554 = vpack.c.bf16 %v3359, %v3358
    %v3555 = vpack.c.bf16 %v3361, %v3360
    %v3556 = vpack.c.bf16 %v3363, %v3362
    %v3557 = vpack.c.bf16 %v3365, %v3364
    %v3558 = vpack.c.bf16 %v3367, %v3366
    %v3559 = vpack.c.bf16 %v3369, %v3368
    %v3560 = vpack.c.bf16 %v3371, %v3370
    %v3561 = vpack.c.bf16 %v3373, %v3372
    %v3562 = vpack.c.bf16 %v3375, %v3374
    %v3563 = vpack.c.bf16 %v3377, %v3376
    %v3564 = vpack.c.bf16 %v3379, %v3378
    %v3565 = vpack.c.bf16 %v3381, %v3380
    %v3566 = vpack.c.bf16 %v3383, %v3382
    %v3567 = vpack.c.bf16 %v3385, %v3384
    %v3568 = vpack.c.bf16 %v3387, %v3386
    %v3569 = vpack.c.bf16 %v3389, %v3388
    %v3570 = vpack.c.bf16 %v3391, %v3390
    %v3571 = vpack.c.bf16 %v3393, %v3392
    %v3572 = vpack.c.bf16 %v3395, %v3394
    %v3573 = vpack.c.bf16 %v3397, %v3396
    %v3574 = vpack.c.bf16 %v3399, %v3398
    %v3575 = vpack.c.bf16 %v3401, %v3400
    %v3576 = vpack.c.bf16 %v3403, %v3402
    %v3577 = vpack.c.bf16 %v3405, %v3404
    %v3578 = vpack.c.bf16 %v3407, %v3406
    %v3579 = vpack.c.bf16 %v3409, %v3408
    %v3580 = vpack.c.bf16 %v3411, %v3410
    %v3581 = vpack.c.bf16 %v3413, %v3412
    %v3582 = vpack.c.bf16 %v3415, %v3414
    %v3583 = vpack.c.bf16 %v3417, %v3416
    %v3584 = vpack.c.bf16 %v3419, %v3418
    %v3585 = vpack.c.bf16 %v3421, %v3420
    %v3586 = vpack.c.bf16 %v3423, %v3422
    %v3587 = vpack.c.bf16 %v3425, %v3424
    %v3588 = vpack.c.bf16 %v3427, %v3426
    %v3589 = vpack.c.bf16 %v3429, %v3428
    %v3590 = vpack.c.bf16 %v3431, %v3430
    %v3591 = vpack.c.bf16 %v3433, %v3432
    %v3592 = vpack.c.bf16 %v3435, %v3434
    %v3593 = vpack.c.bf16 %v3437, %v3436
    %v3594 = vpack.c.bf16 %v3439, %v3438
    %v3595 = vpack.c.bf16 %v3441, %v3440
    %v3596 = vpack.c.bf16 %v3443, %v3442
    %v3597 = vpack.c.bf16 %v3445, %v3444
    %v3598 = vpack.c.bf16 %v3447, %v3446
    %v3599 = vpack.c.bf16 %v3449, %v3448
    %v3600 = vpack.c.bf16 %v3451, %v3450
    %v3601 = vpack.c.bf16 %v3453, %v3452
    %v3602 = vpack.c.bf16 %v3455, %v3454
    %v3603 = vpack.c.bf16 %v3457, %v3456
    %v3604 = vpack.c.bf16 %v3459, %v3458
    %v3605 = vpack.c.bf16 %v3461, %v3460
    %v3606 = vpack.c.bf16 %v3463, %v3462
    %v3607 = vpack.c.bf16 %v3465, %v3464
    %v3608 = vpack.c.bf16 %v3467, %v3466
    %v3609 = vpack.c.bf16 %v3469, %v3468
    %v3610 = vpack.c.bf16 %v3471, %v3470
    %v3611 = vpack.c.bf16 %v3473, %v3472
    %v3612 = vpack.c.bf16 %v3475, %v3474
    %v3613 = vpack.c.bf16 %v3477, %v3476
    %v3614 = vpack.c.bf16 %v3479, %v3478
    %v3615 = vpack.c.bf16 %v3481, %v3480
    %v3616 = vpack.c.bf16 %v3483, %v3482
    %v3617 = vpack.c.bf16 %v3485, %v3484
    %v3618 = vpack.c.bf16 %v3487, %v3486
    %v3619 = vpack.c.bf16 %v3489, %v3488
    %v3620 = vpack.c.bf16 %v3491, %v3490
    %v3621 = vpack.c.bf16 %v3493, %v3492
    %s3622 = scalar_lea.vmem %s1, 8
    %v3623 = vld [vmem:[%s3622] sm:$0xf]
    %v3624 = vld [vmem:[%s3622 + $0x4] sm:$0x1]
    %v3627 = vunpack.c.l.b16 %v3623
    %v3628 = vunpack.c.l.b16 %v3624
    %v3629 = vpack.c.b16 %v3628, %v3627
    %v3631 = vsel %vm300, %v3494, 0
    %v3634 = vsel %vm300, %v3495, 0
    %v3637 = vsel %vm300, %v3496, 0
    %v3640 = vsel %vm300, %v3497, 0
    %v3643 = vsel %vm300, %v3498, 0
    %v3646 = vsel %vm300, %v3499, 0
    %v3649 = vsel %vm300, %v3500, 0
    %v3652 = vsel %vm300, %v3501, 0
    %v3655 = vsel %vm300, %v3502, 0
    %v3658 = vsel %vm300, %v3503, 0
    %v3661 = vsel %vm300, %v3504, 0
    %v3664 = vsel %vm300, %v3505, 0
    %v3667 = vsel %vm300, %v3506, 0
    %v3670 = vsel %vm300, %v3507, 0
    %v3673 = vsel %vm300, %v3508, 0
    %v3676 = vsel %vm300, %v3509, 0
    %v3679 = vsel %vm300, %v3510, 0
    %v3682 = vsel %vm300, %v3511, 0
    %v3685 = vsel %vm300, %v3512, 0
    %v3688 = vsel %vm300, %v3513, 0
    %v3691 = vsel %vm300, %v3514, 0
    %v3694 = vsel %vm300, %v3515, 0
    %v3697 = vsel %vm300, %v3516, 0
    %v3700 = vsel %vm300, %v3517, 0
    %v3703 = vsel %vm300, %v3518, 0
    %v3706 = vsel %vm300, %v3519, 0
    %v3709 = vsel %vm300, %v3520, 0
    %v3712 = vsel %vm300, %v3521, 0
    %v3715 = vsel %vm300, %v3522, 0
    %v3718 = vsel %vm300, %v3523, 0
    %v3721 = vsel %vm300, %v3524, 0
    %v3724 = vsel %vm300, %v3525, 0
    %v3727 = vsel %vm300, %v3526, 0
    %v3730 = vsel %vm300, %v3527, 0
    %v3733 = vsel %vm300, %v3528, 0
    %v3736 = vsel %vm300, %v3529, 0
    %v3739 = vsel %vm300, %v3530, 0
    %v3742 = vsel %vm300, %v3531, 0
    %v3745 = vsel %vm300, %v3532, 0
    %v3748 = vsel %vm300, %v3533, 0
    %v3751 = vsel %vm300, %v3534, 0
    %v3754 = vsel %vm300, %v3535, 0
    %v3757 = vsel %vm300, %v3536, 0
    %v3760 = vsel %vm300, %v3537, 0
    %v3763 = vsel %vm300, %v3538, 0
    %v3766 = vsel %vm300, %v3539, 0
    %v3769 = vsel %vm300, %v3540, 0
    %v3772 = vsel %vm300, %v3541, 0
    %v3775 = vsel %vm300, %v3542, 0
    %v3778 = vsel %vm300, %v3543, 0
    %v3781 = vsel %vm300, %v3544, 0
    %v3784 = vsel %vm300, %v3545, 0
    %v3787 = vsel %vm300, %v3546, 0
    %v3790 = vsel %vm300, %v3547, 0
    %v3793 = vsel %vm300, %v3548, 0
    %v3796 = vsel %vm300, %v3549, 0
    %v3799 = vsel %vm300, %v3550, 0
    %v3802 = vsel %vm300, %v3551, 0
    %v3805 = vsel %vm300, %v3552, 0
    %v3808 = vsel %vm300, %v3553, 0
    %v3811 = vsel %vm300, %v3554, 0
    %v3814 = vsel %vm300, %v3555, 0
    %v3817 = vsel %vm300, %v3556, 0
    %v3820 = vsel %vm300, %v3557, 0
    %v3823 = vsel %vm300, %v3558, 0
    %v3826 = vsel %vm300, %v3559, 0
    %v3829 = vsel %vm300, %v3560, 0
    %v3832 = vsel %vm300, %v3561, 0
    %v3835 = vsel %vm300, %v3562, 0
    %v3838 = vsel %vm300, %v3563, 0
    %v3841 = vsel %vm300, %v3564, 0
    %v3844 = vsel %vm300, %v3565, 0
    %v3847 = vsel %vm300, %v3566, 0
    %v3850 = vsel %vm300, %v3567, 0
    %v3853 = vsel %vm300, %v3568, 0
    %v3856 = vsel %vm300, %v3569, 0
    %v3859 = vsel %vm300, %v3570, 0
    %v3862 = vsel %vm300, %v3571, 0
    %v3865 = vsel %vm300, %v3572, 0
    %v3868 = vsel %vm300, %v3573, 0
    %v3871 = vsel %vm300, %v3574, 0
    %v3874 = vsel %vm300, %v3575, 0
    %v3877 = vsel %vm300, %v3576, 0
    %v3880 = vsel %vm300, %v3577, 0
    %v3883 = vsel %vm300, %v3578, 0
    %v3886 = vsel %vm300, %v3579, 0
    %v3889 = vsel %vm300, %v3580, 0
    %v3892 = vsel %vm300, %v3581, 0
    %v3895 = vsel %vm300, %v3582, 0
    %v3898 = vsel %vm300, %v3583, 0
    %v3901 = vsel %vm300, %v3584, 0
    %v3904 = vsel %vm300, %v3585, 0
    %v3907 = vsel %vm300, %v3586, 0
    %v3910 = vsel %vm300, %v3587, 0
    %v3913 = vsel %vm300, %v3588, 0
    %v3916 = vsel %vm300, %v3589, 0
    %v3919 = vsel %vm300, %v3590, 0
    %v3922 = vsel %vm300, %v3591, 0
    %v3925 = vsel %vm300, %v3592, 0
    %v3928 = vsel %vm300, %v3593, 0
    %v3931 = vsel %vm300, %v3594, 0
    %v3934 = vsel %vm300, %v3595, 0
    %v3937 = vsel %vm300, %v3596, 0
    %v3940 = vsel %vm300, %v3597, 0
    %v3943 = vsel %vm300, %v3598, 0
    %v3946 = vsel %vm300, %v3599, 0
    %v3949 = vsel %vm300, %v3600, 0
    %v3952 = vsel %vm300, %v3601, 0
    %v3955 = vsel %vm300, %v3602, 0
    %v3958 = vsel %vm300, %v3603, 0
    %v3961 = vsel %vm300, %v3604, 0
    %v3964 = vsel %vm300, %v3605, 0
    %v3967 = vsel %vm300, %v3606, 0
    %v3970 = vsel %vm300, %v3607, 0
    %v3973 = vsel %vm300, %v3608, 0
    %v3976 = vsel %vm300, %v3609, 0
    %v3979 = vsel %vm300, %v3610, 0
    %v3982 = vsel %vm300, %v3611, 0
    %v3985 = vsel %vm300, %v3612, 0
    %v3988 = vsel %vm300, %v3613, 0
    %v3991 = vsel %vm300, %v3614, 0
    %v3994 = vsel %vm300, %v3615, 0
    %v3997 = vsel %vm300, %v3616, 0
    %v4000 = vsel %vm300, %v3617, 0
    %v4003 = vsel %vm300, %v3618, 0
    %v4006 = vsel %vm300, %v3619, 0
    %v4009 = vsel %vm300, %v3620, 0
    %v4012 = vsel %vm300, %v3621, 0
    %vm4014 = vcmask 1043456
    %vm4015 = vcmask 1044480
    %v4016 = vsel %vm4014, 4294967295, 65535
    %v4017 = vsel %vm4015, %v4016, 0
    %v4019 = vand.u32 %v3629, %v4017
    %4021 = vmatpush.bf16.msra.mxu0 0
    %4022 = vmatpush.bf16.msra.mxu0 0
    %4023 = vmatpush.bf16.msra.mxu0 0
    %4024 = vmatpush.bf16.msra.mxu0 0
    %4025 = vmatpush.bf16.msra.mxu0 0
    %4026 = vmatpush.bf16.msra.mxu0 0
    %4027 = vmatpush.bf16.msra.mxu0 0
    %4028 = vmatpush.bf16.msra.mxu0 %v4019
    %4029 = vmatmul.bf16.gmra.mxu0 %v3631
    %v4030 = vpop.f32.mrf.mxu0
    %v4031 = vadd.f32 0.0, %v4030
    %v4032 = vpop.f32.mrf.mxu0
    %v4033 = vadd.f32 0.0, %v4032
    %4034 = vmatmul.bf16.gmra.mxu0 %v3634
    %v4035 = vpop.f32.mrf.mxu0
    %v4036 = vadd.f32 0.0, %v4035
    %v4037 = vpop.f32.mrf.mxu0
    %v4038 = vadd.f32 0.0, %v4037
    %4039 = vmatmul.bf16.gmra.mxu0 %v3637
    %v4040 = vpop.f32.mrf.mxu0
    %v4041 = vadd.f32 0.0, %v4040
    %v4042 = vpop.f32.mrf.mxu0
    %v4043 = vadd.f32 0.0, %v4042
    %4044 = vmatmul.bf16.gmra.mxu0 %v3640
    %v4045 = vpop.f32.mrf.mxu0
    %v4046 = vadd.f32 0.0, %v4045
    %v4047 = vpop.f32.mrf.mxu0
    %v4048 = vadd.f32 0.0, %v4047
    %4049 = vmatmul.bf16.gmra.mxu0 %v3643
    %v4050 = vpop.f32.mrf.mxu0
    %v4051 = vadd.f32 0.0, %v4050
    %v4052 = vpop.f32.mrf.mxu0
    %v4053 = vadd.f32 0.0, %v4052
    %4054 = vmatmul.bf16.gmra.mxu0 %v3646
    %v4055 = vpop.f32.mrf.mxu0
    %v4056 = vadd.f32 0.0, %v4055
    %v4057 = vpop.f32.mrf.mxu0
    %v4058 = vadd.f32 0.0, %v4057
    %4059 = vmatmul.bf16.gmra.mxu0 %v3649
    %v4060 = vpop.f32.mrf.mxu0
    %v4061 = vadd.f32 0.0, %v4060
    %v4062 = vpop.f32.mrf.mxu0
    %v4063 = vadd.f32 0.0, %v4062
    %4064 = vmatmul.bf16.gmra.mxu0 %v3652
    %v4065 = vpop.f32.mrf.mxu0
    %v4066 = vadd.f32 0.0, %v4065
    %v4067 = vpop.f32.mrf.mxu0
    %v4068 = vadd.f32 0.0, %v4067
    %4069 = vmatmul.bf16.gmra.mxu0 %v3655
    %v4070 = vpop.f32.mrf.mxu0
    %v4071 = vadd.f32 0.0, %v4070
    %v4072 = vpop.f32.mrf.mxu0
    %v4073 = vadd.f32 0.0, %v4072
    %4074 = vmatmul.bf16.gmra.mxu0 %v3658
    %v4075 = vpop.f32.mrf.mxu0
    %v4076 = vadd.f32 0.0, %v4075
    %v4077 = vpop.f32.mrf.mxu0
    %v4078 = vadd.f32 0.0, %v4077
    %4079 = vmatmul.bf16.gmra.mxu0 %v3661
    %v4080 = vpop.f32.mrf.mxu0
    %v4081 = vadd.f32 0.0, %v4080
    %v4082 = vpop.f32.mrf.mxu0
    %v4083 = vadd.f32 0.0, %v4082
    %4084 = vmatmul.bf16.gmra.mxu0 %v3664
    %v4085 = vpop.f32.mrf.mxu0
    %v4086 = vadd.f32 0.0, %v4085
    %v4087 = vpop.f32.mrf.mxu0
    %v4088 = vadd.f32 0.0, %v4087
    %4089 = vmatmul.bf16.gmra.mxu0 %v3667
    %v4090 = vpop.f32.mrf.mxu0
    %v4091 = vadd.f32 0.0, %v4090
    %v4092 = vpop.f32.mrf.mxu0
    %v4093 = vadd.f32 0.0, %v4092
    %4094 = vmatmul.bf16.gmra.mxu0 %v3670
    %v4095 = vpop.f32.mrf.mxu0
    %v4096 = vadd.f32 0.0, %v4095
    %v4097 = vpop.f32.mrf.mxu0
    %v4098 = vadd.f32 0.0, %v4097
    %4099 = vmatmul.bf16.gmra.mxu0 %v3673
    %v4100 = vpop.f32.mrf.mxu0
    %v4101 = vadd.f32 0.0, %v4100
    %v4102 = vpop.f32.mrf.mxu0
    %v4103 = vadd.f32 0.0, %v4102
    %4104 = vmatmul.bf16.gmra.mxu0 %v3676
    %v4105 = vpop.f32.mrf.mxu0
    %v4106 = vadd.f32 0.0, %v4105
    %v4107 = vpop.f32.mrf.mxu0
    %v4108 = vadd.f32 0.0, %v4107
    %4109 = vmatmul.bf16.gmra.mxu0 %v3679
    %v4110 = vpop.f32.mrf.mxu0
    %v4111 = vadd.f32 0.0, %v4110
    %v4112 = vpop.f32.mrf.mxu0
    %v4113 = vadd.f32 0.0, %v4112
    %4114 = vmatmul.bf16.gmra.mxu0 %v3682
    %v4115 = vpop.f32.mrf.mxu0
    %v4116 = vadd.f32 0.0, %v4115
    %v4117 = vpop.f32.mrf.mxu0
    %v4118 = vadd.f32 0.0, %v4117
    %4119 = vmatmul.bf16.gmra.mxu0 %v3685
    %v4120 = vpop.f32.mrf.mxu0
    %v4121 = vadd.f32 0.0, %v4120
    %v4122 = vpop.f32.mrf.mxu0
    %v4123 = vadd.f32 0.0, %v4122
    %4124 = vmatmul.bf16.gmra.mxu0 %v3688
    %v4125 = vpop.f32.mrf.mxu0
    %v4126 = vadd.f32 0.0, %v4125
    %v4127 = vpop.f32.mrf.mxu0
    %v4128 = vadd.f32 0.0, %v4127
    %4129 = vmatmul.bf16.gmra.mxu0 %v3691
    %v4130 = vpop.f32.mrf.mxu0
    %v4131 = vadd.f32 0.0, %v4130
    %v4132 = vpop.f32.mrf.mxu0
    %v4133 = vadd.f32 0.0, %v4132
    %4134 = vmatmul.bf16.gmra.mxu0 %v3694
    %v4135 = vpop.f32.mrf.mxu0
    %v4136 = vadd.f32 0.0, %v4135
    %v4137 = vpop.f32.mrf.mxu0
    %v4138 = vadd.f32 0.0, %v4137
    %4139 = vmatmul.bf16.gmra.mxu0 %v3697
    %v4140 = vpop.f32.mrf.mxu0
    %v4141 = vadd.f32 0.0, %v4140
    %v4142 = vpop.f32.mrf.mxu0
    %v4143 = vadd.f32 0.0, %v4142
    %4144 = vmatmul.bf16.gmra.mxu0 %v3700
    %v4145 = vpop.f32.mrf.mxu0
    %v4146 = vadd.f32 0.0, %v4145
    %v4147 = vpop.f32.mrf.mxu0
    %v4148 = vadd.f32 0.0, %v4147
    %4149 = vmatmul.bf16.gmra.mxu0 %v3703
    %v4150 = vpop.f32.mrf.mxu0
    %v4151 = vadd.f32 0.0, %v4150
    %v4152 = vpop.f32.mrf.mxu0
    %v4153 = vadd.f32 0.0, %v4152
    %4154 = vmatmul.bf16.gmra.mxu0 %v3706
    %v4155 = vpop.f32.mrf.mxu0
    %v4156 = vadd.f32 0.0, %v4155
    %v4157 = vpop.f32.mrf.mxu0
    %v4158 = vadd.f32 0.0, %v4157
    %4159 = vmatmul.bf16.gmra.mxu0 %v3709
    %v4160 = vpop.f32.mrf.mxu0
    %v4161 = vadd.f32 0.0, %v4160
    %v4162 = vpop.f32.mrf.mxu0
    %v4163 = vadd.f32 0.0, %v4162
    %4164 = vmatmul.bf16.gmra.mxu0 %v3712
    %v4165 = vpop.f32.mrf.mxu0
    %v4166 = vadd.f32 0.0, %v4165
    %v4167 = vpop.f32.mrf.mxu0
    %v4168 = vadd.f32 0.0, %v4167
    %4169 = vmatmul.bf16.gmra.mxu0 %v3715
    %v4170 = vpop.f32.mrf.mxu0
    %v4171 = vadd.f32 0.0, %v4170
    %v4172 = vpop.f32.mrf.mxu0
    %v4173 = vadd.f32 0.0, %v4172
    %4174 = vmatmul.bf16.gmra.mxu0 %v3718
    %v4175 = vpop.f32.mrf.mxu0
    %v4176 = vadd.f32 0.0, %v4175
    %v4177 = vpop.f32.mrf.mxu0
    %v4178 = vadd.f32 0.0, %v4177
    %4179 = vmatmul.bf16.gmra.mxu0 %v3721
    %v4180 = vpop.f32.mrf.mxu0
    %v4181 = vadd.f32 0.0, %v4180
    %v4182 = vpop.f32.mrf.mxu0
    %v4183 = vadd.f32 0.0, %v4182
    %4184 = vmatmul.bf16.gmra.mxu0 %v3724
    %v4185 = vpop.f32.mrf.mxu0
    %v4186 = vadd.f32 0.0, %v4185
    %v4187 = vpop.f32.mrf.mxu0
    %v4188 = vadd.f32 0.0, %v4187
    %4189 = vmatmul.bf16.gmra.mxu0 %v3727
    %v4190 = vpop.f32.mrf.mxu0
    %v4191 = vadd.f32 0.0, %v4190
    %v4192 = vpop.f32.mrf.mxu0
    %v4193 = vadd.f32 0.0, %v4192
    %4194 = vmatmul.bf16.gmra.mxu0 %v3730
    %v4195 = vpop.f32.mrf.mxu0
    %v4196 = vadd.f32 0.0, %v4195
    %v4197 = vpop.f32.mrf.mxu0
    %v4198 = vadd.f32 0.0, %v4197
    %4199 = vmatmul.bf16.gmra.mxu0 %v3733
    %v4200 = vpop.f32.mrf.mxu0
    %v4201 = vadd.f32 0.0, %v4200
    %v4202 = vpop.f32.mrf.mxu0
    %v4203 = vadd.f32 0.0, %v4202
    %4204 = vmatmul.bf16.gmra.mxu0 %v3736
    %v4205 = vpop.f32.mrf.mxu0
    %v4206 = vadd.f32 0.0, %v4205
    %v4207 = vpop.f32.mrf.mxu0
    %v4208 = vadd.f32 0.0, %v4207
    %4209 = vmatmul.bf16.gmra.mxu0 %v3739
    %v4210 = vpop.f32.mrf.mxu0
    %v4211 = vadd.f32 0.0, %v4210
    %v4212 = vpop.f32.mrf.mxu0
    %v4213 = vadd.f32 0.0, %v4212
    %4214 = vmatmul.bf16.gmra.mxu0 %v3742
    %v4215 = vpop.f32.mrf.mxu0
    %v4216 = vadd.f32 0.0, %v4215
    %v4217 = vpop.f32.mrf.mxu0
    %v4218 = vadd.f32 0.0, %v4217
    %4219 = vmatmul.bf16.gmra.mxu0 %v3745
    %v4220 = vpop.f32.mrf.mxu0
    %v4221 = vadd.f32 0.0, %v4220
    %v4222 = vpop.f32.mrf.mxu0
    %v4223 = vadd.f32 0.0, %v4222
    %4224 = vmatmul.bf16.gmra.mxu0 %v3748
    %v4225 = vpop.f32.mrf.mxu0
    %v4226 = vadd.f32 0.0, %v4225
    %v4227 = vpop.f32.mrf.mxu0
    %v4228 = vadd.f32 0.0, %v4227
    %4229 = vmatmul.bf16.gmra.mxu0 %v3751
    %v4230 = vpop.f32.mrf.mxu0
    %v4231 = vadd.f32 0.0, %v4230
    %v4232 = vpop.f32.mrf.mxu0
    %v4233 = vadd.f32 0.0, %v4232
    %4234 = vmatmul.bf16.gmra.mxu0 %v3754
    %v4235 = vpop.f32.mrf.mxu0
    %v4236 = vadd.f32 0.0, %v4235
    %v4237 = vpop.f32.mrf.mxu0
    %v4238 = vadd.f32 0.0, %v4237
    %4239 = vmatmul.bf16.gmra.mxu0 %v3757
    %v4240 = vpop.f32.mrf.mxu0
    %v4241 = vadd.f32 0.0, %v4240
    %v4242 = vpop.f32.mrf.mxu0
    %v4243 = vadd.f32 0.0, %v4242
    %4244 = vmatmul.bf16.gmra.mxu0 %v3760
    %v4245 = vpop.f32.mrf.mxu0
    %v4246 = vadd.f32 0.0, %v4245
    %v4247 = vpop.f32.mrf.mxu0
    %v4248 = vadd.f32 0.0, %v4247
    %4249 = vmatmul.bf16.gmra.mxu0 %v3763
    %v4250 = vpop.f32.mrf.mxu0
    %v4251 = vadd.f32 0.0, %v4250
    %v4252 = vpop.f32.mrf.mxu0
    %v4253 = vadd.f32 0.0, %v4252
    %4254 = vmatmul.bf16.gmra.mxu0 %v3766
    %v4255 = vpop.f32.mrf.mxu0
    %v4256 = vadd.f32 0.0, %v4255
    %v4257 = vpop.f32.mrf.mxu0
    %v4258 = vadd.f32 0.0, %v4257
    %4259 = vmatmul.bf16.gmra.mxu0 %v3769
    %v4260 = vpop.f32.mrf.mxu0
    %v4261 = vadd.f32 0.0, %v4260
    %v4262 = vpop.f32.mrf.mxu0
    %v4263 = vadd.f32 0.0, %v4262
    %4264 = vmatmul.bf16.gmra.mxu0 %v3772
    %v4265 = vpop.f32.mrf.mxu0
    %v4266 = vadd.f32 0.0, %v4265
    %v4267 = vpop.f32.mrf.mxu0
    %v4268 = vadd.f32 0.0, %v4267
    %4269 = vmatmul.bf16.gmra.mxu0 %v3775
    %v4270 = vpop.f32.mrf.mxu0
    %v4271 = vadd.f32 0.0, %v4270
    %v4272 = vpop.f32.mrf.mxu0
    %v4273 = vadd.f32 0.0, %v4272
    %4274 = vmatmul.bf16.gmra.mxu0 %v3778
    %v4275 = vpop.f32.mrf.mxu0
    %v4276 = vadd.f32 0.0, %v4275
    %v4277 = vpop.f32.mrf.mxu0
    %v4278 = vadd.f32 0.0, %v4277
    %4279 = vmatmul.bf16.gmra.mxu0 %v3781
    %v4280 = vpop.f32.mrf.mxu0
    %v4281 = vadd.f32 0.0, %v4280
    %v4282 = vpop.f32.mrf.mxu0
    %v4283 = vadd.f32 0.0, %v4282
    %4284 = vmatmul.bf16.gmra.mxu0 %v3784
    %v4285 = vpop.f32.mrf.mxu0
    %v4286 = vadd.f32 0.0, %v4285
    %v4287 = vpop.f32.mrf.mxu0
    %v4288 = vadd.f32 0.0, %v4287
    %4289 = vmatmul.bf16.gmra.mxu0 %v3787
    %v4290 = vpop.f32.mrf.mxu0
    %v4291 = vadd.f32 0.0, %v4290
    %v4292 = vpop.f32.mrf.mxu0
    %v4293 = vadd.f32 0.0, %v4292
    %4294 = vmatmul.bf16.gmra.mxu0 %v3790
    %v4295 = vpop.f32.mrf.mxu0
    %v4296 = vadd.f32 0.0, %v4295
    %v4297 = vpop.f32.mrf.mxu0
    %v4298 = vadd.f32 0.0, %v4297
    %4299 = vmatmul.bf16.gmra.mxu0 %v3793
    %v4300 = vpop.f32.mrf.mxu0
    %v4301 = vadd.f32 0.0, %v4300
    %v4302 = vpop.f32.mrf.mxu0
    %v4303 = vadd.f32 0.0, %v4302
    %4304 = vmatmul.bf16.gmra.mxu0 %v3796
    %v4305 = vpop.f32.mrf.mxu0
    %v4306 = vadd.f32 0.0, %v4305
    %v4307 = vpop.f32.mrf.mxu0
    %v4308 = vadd.f32 0.0, %v4307
    %4309 = vmatmul.bf16.gmra.mxu0 %v3799
    %v4310 = vpop.f32.mrf.mxu0
    %v4311 = vadd.f32 0.0, %v4310
    %v4312 = vpop.f32.mrf.mxu0
    %v4313 = vadd.f32 0.0, %v4312
    %4314 = vmatmul.bf16.gmra.mxu0 %v3802
    %v4315 = vpop.f32.mrf.mxu0
    %v4316 = vadd.f32 0.0, %v4315
    %v4317 = vpop.f32.mrf.mxu0
    %v4318 = vadd.f32 0.0, %v4317
    %4319 = vmatmul.bf16.gmra.mxu0 %v3805
    %v4320 = vpop.f32.mrf.mxu0
    %v4321 = vadd.f32 0.0, %v4320
    %v4322 = vpop.f32.mrf.mxu0
    %v4323 = vadd.f32 0.0, %v4322
    %4324 = vmatmul.bf16.gmra.mxu0 %v3808
    %v4325 = vpop.f32.mrf.mxu0
    %v4326 = vadd.f32 0.0, %v4325
    %v4327 = vpop.f32.mrf.mxu0
    %v4328 = vadd.f32 0.0, %v4327
    %4329 = vmatmul.bf16.gmra.mxu0 %v3811
    %v4330 = vpop.f32.mrf.mxu0
    %v4331 = vadd.f32 0.0, %v4330
    %v4332 = vpop.f32.mrf.mxu0
    %v4333 = vadd.f32 0.0, %v4332
    %4334 = vmatmul.bf16.gmra.mxu0 %v3814
    %v4335 = vpop.f32.mrf.mxu0
    %v4336 = vadd.f32 0.0, %v4335
    %v4337 = vpop.f32.mrf.mxu0
    %v4338 = vadd.f32 0.0, %v4337
    %4339 = vmatmul.bf16.gmra.mxu0 %v3817
    %v4340 = vpop.f32.mrf.mxu0
    %v4341 = vadd.f32 0.0, %v4340
    %v4342 = vpop.f32.mrf.mxu0
    %v4343 = vadd.f32 0.0, %v4342
    %4344 = vmatmul.bf16.gmra.mxu0 %v3820
    %v4345 = vpop.f32.mrf.mxu0
    %v4346 = vadd.f32 0.0, %v4345
    %v4347 = vpop.f32.mrf.mxu0
    %v4348 = vadd.f32 0.0, %v4347
    %4349 = vmatmul.bf16.gmra.mxu0 %v3823
    %v4350 = vpop.f32.mrf.mxu0
    %v4351 = vadd.f32 0.0, %v4350
    %v4352 = vpop.f32.mrf.mxu0
    %v4353 = vadd.f32 0.0, %v4352
    %4354 = vmatmul.bf16.gmra.mxu0 %v3826
    %v4355 = vpop.f32.mrf.mxu0
    %v4356 = vadd.f32 0.0, %v4355
    %v4357 = vpop.f32.mrf.mxu0
    %v4358 = vadd.f32 0.0, %v4357
    %4359 = vmatmul.bf16.gmra.mxu0 %v3829
    %v4360 = vpop.f32.mrf.mxu0
    %v4361 = vadd.f32 0.0, %v4360
    %v4362 = vpop.f32.mrf.mxu0
    %v4363 = vadd.f32 0.0, %v4362
    %4364 = vmatmul.bf16.gmra.mxu0 %v3832
    %v4365 = vpop.f32.mrf.mxu0
    %v4366 = vadd.f32 0.0, %v4365
    %v4367 = vpop.f32.mrf.mxu0
    %v4368 = vadd.f32 0.0, %v4367
    %4369 = vmatmul.bf16.gmra.mxu0 %v3835
    %v4370 = vpop.f32.mrf.mxu0
    %v4371 = vadd.f32 0.0, %v4370
    %v4372 = vpop.f32.mrf.mxu0
    %v4373 = vadd.f32 0.0, %v4372
    %4374 = vmatmul.bf16.gmra.mxu0 %v3838
    %v4375 = vpop.f32.mrf.mxu0
    %v4376 = vadd.f32 0.0, %v4375
    %v4377 = vpop.f32.mrf.mxu0
    %v4378 = vadd.f32 0.0, %v4377
    %4379 = vmatmul.bf16.gmra.mxu0 %v3841
    %v4380 = vpop.f32.mrf.mxu0
    %v4381 = vadd.f32 0.0, %v4380
    %v4382 = vpop.f32.mrf.mxu0
    %v4383 = vadd.f32 0.0, %v4382
    %4384 = vmatmul.bf16.gmra.mxu0 %v3844
    %v4385 = vpop.f32.mrf.mxu0
    %v4386 = vadd.f32 0.0, %v4385
    %v4387 = vpop.f32.mrf.mxu0
    %v4388 = vadd.f32 0.0, %v4387
    %4389 = vmatmul.bf16.gmra.mxu0 %v3847
    %v4390 = vpop.f32.mrf.mxu0
    %v4391 = vadd.f32 0.0, %v4390
    %v4392 = vpop.f32.mrf.mxu0
    %v4393 = vadd.f32 0.0, %v4392
    %4394 = vmatmul.bf16.gmra.mxu0 %v3850
    %v4395 = vpop.f32.mrf.mxu0
    %v4396 = vadd.f32 0.0, %v4395
    %v4397 = vpop.f32.mrf.mxu0
    %v4398 = vadd.f32 0.0, %v4397
    %4399 = vmatmul.bf16.gmra.mxu0 %v3853
    %v4400 = vpop.f32.mrf.mxu0
    %v4401 = vadd.f32 0.0, %v4400
    %v4402 = vpop.f32.mrf.mxu0
    %v4403 = vadd.f32 0.0, %v4402
    %4404 = vmatmul.bf16.gmra.mxu0 %v3856
    %v4405 = vpop.f32.mrf.mxu0
    %v4406 = vadd.f32 0.0, %v4405
    %v4407 = vpop.f32.mrf.mxu0
    %v4408 = vadd.f32 0.0, %v4407
    %4409 = vmatmul.bf16.gmra.mxu0 %v3859
    %v4410 = vpop.f32.mrf.mxu0
    %v4411 = vadd.f32 0.0, %v4410
    %v4412 = vpop.f32.mrf.mxu0
    %v4413 = vadd.f32 0.0, %v4412
    %4414 = vmatmul.bf16.gmra.mxu0 %v3862
    %v4415 = vpop.f32.mrf.mxu0
    %v4416 = vadd.f32 0.0, %v4415
    %v4417 = vpop.f32.mrf.mxu0
    %v4418 = vadd.f32 0.0, %v4417
    %4419 = vmatmul.bf16.gmra.mxu0 %v3865
    %v4420 = vpop.f32.mrf.mxu0
    %v4421 = vadd.f32 0.0, %v4420
    %v4422 = vpop.f32.mrf.mxu0
    %v4423 = vadd.f32 0.0, %v4422
    %4424 = vmatmul.bf16.gmra.mxu0 %v3868
    %v4425 = vpop.f32.mrf.mxu0
    %v4426 = vadd.f32 0.0, %v4425
    %v4427 = vpop.f32.mrf.mxu0
    %v4428 = vadd.f32 0.0, %v4427
    %4429 = vmatmul.bf16.gmra.mxu0 %v3871
    %v4430 = vpop.f32.mrf.mxu0
    %v4431 = vadd.f32 0.0, %v4430
    %v4432 = vpop.f32.mrf.mxu0
    %v4433 = vadd.f32 0.0, %v4432
    %4434 = vmatmul.bf16.gmra.mxu0 %v3874
    %v4435 = vpop.f32.mrf.mxu0
    %v4436 = vadd.f32 0.0, %v4435
    %v4437 = vpop.f32.mrf.mxu0
    %v4438 = vadd.f32 0.0, %v4437
    %4439 = vmatmul.bf16.gmra.mxu0 %v3877
    %v4440 = vpop.f32.mrf.mxu0
    %v4441 = vadd.f32 0.0, %v4440
    %v4442 = vpop.f32.mrf.mxu0
    %v4443 = vadd.f32 0.0, %v4442
    %4444 = vmatmul.bf16.gmra.mxu0 %v3880
    %v4445 = vpop.f32.mrf.mxu0
    %v4446 = vadd.f32 0.0, %v4445
    %v4447 = vpop.f32.mrf.mxu0
    %v4448 = vadd.f32 0.0, %v4447
    %4449 = vmatmul.bf16.gmra.mxu0 %v3883
    %v4450 = vpop.f32.mrf.mxu0
    %v4451 = vadd.f32 0.0, %v4450
    %v4452 = vpop.f32.mrf.mxu0
    %v4453 = vadd.f32 0.0, %v4452
    %4454 = vmatmul.bf16.gmra.mxu0 %v3886
    %v4455 = vpop.f32.mrf.mxu0
    %v4456 = vadd.f32 0.0, %v4455
    %v4457 = vpop.f32.mrf.mxu0
    %v4458 = vadd.f32 0.0, %v4457
    %4459 = vmatmul.bf16.gmra.mxu0 %v3889
    %v4460 = vpop.f32.mrf.mxu0
    %v4461 = vadd.f32 0.0, %v4460
    %v4462 = vpop.f32.mrf.mxu0
    %v4463 = vadd.f32 0.0, %v4462
    %4464 = vmatmul.bf16.gmra.mxu0 %v3892
    %v4465 = vpop.f32.mrf.mxu0
    %v4466 = vadd.f32 0.0, %v4465
    %v4467 = vpop.f32.mrf.mxu0
    %v4468 = vadd.f32 0.0, %v4467
    %4469 = vmatmul.bf16.gmra.mxu0 %v3895
    %v4470 = vpop.f32.mrf.mxu0
    %v4471 = vadd.f32 0.0, %v4470
    %v4472 = vpop.f32.mrf.mxu0
    %v4473 = vadd.f32 0.0, %v4472
    %4474 = vmatmul.bf16.gmra.mxu0 %v3898
    %v4475 = vpop.f32.mrf.mxu0
    %v4476 = vadd.f32 0.0, %v4475
    %v4477 = vpop.f32.mrf.mxu0
    %v4478 = vadd.f32 0.0, %v4477
    %4479 = vmatmul.bf16.gmra.mxu0 %v3901
    %v4480 = vpop.f32.mrf.mxu0
    %v4481 = vadd.f32 0.0, %v4480
    %v4482 = vpop.f32.mrf.mxu0
    %v4483 = vadd.f32 0.0, %v4482
    %4484 = vmatmul.bf16.gmra.mxu0 %v3904
    %v4485 = vpop.f32.mrf.mxu0
    %v4486 = vadd.f32 0.0, %v4485
    %v4487 = vpop.f32.mrf.mxu0
    %v4488 = vadd.f32 0.0, %v4487
    %4489 = vmatmul.bf16.gmra.mxu0 %v3907
    %v4490 = vpop.f32.mrf.mxu0
    %v4491 = vadd.f32 0.0, %v4490
    %v4492 = vpop.f32.mrf.mxu0
    %v4493 = vadd.f32 0.0, %v4492
    %4494 = vmatmul.bf16.gmra.mxu0 %v3910
    %v4495 = vpop.f32.mrf.mxu0
    %v4496 = vadd.f32 0.0, %v4495
    %v4497 = vpop.f32.mrf.mxu0
    %v4498 = vadd.f32 0.0, %v4497
    %4499 = vmatmul.bf16.gmra.mxu0 %v3913
    %v4500 = vpop.f32.mrf.mxu0
    %v4501 = vadd.f32 0.0, %v4500
    %v4502 = vpop.f32.mrf.mxu0
    %v4503 = vadd.f32 0.0, %v4502
    %4504 = vmatmul.bf16.gmra.mxu0 %v3916
    %v4505 = vpop.f32.mrf.mxu0
    %v4506 = vadd.f32 0.0, %v4505
    %v4507 = vpop.f32.mrf.mxu0
    %v4508 = vadd.f32 0.0, %v4507
    %4509 = vmatmul.bf16.gmra.mxu0 %v3919
    %v4510 = vpop.f32.mrf.mxu0
    %v4511 = vadd.f32 0.0, %v4510
    %v4512 = vpop.f32.mrf.mxu0
    %v4513 = vadd.f32 0.0, %v4512
    %4514 = vmatmul.bf16.gmra.mxu0 %v3922
    %v4515 = vpop.f32.mrf.mxu0
    %v4516 = vadd.f32 0.0, %v4515
    %v4517 = vpop.f32.mrf.mxu0
    %v4518 = vadd.f32 0.0, %v4517
    %4519 = vmatmul.bf16.gmra.mxu0 %v3925
    %v4520 = vpop.f32.mrf.mxu0
    %v4521 = vadd.f32 0.0, %v4520
    %v4522 = vpop.f32.mrf.mxu0
    %v4523 = vadd.f32 0.0, %v4522
    %4524 = vmatmul.bf16.gmra.mxu0 %v3928
    %v4525 = vpop.f32.mrf.mxu0
    %v4526 = vadd.f32 0.0, %v4525
    %v4527 = vpop.f32.mrf.mxu0
    %v4528 = vadd.f32 0.0, %v4527
    %4529 = vmatmul.bf16.gmra.mxu0 %v3931
    %v4530 = vpop.f32.mrf.mxu0
    %v4531 = vadd.f32 0.0, %v4530
    %v4532 = vpop.f32.mrf.mxu0
    %v4533 = vadd.f32 0.0, %v4532
    %4534 = vmatmul.bf16.gmra.mxu0 %v3934
    %v4535 = vpop.f32.mrf.mxu0
    %v4536 = vadd.f32 0.0, %v4535
    %v4537 = vpop.f32.mrf.mxu0
    %v4538 = vadd.f32 0.0, %v4537
    %4539 = vmatmul.bf16.gmra.mxu0 %v3937
    %v4540 = vpop.f32.mrf.mxu0
    %v4541 = vadd.f32 0.0, %v4540
    %v4542 = vpop.f32.mrf.mxu0
    %v4543 = vadd.f32 0.0, %v4542
    %4544 = vmatmul.bf16.gmra.mxu0 %v3940
    %v4545 = vpop.f32.mrf.mxu0
    %v4546 = vadd.f32 0.0, %v4545
    %v4547 = vpop.f32.mrf.mxu0
    %v4548 = vadd.f32 0.0, %v4547
    %4549 = vmatmul.bf16.gmra.mxu0 %v3943
    %v4550 = vpop.f32.mrf.mxu0
    %v4551 = vadd.f32 0.0, %v4550
    %v4552 = vpop.f32.mrf.mxu0
    %v4553 = vadd.f32 0.0, %v4552
    %4554 = vmatmul.bf16.gmra.mxu0 %v3946
    %v4555 = vpop.f32.mrf.mxu0
    %v4556 = vadd.f32 0.0, %v4555
    %v4557 = vpop.f32.mrf.mxu0
    %v4558 = vadd.f32 0.0, %v4557
    %4559 = vmatmul.bf16.gmra.mxu0 %v3949
    %v4560 = vpop.f32.mrf.mxu0
    %v4561 = vadd.f32 0.0, %v4560
    %v4562 = vpop.f32.mrf.mxu0
    %v4563 = vadd.f32 0.0, %v4562
    %4564 = vmatmul.bf16.gmra.mxu0 %v3952
    %v4565 = vpop.f32.mrf.mxu0
    %v4566 = vadd.f32 0.0, %v4565
    %v4567 = vpop.f32.mrf.mxu0
    %v4568 = vadd.f32 0.0, %v4567
    %4569 = vmatmul.bf16.gmra.mxu0 %v3955
    %v4570 = vpop.f32.mrf.mxu0
    %v4571 = vadd.f32 0.0, %v4570
    %v4572 = vpop.f32.mrf.mxu0
    %v4573 = vadd.f32 0.0, %v4572
    %4574 = vmatmul.bf16.gmra.mxu0 %v3958
    %v4575 = vpop.f32.mrf.mxu0
    %v4576 = vadd.f32 0.0, %v4575
    %v4577 = vpop.f32.mrf.mxu0
    %v4578 = vadd.f32 0.0, %v4577
    %4579 = vmatmul.bf16.gmra.mxu0 %v3961
    %v4580 = vpop.f32.mrf.mxu0
    %v4581 = vadd.f32 0.0, %v4580
    %v4582 = vpop.f32.mrf.mxu0
    %v4583 = vadd.f32 0.0, %v4582
    %4584 = vmatmul.bf16.gmra.mxu0 %v3964
    %v4585 = vpop.f32.mrf.mxu0
    %v4586 = vadd.f32 0.0, %v4585
    %v4587 = vpop.f32.mrf.mxu0
    %v4588 = vadd.f32 0.0, %v4587
    %4589 = vmatmul.bf16.gmra.mxu0 %v3967
    %v4590 = vpop.f32.mrf.mxu0
    %v4591 = vadd.f32 0.0, %v4590
    %v4592 = vpop.f32.mrf.mxu0
    %v4593 = vadd.f32 0.0, %v4592
    %4594 = vmatmul.bf16.gmra.mxu0 %v3970
    %v4595 = vpop.f32.mrf.mxu0
    %v4596 = vadd.f32 0.0, %v4595
    %v4597 = vpop.f32.mrf.mxu0
    %v4598 = vadd.f32 0.0, %v4597
    %4599 = vmatmul.bf16.gmra.mxu0 %v3973
    %v4600 = vpop.f32.mrf.mxu0
    %v4601 = vadd.f32 0.0, %v4600
    %v4602 = vpop.f32.mrf.mxu0
    %v4603 = vadd.f32 0.0, %v4602
    %4604 = vmatmul.bf16.gmra.mxu0 %v3976
    %v4605 = vpop.f32.mrf.mxu0
    %v4606 = vadd.f32 0.0, %v4605
    %v4607 = vpop.f32.mrf.mxu0
    %v4608 = vadd.f32 0.0, %v4607
    %4609 = vmatmul.bf16.gmra.mxu0 %v3979
    %v4610 = vpop.f32.mrf.mxu0
    %v4611 = vadd.f32 0.0, %v4610
    %v4612 = vpop.f32.mrf.mxu0
    %v4613 = vadd.f32 0.0, %v4612
    %4614 = vmatmul.bf16.gmra.mxu0 %v3982
    %v4615 = vpop.f32.mrf.mxu0
    %v4616 = vadd.f32 0.0, %v4615
    %v4617 = vpop.f32.mrf.mxu0
    %v4618 = vadd.f32 0.0, %v4617
    %4619 = vmatmul.bf16.gmra.mxu0 %v3985
    %v4620 = vpop.f32.mrf.mxu0
    %v4621 = vadd.f32 0.0, %v4620
    %v4622 = vpop.f32.mrf.mxu0
    %v4623 = vadd.f32 0.0, %v4622
    %4624 = vmatmul.bf16.gmra.mxu0 %v3988
    %v4625 = vpop.f32.mrf.mxu0
    %v4626 = vadd.f32 0.0, %v4625
    %v4627 = vpop.f32.mrf.mxu0
    %v4628 = vadd.f32 0.0, %v4627
    %4629 = vmatmul.bf16.gmra.mxu0 %v3991
    %v4630 = vpop.f32.mrf.mxu0
    %v4631 = vadd.f32 0.0, %v4630
    %v4632 = vpop.f32.mrf.mxu0
    %v4633 = vadd.f32 0.0, %v4632
    %4634 = vmatmul.bf16.gmra.mxu0 %v3994
    %v4635 = vpop.f32.mrf.mxu0
    %v4636 = vadd.f32 0.0, %v4635
    %v4637 = vpop.f32.mrf.mxu0
    %v4638 = vadd.f32 0.0, %v4637
    %4639 = vmatmul.bf16.gmra.mxu0 %v3997
    %v4640 = vpop.f32.mrf.mxu0
    %v4641 = vadd.f32 0.0, %v4640
    %v4642 = vpop.f32.mrf.mxu0
    %v4643 = vadd.f32 0.0, %v4642
    %4644 = vmatmul.bf16.gmra.mxu0 %v4000
    %v4645 = vpop.f32.mrf.mxu0
    %v4646 = vadd.f32 0.0, %v4645
    %v4647 = vpop.f32.mrf.mxu0
    %v4648 = vadd.f32 0.0, %v4647
    %4649 = vmatmul.bf16.gmra.mxu0 %v4003
    %v4650 = vpop.f32.mrf.mxu0
    %v4651 = vadd.f32 0.0, %v4650
    %v4652 = vpop.f32.mrf.mxu0
    %v4653 = vadd.f32 0.0, %v4652
    %4654 = vmatmul.bf16.gmra.mxu0 %v4006
    %v4655 = vpop.f32.mrf.mxu0
    %v4656 = vadd.f32 0.0, %v4655
    %v4657 = vpop.f32.mrf.mxu0
    %v4658 = vadd.f32 0.0, %v4657
    %4659 = vmatmul.bf16.gmra.mxu0 %v4009
    %v4660 = vpop.f32.mrf.mxu0
    %v4661 = vadd.f32 0.0, %v4660
    %v4662 = vpop.f32.mrf.mxu0
    %v4663 = vadd.f32 0.0, %v4662
    %4664 = vmatmul.bf16.gmra.mxu0 %v4012
    %v4665 = vpop.f32.mrf.mxu0
    %v4666 = vadd.f32 0.0, %v4665
    %v4667 = vpop.f32.mrf.mxu0
    %v4668 = vadd.f32 0.0, %v4667
    %4669 = vdwg.mxu0
    %v4672 = vunpack.c.l.b16 %v3236
    %v4673 = vunpack.c.l.b16 %v3237
    %v4674 = vpack.c.b16 %v4673, %v4672
    %v4676 = vsel %vm300, %v3108, 0
    %v4679 = vsel %vm300, %v3109, 0
    %v4682 = vsel %vm300, %v3110, 0
    %v4685 = vsel %vm300, %v3111, 0
    %v4688 = vsel %vm300, %v3112, 0
    %v4691 = vsel %vm300, %v3113, 0
    %v4694 = vsel %vm300, %v3114, 0
    %v4697 = vsel %vm300, %v3115, 0
    %v4700 = vsel %vm300, %v3116, 0
    %v4703 = vsel %vm300, %v3117, 0
    %v4706 = vsel %vm300, %v3118, 0
    %v4709 = vsel %vm300, %v3119, 0
    %v4712 = vsel %vm300, %v3120, 0
    %v4715 = vsel %vm300, %v3121, 0
    %v4718 = vsel %vm300, %v3122, 0
    %v4721 = vsel %vm300, %v3123, 0
    %v4724 = vsel %vm300, %v3124, 0
    %v4727 = vsel %vm300, %v3125, 0
    %v4730 = vsel %vm300, %v3126, 0
    %v4733 = vsel %vm300, %v3127, 0
    %v4736 = vsel %vm300, %v3128, 0
    %v4739 = vsel %vm300, %v3129, 0
    %v4742 = vsel %vm300, %v3130, 0
    %v4745 = vsel %vm300, %v3131, 0
    %v4748 = vsel %vm300, %v3132, 0
    %v4751 = vsel %vm300, %v3133, 0
    %v4754 = vsel %vm300, %v3134, 0
    %v4757 = vsel %vm300, %v3135, 0
    %v4760 = vsel %vm300, %v3136, 0
    %v4763 = vsel %vm300, %v3137, 0
    %v4766 = vsel %vm300, %v3138, 0
    %v4769 = vsel %vm300, %v3139, 0
    %v4772 = vsel %vm300, %v3140, 0
    %v4775 = vsel %vm300, %v3141, 0
    %v4778 = vsel %vm300, %v3142, 0
    %v4781 = vsel %vm300, %v3143, 0
    %v4784 = vsel %vm300, %v3144, 0
    %v4787 = vsel %vm300, %v3145, 0
    %v4790 = vsel %vm300, %v3146, 0
    %v4793 = vsel %vm300, %v3147, 0
    %v4796 = vsel %vm300, %v3148, 0
    %v4799 = vsel %vm300, %v3149, 0
    %v4802 = vsel %vm300, %v3150, 0
    %v4805 = vsel %vm300, %v3151, 0
    %v4808 = vsel %vm300, %v3152, 0
    %v4811 = vsel %vm300, %v3153, 0
    %v4814 = vsel %vm300, %v3154, 0
    %v4817 = vsel %vm300, %v3155, 0
    %v4820 = vsel %vm300, %v3156, 0
    %v4823 = vsel %vm300, %v3157, 0
    %v4826 = vsel %vm300, %v3158, 0
    %v4829 = vsel %vm300, %v3159, 0
    %v4832 = vsel %vm300, %v3160, 0
    %v4835 = vsel %vm300, %v3161, 0
    %v4838 = vsel %vm300, %v3162, 0
    %v4841 = vsel %vm300, %v3163, 0
    %v4844 = vsel %vm300, %v3164, 0
    %v4847 = vsel %vm300, %v3165, 0
    %v4850 = vsel %vm300, %v3166, 0
    %v4853 = vsel %vm300, %v3167, 0
    %v4856 = vsel %vm300, %v3168, 0
    %v4859 = vsel %vm300, %v3169, 0
    %v4862 = vsel %vm300, %v3170, 0
    %v4865 = vsel %vm300, %v3171, 0
    %v4868 = vsel %vm300, %v3172, 0
    %v4871 = vsel %vm300, %v3173, 0
    %v4874 = vsel %vm300, %v3174, 0
    %v4877 = vsel %vm300, %v3175, 0
    %v4880 = vsel %vm300, %v3176, 0
    %v4883 = vsel %vm300, %v3177, 0
    %v4886 = vsel %vm300, %v3178, 0
    %v4889 = vsel %vm300, %v3179, 0
    %v4892 = vsel %vm300, %v3180, 0
    %v4895 = vsel %vm300, %v3181, 0
    %v4898 = vsel %vm300, %v3182, 0
    %v4901 = vsel %vm300, %v3183, 0
    %v4904 = vsel %vm300, %v3184, 0
    %v4907 = vsel %vm300, %v3185, 0
    %v4910 = vsel %vm300, %v3186, 0
    %v4913 = vsel %vm300, %v3187, 0
    %v4916 = vsel %vm300, %v3188, 0
    %v4919 = vsel %vm300, %v3189, 0
    %v4922 = vsel %vm300, %v3190, 0
    %v4925 = vsel %vm300, %v3191, 0
    %v4928 = vsel %vm300, %v3192, 0
    %v4931 = vsel %vm300, %v3193, 0
    %v4934 = vsel %vm300, %v3194, 0
    %v4937 = vsel %vm300, %v3195, 0
    %v4940 = vsel %vm300, %v3196, 0
    %v4943 = vsel %vm300, %v3197, 0
    %v4946 = vsel %vm300, %v3198, 0
    %v4949 = vsel %vm300, %v3199, 0
    %v4952 = vsel %vm300, %v3200, 0
    %v4955 = vsel %vm300, %v3201, 0
    %v4958 = vsel %vm300, %v3202, 0
    %v4961 = vsel %vm300, %v3203, 0
    %v4964 = vsel %vm300, %v3204, 0
    %v4967 = vsel %vm300, %v3205, 0
    %v4970 = vsel %vm300, %v3206, 0
    %v4973 = vsel %vm300, %v3207, 0
    %v4976 = vsel %vm300, %v3208, 0
    %v4979 = vsel %vm300, %v3209, 0
    %v4982 = vsel %vm300, %v3210, 0
    %v4985 = vsel %vm300, %v3211, 0
    %v4988 = vsel %vm300, %v3212, 0
    %v4991 = vsel %vm300, %v3213, 0
    %v4994 = vsel %vm300, %v3214, 0
    %v4997 = vsel %vm300, %v3215, 0
    %v5000 = vsel %vm300, %v3216, 0
    %v5003 = vsel %vm300, %v3217, 0
    %v5006 = vsel %vm300, %v3218, 0
    %v5009 = vsel %vm300, %v3219, 0
    %v5012 = vsel %vm300, %v3220, 0
    %v5015 = vsel %vm300, %v3221, 0
    %v5018 = vsel %vm300, %v3222, 0
    %v5021 = vsel %vm300, %v3223, 0
    %v5024 = vsel %vm300, %v3224, 0
    %v5027 = vsel %vm300, %v3225, 0
    %v5030 = vsel %vm300, %v3226, 0
    %v5033 = vsel %vm300, %v3227, 0
    %v5036 = vsel %vm300, %v3228, 0
    %v5039 = vsel %vm300, %v3229, 0
    %v5042 = vsel %vm300, %v3230, 0
    %v5045 = vsel %vm300, %v3231, 0
    %v5048 = vsel %vm300, %v3232, 0
    %v5051 = vsel %vm300, %v3233, 0
    %v5054 = vsel %vm300, %v3234, 0
    %v5057 = vsel %vm300, %v3235, 0
    %v5060 = vand.u32 %v4674, %v4017
    %5062 = vmatpush.bf16.msra.mxu0 0
    %5063 = vmatpush.bf16.msra.mxu0 0
    %5064 = vmatpush.bf16.msra.mxu0 0
    %5065 = vmatpush.bf16.msra.mxu0 0
    %5066 = vmatpush.bf16.msra.mxu0 0
    %5067 = vmatpush.bf16.msra.mxu0 0
    %5068 = vmatpush.bf16.msra.mxu0 0
    %5069 = vmatpush.bf16.msra.mxu0 %v5060
    %5070 = vmatmul.bf16.gmra.mxu0 %v4676
    %v5071 = vpop.f32.mrf.mxu0
    %v5072 = vadd.f32 %v4031, %v5071
    %v5073 = vpop.f32.mrf.mxu0
    %v5074 = vadd.f32 %v4033, %v5073
    %5075 = vmatmul.bf16.gmra.mxu0 %v4679
    %v5076 = vpop.f32.mrf.mxu0
    %v5077 = vadd.f32 %v4036, %v5076
    %v5078 = vpop.f32.mrf.mxu0
    %v5079 = vadd.f32 %v4038, %v5078
    %5080 = vmatmul.bf16.gmra.mxu0 %v4682
    %v5081 = vpop.f32.mrf.mxu0
    %v5082 = vadd.f32 %v4041, %v5081
    %v5083 = vpop.f32.mrf.mxu0
    %v5084 = vadd.f32 %v4043, %v5083
    %5085 = vmatmul.bf16.gmra.mxu0 %v4685
    %v5086 = vpop.f32.mrf.mxu0
    %v5087 = vadd.f32 %v4046, %v5086
    %v5088 = vpop.f32.mrf.mxu0
    %v5089 = vadd.f32 %v4048, %v5088
    %5090 = vmatmul.bf16.gmra.mxu0 %v4688
    %v5091 = vpop.f32.mrf.mxu0
    %v5092 = vadd.f32 %v4051, %v5091
    %v5093 = vpop.f32.mrf.mxu0
    %v5094 = vadd.f32 %v4053, %v5093
    %5095 = vmatmul.bf16.gmra.mxu0 %v4691
    %v5096 = vpop.f32.mrf.mxu0
    %v5097 = vadd.f32 %v4056, %v5096
    %v5098 = vpop.f32.mrf.mxu0
    %v5099 = vadd.f32 %v4058, %v5098
    %5100 = vmatmul.bf16.gmra.mxu0 %v4694
    %v5101 = vpop.f32.mrf.mxu0
    %v5102 = vadd.f32 %v4061, %v5101
    %v5103 = vpop.f32.mrf.mxu0
    %v5104 = vadd.f32 %v4063, %v5103
    %5105 = vmatmul.bf16.gmra.mxu0 %v4697
    %v5106 = vpop.f32.mrf.mxu0
    %v5107 = vadd.f32 %v4066, %v5106
    %v5108 = vpop.f32.mrf.mxu0
    %v5109 = vadd.f32 %v4068, %v5108
    %5110 = vmatmul.bf16.gmra.mxu0 %v4700
    %v5111 = vpop.f32.mrf.mxu0
    %v5112 = vadd.f32 %v4071, %v5111
    %v5113 = vpop.f32.mrf.mxu0
    %v5114 = vadd.f32 %v4073, %v5113
    %5115 = vmatmul.bf16.gmra.mxu0 %v4703
    %v5116 = vpop.f32.mrf.mxu0
    %v5117 = vadd.f32 %v4076, %v5116
    %v5118 = vpop.f32.mrf.mxu0
    %v5119 = vadd.f32 %v4078, %v5118
    %5120 = vmatmul.bf16.gmra.mxu0 %v4706
    %v5121 = vpop.f32.mrf.mxu0
    %v5122 = vadd.f32 %v4081, %v5121
    %v5123 = vpop.f32.mrf.mxu0
    %v5124 = vadd.f32 %v4083, %v5123
    %5125 = vmatmul.bf16.gmra.mxu0 %v4709
    %v5126 = vpop.f32.mrf.mxu0
    %v5127 = vadd.f32 %v4086, %v5126
    %v5128 = vpop.f32.mrf.mxu0
    %v5129 = vadd.f32 %v4088, %v5128
    %5130 = vmatmul.bf16.gmra.mxu0 %v4712
    %v5131 = vpop.f32.mrf.mxu0
    %v5132 = vadd.f32 %v4091, %v5131
    %v5133 = vpop.f32.mrf.mxu0
    %v5134 = vadd.f32 %v4093, %v5133
    %5135 = vmatmul.bf16.gmra.mxu0 %v4715
    %v5136 = vpop.f32.mrf.mxu0
    %v5137 = vadd.f32 %v4096, %v5136
    %v5138 = vpop.f32.mrf.mxu0
    %v5139 = vadd.f32 %v4098, %v5138
    %5140 = vmatmul.bf16.gmra.mxu0 %v4718
    %v5141 = vpop.f32.mrf.mxu0
    %v5142 = vadd.f32 %v4101, %v5141
    %v5143 = vpop.f32.mrf.mxu0
    %v5144 = vadd.f32 %v4103, %v5143
    %5145 = vmatmul.bf16.gmra.mxu0 %v4721
    %v5146 = vpop.f32.mrf.mxu0
    %v5147 = vadd.f32 %v4106, %v5146
    %v5148 = vpop.f32.mrf.mxu0
    %v5149 = vadd.f32 %v4108, %v5148
    %5150 = vmatmul.bf16.gmra.mxu0 %v4724
    %v5151 = vpop.f32.mrf.mxu0
    %v5152 = vadd.f32 %v4111, %v5151
    %v5153 = vpop.f32.mrf.mxu0
    %v5154 = vadd.f32 %v4113, %v5153
    %5155 = vmatmul.bf16.gmra.mxu0 %v4727
    %v5156 = vpop.f32.mrf.mxu0
    %v5157 = vadd.f32 %v4116, %v5156
    %v5158 = vpop.f32.mrf.mxu0
    %v5159 = vadd.f32 %v4118, %v5158
    %5160 = vmatmul.bf16.gmra.mxu0 %v4730
    %v5161 = vpop.f32.mrf.mxu0
    %v5162 = vadd.f32 %v4121, %v5161
    %v5163 = vpop.f32.mrf.mxu0
    %v5164 = vadd.f32 %v4123, %v5163
    %5165 = vmatmul.bf16.gmra.mxu0 %v4733
    %v5166 = vpop.f32.mrf.mxu0
    %v5167 = vadd.f32 %v4126, %v5166
    %v5168 = vpop.f32.mrf.mxu0
    %v5169 = vadd.f32 %v4128, %v5168
    %5170 = vmatmul.bf16.gmra.mxu0 %v4736
    %v5171 = vpop.f32.mrf.mxu0
    %v5172 = vadd.f32 %v4131, %v5171
    %v5173 = vpop.f32.mrf.mxu0
    %v5174 = vadd.f32 %v4133, %v5173
    %5175 = vmatmul.bf16.gmra.mxu0 %v4739
    %v5176 = vpop.f32.mrf.mxu0
    %v5177 = vadd.f32 %v4136, %v5176
    %v5178 = vpop.f32.mrf.mxu0
    %v5179 = vadd.f32 %v4138, %v5178
    %5180 = vmatmul.bf16.gmra.mxu0 %v4742
    %v5181 = vpop.f32.mrf.mxu0
    %v5182 = vadd.f32 %v4141, %v5181
    %v5183 = vpop.f32.mrf.mxu0
    %v5184 = vadd.f32 %v4143, %v5183
    %5185 = vmatmul.bf16.gmra.mxu0 %v4745
    %v5186 = vpop.f32.mrf.mxu0
    %v5187 = vadd.f32 %v4146, %v5186
    %v5188 = vpop.f32.mrf.mxu0
    %v5189 = vadd.f32 %v4148, %v5188
    %5190 = vmatmul.bf16.gmra.mxu0 %v4748
    %v5191 = vpop.f32.mrf.mxu0
    %v5192 = vadd.f32 %v4151, %v5191
    %v5193 = vpop.f32.mrf.mxu0
    %v5194 = vadd.f32 %v4153, %v5193
    %5195 = vmatmul.bf16.gmra.mxu0 %v4751
    %v5196 = vpop.f32.mrf.mxu0
    %v5197 = vadd.f32 %v4156, %v5196
    %v5198 = vpop.f32.mrf.mxu0
    %v5199 = vadd.f32 %v4158, %v5198
    %5200 = vmatmul.bf16.gmra.mxu0 %v4754
    %v5201 = vpop.f32.mrf.mxu0
    %v5202 = vadd.f32 %v4161, %v5201
    %v5203 = vpop.f32.mrf.mxu0
    %v5204 = vadd.f32 %v4163, %v5203
    %5205 = vmatmul.bf16.gmra.mxu0 %v4757
    %v5206 = vpop.f32.mrf.mxu0
    %v5207 = vadd.f32 %v4166, %v5206
    %v5208 = vpop.f32.mrf.mxu0
    %v5209 = vadd.f32 %v4168, %v5208
    %5210 = vmatmul.bf16.gmra.mxu0 %v4760
    %v5211 = vpop.f32.mrf.mxu0
    %v5212 = vadd.f32 %v4171, %v5211
    %v5213 = vpop.f32.mrf.mxu0
    %v5214 = vadd.f32 %v4173, %v5213
    %5215 = vmatmul.bf16.gmra.mxu0 %v4763
    %v5216 = vpop.f32.mrf.mxu0
    %v5217 = vadd.f32 %v4176, %v5216
    %v5218 = vpop.f32.mrf.mxu0
    %v5219 = vadd.f32 %v4178, %v5218
    %5220 = vmatmul.bf16.gmra.mxu0 %v4766
    %v5221 = vpop.f32.mrf.mxu0
    %v5222 = vadd.f32 %v4181, %v5221
    %v5223 = vpop.f32.mrf.mxu0
    %v5224 = vadd.f32 %v4183, %v5223
    %5225 = vmatmul.bf16.gmra.mxu0 %v4769
    %v5226 = vpop.f32.mrf.mxu0
    %v5227 = vadd.f32 %v4186, %v5226
    %v5228 = vpop.f32.mrf.mxu0
    %v5229 = vadd.f32 %v4188, %v5228
    %5230 = vmatmul.bf16.gmra.mxu0 %v4772
    %v5231 = vpop.f32.mrf.mxu0
    %v5232 = vadd.f32 %v4191, %v5231
    %v5233 = vpop.f32.mrf.mxu0
    %v5234 = vadd.f32 %v4193, %v5233
    %5235 = vmatmul.bf16.gmra.mxu0 %v4775
    %v5236 = vpop.f32.mrf.mxu0
    %v5237 = vadd.f32 %v4196, %v5236
    %v5238 = vpop.f32.mrf.mxu0
    %v5239 = vadd.f32 %v4198, %v5238
    %5240 = vmatmul.bf16.gmra.mxu0 %v4778
    %v5241 = vpop.f32.mrf.mxu0
    %v5242 = vadd.f32 %v4201, %v5241
    %v5243 = vpop.f32.mrf.mxu0
    %v5244 = vadd.f32 %v4203, %v5243
    %5245 = vmatmul.bf16.gmra.mxu0 %v4781
    %v5246 = vpop.f32.mrf.mxu0
    %v5247 = vadd.f32 %v4206, %v5246
    %v5248 = vpop.f32.mrf.mxu0
    %v5249 = vadd.f32 %v4208, %v5248
    %5250 = vmatmul.bf16.gmra.mxu0 %v4784
    %v5251 = vpop.f32.mrf.mxu0
    %v5252 = vadd.f32 %v4211, %v5251
    %v5253 = vpop.f32.mrf.mxu0
    %v5254 = vadd.f32 %v4213, %v5253
    %5255 = vmatmul.bf16.gmra.mxu0 %v4787
    %v5256 = vpop.f32.mrf.mxu0
    %v5257 = vadd.f32 %v4216, %v5256
    %v5258 = vpop.f32.mrf.mxu0
    %v5259 = vadd.f32 %v4218, %v5258
    %5260 = vmatmul.bf16.gmra.mxu0 %v4790
    %v5261 = vpop.f32.mrf.mxu0
    %v5262 = vadd.f32 %v4221, %v5261
    %v5263 = vpop.f32.mrf.mxu0
    %v5264 = vadd.f32 %v4223, %v5263
    %5265 = vmatmul.bf16.gmra.mxu0 %v4793
    %v5266 = vpop.f32.mrf.mxu0
    %v5267 = vadd.f32 %v4226, %v5266
    %v5268 = vpop.f32.mrf.mxu0
    %v5269 = vadd.f32 %v4228, %v5268
    %5270 = vmatmul.bf16.gmra.mxu0 %v4796
    %v5271 = vpop.f32.mrf.mxu0
    %v5272 = vadd.f32 %v4231, %v5271
    %v5273 = vpop.f32.mrf.mxu0
    %v5274 = vadd.f32 %v4233, %v5273
    %5275 = vmatmul.bf16.gmra.mxu0 %v4799
    %v5276 = vpop.f32.mrf.mxu0
    %v5277 = vadd.f32 %v4236, %v5276
    %v5278 = vpop.f32.mrf.mxu0
    %v5279 = vadd.f32 %v4238, %v5278
    %5280 = vmatmul.bf16.gmra.mxu0 %v4802
    %v5281 = vpop.f32.mrf.mxu0
    %v5282 = vadd.f32 %v4241, %v5281
    %v5283 = vpop.f32.mrf.mxu0
    %v5284 = vadd.f32 %v4243, %v5283
    %5285 = vmatmul.bf16.gmra.mxu0 %v4805
    %v5286 = vpop.f32.mrf.mxu0
    %v5287 = vadd.f32 %v4246, %v5286
    %v5288 = vpop.f32.mrf.mxu0
    %v5289 = vadd.f32 %v4248, %v5288
    %5290 = vmatmul.bf16.gmra.mxu0 %v4808
    %v5291 = vpop.f32.mrf.mxu0
    %v5292 = vadd.f32 %v4251, %v5291
    %v5293 = vpop.f32.mrf.mxu0
    %v5294 = vadd.f32 %v4253, %v5293
    %5295 = vmatmul.bf16.gmra.mxu0 %v4811
    %v5296 = vpop.f32.mrf.mxu0
    %v5297 = vadd.f32 %v4256, %v5296
    %v5298 = vpop.f32.mrf.mxu0
    %v5299 = vadd.f32 %v4258, %v5298
    %5300 = vmatmul.bf16.gmra.mxu0 %v4814
    %v5301 = vpop.f32.mrf.mxu0
    %v5302 = vadd.f32 %v4261, %v5301
    %v5303 = vpop.f32.mrf.mxu0
    %v5304 = vadd.f32 %v4263, %v5303
    %5305 = vmatmul.bf16.gmra.mxu0 %v4817
    %v5306 = vpop.f32.mrf.mxu0
    %v5307 = vadd.f32 %v4266, %v5306
    %v5308 = vpop.f32.mrf.mxu0
    %v5309 = vadd.f32 %v4268, %v5308
    %5310 = vmatmul.bf16.gmra.mxu0 %v4820
    %v5311 = vpop.f32.mrf.mxu0
    %v5312 = vadd.f32 %v4271, %v5311
    %v5313 = vpop.f32.mrf.mxu0
    %v5314 = vadd.f32 %v4273, %v5313
    %5315 = vmatmul.bf16.gmra.mxu0 %v4823
    %v5316 = vpop.f32.mrf.mxu0
    %v5317 = vadd.f32 %v4276, %v5316
    %v5318 = vpop.f32.mrf.mxu0
    %v5319 = vadd.f32 %v4278, %v5318
    %5320 = vmatmul.bf16.gmra.mxu0 %v4826
    %v5321 = vpop.f32.mrf.mxu0
    %v5322 = vadd.f32 %v4281, %v5321
    %v5323 = vpop.f32.mrf.mxu0
    %v5324 = vadd.f32 %v4283, %v5323
    %5325 = vmatmul.bf16.gmra.mxu0 %v4829
    %v5326 = vpop.f32.mrf.mxu0
    %v5327 = vadd.f32 %v4286, %v5326
    %v5328 = vpop.f32.mrf.mxu0
    %v5329 = vadd.f32 %v4288, %v5328
    %5330 = vmatmul.bf16.gmra.mxu0 %v4832
    %v5331 = vpop.f32.mrf.mxu0
    %v5332 = vadd.f32 %v4291, %v5331
    %v5333 = vpop.f32.mrf.mxu0
    %v5334 = vadd.f32 %v4293, %v5333
    %5335 = vmatmul.bf16.gmra.mxu0 %v4835
    %v5336 = vpop.f32.mrf.mxu0
    %v5337 = vadd.f32 %v4296, %v5336
    %v5338 = vpop.f32.mrf.mxu0
    %v5339 = vadd.f32 %v4298, %v5338
    %5340 = vmatmul.bf16.gmra.mxu0 %v4838
    %v5341 = vpop.f32.mrf.mxu0
    %v5342 = vadd.f32 %v4301, %v5341
    %v5343 = vpop.f32.mrf.mxu0
    %v5344 = vadd.f32 %v4303, %v5343
    %5345 = vmatmul.bf16.gmra.mxu0 %v4841
    %v5346 = vpop.f32.mrf.mxu0
    %v5347 = vadd.f32 %v4306, %v5346
    %v5348 = vpop.f32.mrf.mxu0
    %v5349 = vadd.f32 %v4308, %v5348
    %5350 = vmatmul.bf16.gmra.mxu0 %v4844
    %v5351 = vpop.f32.mrf.mxu0
    %v5352 = vadd.f32 %v4311, %v5351
    %v5353 = vpop.f32.mrf.mxu0
    %v5354 = vadd.f32 %v4313, %v5353
    %5355 = vmatmul.bf16.gmra.mxu0 %v4847
    %v5356 = vpop.f32.mrf.mxu0
    %v5357 = vadd.f32 %v4316, %v5356
    %v5358 = vpop.f32.mrf.mxu0
    %v5359 = vadd.f32 %v4318, %v5358
    %5360 = vmatmul.bf16.gmra.mxu0 %v4850
    %v5361 = vpop.f32.mrf.mxu0
    %v5362 = vadd.f32 %v4321, %v5361
    %v5363 = vpop.f32.mrf.mxu0
    %v5364 = vadd.f32 %v4323, %v5363
    %5365 = vmatmul.bf16.gmra.mxu0 %v4853
    %v5366 = vpop.f32.mrf.mxu0
    %v5367 = vadd.f32 %v4326, %v5366
    %v5368 = vpop.f32.mrf.mxu0
    %v5369 = vadd.f32 %v4328, %v5368
    %5370 = vmatmul.bf16.gmra.mxu0 %v4856
    %v5371 = vpop.f32.mrf.mxu0
    %v5372 = vadd.f32 %v4331, %v5371
    %v5373 = vpop.f32.mrf.mxu0
    %v5374 = vadd.f32 %v4333, %v5373
    %5375 = vmatmul.bf16.gmra.mxu0 %v4859
    %v5376 = vpop.f32.mrf.mxu0
    %v5377 = vadd.f32 %v4336, %v5376
    %v5378 = vpop.f32.mrf.mxu0
    %v5379 = vadd.f32 %v4338, %v5378
    %5380 = vmatmul.bf16.gmra.mxu0 %v4862
    %v5381 = vpop.f32.mrf.mxu0
    %v5382 = vadd.f32 %v4341, %v5381
    %v5383 = vpop.f32.mrf.mxu0
    %v5384 = vadd.f32 %v4343, %v5383
    %5385 = vmatmul.bf16.gmra.mxu0 %v4865
    %v5386 = vpop.f32.mrf.mxu0
    %v5387 = vadd.f32 %v4346, %v5386
    %v5388 = vpop.f32.mrf.mxu0
    %v5389 = vadd.f32 %v4348, %v5388
    %5390 = vmatmul.bf16.gmra.mxu0 %v4868
    %v5391 = vpop.f32.mrf.mxu0
    %v5392 = vadd.f32 %v4351, %v5391
    %v5393 = vpop.f32.mrf.mxu0
    %v5394 = vadd.f32 %v4353, %v5393
    %5395 = vmatmul.bf16.gmra.mxu0 %v4871
    %v5396 = vpop.f32.mrf.mxu0
    %v5397 = vadd.f32 %v4356, %v5396
    %v5398 = vpop.f32.mrf.mxu0
    %v5399 = vadd.f32 %v4358, %v5398
    %5400 = vmatmul.bf16.gmra.mxu0 %v4874
    %v5401 = vpop.f32.mrf.mxu0
    %v5402 = vadd.f32 %v4361, %v5401
    %v5403 = vpop.f32.mrf.mxu0
    %v5404 = vadd.f32 %v4363, %v5403
    %5405 = vmatmul.bf16.gmra.mxu0 %v4877
    %v5406 = vpop.f32.mrf.mxu0
    %v5407 = vadd.f32 %v4366, %v5406
    %v5408 = vpop.f32.mrf.mxu0
    %v5409 = vadd.f32 %v4368, %v5408
    %5410 = vmatmul.bf16.gmra.mxu0 %v4880
    %v5411 = vpop.f32.mrf.mxu0
    %v5412 = vadd.f32 %v4371, %v5411
    %v5413 = vpop.f32.mrf.mxu0
    %v5414 = vadd.f32 %v4373, %v5413
    %5415 = vmatmul.bf16.gmra.mxu0 %v4883
    %v5416 = vpop.f32.mrf.mxu0
    %v5417 = vadd.f32 %v4376, %v5416
    %v5418 = vpop.f32.mrf.mxu0
    %v5419 = vadd.f32 %v4378, %v5418
    %5420 = vmatmul.bf16.gmra.mxu0 %v4886
    %v5421 = vpop.f32.mrf.mxu0
    %v5422 = vadd.f32 %v4381, %v5421
    %v5423 = vpop.f32.mrf.mxu0
    %v5424 = vadd.f32 %v4383, %v5423
    %5425 = vmatmul.bf16.gmra.mxu0 %v4889
    %v5426 = vpop.f32.mrf.mxu0
    %v5427 = vadd.f32 %v4386, %v5426
    %v5428 = vpop.f32.mrf.mxu0
    %v5429 = vadd.f32 %v4388, %v5428
    %5430 = vmatmul.bf16.gmra.mxu0 %v4892
    %v5431 = vpop.f32.mrf.mxu0
    %v5432 = vadd.f32 %v4391, %v5431
    %v5433 = vpop.f32.mrf.mxu0
    %v5434 = vadd.f32 %v4393, %v5433
    %5435 = vmatmul.bf16.gmra.mxu0 %v4895
    %v5436 = vpop.f32.mrf.mxu0
    %v5437 = vadd.f32 %v4396, %v5436
    %v5438 = vpop.f32.mrf.mxu0
    %v5439 = vadd.f32 %v4398, %v5438
    %5440 = vmatmul.bf16.gmra.mxu0 %v4898
    %v5441 = vpop.f32.mrf.mxu0
    %v5442 = vadd.f32 %v4401, %v5441
    %v5443 = vpop.f32.mrf.mxu0
    %v5444 = vadd.f32 %v4403, %v5443
    %5445 = vmatmul.bf16.gmra.mxu0 %v4901
    %v5446 = vpop.f32.mrf.mxu0
    %v5447 = vadd.f32 %v4406, %v5446
    %v5448 = vpop.f32.mrf.mxu0
    %v5449 = vadd.f32 %v4408, %v5448
    %5450 = vmatmul.bf16.gmra.mxu0 %v4904
    %v5451 = vpop.f32.mrf.mxu0
    %v5452 = vadd.f32 %v4411, %v5451
    %v5453 = vpop.f32.mrf.mxu0
    %v5454 = vadd.f32 %v4413, %v5453
    %5455 = vmatmul.bf16.gmra.mxu0 %v4907
    %v5456 = vpop.f32.mrf.mxu0
    %v5457 = vadd.f32 %v4416, %v5456
    %v5458 = vpop.f32.mrf.mxu0
    %v5459 = vadd.f32 %v4418, %v5458
    %5460 = vmatmul.bf16.gmra.mxu0 %v4910
    %v5461 = vpop.f32.mrf.mxu0
    %v5462 = vadd.f32 %v4421, %v5461
    %v5463 = vpop.f32.mrf.mxu0
    %v5464 = vadd.f32 %v4423, %v5463
    %5465 = vmatmul.bf16.gmra.mxu0 %v4913
    %v5466 = vpop.f32.mrf.mxu0
    %v5467 = vadd.f32 %v4426, %v5466
    %v5468 = vpop.f32.mrf.mxu0
    %v5469 = vadd.f32 %v4428, %v5468
    %5470 = vmatmul.bf16.gmra.mxu0 %v4916
    %v5471 = vpop.f32.mrf.mxu0
    %v5472 = vadd.f32 %v4431, %v5471
    %v5473 = vpop.f32.mrf.mxu0
    %v5474 = vadd.f32 %v4433, %v5473
    %5475 = vmatmul.bf16.gmra.mxu0 %v4919
    %v5476 = vpop.f32.mrf.mxu0
    %v5477 = vadd.f32 %v4436, %v5476
    %v5478 = vpop.f32.mrf.mxu0
    %v5479 = vadd.f32 %v4438, %v5478
    %5480 = vmatmul.bf16.gmra.mxu0 %v4922
    %v5481 = vpop.f32.mrf.mxu0
    %v5482 = vadd.f32 %v4441, %v5481
    %v5483 = vpop.f32.mrf.mxu0
    %v5484 = vadd.f32 %v4443, %v5483
    %5485 = vmatmul.bf16.gmra.mxu0 %v4925
    %v5486 = vpop.f32.mrf.mxu0
    %v5487 = vadd.f32 %v4446, %v5486
    %v5488 = vpop.f32.mrf.mxu0
    %v5489 = vadd.f32 %v4448, %v5488
    %5490 = vmatmul.bf16.gmra.mxu0 %v4928
    %v5491 = vpop.f32.mrf.mxu0
    %v5492 = vadd.f32 %v4451, %v5491
    %v5493 = vpop.f32.mrf.mxu0
    %v5494 = vadd.f32 %v4453, %v5493
    %5495 = vmatmul.bf16.gmra.mxu0 %v4931
    %v5496 = vpop.f32.mrf.mxu0
    %v5497 = vadd.f32 %v4456, %v5496
    %v5498 = vpop.f32.mrf.mxu0
    %v5499 = vadd.f32 %v4458, %v5498
    %5500 = vmatmul.bf16.gmra.mxu0 %v4934
    %v5501 = vpop.f32.mrf.mxu0
    %v5502 = vadd.f32 %v4461, %v5501
    %v5503 = vpop.f32.mrf.mxu0
    %v5504 = vadd.f32 %v4463, %v5503
    %5505 = vmatmul.bf16.gmra.mxu0 %v4937
    %v5506 = vpop.f32.mrf.mxu0
    %v5507 = vadd.f32 %v4466, %v5506
    %v5508 = vpop.f32.mrf.mxu0
    %v5509 = vadd.f32 %v4468, %v5508
    %5510 = vmatmul.bf16.gmra.mxu0 %v4940
    %v5511 = vpop.f32.mrf.mxu0
    %v5512 = vadd.f32 %v4471, %v5511
    %v5513 = vpop.f32.mrf.mxu0
    %v5514 = vadd.f32 %v4473, %v5513
    %5515 = vmatmul.bf16.gmra.mxu0 %v4943
    %v5516 = vpop.f32.mrf.mxu0
    %v5517 = vadd.f32 %v4476, %v5516
    %v5518 = vpop.f32.mrf.mxu0
    %v5519 = vadd.f32 %v4478, %v5518
    %5520 = vmatmul.bf16.gmra.mxu0 %v4946
    %v5521 = vpop.f32.mrf.mxu0
    %v5522 = vadd.f32 %v4481, %v5521
    %v5523 = vpop.f32.mrf.mxu0
    %v5524 = vadd.f32 %v4483, %v5523
    %5525 = vmatmul.bf16.gmra.mxu0 %v4949
    %v5526 = vpop.f32.mrf.mxu0
    %v5527 = vadd.f32 %v4486, %v5526
    %v5528 = vpop.f32.mrf.mxu0
    %v5529 = vadd.f32 %v4488, %v5528
    %5530 = vmatmul.bf16.gmra.mxu0 %v4952
    %v5531 = vpop.f32.mrf.mxu0
    %v5532 = vadd.f32 %v4491, %v5531
    %v5533 = vpop.f32.mrf.mxu0
    %v5534 = vadd.f32 %v4493, %v5533
    %5535 = vmatmul.bf16.gmra.mxu0 %v4955
    %v5536 = vpop.f32.mrf.mxu0
    %v5537 = vadd.f32 %v4496, %v5536
    %v5538 = vpop.f32.mrf.mxu0
    %v5539 = vadd.f32 %v4498, %v5538
    %5540 = vmatmul.bf16.gmra.mxu0 %v4958
    %v5541 = vpop.f32.mrf.mxu0
    %v5542 = vadd.f32 %v4501, %v5541
    %v5543 = vpop.f32.mrf.mxu0
    %v5544 = vadd.f32 %v4503, %v5543
    %5545 = vmatmul.bf16.gmra.mxu0 %v4961
    %v5546 = vpop.f32.mrf.mxu0
    %v5547 = vadd.f32 %v4506, %v5546
    %v5548 = vpop.f32.mrf.mxu0
    %v5549 = vadd.f32 %v4508, %v5548
    %5550 = vmatmul.bf16.gmra.mxu0 %v4964
    %v5551 = vpop.f32.mrf.mxu0
    %v5552 = vadd.f32 %v4511, %v5551
    %v5553 = vpop.f32.mrf.mxu0
    %v5554 = vadd.f32 %v4513, %v5553
    %5555 = vmatmul.bf16.gmra.mxu0 %v4967
    %v5556 = vpop.f32.mrf.mxu0
    %v5557 = vadd.f32 %v4516, %v5556
    %v5558 = vpop.f32.mrf.mxu0
    %v5559 = vadd.f32 %v4518, %v5558
    %5560 = vmatmul.bf16.gmra.mxu0 %v4970
    %v5561 = vpop.f32.mrf.mxu0
    %v5562 = vadd.f32 %v4521, %v5561
    %v5563 = vpop.f32.mrf.mxu0
    %v5564 = vadd.f32 %v4523, %v5563
    %5565 = vmatmul.bf16.gmra.mxu0 %v4973
    %v5566 = vpop.f32.mrf.mxu0
    %v5567 = vadd.f32 %v4526, %v5566
    %v5568 = vpop.f32.mrf.mxu0
    %v5569 = vadd.f32 %v4528, %v5568
    %5570 = vmatmul.bf16.gmra.mxu0 %v4976
    %v5571 = vpop.f32.mrf.mxu0
    %v5572 = vadd.f32 %v4531, %v5571
    %v5573 = vpop.f32.mrf.mxu0
    %v5574 = vadd.f32 %v4533, %v5573
    %5575 = vmatmul.bf16.gmra.mxu0 %v4979
    %v5576 = vpop.f32.mrf.mxu0
    %v5577 = vadd.f32 %v4536, %v5576
    %v5578 = vpop.f32.mrf.mxu0
    %v5579 = vadd.f32 %v4538, %v5578
    %5580 = vmatmul.bf16.gmra.mxu0 %v4982
    %v5581 = vpop.f32.mrf.mxu0
    %v5582 = vadd.f32 %v4541, %v5581
    %v5583 = vpop.f32.mrf.mxu0
    %v5584 = vadd.f32 %v4543, %v5583
    %5585 = vmatmul.bf16.gmra.mxu0 %v4985
    %v5586 = vpop.f32.mrf.mxu0
    %v5587 = vadd.f32 %v4546, %v5586
    %v5588 = vpop.f32.mrf.mxu0
    %v5589 = vadd.f32 %v4548, %v5588
    %5590 = vmatmul.bf16.gmra.mxu0 %v4988
    %v5591 = vpop.f32.mrf.mxu0
    %v5592 = vadd.f32 %v4551, %v5591
    %v5593 = vpop.f32.mrf.mxu0
    %v5594 = vadd.f32 %v4553, %v5593
    %5595 = vmatmul.bf16.gmra.mxu0 %v4991
    %v5596 = vpop.f32.mrf.mxu0
    %v5597 = vadd.f32 %v4556, %v5596
    %v5598 = vpop.f32.mrf.mxu0
    %v5599 = vadd.f32 %v4558, %v5598
    %5600 = vmatmul.bf16.gmra.mxu0 %v4994
    %v5601 = vpop.f32.mrf.mxu0
    %v5602 = vadd.f32 %v4561, %v5601
    %v5603 = vpop.f32.mrf.mxu0
    %v5604 = vadd.f32 %v4563, %v5603
    %5605 = vmatmul.bf16.gmra.mxu0 %v4997
    %v5606 = vpop.f32.mrf.mxu0
    %v5607 = vadd.f32 %v4566, %v5606
    %v5608 = vpop.f32.mrf.mxu0
    %v5609 = vadd.f32 %v4568, %v5608
    %5610 = vmatmul.bf16.gmra.mxu0 %v5000
    %v5611 = vpop.f32.mrf.mxu0
    %v5612 = vadd.f32 %v4571, %v5611
    %v5613 = vpop.f32.mrf.mxu0
    %v5614 = vadd.f32 %v4573, %v5613
    %5615 = vmatmul.bf16.gmra.mxu0 %v5003
    %v5616 = vpop.f32.mrf.mxu0
    %v5617 = vadd.f32 %v4576, %v5616
    %v5618 = vpop.f32.mrf.mxu0
    %v5619 = vadd.f32 %v4578, %v5618
    %5620 = vmatmul.bf16.gmra.mxu0 %v5006
    %v5621 = vpop.f32.mrf.mxu0
    %v5622 = vadd.f32 %v4581, %v5621
    %v5623 = vpop.f32.mrf.mxu0
    %v5624 = vadd.f32 %v4583, %v5623
    %5625 = vmatmul.bf16.gmra.mxu0 %v5009
    %v5626 = vpop.f32.mrf.mxu0
    %v5627 = vadd.f32 %v4586, %v5626
    %v5628 = vpop.f32.mrf.mxu0
    %v5629 = vadd.f32 %v4588, %v5628
    %5630 = vmatmul.bf16.gmra.mxu0 %v5012
    %v5631 = vpop.f32.mrf.mxu0
    %v5632 = vadd.f32 %v4591, %v5631
    %v5633 = vpop.f32.mrf.mxu0
    %v5634 = vadd.f32 %v4593, %v5633
    %5635 = vmatmul.bf16.gmra.mxu0 %v5015
    %v5636 = vpop.f32.mrf.mxu0
    %v5637 = vadd.f32 %v4596, %v5636
    %v5638 = vpop.f32.mrf.mxu0
    %v5639 = vadd.f32 %v4598, %v5638
    %5640 = vmatmul.bf16.gmra.mxu0 %v5018
    %v5641 = vpop.f32.mrf.mxu0
    %v5642 = vadd.f32 %v4601, %v5641
    %v5643 = vpop.f32.mrf.mxu0
    %v5644 = vadd.f32 %v4603, %v5643
    %5645 = vmatmul.bf16.gmra.mxu0 %v5021
    %v5646 = vpop.f32.mrf.mxu0
    %v5647 = vadd.f32 %v4606, %v5646
    %v5648 = vpop.f32.mrf.mxu0
    %v5649 = vadd.f32 %v4608, %v5648
    %5650 = vmatmul.bf16.gmra.mxu0 %v5024
    %v5651 = vpop.f32.mrf.mxu0
    %v5652 = vadd.f32 %v4611, %v5651
    %v5653 = vpop.f32.mrf.mxu0
    %v5654 = vadd.f32 %v4613, %v5653
    %5655 = vmatmul.bf16.gmra.mxu0 %v5027
    %v5656 = vpop.f32.mrf.mxu0
    %v5657 = vadd.f32 %v4616, %v5656
    %v5658 = vpop.f32.mrf.mxu0
    %v5659 = vadd.f32 %v4618, %v5658
    %5660 = vmatmul.bf16.gmra.mxu0 %v5030
    %v5661 = vpop.f32.mrf.mxu0
    %v5662 = vadd.f32 %v4621, %v5661
    %v5663 = vpop.f32.mrf.mxu0
    %v5664 = vadd.f32 %v4623, %v5663
    %5665 = vmatmul.bf16.gmra.mxu0 %v5033
    %v5666 = vpop.f32.mrf.mxu0
    %v5667 = vadd.f32 %v4626, %v5666
    %v5668 = vpop.f32.mrf.mxu0
    %v5669 = vadd.f32 %v4628, %v5668
    %5670 = vmatmul.bf16.gmra.mxu0 %v5036
    %v5671 = vpop.f32.mrf.mxu0
    %v5672 = vadd.f32 %v4631, %v5671
    %v5673 = vpop.f32.mrf.mxu0
    %v5674 = vadd.f32 %v4633, %v5673
    %5675 = vmatmul.bf16.gmra.mxu0 %v5039
    %v5676 = vpop.f32.mrf.mxu0
    %v5677 = vadd.f32 %v4636, %v5676
    %v5678 = vpop.f32.mrf.mxu0
    %v5679 = vadd.f32 %v4638, %v5678
    %5680 = vmatmul.bf16.gmra.mxu0 %v5042
    %v5681 = vpop.f32.mrf.mxu0
    %v5682 = vadd.f32 %v4641, %v5681
    %v5683 = vpop.f32.mrf.mxu0
    %v5684 = vadd.f32 %v4643, %v5683
    %5685 = vmatmul.bf16.gmra.mxu0 %v5045
    %v5686 = vpop.f32.mrf.mxu0
    %v5687 = vadd.f32 %v4646, %v5686
    %v5688 = vpop.f32.mrf.mxu0
    %v5689 = vadd.f32 %v4648, %v5688
    %5690 = vmatmul.bf16.gmra.mxu0 %v5048
    %v5691 = vpop.f32.mrf.mxu0
    %v5692 = vadd.f32 %v4651, %v5691
    %v5693 = vpop.f32.mrf.mxu0
    %v5694 = vadd.f32 %v4653, %v5693
    %5695 = vmatmul.bf16.gmra.mxu0 %v5051
    %v5696 = vpop.f32.mrf.mxu0
    %v5697 = vadd.f32 %v4656, %v5696
    %v5698 = vpop.f32.mrf.mxu0
    %v5699 = vadd.f32 %v4658, %v5698
    %5700 = vmatmul.bf16.gmra.mxu0 %v5054
    %v5701 = vpop.f32.mrf.mxu0
    %v5702 = vadd.f32 %v4661, %v5701
    %v5703 = vpop.f32.mrf.mxu0
    %v5704 = vadd.f32 %v4663, %v5703
    %5705 = vmatmul.bf16.gmra.mxu0 %v5057
    %v5706 = vpop.f32.mrf.mxu0
    %v5707 = vadd.f32 %v4666, %v5706
    %v5708 = vpop.f32.mrf.mxu0
    %v5709 = vadd.f32 %v4668, %v5708
    %5710 = vdwg.mxu0
    %s5711 = scalar_lea.vmem [#allocation2], 256
    %v5712 = vld [vmem:[%s5711] sm:$0xff]
    %v5713 = vld [vmem:[%s5711 + $0x8] sm:$0xff]
    %v5714 = vld [vmem:[%s5711 + $0x10] sm:$0xff]
    %v5715 = vld [vmem:[%s5711 + $0x18] sm:$0xff]
    %v5716 = vld [vmem:[%s5711 + $0x20] sm:$0xff]
    %v5717 = vld [vmem:[%s5711 + $0x28] sm:$0xff]
    %v5718 = vld [vmem:[%s5711 + $0x30] sm:$0xff]
    %v5719 = vld [vmem:[%s5711 + $0x38] sm:$0xff]
    %v5720 = vld [vmem:[%s5711 + $0x40] sm:$0xff]
    %v5721 = vld [vmem:[%s5711 + $0x48] sm:$0xff]
    %v5722 = vld [vmem:[%s5711 + $0x50] sm:$0xff]
    %v5723 = vld [vmem:[%s5711 + $0x58] sm:$0xff]
    %v5724 = vld [vmem:[%s5711 + $0x60] sm:$0xff]
    %v5725 = vld [vmem:[%s5711 + $0x68] sm:$0xff]
    %v5726 = vld [vmem:[%s5711 + $0x70] sm:$0xff]
    %v5727 = vld [vmem:[%s5711 + $0x78] sm:$0xff]
    %v5728 = vld [vmem:[%s5711 + $0x80] sm:$0xff]
    %v5729 = vld [vmem:[%s5711 + $0x88] sm:$0xff]
    %v5730 = vld [vmem:[%s5711 + $0x90] sm:$0xff]
    %v5731 = vld [vmem:[%s5711 + $0x98] sm:$0xff]
    %v5732 = vld [vmem:[%s5711 + $0xa0] sm:$0xff]
    %v5733 = vld [vmem:[%s5711 + $0xa8] sm:$0xff]
    %v5734 = vld [vmem:[%s5711 + $0xb0] sm:$0xff]
    %v5735 = vld [vmem:[%s5711 + $0xb8] sm:$0xff]
    %v5736 = vld [vmem:[%s5711 + $0xc0] sm:$0xff]
    %v5737 = vld [vmem:[%s5711 + $0xc8] sm:$0xff]
    %v5738 = vld [vmem:[%s5711 + $0xd0] sm:$0xff]
    %v5739 = vld [vmem:[%s5711 + $0xd8] sm:$0xff]
    %v5740 = vld [vmem:[%s5711 + $0xe0] sm:$0xff]
    %v5741 = vld [vmem:[%s5711 + $0xe8] sm:$0xff]
    %v5742 = vld [vmem:[%s5711 + $0xf0] sm:$0xff]
    %v5743 = vld [vmem:[%s5711 + $0xf8] sm:$0xff]
    %v5744 = vld [vmem:[%s5711 + $0x100] sm:$0xff]
    %v5745 = vld [vmem:[%s5711 + $0x108] sm:$0xff]
    %v5746 = vld [vmem:[%s5711 + $0x110] sm:$0xff]
    %v5747 = vld [vmem:[%s5711 + $0x118] sm:$0xff]
    %v5748 = vld [vmem:[%s5711 + $0x120] sm:$0xff]
    %v5749 = vld [vmem:[%s5711 + $0x128] sm:$0xff]
    %v5750 = vld [vmem:[%s5711 + $0x130] sm:$0xff]
    %v5751 = vld [vmem:[%s5711 + $0x138] sm:$0xff]
    %v5752 = vld [vmem:[%s5711 + $0x140] sm:$0xff]
    %v5753 = vld [vmem:[%s5711 + $0x148] sm:$0xff]
    %v5754 = vld [vmem:[%s5711 + $0x150] sm:$0xff]
    %v5755 = vld [vmem:[%s5711 + $0x158] sm:$0xff]
    %v5756 = vld [vmem:[%s5711 + $0x160] sm:$0xff]
    %v5757 = vld [vmem:[%s5711 + $0x168] sm:$0xff]
    %v5758 = vld [vmem:[%s5711 + $0x170] sm:$0xff]
    %v5759 = vld [vmem:[%s5711 + $0x178] sm:$0xff]
    %v5760 = vld [vmem:[%s5711 + $0x180] sm:$0xff]
    %v5761 = vld [vmem:[%s5711 + $0x188] sm:$0xff]
    %v5762 = vld [vmem:[%s5711 + $0x190] sm:$0xff]
    %v5763 = vld [vmem:[%s5711 + $0x198] sm:$0xff]
    %v5764 = vld [vmem:[%s5711 + $0x1a0] sm:$0xff]
    %v5765 = vld [vmem:[%s5711 + $0x1a8] sm:$0xff]
    %v5766 = vld [vmem:[%s5711 + $0x1b0] sm:$0xff]
    %v5767 = vld [vmem:[%s5711 + $0x1b8] sm:$0xff]
    %v5768 = vld [vmem:[%s5711 + $0x1c0] sm:$0xff]
    %v5769 = vld [vmem:[%s5711 + $0x1c8] sm:$0xff]
    %v5770 = vld [vmem:[%s5711 + $0x1d0] sm:$0xff]
    %v5771 = vld [vmem:[%s5711 + $0x1d8] sm:$0xff]
    %v5772 = vld [vmem:[%s5711 + $0x1e0] sm:$0xff]
    %v5773 = vld [vmem:[%s5711 + $0x1e8] sm:$0xff]
    %v5774 = vld [vmem:[%s5711 + $0x1f0] sm:$0xff]
    %v5775 = vld [vmem:[%s5711 + $0x1f8] sm:$0xff]
    %v5776 = vld [vmem:[%s5711 + $0x200] sm:$0xff]
    %v5777 = vld [vmem:[%s5711 + $0x208] sm:$0xff]
    %v5778 = vld [vmem:[%s5711 + $0x210] sm:$0xff]
    %v5779 = vld [vmem:[%s5711 + $0x218] sm:$0xff]
    %v5780 = vld [vmem:[%s5711 + $0x220] sm:$0xff]
    %v5781 = vld [vmem:[%s5711 + $0x228] sm:$0xff]
    %v5782 = vld [vmem:[%s5711 + $0x230] sm:$0xff]
    %v5783 = vld [vmem:[%s5711 + $0x238] sm:$0xff]
    %v5784 = vld [vmem:[%s5711 + $0x240] sm:$0xff]
    %v5785 = vld [vmem:[%s5711 + $0x248] sm:$0xff]
    %v5786 = vld [vmem:[%s5711 + $0x250] sm:$0xff]
    %v5787 = vld [vmem:[%s5711 + $0x258] sm:$0xff]
    %v5788 = vld [vmem:[%s5711 + $0x260] sm:$0xff]
    %v5789 = vld [vmem:[%s5711 + $0x268] sm:$0xff]
    %v5790 = vld [vmem:[%s5711 + $0x270] sm:$0xff]
    %v5791 = vld [vmem:[%s5711 + $0x278] sm:$0xff]
    %v5792 = vld [vmem:[%s5711 + $0x280] sm:$0xff]
    %v5793 = vld [vmem:[%s5711 + $0x288] sm:$0xff]
    %v5794 = vld [vmem:[%s5711 + $0x290] sm:$0xff]
    %v5795 = vld [vmem:[%s5711 + $0x298] sm:$0xff]
    %v5796 = vld [vmem:[%s5711 + $0x2a0] sm:$0xff]
    %v5797 = vld [vmem:[%s5711 + $0x2a8] sm:$0xff]
    %v5798 = vld [vmem:[%s5711 + $0x2b0] sm:$0xff]
    %v5799 = vld [vmem:[%s5711 + $0x2b8] sm:$0xff]
    %v5800 = vld [vmem:[%s5711 + $0x2c0] sm:$0xff]
    %v5801 = vld [vmem:[%s5711 + $0x2c8] sm:$0xff]
    %v5802 = vld [vmem:[%s5711 + $0x2d0] sm:$0xff]
    %v5803 = vld [vmem:[%s5711 + $0x2d8] sm:$0xff]
    %v5804 = vld [vmem:[%s5711 + $0x2e0] sm:$0xff]
    %v5805 = vld [vmem:[%s5711 + $0x2e8] sm:$0xff]
    %v5806 = vld [vmem:[%s5711 + $0x2f0] sm:$0xff]
    %v5807 = vld [vmem:[%s5711 + $0x2f8] sm:$0xff]
    %v5808 = vld [vmem:[%s5711 + $0x300] sm:$0xff]
    %v5809 = vld [vmem:[%s5711 + $0x308] sm:$0xff]
    %v5810 = vld [vmem:[%s5711 + $0x310] sm:$0xff]
    %v5811 = vld [vmem:[%s5711 + $0x318] sm:$0xff]
    %v5812 = vld [vmem:[%s5711 + $0x320] sm:$0xff]
    %v5813 = vld [vmem:[%s5711 + $0x328] sm:$0xff]
    %v5814 = vld [vmem:[%s5711 + $0x330] sm:$0xff]
    %v5815 = vld [vmem:[%s5711 + $0x338] sm:$0xff]
    %v5816 = vld [vmem:[%s5711 + $0x340] sm:$0xff]
    %v5817 = vld [vmem:[%s5711 + $0x348] sm:$0xff]
    %v5818 = vld [vmem:[%s5711 + $0x350] sm:$0xff]
    %v5819 = vld [vmem:[%s5711 + $0x358] sm:$0xff]
    %v5820 = vld [vmem:[%s5711 + $0x360] sm:$0xff]
    %v5821 = vld [vmem:[%s5711 + $0x368] sm:$0xff]
    %v5822 = vld [vmem:[%s5711 + $0x370] sm:$0xff]
    %v5823 = vld [vmem:[%s5711 + $0x378] sm:$0xff]
    %v5824 = vld [vmem:[%s5711 + $0x380] sm:$0xff]
    %v5825 = vld [vmem:[%s5711 + $0x388] sm:$0xff]
    %v5826 = vld [vmem:[%s5711 + $0x390] sm:$0xff]
    %v5827 = vld [vmem:[%s5711 + $0x398] sm:$0xff]
    %v5828 = vld [vmem:[%s5711 + $0x3a0] sm:$0xff]
    %v5829 = vld [vmem:[%s5711 + $0x3a8] sm:$0xff]
    %v5830 = vld [vmem:[%s5711 + $0x3b0] sm:$0xff]
    %v5831 = vld [vmem:[%s5711 + $0x3b8] sm:$0xff]
    %v5832 = vld [vmem:[%s5711 + $0x3c0] sm:$0xff]
    %v5833 = vld [vmem:[%s5711 + $0x3c8] sm:$0xff]
    %v5834 = vld [vmem:[%s5711 + $0x3d0] sm:$0xff]
    %v5835 = vld [vmem:[%s5711 + $0x3d8] sm:$0xff]
    %v5836 = vld [vmem:[%s5711 + $0x3e0] sm:$0xff]
    %v5837 = vld [vmem:[%s5711 + $0x3e8] sm:$0xff]
    %v5838 = vld [vmem:[%s5711 + $0x3f0] sm:$0xff]
    %v5839 = vld [vmem:[%s5711 + $0x3f8] sm:$0xff]
    %v5840 = vld [vmem:[%s5711 + $0x400] sm:$0xff]
    %v5841 = vld [vmem:[%s5711 + $0x408] sm:$0xff]
    %v5842 = vld [vmem:[%s5711 + $0x410] sm:$0xff]
    %v5843 = vld [vmem:[%s5711 + $0x418] sm:$0xff]
    %v5844 = vld [vmem:[%s5711 + $0x420] sm:$0xff]
    %v5845 = vld [vmem:[%s5711 + $0x428] sm:$0xff]
    %v5846 = vld [vmem:[%s5711 + $0x430] sm:$0xff]
    %v5847 = vld [vmem:[%s5711 + $0x438] sm:$0xff]
    %v5848 = vld [vmem:[%s5711 + $0x440] sm:$0xff]
    %v5849 = vld [vmem:[%s5711 + $0x448] sm:$0xff]
    %v5850 = vld [vmem:[%s5711 + $0x450] sm:$0xff]
    %v5851 = vld [vmem:[%s5711 + $0x458] sm:$0xff]
    %v5852 = vld [vmem:[%s5711 + $0x460] sm:$0xff]
    %v5853 = vld [vmem:[%s5711 + $0x468] sm:$0xff]
    %v5854 = vld [vmem:[%s5711 + $0x470] sm:$0xff]
    %v5855 = vld [vmem:[%s5711 + $0x478] sm:$0xff]
    %v5856 = vld [vmem:[%s5711 + $0x480] sm:$0xff]
    %v5857 = vld [vmem:[%s5711 + $0x488] sm:$0xff]
    %v5858 = vld [vmem:[%s5711 + $0x490] sm:$0xff]
    %v5859 = vld [vmem:[%s5711 + $0x498] sm:$0xff]
    %v5860 = vld [vmem:[%s5711 + $0x4a0] sm:$0xff]
    %v5861 = vld [vmem:[%s5711 + $0x4a8] sm:$0xff]
    %v5862 = vld [vmem:[%s5711 + $0x4b0] sm:$0xff]
    %v5863 = vld [vmem:[%s5711 + $0x4b8] sm:$0xff]
    %v5864 = vld [vmem:[%s5711 + $0x4c0] sm:$0xff]
    %v5865 = vld [vmem:[%s5711 + $0x4c8] sm:$0xff]
    %v5866 = vld [vmem:[%s5711 + $0x4d0] sm:$0xff]
    %v5867 = vld [vmem:[%s5711 + $0x4d8] sm:$0xff]
    %v5868 = vld [vmem:[%s5711 + $0x4e0] sm:$0xff]
    %v5869 = vld [vmem:[%s5711 + $0x4e8] sm:$0xff]
    %v5870 = vld [vmem:[%s5711 + $0x4f0] sm:$0xff]
    %v5871 = vld [vmem:[%s5711 + $0x4f8] sm:$0xff]
    %v5872 = vld [vmem:[%s5711 + $0x500] sm:$0xff]
    %v5873 = vld [vmem:[%s5711 + $0x508] sm:$0xff]
    %v5874 = vld [vmem:[%s5711 + $0x510] sm:$0xff]
    %v5875 = vld [vmem:[%s5711 + $0x518] sm:$0xff]
    %v5876 = vld [vmem:[%s5711 + $0x520] sm:$0xff]
    %v5877 = vld [vmem:[%s5711 + $0x528] sm:$0xff]
    %v5878 = vld [vmem:[%s5711 + $0x530] sm:$0xff]
    %v5879 = vld [vmem:[%s5711 + $0x538] sm:$0xff]
    %v5880 = vld [vmem:[%s5711 + $0x540] sm:$0xff]
    %v5881 = vld [vmem:[%s5711 + $0x548] sm:$0xff]
    %v5882 = vld [vmem:[%s5711 + $0x550] sm:$0xff]
    %v5883 = vld [vmem:[%s5711 + $0x558] sm:$0xff]
    %v5884 = vld [vmem:[%s5711 + $0x560] sm:$0xff]
    %v5885 = vld [vmem:[%s5711 + $0x568] sm:$0xff]
    %v5886 = vld [vmem:[%s5711 + $0x570] sm:$0xff]
    %v5887 = vld [vmem:[%s5711 + $0x578] sm:$0xff]
    %v5888 = vld [vmem:[%s5711 + $0x580] sm:$0xff]
    %v5889 = vld [vmem:[%s5711 + $0x588] sm:$0xff]
    %v5890 = vld [vmem:[%s5711 + $0x590] sm:$0xff]
    %v5891 = vld [vmem:[%s5711 + $0x598] sm:$0xff]
    %v5892 = vld [vmem:[%s5711 + $0x5a0] sm:$0xff]
    %v5893 = vld [vmem:[%s5711 + $0x5a8] sm:$0xff]
    %v5894 = vld [vmem:[%s5711 + $0x5b0] sm:$0xff]
    %v5895 = vld [vmem:[%s5711 + $0x5b8] sm:$0xff]
    %v5896 = vld [vmem:[%s5711 + $0x5c0] sm:$0xff]
    %v5897 = vld [vmem:[%s5711 + $0x5c8] sm:$0xff]
    %v5898 = vld [vmem:[%s5711 + $0x5d0] sm:$0xff]
    %v5899 = vld [vmem:[%s5711 + $0x5d8] sm:$0xff]
    %v5900 = vld [vmem:[%s5711 + $0x5e0] sm:$0xff]
    %v5901 = vld [vmem:[%s5711 + $0x5e8] sm:$0xff]
    %v5902 = vld [vmem:[%s5711 + $0x5f0] sm:$0xff]
    %v5903 = vld [vmem:[%s5711 + $0x5f8] sm:$0xff]
    %v5904 = vld [vmem:[%s5711 + $0x600] sm:$0xff]
    %v5905 = vld [vmem:[%s5711 + $0x608] sm:$0xff]
    %v5906 = vld [vmem:[%s5711 + $0x610] sm:$0xff]
    %v5907 = vld [vmem:[%s5711 + $0x618] sm:$0xff]
    %v5908 = vld [vmem:[%s5711 + $0x620] sm:$0xff]
    %v5909 = vld [vmem:[%s5711 + $0x628] sm:$0xff]
    %v5910 = vld [vmem:[%s5711 + $0x630] sm:$0xff]
    %v5911 = vld [vmem:[%s5711 + $0x638] sm:$0xff]
    %v5912 = vld [vmem:[%s5711 + $0x640] sm:$0xff]
    %v5913 = vld [vmem:[%s5711 + $0x648] sm:$0xff]
    %v5914 = vld [vmem:[%s5711 + $0x650] sm:$0xff]
    %v5915 = vld [vmem:[%s5711 + $0x658] sm:$0xff]
    %v5916 = vld [vmem:[%s5711 + $0x660] sm:$0xff]
    %v5917 = vld [vmem:[%s5711 + $0x668] sm:$0xff]
    %v5918 = vld [vmem:[%s5711 + $0x670] sm:$0xff]
    %v5919 = vld [vmem:[%s5711 + $0x678] sm:$0xff]
    %v5920 = vld [vmem:[%s5711 + $0x680] sm:$0xff]
    %v5921 = vld [vmem:[%s5711 + $0x688] sm:$0xff]
    %v5922 = vld [vmem:[%s5711 + $0x690] sm:$0xff]
    %v5923 = vld [vmem:[%s5711 + $0x698] sm:$0xff]
    %v5924 = vld [vmem:[%s5711 + $0x6a0] sm:$0xff]
    %v5925 = vld [vmem:[%s5711 + $0x6a8] sm:$0xff]
    %v5926 = vld [vmem:[%s5711 + $0x6b0] sm:$0xff]
    %v5927 = vld [vmem:[%s5711 + $0x6b8] sm:$0xff]
    %v5928 = vld [vmem:[%s5711 + $0x6c0] sm:$0xff]
    %v5929 = vld [vmem:[%s5711 + $0x6c8] sm:$0xff]
    %v5930 = vld [vmem:[%s5711 + $0x6d0] sm:$0xff]
    %v5931 = vld [vmem:[%s5711 + $0x6d8] sm:$0xff]
    %v5932 = vld [vmem:[%s5711 + $0x6e0] sm:$0xff]
    %v5933 = vld [vmem:[%s5711 + $0x6e8] sm:$0xff]
    %v5934 = vld [vmem:[%s5711 + $0x6f0] sm:$0xff]
    %v5935 = vld [vmem:[%s5711 + $0x6f8] sm:$0xff]
    %v5936 = vld [vmem:[%s5711 + $0x700] sm:$0xff]
    %v5937 = vld [vmem:[%s5711 + $0x708] sm:$0xff]
    %v5938 = vld [vmem:[%s5711 + $0x710] sm:$0xff]
    %v5939 = vld [vmem:[%s5711 + $0x718] sm:$0xff]
    %v5940 = vld [vmem:[%s5711 + $0x720] sm:$0xff]
    %v5941 = vld [vmem:[%s5711 + $0x728] sm:$0xff]
    %v5942 = vld [vmem:[%s5711 + $0x730] sm:$0xff]
    %v5943 = vld [vmem:[%s5711 + $0x738] sm:$0xff]
    %v5944 = vld [vmem:[%s5711 + $0x740] sm:$0xff]
    %v5945 = vld [vmem:[%s5711 + $0x748] sm:$0xff]
    %v5946 = vld [vmem:[%s5711 + $0x750] sm:$0xff]
    %v5947 = vld [vmem:[%s5711 + $0x758] sm:$0xff]
    %v5948 = vld [vmem:[%s5711 + $0x760] sm:$0xff]
    %v5949 = vld [vmem:[%s5711 + $0x768] sm:$0xff]
    %v5950 = vld [vmem:[%s5711 + $0x770] sm:$0xff]
    %v5951 = vld [vmem:[%s5711 + $0x778] sm:$0xff]
    %v5952 = vld [vmem:[%s5711 + $0x780] sm:$0xff]
    %v5953 = vld [vmem:[%s5711 + $0x788] sm:$0xff]
    %v5954 = vld [vmem:[%s5711 + $0x790] sm:$0xff]
    %v5955 = vld [vmem:[%s5711 + $0x798] sm:$0xff]
    %v5956 = vld [vmem:[%s5711 + $0x7a0] sm:$0xff]
    %v5957 = vld [vmem:[%s5711 + $0x7a8] sm:$0xff]
    %v5958 = vld [vmem:[%s5711 + $0x7b0] sm:$0xff]
    %v5959 = vld [vmem:[%s5711 + $0x7b8] sm:$0xff]
    %v5960 = vld [vmem:[%s5711 + $0x7c0] sm:$0xff]
    %v5961 = vld [vmem:[%s5711 + $0x7c8] sm:$0xff]
    %v5962 = vld [vmem:[%s5711 + $0x7d0] sm:$0xff]
    %v5963 = vld [vmem:[%s5711 + $0x7d8] sm:$0xff]
    %v5964 = vld [vmem:[%s5711 + $0x7e0] sm:$0xff]
    %v5965 = vld [vmem:[%s5711 + $0x7e8] sm:$0xff]
    %v5966 = vld [vmem:[%s5711 + $0x7f0] sm:$0xff]
    %v5967 = vld [vmem:[%s5711 + $0x7f8] sm:$0xff]
    %v5968 = vpack.c.bf16 %v5713, %v5712
    %v5969 = vpack.c.bf16 %v5715, %v5714
    %v5970 = vpack.c.bf16 %v5717, %v5716
    %v5971 = vpack.c.bf16 %v5719, %v5718
    %v5972 = vpack.c.bf16 %v5721, %v5720
    %v5973 = vpack.c.bf16 %v5723, %v5722
    %v5974 = vpack.c.bf16 %v5725, %v5724
    %v5975 = vpack.c.bf16 %v5727, %v5726
    %v5976 = vpack.c.bf16 %v5729, %v5728
    %v5977 = vpack.c.bf16 %v5731, %v5730
    %v5978 = vpack.c.bf16 %v5733, %v5732
    %v5979 = vpack.c.bf16 %v5735, %v5734
    %v5980 = vpack.c.bf16 %v5737, %v5736
    %v5981 = vpack.c.bf16 %v5739, %v5738
    %v5982 = vpack.c.bf16 %v5741, %v5740
    %v5983 = vpack.c.bf16 %v5743, %v5742
    %v5984 = vpack.c.bf16 %v5745, %v5744
    %v5985 = vpack.c.bf16 %v5747, %v5746
    %v5986 = vpack.c.bf16 %v5749, %v5748
    %v5987 = vpack.c.bf16 %v5751, %v5750
    %v5988 = vpack.c.bf16 %v5753, %v5752
    %v5989 = vpack.c.bf16 %v5755, %v5754
    %v5990 = vpack.c.bf16 %v5757, %v5756
    %v5991 = vpack.c.bf16 %v5759, %v5758
    %v5992 = vpack.c.bf16 %v5761, %v5760
    %v5993 = vpack.c.bf16 %v5763, %v5762
    %v5994 = vpack.c.bf16 %v5765, %v5764
    %v5995 = vpack.c.bf16 %v5767, %v5766
    %v5996 = vpack.c.bf16 %v5769, %v5768
    %v5997 = vpack.c.bf16 %v5771, %v5770
    %v5998 = vpack.c.bf16 %v5773, %v5772
    %v5999 = vpack.c.bf16 %v5775, %v5774
    %v6000 = vpack.c.bf16 %v5777, %v5776
    %v6001 = vpack.c.bf16 %v5779, %v5778
    %v6002 = vpack.c.bf16 %v5781, %v5780
    %v6003 = vpack.c.bf16 %v5783, %v5782
    %v6004 = vpack.c.bf16 %v5785, %v5784
    %v6005 = vpack.c.bf16 %v5787, %v5786
    %v6006 = vpack.c.bf16 %v5789, %v5788
    %v6007 = vpack.c.bf16 %v5791, %v5790
    %v6008 = vpack.c.bf16 %v5793, %v5792
    %v6009 = vpack.c.bf16 %v5795, %v5794
    %v6010 = vpack.c.bf16 %v5797, %v5796
    %v6011 = vpack.c.bf16 %v5799, %v5798
    %v6012 = vpack.c.bf16 %v5801, %v5800
    %v6013 = vpack.c.bf16 %v5803, %v5802
    %v6014 = vpack.c.bf16 %v5805, %v5804
    %v6015 = vpack.c.bf16 %v5807, %v5806
    %v6016 = vpack.c.bf16 %v5809, %v5808
    %v6017 = vpack.c.bf16 %v5811, %v5810
    %v6018 = vpack.c.bf16 %v5813, %v5812
    %v6019 = vpack.c.bf16 %v5815, %v5814
    %v6020 = vpack.c.bf16 %v5817, %v5816
    %v6021 = vpack.c.bf16 %v5819, %v5818
    %v6022 = vpack.c.bf16 %v5821, %v5820
    %v6023 = vpack.c.bf16 %v5823, %v5822
    %v6024 = vpack.c.bf16 %v5825, %v5824
    %v6025 = vpack.c.bf16 %v5827, %v5826
    %v6026 = vpack.c.bf16 %v5829, %v5828
    %v6027 = vpack.c.bf16 %v5831, %v5830
    %v6028 = vpack.c.bf16 %v5833, %v5832
    %v6029 = vpack.c.bf16 %v5835, %v5834
    %v6030 = vpack.c.bf16 %v5837, %v5836
    %v6031 = vpack.c.bf16 %v5839, %v5838
    %v6032 = vpack.c.bf16 %v5841, %v5840
    %v6033 = vpack.c.bf16 %v5843, %v5842
    %v6034 = vpack.c.bf16 %v5845, %v5844
    %v6035 = vpack.c.bf16 %v5847, %v5846
    %v6036 = vpack.c.bf16 %v5849, %v5848
    %v6037 = vpack.c.bf16 %v5851, %v5850
    %v6038 = vpack.c.bf16 %v5853, %v5852
    %v6039 = vpack.c.bf16 %v5855, %v5854
    %v6040 = vpack.c.bf16 %v5857, %v5856
    %v6041 = vpack.c.bf16 %v5859, %v5858
    %v6042 = vpack.c.bf16 %v5861, %v5860
    %v6043 = vpack.c.bf16 %v5863, %v5862
    %v6044 = vpack.c.bf16 %v5865, %v5864
    %v6045 = vpack.c.bf16 %v5867, %v5866
    %v6046 = vpack.c.bf16 %v5869, %v5868
    %v6047 = vpack.c.bf16 %v5871, %v5870
    %v6048 = vpack.c.bf16 %v5873, %v5872
    %v6049 = vpack.c.bf16 %v5875, %v5874
    %v6050 = vpack.c.bf16 %v5877, %v5876
    %v6051 = vpack.c.bf16 %v5879, %v5878
    %v6052 = vpack.c.bf16 %v5881, %v5880
    %v6053 = vpack.c.bf16 %v5883, %v5882
    %v6054 = vpack.c.bf16 %v5885, %v5884
    %v6055 = vpack.c.bf16 %v5887, %v5886
    %v6056 = vpack.c.bf16 %v5889, %v5888
    %v6057 = vpack.c.bf16 %v5891, %v5890
    %v6058 = vpack.c.bf16 %v5893, %v5892
    %v6059 = vpack.c.bf16 %v5895, %v5894
    %v6060 = vpack.c.bf16 %v5897, %v5896
    %v6061 = vpack.c.bf16 %v5899, %v5898
    %v6062 = vpack.c.bf16 %v5901, %v5900
    %v6063 = vpack.c.bf16 %v5903, %v5902
    %v6064 = vpack.c.bf16 %v5905, %v5904
    %v6065 = vpack.c.bf16 %v5907, %v5906
    %v6066 = vpack.c.bf16 %v5909, %v5908
    %v6067 = vpack.c.bf16 %v5911, %v5910
    %v6068 = vpack.c.bf16 %v5913, %v5912
    %v6069 = vpack.c.bf16 %v5915, %v5914
    %v6070 = vpack.c.bf16 %v5917, %v5916
    %v6071 = vpack.c.bf16 %v5919, %v5918
    %v6072 = vpack.c.bf16 %v5921, %v5920
    %v6073 = vpack.c.bf16 %v5923, %v5922
    %v6074 = vpack.c.bf16 %v5925, %v5924
    %v6075 = vpack.c.bf16 %v5927, %v5926
    %v6076 = vpack.c.bf16 %v5929, %v5928
    %v6077 = vpack.c.bf16 %v5931, %v5930
    %v6078 = vpack.c.bf16 %v5933, %v5932
    %v6079 = vpack.c.bf16 %v5935, %v5934
    %v6080 = vpack.c.bf16 %v5937, %v5936
    %v6081 = vpack.c.bf16 %v5939, %v5938
    %v6082 = vpack.c.bf16 %v5941, %v5940
    %v6083 = vpack.c.bf16 %v5943, %v5942
    %v6084 = vpack.c.bf16 %v5945, %v5944
    %v6085 = vpack.c.bf16 %v5947, %v5946
    %v6086 = vpack.c.bf16 %v5949, %v5948
    %v6087 = vpack.c.bf16 %v5951, %v5950
    %v6088 = vpack.c.bf16 %v5953, %v5952
    %v6089 = vpack.c.bf16 %v5955, %v5954
    %v6090 = vpack.c.bf16 %v5957, %v5956
    %v6091 = vpack.c.bf16 %v5959, %v5958
    %v6092 = vpack.c.bf16 %v5961, %v5960
    %v6093 = vpack.c.bf16 %v5963, %v5962
    %v6094 = vpack.c.bf16 %v5965, %v5964
    %v6095 = vpack.c.bf16 %v5967, %v5966
    %s6096 = scalar_lea.vmem %s1, 16
    %v6097 = vld [vmem:[%s6096] sm:$0xf]
    %v6098 = vld [vmem:[%s6096 + $0x4] sm:$0x1]
    %v6101 = vunpack.c.l.b16 %v6097
    %v6102 = vunpack.c.l.b16 %v6098
    %v6103 = vpack.c.b16 %v6102, %v6101
    %v6105 = vsel %vm300, %v5968, 0
    %v6108 = vsel %vm300, %v5969, 0
    %v6111 = vsel %vm300, %v5970, 0
    %v6114 = vsel %vm300, %v5971, 0
    %v6117 = vsel %vm300, %v5972, 0
    %v6120 = vsel %vm300, %v5973, 0
    %v6123 = vsel %vm300, %v5974, 0
    %v6126 = vsel %vm300, %v5975, 0
    %v6129 = vsel %vm300, %v5976, 0
    %v6132 = vsel %vm300, %v5977, 0
    %v6135 = vsel %vm300, %v5978, 0
    %v6138 = vsel %vm300, %v5979, 0
    %v6141 = vsel %vm300, %v5980, 0
    %v6144 = vsel %vm300, %v5981, 0
    %v6147 = vsel %vm300, %v5982, 0
    %v6150 = vsel %vm300, %v5983, 0
    %v6153 = vsel %vm300, %v5984, 0
    %v6156 = vsel %vm300, %v5985, 0
    %v6159 = vsel %vm300, %v5986, 0
    %v6162 = vsel %vm300, %v5987, 0
    %v6165 = vsel %vm300, %v5988, 0
    %v6168 = vsel %vm300, %v5989, 0
    %v6171 = vsel %vm300, %v5990, 0
    %v6174 = vsel %vm300, %v5991, 0
    %v6177 = vsel %vm300, %v5992, 0
    %v6180 = vsel %vm300, %v5993, 0
    %v6183 = vsel %vm300, %v5994, 0
    %v6186 = vsel %vm300, %v5995, 0
    %v6189 = vsel %vm300, %v5996, 0
    %v6192 = vsel %vm300, %v5997, 0
    %v6195 = vsel %vm300, %v5998, 0
    %v6198 = vsel %vm300, %v5999, 0
    %v6201 = vsel %vm300, %v6000, 0
    %v6204 = vsel %vm300, %v6001, 0
    %v6207 = vsel %vm300, %v6002, 0
    %v6210 = vsel %vm300, %v6003, 0
    %v6213 = vsel %vm300, %v6004, 0
    %v6216 = vsel %vm300, %v6005, 0
    %v6219 = vsel %vm300, %v6006, 0
    %v6222 = vsel %vm300, %v6007, 0
    %v6225 = vsel %vm300, %v6008, 0
    %v6228 = vsel %vm300, %v6009, 0
    %v6231 = vsel %vm300, %v6010, 0
    %v6234 = vsel %vm300, %v6011, 0
    %v6237 = vsel %vm300, %v6012, 0
    %v6240 = vsel %vm300, %v6013, 0
    %v6243 = vsel %vm300, %v6014, 0
    %v6246 = vsel %vm300, %v6015, 0
    %v6249 = vsel %vm300, %v6016, 0
    %v6252 = vsel %vm300, %v6017, 0
    %v6255 = vsel %vm300, %v6018, 0
    %v6258 = vsel %vm300, %v6019, 0
    %v6261 = vsel %vm300, %v6020, 0
    %v6264 = vsel %vm300, %v6021, 0
    %v6267 = vsel %vm300, %v6022, 0
    %v6270 = vsel %vm300, %v6023, 0
    %v6273 = vsel %vm300, %v6024, 0
    %v6276 = vsel %vm300, %v6025, 0
    %v6279 = vsel %vm300, %v6026, 0
    %v6282 = vsel %vm300, %v6027, 0
    %v6285 = vsel %vm300, %v6028, 0
    %v6288 = vsel %vm300, %v6029, 0
    %v6291 = vsel %vm300, %v6030, 0
    %v6294 = vsel %vm300, %v6031, 0
    %v6297 = vsel %vm300, %v6032, 0
    %v6300 = vsel %vm300, %v6033, 0
    %v6303 = vsel %vm300, %v6034, 0
    %v6306 = vsel %vm300, %v6035, 0
    %v6309 = vsel %vm300, %v6036, 0
    %v6312 = vsel %vm300, %v6037, 0
    %v6315 = vsel %vm300, %v6038, 0
    %v6318 = vsel %vm300, %v6039, 0
    %v6321 = vsel %vm300, %v6040, 0
    %v6324 = vsel %vm300, %v6041, 0
    %v6327 = vsel %vm300, %v6042, 0
    %v6330 = vsel %vm300, %v6043, 0
    %v6333 = vsel %vm300, %v6044, 0
    %v6336 = vsel %vm300, %v6045, 0
    %v6339 = vsel %vm300, %v6046, 0
    %v6342 = vsel %vm300, %v6047, 0
    %v6345 = vsel %vm300, %v6048, 0
    %v6348 = vsel %vm300, %v6049, 0
    %v6351 = vsel %vm300, %v6050, 0
    %v6354 = vsel %vm300, %v6051, 0
    %v6357 = vsel %vm300, %v6052, 0
    %v6360 = vsel %vm300, %v6053, 0
    %v6363 = vsel %vm300, %v6054, 0
    %v6366 = vsel %vm300, %v6055, 0
    %v6369 = vsel %vm300, %v6056, 0
    %v6372 = vsel %vm300, %v6057, 0
    %v6375 = vsel %vm300, %v6058, 0
    %v6378 = vsel %vm300, %v6059, 0
    %v6381 = vsel %vm300, %v6060, 0
    %v6384 = vsel %vm300, %v6061, 0
    %v6387 = vsel %vm300, %v6062, 0
    %v6390 = vsel %vm300, %v6063, 0
    %v6393 = vsel %vm300, %v6064, 0
    %v6396 = vsel %vm300, %v6065, 0
    %v6399 = vsel %vm300, %v6066, 0
    %v6402 = vsel %vm300, %v6067, 0
    %v6405 = vsel %vm300, %v6068, 0
    %v6408 = vsel %vm300, %v6069, 0
    %v6411 = vsel %vm300, %v6070, 0
    %v6414 = vsel %vm300, %v6071, 0
    %v6417 = vsel %vm300, %v6072, 0
    %v6420 = vsel %vm300, %v6073, 0
    %v6423 = vsel %vm300, %v6074, 0
    %v6426 = vsel %vm300, %v6075, 0
    %v6429 = vsel %vm300, %v6076, 0
    %v6432 = vsel %vm300, %v6077, 0
    %v6435 = vsel %vm300, %v6078, 0
    %v6438 = vsel %vm300, %v6079, 0
    %v6441 = vsel %vm300, %v6080, 0
    %v6444 = vsel %vm300, %v6081, 0
    %v6447 = vsel %vm300, %v6082, 0
    %v6450 = vsel %vm300, %v6083, 0
    %v6453 = vsel %vm300, %v6084, 0
    %v6456 = vsel %vm300, %v6085, 0
    %v6459 = vsel %vm300, %v6086, 0
    %v6462 = vsel %vm300, %v6087, 0
    %v6465 = vsel %vm300, %v6088, 0
    %v6468 = vsel %vm300, %v6089, 0
    %v6471 = vsel %vm300, %v6090, 0
    %v6474 = vsel %vm300, %v6091, 0
    %v6477 = vsel %vm300, %v6092, 0
    %v6480 = vsel %vm300, %v6093, 0
    %v6483 = vsel %vm300, %v6094, 0
    %v6486 = vsel %vm300, %v6095, 0
    %v6489 = vand.u32 %v6103, %v4017
    %6491 = vmatpush.bf16.msra.mxu0 0
    %6492 = vmatpush.bf16.msra.mxu0 0
    %6493 = vmatpush.bf16.msra.mxu0 0
    %6494 = vmatpush.bf16.msra.mxu0 0
    %6495 = vmatpush.bf16.msra.mxu0 0
    %6496 = vmatpush.bf16.msra.mxu0 0
    %6497 = vmatpush.bf16.msra.mxu0 0
    %6498 = vmatpush.bf16.msra.mxu0 %v6489
    %6499 = vmatmul.bf16.gmra.mxu0 %v6105
    %v6500 = vpop.f32.mrf.mxu0
    %v6501 = vadd.f32 0.0, %v6500
    %v6502 = vpop.f32.mrf.mxu0
    %v6503 = vadd.f32 0.0, %v6502
    %6504 = vmatmul.bf16.gmra.mxu0 %v6108
    %v6505 = vpop.f32.mrf.mxu0
    %v6506 = vadd.f32 0.0, %v6505
    %v6507 = vpop.f32.mrf.mxu0
    %v6508 = vadd.f32 0.0, %v6507
    %6509 = vmatmul.bf16.gmra.mxu0 %v6111
    %v6510 = vpop.f32.mrf.mxu0
    %v6511 = vadd.f32 0.0, %v6510
    %v6512 = vpop.f32.mrf.mxu0
    %v6513 = vadd.f32 0.0, %v6512
    %6514 = vmatmul.bf16.gmra.mxu0 %v6114
    %v6515 = vpop.f32.mrf.mxu0
    %v6516 = vadd.f32 0.0, %v6515
    %v6517 = vpop.f32.mrf.mxu0
    %v6518 = vadd.f32 0.0, %v6517
    %6519 = vmatmul.bf16.gmra.mxu0 %v6117
    %v6520 = vpop.f32.mrf.mxu0
    %v6521 = vadd.f32 0.0, %v6520
    %v6522 = vpop.f32.mrf.mxu0
    %v6523 = vadd.f32 0.0, %v6522
    %6524 = vmatmul.bf16.gmra.mxu0 %v6120
    %v6525 = vpop.f32.mrf.mxu0
    %v6526 = vadd.f32 0.0, %v6525
    %v6527 = vpop.f32.mrf.mxu0
    %v6528 = vadd.f32 0.0, %v6527
    %6529 = vmatmul.bf16.gmra.mxu0 %v6123
    %v6530 = vpop.f32.mrf.mxu0
    %v6531 = vadd.f32 0.0, %v6530
    %v6532 = vpop.f32.mrf.mxu0
    %v6533 = vadd.f32 0.0, %v6532
    %6534 = vmatmul.bf16.gmra.mxu0 %v6126
    %v6535 = vpop.f32.mrf.mxu0
    %v6536 = vadd.f32 0.0, %v6535
    %v6537 = vpop.f32.mrf.mxu0
    %v6538 = vadd.f32 0.0, %v6537
    %6539 = vmatmul.bf16.gmra.mxu0 %v6129
    %v6540 = vpop.f32.mrf.mxu0
    %v6541 = vadd.f32 0.0, %v6540
    %v6542 = vpop.f32.mrf.mxu0
    %v6543 = vadd.f32 0.0, %v6542
    %6544 = vmatmul.bf16.gmra.mxu0 %v6132
    %v6545 = vpop.f32.mrf.mxu0
    %v6546 = vadd.f32 0.0, %v6545
    %v6547 = vpop.f32.mrf.mxu0
    %v6548 = vadd.f32 0.0, %v6547
    %6549 = vmatmul.bf16.gmra.mxu0 %v6135
    %v6550 = vpop.f32.mrf.mxu0
    %v6551 = vadd.f32 0.0, %v6550
    %v6552 = vpop.f32.mrf.mxu0
    %v6553 = vadd.f32 0.0, %v6552
    %6554 = vmatmul.bf16.gmra.mxu0 %v6138
    %v6555 = vpop.f32.mrf.mxu0
    %v6556 = vadd.f32 0.0, %v6555
    %v6557 = vpop.f32.mrf.mxu0
    %v6558 = vadd.f32 0.0, %v6557
    %6559 = vmatmul.bf16.gmra.mxu0 %v6141
    %v6560 = vpop.f32.mrf.mxu0
    %v6561 = vadd.f32 0.0, %v6560
    %v6562 = vpop.f32.mrf.mxu0
    %v6563 = vadd.f32 0.0, %v6562
    %6564 = vmatmul.bf16.gmra.mxu0 %v6144
    %v6565 = vpop.f32.mrf.mxu0
    %v6566 = vadd.f32 0.0, %v6565
    %v6567 = vpop.f32.mrf.mxu0
    %v6568 = vadd.f32 0.0, %v6567
    %6569 = vmatmul.bf16.gmra.mxu0 %v6147
    %v6570 = vpop.f32.mrf.mxu0
    %v6571 = vadd.f32 0.0, %v6570
    %v6572 = vpop.f32.mrf.mxu0
    %v6573 = vadd.f32 0.0, %v6572
    %6574 = vmatmul.bf16.gmra.mxu0 %v6150
    %v6575 = vpop.f32.mrf.mxu0
    %v6576 = vadd.f32 0.0, %v6575
    %v6577 = vpop.f32.mrf.mxu0
    %v6578 = vadd.f32 0.0, %v6577
    %6579 = vmatmul.bf16.gmra.mxu0 %v6153
    %v6580 = vpop.f32.mrf.mxu0
    %v6581 = vadd.f32 0.0, %v6580
    %v6582 = vpop.f32.mrf.mxu0
    %v6583 = vadd.f32 0.0, %v6582
    %6584 = vmatmul.bf16.gmra.mxu0 %v6156
    %v6585 = vpop.f32.mrf.mxu0
    %v6586 = vadd.f32 0.0, %v6585
    %v6587 = vpop.f32.mrf.mxu0
    %v6588 = vadd.f32 0.0, %v6587
    %6589 = vmatmul.bf16.gmra.mxu0 %v6159
    %v6590 = vpop.f32.mrf.mxu0
    %v6591 = vadd.f32 0.0, %v6590
    %v6592 = vpop.f32.mrf.mxu0
    %v6593 = vadd.f32 0.0, %v6592
    %6594 = vmatmul.bf16.gmra.mxu0 %v6162
    %v6595 = vpop.f32.mrf.mxu0
    %v6596 = vadd.f32 0.0, %v6595
    %v6597 = vpop.f32.mrf.mxu0
    %v6598 = vadd.f32 0.0, %v6597
    %6599 = vmatmul.bf16.gmra.mxu0 %v6165
    %v6600 = vpop.f32.mrf.mxu0
    %v6601 = vadd.f32 0.0, %v6600
    %v6602 = vpop.f32.mrf.mxu0
    %v6603 = vadd.f32 0.0, %v6602
    %6604 = vmatmul.bf16.gmra.mxu0 %v6168
    %v6605 = vpop.f32.mrf.mxu0
    %v6606 = vadd.f32 0.0, %v6605
    %v6607 = vpop.f32.mrf.mxu0
    %v6608 = vadd.f32 0.0, %v6607
    %6609 = vmatmul.bf16.gmra.mxu0 %v6171
    %v6610 = vpop.f32.mrf.mxu0
    %v6611 = vadd.f32 0.0, %v6610
    %v6612 = vpop.f32.mrf.mxu0
    %v6613 = vadd.f32 0.0, %v6612
    %6614 = vmatmul.bf16.gmra.mxu0 %v6174
    %v6615 = vpop.f32.mrf.mxu0
    %v6616 = vadd.f32 0.0, %v6615
    %v6617 = vpop.f32.mrf.mxu0
    %v6618 = vadd.f32 0.0, %v6617
    %6619 = vmatmul.bf16.gmra.mxu0 %v6177
    %v6620 = vpop.f32.mrf.mxu0
    %v6621 = vadd.f32 0.0, %v6620
    %v6622 = vpop.f32.mrf.mxu0
    %v6623 = vadd.f32 0.0, %v6622
    %6624 = vmatmul.bf16.gmra.mxu0 %v6180
    %v6625 = vpop.f32.mrf.mxu0
    %v6626 = vadd.f32 0.0, %v6625
    %v6627 = vpop.f32.mrf.mxu0
    %v6628 = vadd.f32 0.0, %v6627
    %6629 = vmatmul.bf16.gmra.mxu0 %v6183
    %v6630 = vpop.f32.mrf.mxu0
    %v6631 = vadd.f32 0.0, %v6630
    %v6632 = vpop.f32.mrf.mxu0
    %v6633 = vadd.f32 0.0, %v6632
    %6634 = vmatmul.bf16.gmra.mxu0 %v6186
    %v6635 = vpop.f32.mrf.mxu0
    %v6636 = vadd.f32 0.0, %v6635
    %v6637 = vpop.f32.mrf.mxu0
    %v6638 = vadd.f32 0.0, %v6637
    %6639 = vmatmul.bf16.gmra.mxu0 %v6189
    %v6640 = vpop.f32.mrf.mxu0
    %v6641 = vadd.f32 0.0, %v6640
    %v6642 = vpop.f32.mrf.mxu0
    %v6643 = vadd.f32 0.0, %v6642
    %6644 = vmatmul.bf16.gmra.mxu0 %v6192
    %v6645 = vpop.f32.mrf.mxu0
    %v6646 = vadd.f32 0.0, %v6645
    %v6647 = vpop.f32.mrf.mxu0
    %v6648 = vadd.f32 0.0, %v6647
    %6649 = vmatmul.bf16.gmra.mxu0 %v6195
    %v6650 = vpop.f32.mrf.mxu0
    %v6651 = vadd.f32 0.0, %v6650
    %v6652 = vpop.f32.mrf.mxu0
    %v6653 = vadd.f32 0.0, %v6652
    %6654 = vmatmul.bf16.gmra.mxu0 %v6198
    %v6655 = vpop.f32.mrf.mxu0
    %v6656 = vadd.f32 0.0, %v6655
    %v6657 = vpop.f32.mrf.mxu0
    %v6658 = vadd.f32 0.0, %v6657
    %6659 = vmatmul.bf16.gmra.mxu0 %v6201
    %v6660 = vpop.f32.mrf.mxu0
    %v6661 = vadd.f32 0.0, %v6660
    %v6662 = vpop.f32.mrf.mxu0
    %v6663 = vadd.f32 0.0, %v6662
    %6664 = vmatmul.bf16.gmra.mxu0 %v6204
    %v6665 = vpop.f32.mrf.mxu0
    %v6666 = vadd.f32 0.0, %v6665
    %v6667 = vpop.f32.mrf.mxu0
    %v6668 = vadd.f32 0.0, %v6667
    %6669 = vmatmul.bf16.gmra.mxu0 %v6207
    %v6670 = vpop.f32.mrf.mxu0
    %v6671 = vadd.f32 0.0, %v6670
    %v6672 = vpop.f32.mrf.mxu0
    %v6673 = vadd.f32 0.0, %v6672
    %6674 = vmatmul.bf16.gmra.mxu0 %v6210
    %v6675 = vpop.f32.mrf.mxu0
    %v6676 = vadd.f32 0.0, %v6675
    %v6677 = vpop.f32.mrf.mxu0
    %v6678 = vadd.f32 0.0, %v6677
    %6679 = vmatmul.bf16.gmra.mxu0 %v6213
    %v6680 = vpop.f32.mrf.mxu0
    %v6681 = vadd.f32 0.0, %v6680
    %v6682 = vpop.f32.mrf.mxu0
    %v6683 = vadd.f32 0.0, %v6682
    %6684 = vmatmul.bf16.gmra.mxu0 %v6216
    %v6685 = vpop.f32.mrf.mxu0
    %v6686 = vadd.f32 0.0, %v6685
    %v6687 = vpop.f32.mrf.mxu0
    %v6688 = vadd.f32 0.0, %v6687
    %6689 = vmatmul.bf16.gmra.mxu0 %v6219
    %v6690 = vpop.f32.mrf.mxu0
    %v6691 = vadd.f32 0.0, %v6690
    %v6692 = vpop.f32.mrf.mxu0
    %v6693 = vadd.f32 0.0, %v6692
    %6694 = vmatmul.bf16.gmra.mxu0 %v6222
    %v6695 = vpop.f32.mrf.mxu0
    %v6696 = vadd.f32 0.0, %v6695
    %v6697 = vpop.f32.mrf.mxu0
    %v6698 = vadd.f32 0.0, %v6697
    %6699 = vmatmul.bf16.gmra.mxu0 %v6225
    %v6700 = vpop.f32.mrf.mxu0
    %v6701 = vadd.f32 0.0, %v6700
    %v6702 = vpop.f32.mrf.mxu0
    %v6703 = vadd.f32 0.0, %v6702
    %6704 = vmatmul.bf16.gmra.mxu0 %v6228
    %v6705 = vpop.f32.mrf.mxu0
    %v6706 = vadd.f32 0.0, %v6705
    %v6707 = vpop.f32.mrf.mxu0
    %v6708 = vadd.f32 0.0, %v6707
    %6709 = vmatmul.bf16.gmra.mxu0 %v6231
    %v6710 = vpop.f32.mrf.mxu0
    %v6711 = vadd.f32 0.0, %v6710
    %v6712 = vpop.f32.mrf.mxu0
    %v6713 = vadd.f32 0.0, %v6712
    %6714 = vmatmul.bf16.gmra.mxu0 %v6234
    %v6715 = vpop.f32.mrf.mxu0
    %v6716 = vadd.f32 0.0, %v6715
    %v6717 = vpop.f32.mrf.mxu0
    %v6718 = vadd.f32 0.0, %v6717
    %6719 = vmatmul.bf16.gmra.mxu0 %v6237
    %v6720 = vpop.f32.mrf.mxu0
    %v6721 = vadd.f32 0.0, %v6720
    %v6722 = vpop.f32.mrf.mxu0
    %v6723 = vadd.f32 0.0, %v6722
    %6724 = vmatmul.bf16.gmra.mxu0 %v6240
    %v6725 = vpop.f32.mrf.mxu0
    %v6726 = vadd.f32 0.0, %v6725
    %v6727 = vpop.f32.mrf.mxu0
    %v6728 = vadd.f32 0.0, %v6727
    %6729 = vmatmul.bf16.gmra.mxu0 %v6243
    %v6730 = vpop.f32.mrf.mxu0
    %v6731 = vadd.f32 0.0, %v6730
    %v6732 = vpop.f32.mrf.mxu0
    %v6733 = vadd.f32 0.0, %v6732
    %6734 = vmatmul.bf16.gmra.mxu0 %v6246
    %v6735 = vpop.f32.mrf.mxu0
    %v6736 = vadd.f32 0.0, %v6735
    %v6737 = vpop.f32.mrf.mxu0
    %v6738 = vadd.f32 0.0, %v6737
    %6739 = vmatmul.bf16.gmra.mxu0 %v6249
    %v6740 = vpop.f32.mrf.mxu0
    %v6741 = vadd.f32 0.0, %v6740
    %v6742 = vpop.f32.mrf.mxu0
    %v6743 = vadd.f32 0.0, %v6742
    %6744 = vmatmul.bf16.gmra.mxu0 %v6252
    %v6745 = vpop.f32.mrf.mxu0
    %v6746 = vadd.f32 0.0, %v6745
    %v6747 = vpop.f32.mrf.mxu0
    %v6748 = vadd.f32 0.0, %v6747
    %6749 = vmatmul.bf16.gmra.mxu0 %v6255
    %v6750 = vpop.f32.mrf.mxu0
    %v6751 = vadd.f32 0.0, %v6750
    %v6752 = vpop.f32.mrf.mxu0
    %v6753 = vadd.f32 0.0, %v6752
    %6754 = vmatmul.bf16.gmra.mxu0 %v6258
    %v6755 = vpop.f32.mrf.mxu0
    %v6756 = vadd.f32 0.0, %v6755
    %v6757 = vpop.f32.mrf.mxu0
    %v6758 = vadd.f32 0.0, %v6757
    %6759 = vmatmul.bf16.gmra.mxu0 %v6261
    %v6760 = vpop.f32.mrf.mxu0
    %v6761 = vadd.f32 0.0, %v6760
    %v6762 = vpop.f32.mrf.mxu0
    %v6763 = vadd.f32 0.0, %v6762
    %6764 = vmatmul.bf16.gmra.mxu0 %v6264
    %v6765 = vpop.f32.mrf.mxu0
    %v6766 = vadd.f32 0.0, %v6765
    %v6767 = vpop.f32.mrf.mxu0
    %v6768 = vadd.f32 0.0, %v6767
    %6769 = vmatmul.bf16.gmra.mxu0 %v6267
    %v6770 = vpop.f32.mrf.mxu0
    %v6771 = vadd.f32 0.0, %v6770
    %v6772 = vpop.f32.mrf.mxu0
    %v6773 = vadd.f32 0.0, %v6772
    %6774 = vmatmul.bf16.gmra.mxu0 %v6270
    %v6775 = vpop.f32.mrf.mxu0
    %v6776 = vadd.f32 0.0, %v6775
    %v6777 = vpop.f32.mrf.mxu0
    %v6778 = vadd.f32 0.0, %v6777
    %6779 = vmatmul.bf16.gmra.mxu0 %v6273
    %v6780 = vpop.f32.mrf.mxu0
    %v6781 = vadd.f32 0.0, %v6780
    %v6782 = vpop.f32.mrf.mxu0
    %v6783 = vadd.f32 0.0, %v6782
    %6784 = vmatmul.bf16.gmra.mxu0 %v6276
    %v6785 = vpop.f32.mrf.mxu0
    %v6786 = vadd.f32 0.0, %v6785
    %v6787 = vpop.f32.mrf.mxu0
    %v6788 = vadd.f32 0.0, %v6787
    %6789 = vmatmul.bf16.gmra.mxu0 %v6279
    %v6790 = vpop.f32.mrf.mxu0
    %v6791 = vadd.f32 0.0, %v6790
    %v6792 = vpop.f32.mrf.mxu0
    %v6793 = vadd.f32 0.0, %v6792
    %6794 = vmatmul.bf16.gmra.mxu0 %v6282
    %v6795 = vpop.f32.mrf.mxu0
    %v6796 = vadd.f32 0.0, %v6795
    %v6797 = vpop.f32.mrf.mxu0
    %v6798 = vadd.f32 0.0, %v6797
    %6799 = vmatmul.bf16.gmra.mxu0 %v6285
    %v6800 = vpop.f32.mrf.mxu0
    %v6801 = vadd.f32 0.0, %v6800
    %v6802 = vpop.f32.mrf.mxu0
    %v6803 = vadd.f32 0.0, %v6802
    %6804 = vmatmul.bf16.gmra.mxu0 %v6288
    %v6805 = vpop.f32.mrf.mxu0
    %v6806 = vadd.f32 0.0, %v6805
    %v6807 = vpop.f32.mrf.mxu0
    %v6808 = vadd.f32 0.0, %v6807
    %6809 = vmatmul.bf16.gmra.mxu0 %v6291
    %v6810 = vpop.f32.mrf.mxu0
    %v6811 = vadd.f32 0.0, %v6810
    %v6812 = vpop.f32.mrf.mxu0
    %v6813 = vadd.f32 0.0, %v6812
    %6814 = vmatmul.bf16.gmra.mxu0 %v6294
    %v6815 = vpop.f32.mrf.mxu0
    %v6816 = vadd.f32 0.0, %v6815
    %v6817 = vpop.f32.mrf.mxu0
    %v6818 = vadd.f32 0.0, %v6817
    %6819 = vmatmul.bf16.gmra.mxu0 %v6297
    %v6820 = vpop.f32.mrf.mxu0
    %v6821 = vadd.f32 0.0, %v6820
    %v6822 = vpop.f32.mrf.mxu0
    %v6823 = vadd.f32 0.0, %v6822
    %6824 = vmatmul.bf16.gmra.mxu0 %v6300
    %v6825 = vpop.f32.mrf.mxu0
    %v6826 = vadd.f32 0.0, %v6825
    %v6827 = vpop.f32.mrf.mxu0
    %v6828 = vadd.f32 0.0, %v6827
    %6829 = vmatmul.bf16.gmra.mxu0 %v6303
    %v6830 = vpop.f32.mrf.mxu0
    %v6831 = vadd.f32 0.0, %v6830
    %v6832 = vpop.f32.mrf.mxu0
    %v6833 = vadd.f32 0.0, %v6832
    %6834 = vmatmul.bf16.gmra.mxu0 %v6306
    %v6835 = vpop.f32.mrf.mxu0
    %v6836 = vadd.f32 0.0, %v6835
    %v6837 = vpop.f32.mrf.mxu0
    %v6838 = vadd.f32 0.0, %v6837
    %6839 = vmatmul.bf16.gmra.mxu0 %v6309
    %v6840 = vpop.f32.mrf.mxu0
    %v6841 = vadd.f32 0.0, %v6840
    %v6842 = vpop.f32.mrf.mxu0
    %v6843 = vadd.f32 0.0, %v6842
    %6844 = vmatmul.bf16.gmra.mxu0 %v6312
    %v6845 = vpop.f32.mrf.mxu0
    %v6846 = vadd.f32 0.0, %v6845
    %v6847 = vpop.f32.mrf.mxu0
    %v6848 = vadd.f32 0.0, %v6847
    %6849 = vmatmul.bf16.gmra.mxu0 %v6315
    %v6850 = vpop.f32.mrf.mxu0
    %v6851 = vadd.f32 0.0, %v6850
    %v6852 = vpop.f32.mrf.mxu0
    %v6853 = vadd.f32 0.0, %v6852
    %6854 = vmatmul.bf16.gmra.mxu0 %v6318
    %v6855 = vpop.f32.mrf.mxu0
    %v6856 = vadd.f32 0.0, %v6855
    %v6857 = vpop.f32.mrf.mxu0
    %v6858 = vadd.f32 0.0, %v6857
    %6859 = vmatmul.bf16.gmra.mxu0 %v6321
    %v6860 = vpop.f32.mrf.mxu0
    %v6861 = vadd.f32 0.0, %v6860
    %v6862 = vpop.f32.mrf.mxu0
    %v6863 = vadd.f32 0.0, %v6862
    %6864 = vmatmul.bf16.gmra.mxu0 %v6324
    %v6865 = vpop.f32.mrf.mxu0
    %v6866 = vadd.f32 0.0, %v6865
    %v6867 = vpop.f32.mrf.mxu0
    %v6868 = vadd.f32 0.0, %v6867
    %6869 = vmatmul.bf16.gmra.mxu0 %v6327
    %v6870 = vpop.f32.mrf.mxu0
    %v6871 = vadd.f32 0.0, %v6870
    %v6872 = vpop.f32.mrf.mxu0
    %v6873 = vadd.f32 0.0, %v6872
    %6874 = vmatmul.bf16.gmra.mxu0 %v6330
    %v6875 = vpop.f32.mrf.mxu0
    %v6876 = vadd.f32 0.0, %v6875
    %v6877 = vpop.f32.mrf.mxu0
    %v6878 = vadd.f32 0.0, %v6877
    %6879 = vmatmul.bf16.gmra.mxu0 %v6333
    %v6880 = vpop.f32.mrf.mxu0
    %v6881 = vadd.f32 0.0, %v6880
    %v6882 = vpop.f32.mrf.mxu0
    %v6883 = vadd.f32 0.0, %v6882
    %6884 = vmatmul.bf16.gmra.mxu0 %v6336
    %v6885 = vpop.f32.mrf.mxu0
    %v6886 = vadd.f32 0.0, %v6885
    %v6887 = vpop.f32.mrf.mxu0
    %v6888 = vadd.f32 0.0, %v6887
    %6889 = vmatmul.bf16.gmra.mxu0 %v6339
    %v6890 = vpop.f32.mrf.mxu0
    %v6891 = vadd.f32 0.0, %v6890
    %v6892 = vpop.f32.mrf.mxu0
    %v6893 = vadd.f32 0.0, %v6892
    %6894 = vmatmul.bf16.gmra.mxu0 %v6342
    %v6895 = vpop.f32.mrf.mxu0
    %v6896 = vadd.f32 0.0, %v6895
    %v6897 = vpop.f32.mrf.mxu0
    %v6898 = vadd.f32 0.0, %v6897
    %6899 = vmatmul.bf16.gmra.mxu0 %v6345
    %v6900 = vpop.f32.mrf.mxu0
    %v6901 = vadd.f32 0.0, %v6900
    %v6902 = vpop.f32.mrf.mxu0
    %v6903 = vadd.f32 0.0, %v6902
    %6904 = vmatmul.bf16.gmra.mxu0 %v6348
    %v6905 = vpop.f32.mrf.mxu0
    %v6906 = vadd.f32 0.0, %v6905
    %v6907 = vpop.f32.mrf.mxu0
    %v6908 = vadd.f32 0.0, %v6907
    %6909 = vmatmul.bf16.gmra.mxu0 %v6351
    %v6910 = vpop.f32.mrf.mxu0
    %v6911 = vadd.f32 0.0, %v6910
    %v6912 = vpop.f32.mrf.mxu0
    %v6913 = vadd.f32 0.0, %v6912
    %6914 = vmatmul.bf16.gmra.mxu0 %v6354
    %v6915 = vpop.f32.mrf.mxu0
    %v6916 = vadd.f32 0.0, %v6915
    %v6917 = vpop.f32.mrf.mxu0
    %v6918 = vadd.f32 0.0, %v6917
    %6919 = vmatmul.bf16.gmra.mxu0 %v6357
    %v6920 = vpop.f32.mrf.mxu0
    %v6921 = vadd.f32 0.0, %v6920
    %v6922 = vpop.f32.mrf.mxu0
    %v6923 = vadd.f32 0.0, %v6922
    %6924 = vmatmul.bf16.gmra.mxu0 %v6360
    %v6925 = vpop.f32.mrf.mxu0
    %v6926 = vadd.f32 0.0, %v6925
    %v6927 = vpop.f32.mrf.mxu0
    %v6928 = vadd.f32 0.0, %v6927
    %6929 = vmatmul.bf16.gmra.mxu0 %v6363
    %v6930 = vpop.f32.mrf.mxu0
    %v6931 = vadd.f32 0.0, %v6930
    %v6932 = vpop.f32.mrf.mxu0
    %v6933 = vadd.f32 0.0, %v6932
    %6934 = vmatmul.bf16.gmra.mxu0 %v6366
    %v6935 = vpop.f32.mrf.mxu0
    %v6936 = vadd.f32 0.0, %v6935
    %v6937 = vpop.f32.mrf.mxu0
    %v6938 = vadd.f32 0.0, %v6937
    %6939 = vmatmul.bf16.gmra.mxu0 %v6369
    %v6940 = vpop.f32.mrf.mxu0
    %v6941 = vadd.f32 0.0, %v6940
    %v6942 = vpop.f32.mrf.mxu0
    %v6943 = vadd.f32 0.0, %v6942
    %6944 = vmatmul.bf16.gmra.mxu0 %v6372
    %v6945 = vpop.f32.mrf.mxu0
    %v6946 = vadd.f32 0.0, %v6945
    %v6947 = vpop.f32.mrf.mxu0
    %v6948 = vadd.f32 0.0, %v6947
    %6949 = vmatmul.bf16.gmra.mxu0 %v6375
    %v6950 = vpop.f32.mrf.mxu0
    %v6951 = vadd.f32 0.0, %v6950
    %v6952 = vpop.f32.mrf.mxu0
    %v6953 = vadd.f32 0.0, %v6952
    %6954 = vmatmul.bf16.gmra.mxu0 %v6378
    %v6955 = vpop.f32.mrf.mxu0
    %v6956 = vadd.f32 0.0, %v6955
    %v6957 = vpop.f32.mrf.mxu0
    %v6958 = vadd.f32 0.0, %v6957
    %6959 = vmatmul.bf16.gmra.mxu0 %v6381
    %v6960 = vpop.f32.mrf.mxu0
    %v6961 = vadd.f32 0.0, %v6960
    %v6962 = vpop.f32.mrf.mxu0
    %v6963 = vadd.f32 0.0, %v6962
    %6964 = vmatmul.bf16.gmra.mxu0 %v6384
    %v6965 = vpop.f32.mrf.mxu0
    %v6966 = vadd.f32 0.0, %v6965
    %v6967 = vpop.f32.mrf.mxu0
    %v6968 = vadd.f32 0.0, %v6967
    %6969 = vmatmul.bf16.gmra.mxu0 %v6387
    %v6970 = vpop.f32.mrf.mxu0
    %v6971 = vadd.f32 0.0, %v6970
    %v6972 = vpop.f32.mrf.mxu0
    %v6973 = vadd.f32 0.0, %v6972
    %6974 = vmatmul.bf16.gmra.mxu0 %v6390
    %v6975 = vpop.f32.mrf.mxu0
    %v6976 = vadd.f32 0.0, %v6975
    %v6977 = vpop.f32.mrf.mxu0
    %v6978 = vadd.f32 0.0, %v6977
    %6979 = vmatmul.bf16.gmra.mxu0 %v6393
    %v6980 = vpop.f32.mrf.mxu0
    %v6981 = vadd.f32 0.0, %v6980
    %v6982 = vpop.f32.mrf.mxu0
    %v6983 = vadd.f32 0.0, %v6982
    %6984 = vmatmul.bf16.gmra.mxu0 %v6396
    %v6985 = vpop.f32.mrf.mxu0
    %v6986 = vadd.f32 0.0, %v6985
    %v6987 = vpop.f32.mrf.mxu0
    %v6988 = vadd.f32 0.0, %v6987
    %6989 = vmatmul.bf16.gmra.mxu0 %v6399
    %v6990 = vpop.f32.mrf.mxu0
    %v6991 = vadd.f32 0.0, %v6990
    %v6992 = vpop.f32.mrf.mxu0
    %v6993 = vadd.f32 0.0, %v6992
    %6994 = vmatmul.bf16.gmra.mxu0 %v6402
    %v6995 = vpop.f32.mrf.mxu0
    %v6996 = vadd.f32 0.0, %v6995
    %v6997 = vpop.f32.mrf.mxu0
    %v6998 = vadd.f32 0.0, %v6997
    %6999 = vmatmul.bf16.gmra.mxu0 %v6405
    %v7000 = vpop.f32.mrf.mxu0
    %v7001 = vadd.f32 0.0, %v7000
    %v7002 = vpop.f32.mrf.mxu0
    %v7003 = vadd.f32 0.0, %v7002
    %7004 = vmatmul.bf16.gmra.mxu0 %v6408
    %v7005 = vpop.f32.mrf.mxu0
    %v7006 = vadd.f32 0.0, %v7005
    %v7007 = vpop.f32.mrf.mxu0
    %v7008 = vadd.f32 0.0, %v7007
    %7009 = vmatmul.bf16.gmra.mxu0 %v6411
    %v7010 = vpop.f32.mrf.mxu0
    %v7011 = vadd.f32 0.0, %v7010
    %v7012 = vpop.f32.mrf.mxu0
    %v7013 = vadd.f32 0.0, %v7012
    %7014 = vmatmul.bf16.gmra.mxu0 %v6414
    %v7015 = vpop.f32.mrf.mxu0
    %v7016 = vadd.f32 0.0, %v7015
    %v7017 = vpop.f32.mrf.mxu0
    %v7018 = vadd.f32 0.0, %v7017
    %7019 = vmatmul.bf16.gmra.mxu0 %v6417
    %v7020 = vpop.f32.mrf.mxu0
    %v7021 = vadd.f32 0.0, %v7020
    %v7022 = vpop.f32.mrf.mxu0
    %v7023 = vadd.f32 0.0, %v7022
    %7024 = vmatmul.bf16.gmra.mxu0 %v6420
    %v7025 = vpop.f32.mrf.mxu0
    %v7026 = vadd.f32 0.0, %v7025
    %v7027 = vpop.f32.mrf.mxu0
    %v7028 = vadd.f32 0.0, %v7027
    %7029 = vmatmul.bf16.gmra.mxu0 %v6423
    %v7030 = vpop.f32.mrf.mxu0
    %v7031 = vadd.f32 0.0, %v7030
    %v7032 = vpop.f32.mrf.mxu0
    %v7033 = vadd.f32 0.0, %v7032
    %7034 = vmatmul.bf16.gmra.mxu0 %v6426
    %v7035 = vpop.f32.mrf.mxu0
    %v7036 = vadd.f32 0.0, %v7035
    %v7037 = vpop.f32.mrf.mxu0
    %v7038 = vadd.f32 0.0, %v7037
    %7039 = vmatmul.bf16.gmra.mxu0 %v6429
    %v7040 = vpop.f32.mrf.mxu0
    %v7041 = vadd.f32 0.0, %v7040
    %v7042 = vpop.f32.mrf.mxu0
    %v7043 = vadd.f32 0.0, %v7042
    %7044 = vmatmul.bf16.gmra.mxu0 %v6432
    %v7045 = vpop.f32.mrf.mxu0
    %v7046 = vadd.f32 0.0, %v7045
    %v7047 = vpop.f32.mrf.mxu0
    %v7048 = vadd.f32 0.0, %v7047
    %7049 = vmatmul.bf16.gmra.mxu0 %v6435
    %v7050 = vpop.f32.mrf.mxu0
    %v7051 = vadd.f32 0.0, %v7050
    %v7052 = vpop.f32.mrf.mxu0
    %v7053 = vadd.f32 0.0, %v7052
    %7054 = vmatmul.bf16.gmra.mxu0 %v6438
    %v7055 = vpop.f32.mrf.mxu0
    %v7056 = vadd.f32 0.0, %v7055
    %v7057 = vpop.f32.mrf.mxu0
    %v7058 = vadd.f32 0.0, %v7057
    %7059 = vmatmul.bf16.gmra.mxu0 %v6441
    %v7060 = vpop.f32.mrf.mxu0
    %v7061 = vadd.f32 0.0, %v7060
    %v7062 = vpop.f32.mrf.mxu0
    %v7063 = vadd.f32 0.0, %v7062
    %7064 = vmatmul.bf16.gmra.mxu0 %v6444
    %v7065 = vpop.f32.mrf.mxu0
    %v7066 = vadd.f32 0.0, %v7065
    %v7067 = vpop.f32.mrf.mxu0
    %v7068 = vadd.f32 0.0, %v7067
    %7069 = vmatmul.bf16.gmra.mxu0 %v6447
    %v7070 = vpop.f32.mrf.mxu0
    %v7071 = vadd.f32 0.0, %v7070
    %v7072 = vpop.f32.mrf.mxu0
    %v7073 = vadd.f32 0.0, %v7072
    %7074 = vmatmul.bf16.gmra.mxu0 %v6450
    %v7075 = vpop.f32.mrf.mxu0
    %v7076 = vadd.f32 0.0, %v7075
    %v7077 = vpop.f32.mrf.mxu0
    %v7078 = vadd.f32 0.0, %v7077
    %7079 = vmatmul.bf16.gmra.mxu0 %v6453
    %v7080 = vpop.f32.mrf.mxu0
    %v7081 = vadd.f32 0.0, %v7080
    %v7082 = vpop.f32.mrf.mxu0
    %v7083 = vadd.f32 0.0, %v7082
    %7084 = vmatmul.bf16.gmra.mxu0 %v6456
    %v7085 = vpop.f32.mrf.mxu0
    %v7086 = vadd.f32 0.0, %v7085
    %v7087 = vpop.f32.mrf.mxu0
    %v7088 = vadd.f32 0.0, %v7087
    %7089 = vmatmul.bf16.gmra.mxu0 %v6459
    %v7090 = vpop.f32.mrf.mxu0
    %v7091 = vadd.f32 0.0, %v7090
    %v7092 = vpop.f32.mrf.mxu0
    %v7093 = vadd.f32 0.0, %v7092
    %7094 = vmatmul.bf16.gmra.mxu0 %v6462
    %v7095 = vpop.f32.mrf.mxu0
    %v7096 = vadd.f32 0.0, %v7095
    %v7097 = vpop.f32.mrf.mxu0
    %v7098 = vadd.f32 0.0, %v7097
    %7099 = vmatmul.bf16.gmra.mxu0 %v6465
    %v7100 = vpop.f32.mrf.mxu0
    %v7101 = vadd.f32 0.0, %v7100
    %v7102 = vpop.f32.mrf.mxu0
    %v7103 = vadd.f32 0.0, %v7102
    %7104 = vmatmul.bf16.gmra.mxu0 %v6468
    %v7105 = vpop.f32.mrf.mxu0
    %v7106 = vadd.f32 0.0, %v7105
    %v7107 = vpop.f32.mrf.mxu0
    %v7108 = vadd.f32 0.0, %v7107
    %7109 = vmatmul.bf16.gmra.mxu0 %v6471
    %v7110 = vpop.f32.mrf.mxu0
    %v7111 = vadd.f32 0.0, %v7110
    %v7112 = vpop.f32.mrf.mxu0
    %v7113 = vadd.f32 0.0, %v7112
    %7114 = vmatmul.bf16.gmra.mxu0 %v6474
    %v7115 = vpop.f32.mrf.mxu0
    %v7116 = vadd.f32 0.0, %v7115
    %v7117 = vpop.f32.mrf.mxu0
    %v7118 = vadd.f32 0.0, %v7117
    %7119 = vmatmul.bf16.gmra.mxu0 %v6477
    %v7120 = vpop.f32.mrf.mxu0
    %v7121 = vadd.f32 0.0, %v7120
    %v7122 = vpop.f32.mrf.mxu0
    %v7123 = vadd.f32 0.0, %v7122
    %7124 = vmatmul.bf16.gmra.mxu0 %v6480
    %v7125 = vpop.f32.mrf.mxu0
    %v7126 = vadd.f32 0.0, %v7125
    %v7127 = vpop.f32.mrf.mxu0
    %v7128 = vadd.f32 0.0, %v7127
    %7129 = vmatmul.bf16.gmra.mxu0 %v6483
    %v7130 = vpop.f32.mrf.mxu0
    %v7131 = vadd.f32 0.0, %v7130
    %v7132 = vpop.f32.mrf.mxu0
    %v7133 = vadd.f32 0.0, %v7132
    %7134 = vmatmul.bf16.gmra.mxu0 %v6486
    %v7135 = vpop.f32.mrf.mxu0
    %v7136 = vadd.f32 0.0, %v7135
    %v7137 = vpop.f32.mrf.mxu0
    %v7138 = vadd.f32 0.0, %v7137
    %7139 = vdwg.mxu0
    %v7140 = vadd.f32 %v5072, %v6501
    %v7141 = vadd.f32 %v5074, %v6503
    %v7142 = vadd.f32 %v5077, %v6506
    %v7143 = vadd.f32 %v5079, %v6508
    %v7144 = vadd.f32 %v5082, %v6511
    %v7145 = vadd.f32 %v5084, %v6513
    %v7146 = vadd.f32 %v5087, %v6516
    %v7147 = vadd.f32 %v5089, %v6518
    %v7148 = vadd.f32 %v5092, %v6521
    %v7149 = vadd.f32 %v5094, %v6523
    %v7150 = vadd.f32 %v5097, %v6526
    %v7151 = vadd.f32 %v5099, %v6528
    %v7152 = vadd.f32 %v5102, %v6531
    %v7153 = vadd.f32 %v5104, %v6533
    %v7154 = vadd.f32 %v5107, %v6536
    %v7155 = vadd.f32 %v5109, %v6538
    %v7156 = vadd.f32 %v5112, %v6541
    %v7157 = vadd.f32 %v5114, %v6543
    %v7158 = vadd.f32 %v5117, %v6546
    %v7159 = vadd.f32 %v5119, %v6548
    %v7160 = vadd.f32 %v5122, %v6551
    %v7161 = vadd.f32 %v5124, %v6553
    %v7162 = vadd.f32 %v5127, %v6556
    %v7163 = vadd.f32 %v5129, %v6558
    %v7164 = vadd.f32 %v5132, %v6561
    %v7165 = vadd.f32 %v5134, %v6563
    %v7166 = vadd.f32 %v5137, %v6566
    %v7167 = vadd.f32 %v5139, %v6568
    %v7168 = vadd.f32 %v5142, %v6571
    %v7169 = vadd.f32 %v5144, %v6573
    %v7170 = vadd.f32 %v5147, %v6576
    %v7171 = vadd.f32 %v5149, %v6578
    %v7172 = vadd.f32 %v5152, %v6581
    %v7173 = vadd.f32 %v5154, %v6583
    %v7174 = vadd.f32 %v5157, %v6586
    %v7175 = vadd.f32 %v5159, %v6588
    %v7176 = vadd.f32 %v5162, %v6591
    %v7177 = vadd.f32 %v5164, %v6593
    %v7178 = vadd.f32 %v5167, %v6596
    %v7179 = vadd.f32 %v5169, %v6598
    %v7180 = vadd.f32 %v5172, %v6601
    %v7181 = vadd.f32 %v5174, %v6603
    %v7182 = vadd.f32 %v5177, %v6606
    %v7183 = vadd.f32 %v5179, %v6608
    %v7184 = vadd.f32 %v5182, %v6611
    %v7185 = vadd.f32 %v5184, %v6613
    %v7186 = vadd.f32 %v5187, %v6616
    %v7187 = vadd.f32 %v5189, %v6618
    %v7188 = vadd.f32 %v5192, %v6621
    %v7189 = vadd.f32 %v5194, %v6623
    %v7190 = vadd.f32 %v5197, %v6626
    %v7191 = vadd.f32 %v5199, %v6628
    %v7192 = vadd.f32 %v5202, %v6631
    %v7193 = vadd.f32 %v5204, %v6633
    %v7194 = vadd.f32 %v5207, %v6636
    %v7195 = vadd.f32 %v5209, %v6638
    %v7196 = vadd.f32 %v5212, %v6641
    %v7197 = vadd.f32 %v5214, %v6643
    %v7198 = vadd.f32 %v5217, %v6646
    %v7199 = vadd.f32 %v5219, %v6648
    %v7200 = vadd.f32 %v5222, %v6651
    %v7201 = vadd.f32 %v5224, %v6653
    %v7202 = vadd.f32 %v5227, %v6656
    %v7203 = vadd.f32 %v5229, %v6658
    %v7204 = vadd.f32 %v5232, %v6661
    %v7205 = vadd.f32 %v5234, %v6663
    %v7206 = vadd.f32 %v5237, %v6666
    %v7207 = vadd.f32 %v5239, %v6668
    %v7208 = vadd.f32 %v5242, %v6671
    %v7209 = vadd.f32 %v5244, %v6673
    %v7210 = vadd.f32 %v5247, %v6676
    %v7211 = vadd.f32 %v5249, %v6678
    %v7212 = vadd.f32 %v5252, %v6681
    %v7213 = vadd.f32 %v5254, %v6683
    %v7214 = vadd.f32 %v5257, %v6686
    %v7215 = vadd.f32 %v5259, %v6688
    %v7216 = vadd.f32 %v5262, %v6691
    %v7217 = vadd.f32 %v5264, %v6693
    %v7218 = vadd.f32 %v5267, %v6696
    %v7219 = vadd.f32 %v5269, %v6698
    %v7220 = vadd.f32 %v5272, %v6701
    %v7221 = vadd.f32 %v5274, %v6703
    %v7222 = vadd.f32 %v5277, %v6706
    %v7223 = vadd.f32 %v5279, %v6708
    %v7224 = vadd.f32 %v5282, %v6711
    %v7225 = vadd.f32 %v5284, %v6713
    %v7226 = vadd.f32 %v5287, %v6716
    %v7227 = vadd.f32 %v5289, %v6718
    %v7228 = vadd.f32 %v5292, %v6721
    %v7229 = vadd.f32 %v5294, %v6723
    %v7230 = vadd.f32 %v5297, %v6726
    %v7231 = vadd.f32 %v5299, %v6728
    %v7232 = vadd.f32 %v5302, %v6731
    %v7233 = vadd.f32 %v5304, %v6733
    %v7234 = vadd.f32 %v5307, %v6736
    %v7235 = vadd.f32 %v5309, %v6738
    %v7236 = vadd.f32 %v5312, %v6741
    %v7237 = vadd.f32 %v5314, %v6743
    %v7238 = vadd.f32 %v5317, %v6746
    %v7239 = vadd.f32 %v5319, %v6748
    %v7240 = vadd.f32 %v5322, %v6751
    %v7241 = vadd.f32 %v5324, %v6753
    %v7242 = vadd.f32 %v5327, %v6756
    %v7243 = vadd.f32 %v5329, %v6758
    %v7244 = vadd.f32 %v5332, %v6761
    %v7245 = vadd.f32 %v5334, %v6763
    %v7246 = vadd.f32 %v5337, %v6766
    %v7247 = vadd.f32 %v5339, %v6768
    %v7248 = vadd.f32 %v5342, %v6771
    %v7249 = vadd.f32 %v5344, %v6773
    %v7250 = vadd.f32 %v5347, %v6776
    %v7251 = vadd.f32 %v5349, %v6778
    %v7252 = vadd.f32 %v5352, %v6781
    %v7253 = vadd.f32 %v5354, %v6783
    %v7254 = vadd.f32 %v5357, %v6786
    %v7255 = vadd.f32 %v5359, %v6788
    %v7256 = vadd.f32 %v5362, %v6791
    %v7257 = vadd.f32 %v5364, %v6793
    %v7258 = vadd.f32 %v5367, %v6796
    %v7259 = vadd.f32 %v5369, %v6798
    %v7260 = vadd.f32 %v5372, %v6801
    %v7261 = vadd.f32 %v5374, %v6803
    %v7262 = vadd.f32 %v5377, %v6806
    %v7263 = vadd.f32 %v5379, %v6808
    %v7264 = vadd.f32 %v5382, %v6811
    %v7265 = vadd.f32 %v5384, %v6813
    %v7266 = vadd.f32 %v5387, %v6816
    %v7267 = vadd.f32 %v5389, %v6818
    %v7268 = vadd.f32 %v5392, %v6821
    %v7269 = vadd.f32 %v5394, %v6823
    %v7270 = vadd.f32 %v5397, %v6826
    %v7271 = vadd.f32 %v5399, %v6828
    %v7272 = vadd.f32 %v5402, %v6831
    %v7273 = vadd.f32 %v5404, %v6833
    %v7274 = vadd.f32 %v5407, %v6836
    %v7275 = vadd.f32 %v5409, %v6838
    %v7276 = vadd.f32 %v5412, %v6841
    %v7277 = vadd.f32 %v5414, %v6843
    %v7278 = vadd.f32 %v5417, %v6846
    %v7279 = vadd.f32 %v5419, %v6848
    %v7280 = vadd.f32 %v5422, %v6851
    %v7281 = vadd.f32 %v5424, %v6853
    %v7282 = vadd.f32 %v5427, %v6856
    %v7283 = vadd.f32 %v5429, %v6858
    %v7284 = vadd.f32 %v5432, %v6861
    %v7285 = vadd.f32 %v5434, %v6863
    %v7286 = vadd.f32 %v5437, %v6866
    %v7287 = vadd.f32 %v5439, %v6868
    %v7288 = vadd.f32 %v5442, %v6871
    %v7289 = vadd.f32 %v5444, %v6873
    %v7290 = vadd.f32 %v5447, %v6876
    %v7291 = vadd.f32 %v5449, %v6878
    %v7292 = vadd.f32 %v5452, %v6881
    %v7293 = vadd.f32 %v5454, %v6883
    %v7294 = vadd.f32 %v5457, %v6886
    %v7295 = vadd.f32 %v5459, %v6888
    %v7296 = vadd.f32 %v5462, %v6891
    %v7297 = vadd.f32 %v5464, %v6893
    %v7298 = vadd.f32 %v5467, %v6896
    %v7299 = vadd.f32 %v5469, %v6898
    %v7300 = vadd.f32 %v5472, %v6901
    %v7301 = vadd.f32 %v5474, %v6903
    %v7302 = vadd.f32 %v5477, %v6906
    %v7303 = vadd.f32 %v5479, %v6908
    %v7304 = vadd.f32 %v5482, %v6911
    %v7305 = vadd.f32 %v5484, %v6913
    %v7306 = vadd.f32 %v5487, %v6916
    %v7307 = vadd.f32 %v5489, %v6918
    %v7308 = vadd.f32 %v5492, %v6921
    %v7309 = vadd.f32 %v5494, %v6923
    %v7310 = vadd.f32 %v5497, %v6926
    %v7311 = vadd.f32 %v5499, %v6928
    %v7312 = vadd.f32 %v5502, %v6931
    %v7313 = vadd.f32 %v5504, %v6933
    %v7314 = vadd.f32 %v5507, %v6936
    %v7315 = vadd.f32 %v5509, %v6938
    %v7316 = vadd.f32 %v5512, %v6941
    %v7317 = vadd.f32 %v5514, %v6943
    %v7318 = vadd.f32 %v5517, %v6946
    %v7319 = vadd.f32 %v5519, %v6948
    %v7320 = vadd.f32 %v5522, %v6951
    %v7321 = vadd.f32 %v5524, %v6953
    %v7322 = vadd.f32 %v5527, %v6956
    %v7323 = vadd.f32 %v5529, %v6958
    %v7324 = vadd.f32 %v5532, %v6961
    %v7325 = vadd.f32 %v5534, %v6963
    %v7326 = vadd.f32 %v5537, %v6966
    %v7327 = vadd.f32 %v5539, %v6968
    %v7328 = vadd.f32 %v5542, %v6971
    %v7329 = vadd.f32 %v5544, %v6973
    %v7330 = vadd.f32 %v5547, %v6976
    %v7331 = vadd.f32 %v5549, %v6978
    %v7332 = vadd.f32 %v5552, %v6981
    %v7333 = vadd.f32 %v5554, %v6983
    %v7334 = vadd.f32 %v5557, %v6986
    %v7335 = vadd.f32 %v5559, %v6988
    %v7336 = vadd.f32 %v5562, %v6991
    %v7337 = vadd.f32 %v5564, %v6993
    %v7338 = vadd.f32 %v5567, %v6996
    %v7339 = vadd.f32 %v5569, %v6998
    %v7340 = vadd.f32 %v5572, %v7001
    %v7341 = vadd.f32 %v5574, %v7003
    %v7342 = vadd.f32 %v5577, %v7006
    %v7343 = vadd.f32 %v5579, %v7008
    %v7344 = vadd.f32 %v5582, %v7011
    %v7345 = vadd.f32 %v5584, %v7013
    %v7346 = vadd.f32 %v5587, %v7016
    %v7347 = vadd.f32 %v5589, %v7018
    %v7348 = vadd.f32 %v5592, %v7021
    %v7349 = vadd.f32 %v5594, %v7023
    %v7350 = vadd.f32 %v5597, %v7026
    %v7351 = vadd.f32 %v5599, %v7028
    %v7352 = vadd.f32 %v5602, %v7031
    %v7353 = vadd.f32 %v5604, %v7033
    %v7354 = vadd.f32 %v5607, %v7036
    %v7355 = vadd.f32 %v5609, %v7038
    %v7356 = vadd.f32 %v5612, %v7041
    %v7357 = vadd.f32 %v5614, %v7043
    %v7358 = vadd.f32 %v5617, %v7046
    %v7359 = vadd.f32 %v5619, %v7048
    %v7360 = vadd.f32 %v5622, %v7051
    %v7361 = vadd.f32 %v5624, %v7053
    %v7362 = vadd.f32 %v5627, %v7056
    %v7363 = vadd.f32 %v5629, %v7058
    %v7364 = vadd.f32 %v5632, %v7061
    %v7365 = vadd.f32 %v5634, %v7063
    %v7366 = vadd.f32 %v5637, %v7066
    %v7367 = vadd.f32 %v5639, %v7068
    %v7368 = vadd.f32 %v5642, %v7071
    %v7369 = vadd.f32 %v5644, %v7073
    %v7370 = vadd.f32 %v5647, %v7076
    %v7371 = vadd.f32 %v5649, %v7078
    %v7372 = vadd.f32 %v5652, %v7081
    %v7373 = vadd.f32 %v5654, %v7083
    %v7374 = vadd.f32 %v5657, %v7086
    %v7375 = vadd.f32 %v5659, %v7088
    %v7376 = vadd.f32 %v5662, %v7091
    %v7377 = vadd.f32 %v5664, %v7093
    %v7378 = vadd.f32 %v5667, %v7096
    %v7379 = vadd.f32 %v5669, %v7098
    %v7380 = vadd.f32 %v5672, %v7101
    %v7381 = vadd.f32 %v5674, %v7103
    %v7382 = vadd.f32 %v5677, %v7106
    %v7383 = vadd.f32 %v5679, %v7108
    %v7384 = vadd.f32 %v5682, %v7111
    %v7385 = vadd.f32 %v5684, %v7113
    %v7386 = vadd.f32 %v5687, %v7116
    %v7387 = vadd.f32 %v5689, %v7118
    %v7388 = vadd.f32 %v5692, %v7121
    %v7389 = vadd.f32 %v5694, %v7123
    %v7390 = vadd.f32 %v5697, %v7126
    %v7391 = vadd.f32 %v5699, %v7128
    %v7392 = vadd.f32 %v5702, %v7131
    %v7393 = vadd.f32 %v5704, %v7133
    %v7394 = vadd.f32 %v5707, %v7136
    %v7395 = vadd.f32 %v5709, %v7138
    %v7397 = vperm.slane %v299, 0
    %v7399 = vadd.f32 %v7140, %v7397
    %v7400 = vadd.f32 %v7141, %v7397
    %v7401 = vadd.f32 %v7142, %v7397
    %v7402 = vadd.f32 %v7143, %v7397
    %v7403 = vadd.f32 %v7144, %v7397
    %v7404 = vadd.f32 %v7145, %v7397
    %v7405 = vadd.f32 %v7146, %v7397
    %v7406 = vadd.f32 %v7147, %v7397
    %v7407 = vadd.f32 %v7148, %v7397
    %v7408 = vadd.f32 %v7149, %v7397
    %v7409 = vadd.f32 %v7150, %v7397
    %v7410 = vadd.f32 %v7151, %v7397
    %v7411 = vadd.f32 %v7152, %v7397
    %v7412 = vadd.f32 %v7153, %v7397
    %v7413 = vadd.f32 %v7154, %v7397
    %v7414 = vadd.f32 %v7155, %v7397
    %v7415 = vadd.f32 %v7156, %v7397
    %v7416 = vadd.f32 %v7157, %v7397
    %v7417 = vadd.f32 %v7158, %v7397
    %v7418 = vadd.f32 %v7159, %v7397
    %v7419 = vadd.f32 %v7160, %v7397
    %v7420 = vadd.f32 %v7161, %v7397
    %v7421 = vadd.f32 %v7162, %v7397
    %v7422 = vadd.f32 %v7163, %v7397
    %v7423 = vadd.f32 %v7164, %v7397
    %v7424 = vadd.f32 %v7165, %v7397
    %v7425 = vadd.f32 %v7166, %v7397
    %v7426 = vadd.f32 %v7167, %v7397
    %v7427 = vadd.f32 %v7168, %v7397
    %v7428 = vadd.f32 %v7169, %v7397
    %v7429 = vadd.f32 %v7170, %v7397
    %v7430 = vadd.f32 %v7171, %v7397
    %v7431 = vadd.f32 %v7172, %v7397
    %v7432 = vadd.f32 %v7173, %v7397
    %v7433 = vadd.f32 %v7174, %v7397
    %v7434 = vadd.f32 %v7175, %v7397
    %v7435 = vadd.f32 %v7176, %v7397
    %v7436 = vadd.f32 %v7177, %v7397
    %v7437 = vadd.f32 %v7178, %v7397
    %v7438 = vadd.f32 %v7179, %v7397
    %v7439 = vadd.f32 %v7180, %v7397
    %v7440 = vadd.f32 %v7181, %v7397
    %v7441 = vadd.f32 %v7182, %v7397
    %v7442 = vadd.f32 %v7183, %v7397
    %v7443 = vadd.f32 %v7184, %v7397
    %v7444 = vadd.f32 %v7185, %v7397
    %v7445 = vadd.f32 %v7186, %v7397
    %v7446 = vadd.f32 %v7187, %v7397
    %v7447 = vadd.f32 %v7188, %v7397
    %v7448 = vadd.f32 %v7189, %v7397
    %v7449 = vadd.f32 %v7190, %v7397
    %v7450 = vadd.f32 %v7191, %v7397
    %v7451 = vadd.f32 %v7192, %v7397
    %v7452 = vadd.f32 %v7193, %v7397
    %v7453 = vadd.f32 %v7194, %v7397
    %v7454 = vadd.f32 %v7195, %v7397
    %v7455 = vadd.f32 %v7196, %v7397
    %v7456 = vadd.f32 %v7197, %v7397
    %v7457 = vadd.f32 %v7198, %v7397
    %v7458 = vadd.f32 %v7199, %v7397
    %v7459 = vadd.f32 %v7200, %v7397
    %v7460 = vadd.f32 %v7201, %v7397
    %v7461 = vadd.f32 %v7202, %v7397
    %v7462 = vadd.f32 %v7203, %v7397
    %v7463 = vadd.f32 %v7204, %v7397
    %v7464 = vadd.f32 %v7205, %v7397
    %v7465 = vadd.f32 %v7206, %v7397
    %v7466 = vadd.f32 %v7207, %v7397
    %v7467 = vadd.f32 %v7208, %v7397
    %v7468 = vadd.f32 %v7209, %v7397
    %v7469 = vadd.f32 %v7210, %v7397
    %v7470 = vadd.f32 %v7211, %v7397
    %v7471 = vadd.f32 %v7212, %v7397
    %v7472 = vadd.f32 %v7213, %v7397
    %v7473 = vadd.f32 %v7214, %v7397
    %v7474 = vadd.f32 %v7215, %v7397
    %v7475 = vadd.f32 %v7216, %v7397
    %v7476 = vadd.f32 %v7217, %v7397
    %v7477 = vadd.f32 %v7218, %v7397
    %v7478 = vadd.f32 %v7219, %v7397
    %v7479 = vadd.f32 %v7220, %v7397
    %v7480 = vadd.f32 %v7221, %v7397
    %v7481 = vadd.f32 %v7222, %v7397
    %v7482 = vadd.f32 %v7223, %v7397
    %v7483 = vadd.f32 %v7224, %v7397
    %v7484 = vadd.f32 %v7225, %v7397
    %v7485 = vadd.f32 %v7226, %v7397
    %v7486 = vadd.f32 %v7227, %v7397
    %v7487 = vadd.f32 %v7228, %v7397
    %v7488 = vadd.f32 %v7229, %v7397
    %v7489 = vadd.f32 %v7230, %v7397
    %v7490 = vadd.f32 %v7231, %v7397
    %v7491 = vadd.f32 %v7232, %v7397
    %v7492 = vadd.f32 %v7233, %v7397
    %v7493 = vadd.f32 %v7234, %v7397
    %v7494 = vadd.f32 %v7235, %v7397
    %v7495 = vadd.f32 %v7236, %v7397
    %v7496 = vadd.f32 %v7237, %v7397
    %v7497 = vadd.f32 %v7238, %v7397
    %v7498 = vadd.f32 %v7239, %v7397
    %v7499 = vadd.f32 %v7240, %v7397
    %v7500 = vadd.f32 %v7241, %v7397
    %v7501 = vadd.f32 %v7242, %v7397
    %v7502 = vadd.f32 %v7243, %v7397
    %v7503 = vadd.f32 %v7244, %v7397
    %v7504 = vadd.f32 %v7245, %v7397
    %v7505 = vadd.f32 %v7246, %v7397
    %v7506 = vadd.f32 %v7247, %v7397
    %v7507 = vadd.f32 %v7248, %v7397
    %v7508 = vadd.f32 %v7249, %v7397
    %v7509 = vadd.f32 %v7250, %v7397
    %v7510 = vadd.f32 %v7251, %v7397
    %v7511 = vadd.f32 %v7252, %v7397
    %v7512 = vadd.f32 %v7253, %v7397
    %v7513 = vadd.f32 %v7254, %v7397
    %v7514 = vadd.f32 %v7255, %v7397
    %v7515 = vadd.f32 %v7256, %v7397
    %v7516 = vadd.f32 %v7257, %v7397
    %v7517 = vadd.f32 %v7258, %v7397
    %v7518 = vadd.f32 %v7259, %v7397
    %v7519 = vadd.f32 %v7260, %v7397
    %v7520 = vadd.f32 %v7261, %v7397
    %v7521 = vadd.f32 %v7262, %v7397
    %v7522 = vadd.f32 %v7263, %v7397
    %v7523 = vadd.f32 %v7264, %v7397
    %v7524 = vadd.f32 %v7265, %v7397
    %v7525 = vadd.f32 %v7266, %v7397
    %v7526 = vadd.f32 %v7267, %v7397
    %v7527 = vadd.f32 %v7268, %v7397
    %v7528 = vadd.f32 %v7269, %v7397
    %v7529 = vadd.f32 %v7270, %v7397
    %v7530 = vadd.f32 %v7271, %v7397
    %v7531 = vadd.f32 %v7272, %v7397
    %v7532 = vadd.f32 %v7273, %v7397
    %v7533 = vadd.f32 %v7274, %v7397
    %v7534 = vadd.f32 %v7275, %v7397
    %v7535 = vadd.f32 %v7276, %v7397
    %v7536 = vadd.f32 %v7277, %v7397
    %v7537 = vadd.f32 %v7278, %v7397
    %v7538 = vadd.f32 %v7279, %v7397
    %v7539 = vadd.f32 %v7280, %v7397
    %v7540 = vadd.f32 %v7281, %v7397
    %v7541 = vadd.f32 %v7282, %v7397
    %v7542 = vadd.f32 %v7283, %v7397
    %v7543 = vadd.f32 %v7284, %v7397
    %v7544 = vadd.f32 %v7285, %v7397
    %v7545 = vadd.f32 %v7286, %v7397
    %v7546 = vadd.f32 %v7287, %v7397
    %v7547 = vadd.f32 %v7288, %v7397
    %v7548 = vadd.f32 %v7289, %v7397
    %v7549 = vadd.f32 %v7290, %v7397
    %v7550 = vadd.f32 %v7291, %v7397
    %v7551 = vadd.f32 %v7292, %v7397
    %v7552 = vadd.f32 %v7293, %v7397
    %v7553 = vadd.f32 %v7294, %v7397
    %v7554 = vadd.f32 %v7295, %v7397
    %v7555 = vadd.f32 %v7296, %v7397
    %v7556 = vadd.f32 %v7297, %v7397
    %v7557 = vadd.f32 %v7298, %v7397
    %v7558 = vadd.f32 %v7299, %v7397
    %v7559 = vadd.f32 %v7300, %v7397
    %v7560 = vadd.f32 %v7301, %v7397
    %v7561 = vadd.f32 %v7302, %v7397
    %v7562 = vadd.f32 %v7303, %v7397
    %v7563 = vadd.f32 %v7304, %v7397
    %v7564 = vadd.f32 %v7305, %v7397
    %v7565 = vadd.f32 %v7306, %v7397
    %v7566 = vadd.f32 %v7307, %v7397
    %v7567 = vadd.f32 %v7308, %v7397
    %v7568 = vadd.f32 %v7309, %v7397
    %v7569 = vadd.f32 %v7310, %v7397
    %v7570 = vadd.f32 %v7311, %v7397
    %v7571 = vadd.f32 %v7312, %v7397
    %v7572 = vadd.f32 %v7313, %v7397
    %v7573 = vadd.f32 %v7314, %v7397
    %v7574 = vadd.f32 %v7315, %v7397
    %v7575 = vadd.f32 %v7316, %v7397
    %v7576 = vadd.f32 %v7317, %v7397
    %v7577 = vadd.f32 %v7318, %v7397
    %v7578 = vadd.f32 %v7319, %v7397
    %v7579 = vadd.f32 %v7320, %v7397
    %v7580 = vadd.f32 %v7321, %v7397
    %v7581 = vadd.f32 %v7322, %v7397
    %v7582 = vadd.f32 %v7323, %v7397
    %v7583 = vadd.f32 %v7324, %v7397
    %v7584 = vadd.f32 %v7325, %v7397
    %v7585 = vadd.f32 %v7326, %v7397
    %v7586 = vadd.f32 %v7327, %v7397
    %v7587 = vadd.f32 %v7328, %v7397
    %v7588 = vadd.f32 %v7329, %v7397
    %v7589 = vadd.f32 %v7330, %v7397
    %v7590 = vadd.f32 %v7331, %v7397
    %v7591 = vadd.f32 %v7332, %v7397
    %v7592 = vadd.f32 %v7333, %v7397
    %v7593 = vadd.f32 %v7334, %v7397
    %v7594 = vadd.f32 %v7335, %v7397
    %v7595 = vadd.f32 %v7336, %v7397
    %v7596 = vadd.f32 %v7337, %v7397
    %v7597 = vadd.f32 %v7338, %v7397
    %v7598 = vadd.f32 %v7339, %v7397
    %v7599 = vadd.f32 %v7340, %v7397
    %v7600 = vadd.f32 %v7341, %v7397
    %v7601 = vadd.f32 %v7342, %v7397
    %v7602 = vadd.f32 %v7343, %v7397
    %v7603 = vadd.f32 %v7344, %v7397
    %v7604 = vadd.f32 %v7345, %v7397
    %v7605 = vadd.f32 %v7346, %v7397
    %v7606 = vadd.f32 %v7347, %v7397
    %v7607 = vadd.f32 %v7348, %v7397
    %v7608 = vadd.f32 %v7349, %v7397
    %v7609 = vadd.f32 %v7350, %v7397
    %v7610 = vadd.f32 %v7351, %v7397
    %v7611 = vadd.f32 %v7352, %v7397
    %v7612 = vadd.f32 %v7353, %v7397
    %v7613 = vadd.f32 %v7354, %v7397
    %v7614 = vadd.f32 %v7355, %v7397
    %v7615 = vadd.f32 %v7356, %v7397
    %v7616 = vadd.f32 %v7357, %v7397
    %v7617 = vadd.f32 %v7358, %v7397
    %v7618 = vadd.f32 %v7359, %v7397
    %v7619 = vadd.f32 %v7360, %v7397
    %v7620 = vadd.f32 %v7361, %v7397
    %v7621 = vadd.f32 %v7362, %v7397
    %v7622 = vadd.f32 %v7363, %v7397
    %v7623 = vadd.f32 %v7364, %v7397
    %v7624 = vadd.f32 %v7365, %v7397
    %v7625 = vadd.f32 %v7366, %v7397
    %v7626 = vadd.f32 %v7367, %v7397
    %v7627 = vadd.f32 %v7368, %v7397
    %v7628 = vadd.f32 %v7369, %v7397
    %v7629 = vadd.f32 %v7370, %v7397
    %v7630 = vadd.f32 %v7371, %v7397
    %v7631 = vadd.f32 %v7372, %v7397
    %v7632 = vadd.f32 %v7373, %v7397
    %v7633 = vadd.f32 %v7374, %v7397
    %v7634 = vadd.f32 %v7375, %v7397
    %v7635 = vadd.f32 %v7376, %v7397
    %v7636 = vadd.f32 %v7377, %v7397
    %v7637 = vadd.f32 %v7378, %v7397
    %v7638 = vadd.f32 %v7379, %v7397
    %v7639 = vadd.f32 %v7380, %v7397
    %v7640 = vadd.f32 %v7381, %v7397
    %v7641 = vadd.f32 %v7382, %v7397
    %v7642 = vadd.f32 %v7383, %v7397
    %v7643 = vadd.f32 %v7384, %v7397
    %v7644 = vadd.f32 %v7385, %v7397
    %v7645 = vadd.f32 %v7386, %v7397
    %v7646 = vadd.f32 %v7387, %v7397
    %v7647 = vadd.f32 %v7388, %v7397
    %v7648 = vadd.f32 %v7389, %v7397
    %v7649 = vadd.f32 %v7390, %v7397
    %v7650 = vadd.f32 %v7391, %v7397
    %v7651 = vadd.f32 %v7392, %v7397
    %v7652 = vadd.f32 %v7393, %v7397
    %v7653 = vadd.f32 %v7394, %v7397
    %v7654 = vadd.f32 %v7395, %v7397
    %v7655 = vmax.f32 %v7399, 0.0
    %v7656 = vmax.f32 %v7400, 0.0
    %v7657 = vmax.f32 %v7401, 0.0
    %v7658 = vmax.f32 %v7402, 0.0
    %v7659 = vmax.f32 %v7403, 0.0
    %v7660 = vmax.f32 %v7404, 0.0
    %v7661 = vmax.f32 %v7405, 0.0
    %v7662 = vmax.f32 %v7406, 0.0
    %v7663 = vmax.f32 %v7407, 0.0
    %v7664 = vmax.f32 %v7408, 0.0
    %v7665 = vmax.f32 %v7409, 0.0
    %v7666 = vmax.f32 %v7410, 0.0
    %v7667 = vmax.f32 %v7411, 0.0
    %v7668 = vmax.f32 %v7412, 0.0
    %v7669 = vmax.f32 %v7413, 0.0
    %v7670 = vmax.f32 %v7414, 0.0
    %v7671 = vmax.f32 %v7415, 0.0
    %v7672 = vmax.f32 %v7416, 0.0
    %v7673 = vmax.f32 %v7417, 0.0
    %v7674 = vmax.f32 %v7418, 0.0
    %v7675 = vmax.f32 %v7419, 0.0
    %v7676 = vmax.f32 %v7420, 0.0
    %v7677 = vmax.f32 %v7421, 0.0
    %v7678 = vmax.f32 %v7422, 0.0
    %v7679 = vmax.f32 %v7423, 0.0
    %v7680 = vmax.f32 %v7424, 0.0
    %v7681 = vmax.f32 %v7425, 0.0
    %v7682 = vmax.f32 %v7426, 0.0
    %v7683 = vmax.f32 %v7427, 0.0
    %v7684 = vmax.f32 %v7428, 0.0
    %v7685 = vmax.f32 %v7429, 0.0
    %v7686 = vmax.f32 %v7430, 0.0
    %v7687 = vmax.f32 %v7431, 0.0
    %v7688 = vmax.f32 %v7432, 0.0
    %v7689 = vmax.f32 %v7433, 0.0
    %v7690 = vmax.f32 %v7434, 0.0
    %v7691 = vmax.f32 %v7435, 0.0
    %v7692 = vmax.f32 %v7436, 0.0
    %v7693 = vmax.f32 %v7437, 0.0
    %v7694 = vmax.f32 %v7438, 0.0
    %v7695 = vmax.f32 %v7439, 0.0
    %v7696 = vmax.f32 %v7440, 0.0
    %v7697 = vmax.f32 %v7441, 0.0
    %v7698 = vmax.f32 %v7442, 0.0
    %v7699 = vmax.f32 %v7443, 0.0
    %v7700 = vmax.f32 %v7444, 0.0
    %v7701 = vmax.f32 %v7445, 0.0
    %v7702 = vmax.f32 %v7446, 0.0
    %v7703 = vmax.f32 %v7447, 0.0
    %v7704 = vmax.f32 %v7448, 0.0
    %v7705 = vmax.f32 %v7449, 0.0
    %v7706 = vmax.f32 %v7450, 0.0
    %v7707 = vmax.f32 %v7451, 0.0
    %v7708 = vmax.f32 %v7452, 0.0
    %v7709 = vmax.f32 %v7453, 0.0
    %v7710 = vmax.f32 %v7454, 0.0
    %v7711 = vmax.f32 %v7455, 0.0
    %v7712 = vmax.f32 %v7456, 0.0
    %v7713 = vmax.f32 %v7457, 0.0
    %v7714 = vmax.f32 %v7458, 0.0
    %v7715 = vmax.f32 %v7459, 0.0
    %v7716 = vmax.f32 %v7460, 0.0
    %v7717 = vmax.f32 %v7461, 0.0
    %v7718 = vmax.f32 %v7462, 0.0
    %v7719 = vmax.f32 %v7463, 0.0
    %v7720 = vmax.f32 %v7464, 0.0
    %v7721 = vmax.f32 %v7465, 0.0
    %v7722 = vmax.f32 %v7466, 0.0
    %v7723 = vmax.f32 %v7467, 0.0
    %v7724 = vmax.f32 %v7468, 0.0
    %v7725 = vmax.f32 %v7469, 0.0
    %v7726 = vmax.f32 %v7470, 0.0
    %v7727 = vmax.f32 %v7471, 0.0
    %v7728 = vmax.f32 %v7472, 0.0
    %v7729 = vmax.f32 %v7473, 0.0
    %v7730 = vmax.f32 %v7474, 0.0
    %v7731 = vmax.f32 %v7475, 0.0
    %v7732 = vmax.f32 %v7476, 0.0
    %v7733 = vmax.f32 %v7477, 0.0
    %v7734 = vmax.f32 %v7478, 0.0
    %v7735 = vmax.f32 %v7479, 0.0
    %v7736 = vmax.f32 %v7480, 0.0
    %v7737 = vmax.f32 %v7481, 0.0
    %v7738 = vmax.f32 %v7482, 0.0
    %v7739 = vmax.f32 %v7483, 0.0
    %v7740 = vmax.f32 %v7484, 0.0
    %v7741 = vmax.f32 %v7485, 0.0
    %v7742 = vmax.f32 %v7486, 0.0
    %v7743 = vmax.f32 %v7487, 0.0
    %v7744 = vmax.f32 %v7488, 0.0
    %v7745 = vmax.f32 %v7489, 0.0
    %v7746 = vmax.f32 %v7490, 0.0
    %v7747 = vmax.f32 %v7491, 0.0
    %v7748 = vmax.f32 %v7492, 0.0
    %v7749 = vmax.f32 %v7493, 0.0
    %v7750 = vmax.f32 %v7494, 0.0
    %v7751 = vmax.f32 %v7495, 0.0
    %v7752 = vmax.f32 %v7496, 0.0
    %v7753 = vmax.f32 %v7497, 0.0
    %v7754 = vmax.f32 %v7498, 0.0
    %v7755 = vmax.f32 %v7499, 0.0
    %v7756 = vmax.f32 %v7500, 0.0
    %v7757 = vmax.f32 %v7501, 0.0
    %v7758 = vmax.f32 %v7502, 0.0
    %v7759 = vmax.f32 %v7503, 0.0
    %v7760 = vmax.f32 %v7504, 0.0
    %v7761 = vmax.f32 %v7505, 0.0
    %v7762 = vmax.f32 %v7506, 0.0
    %v7763 = vmax.f32 %v7507, 0.0
    %v7764 = vmax.f32 %v7508, 0.0
    %v7765 = vmax.f32 %v7509, 0.0
    %v7766 = vmax.f32 %v7510, 0.0
    %v7767 = vmax.f32 %v7511, 0.0
    %v7768 = vmax.f32 %v7512, 0.0
    %v7769 = vmax.f32 %v7513, 0.0
    %v7770 = vmax.f32 %v7514, 0.0
    %v7771 = vmax.f32 %v7515, 0.0
    %v7772 = vmax.f32 %v7516, 0.0
    %v7773 = vmax.f32 %v7517, 0.0
    %v7774 = vmax.f32 %v7518, 0.0
    %v7775 = vmax.f32 %v7519, 0.0
    %v7776 = vmax.f32 %v7520, 0.0
    %v7777 = vmax.f32 %v7521, 0.0
    %v7778 = vmax.f32 %v7522, 0.0
    %v7779 = vmax.f32 %v7523, 0.0
    %v7780 = vmax.f32 %v7524, 0.0
    %v7781 = vmax.f32 %v7525, 0.0
    %v7782 = vmax.f32 %v7526, 0.0
    %v7783 = vmax.f32 %v7527, 0.0
    %v7784 = vmax.f32 %v7528, 0.0
    %v7785 = vmax.f32 %v7529, 0.0
    %v7786 = vmax.f32 %v7530, 0.0
    %v7787 = vmax.f32 %v7531, 0.0
    %v7788 = vmax.f32 %v7532, 0.0
    %v7789 = vmax.f32 %v7533, 0.0
    %v7790 = vmax.f32 %v7534, 0.0
    %v7791 = vmax.f32 %v7535, 0.0
    %v7792 = vmax.f32 %v7536, 0.0
    %v7793 = vmax.f32 %v7537, 0.0
    %v7794 = vmax.f32 %v7538, 0.0
    %v7795 = vmax.f32 %v7539, 0.0
    %v7796 = vmax.f32 %v7540, 0.0
    %v7797 = vmax.f32 %v7541, 0.0
    %v7798 = vmax.f32 %v7542, 0.0
    %v7799 = vmax.f32 %v7543, 0.0
    %v7800 = vmax.f32 %v7544, 0.0
    %v7801 = vmax.f32 %v7545, 0.0
    %v7802 = vmax.f32 %v7546, 0.0
    %v7803 = vmax.f32 %v7547, 0.0
    %v7804 = vmax.f32 %v7548, 0.0
    %v7805 = vmax.f32 %v7549, 0.0
    %v7806 = vmax.f32 %v7550, 0.0
    %v7807 = vmax.f32 %v7551, 0.0
    %v7808 = vmax.f32 %v7552, 0.0
    %v7809 = vmax.f32 %v7553, 0.0
    %v7810 = vmax.f32 %v7554, 0.0
    %v7811 = vmax.f32 %v7555, 0.0
    %v7812 = vmax.f32 %v7556, 0.0
    %v7813 = vmax.f32 %v7557, 0.0
    %v7814 = vmax.f32 %v7558, 0.0
    %v7815 = vmax.f32 %v7559, 0.0
    %v7816 = vmax.f32 %v7560, 0.0
    %v7817 = vmax.f32 %v7561, 0.0
    %v7818 = vmax.f32 %v7562, 0.0
    %v7819 = vmax.f32 %v7563, 0.0
    %v7820 = vmax.f32 %v7564, 0.0
    %v7821 = vmax.f32 %v7565, 0.0
    %v7822 = vmax.f32 %v7566, 0.0
    %v7823 = vmax.f32 %v7567, 0.0
    %v7824 = vmax.f32 %v7568, 0.0
    %v7825 = vmax.f32 %v7569, 0.0
    %v7826 = vmax.f32 %v7570, 0.0
    %v7827 = vmax.f32 %v7571, 0.0
    %v7828 = vmax.f32 %v7572, 0.0
    %v7829 = vmax.f32 %v7573, 0.0
    %v7830 = vmax.f32 %v7574, 0.0
    %v7831 = vmax.f32 %v7575, 0.0
    %v7832 = vmax.f32 %v7576, 0.0
    %v7833 = vmax.f32 %v7577, 0.0
    %v7834 = vmax.f32 %v7578, 0.0
    %v7835 = vmax.f32 %v7579, 0.0
    %v7836 = vmax.f32 %v7580, 0.0
    %v7837 = vmax.f32 %v7581, 0.0
    %v7838 = vmax.f32 %v7582, 0.0
    %v7839 = vmax.f32 %v7583, 0.0
    %v7840 = vmax.f32 %v7584, 0.0
    %v7841 = vmax.f32 %v7585, 0.0
    %v7842 = vmax.f32 %v7586, 0.0
    %v7843 = vmax.f32 %v7587, 0.0
    %v7844 = vmax.f32 %v7588, 0.0
    %v7845 = vmax.f32 %v7589, 0.0
    %v7846 = vmax.f32 %v7590, 0.0
    %v7847 = vmax.f32 %v7591, 0.0
    %v7848 = vmax.f32 %v7592, 0.0
    %v7849 = vmax.f32 %v7593, 0.0
    %v7850 = vmax.f32 %v7594, 0.0
    %v7851 = vmax.f32 %v7595, 0.0
    %v7852 = vmax.f32 %v7596, 0.0
    %v7853 = vmax.f32 %v7597, 0.0
    %v7854 = vmax.f32 %v7598, 0.0
    %v7855 = vmax.f32 %v7599, 0.0
    %v7856 = vmax.f32 %v7600, 0.0
    %v7857 = vmax.f32 %v7601, 0.0
    %v7858 = vmax.f32 %v7602, 0.0
    %v7859 = vmax.f32 %v7603, 0.0
    %v7860 = vmax.f32 %v7604, 0.0
    %v7861 = vmax.f32 %v7605, 0.0
    %v7862 = vmax.f32 %v7606, 0.0
    %v7863 = vmax.f32 %v7607, 0.0
    %v7864 = vmax.f32 %v7608, 0.0
    %v7865 = vmax.f32 %v7609, 0.0
    %v7866 = vmax.f32 %v7610, 0.0
    %v7867 = vmax.f32 %v7611, 0.0
    %v7868 = vmax.f32 %v7612, 0.0
    %v7869 = vmax.f32 %v7613, 0.0
    %v7870 = vmax.f32 %v7614, 0.0
    %v7871 = vmax.f32 %v7615, 0.0
    %v7872 = vmax.f32 %v7616, 0.0
    %v7873 = vmax.f32 %v7617, 0.0
    %v7874 = vmax.f32 %v7618, 0.0
    %v7875 = vmax.f32 %v7619, 0.0
    %v7876 = vmax.f32 %v7620, 0.0
    %v7877 = vmax.f32 %v7621, 0.0
    %v7878 = vmax.f32 %v7622, 0.0
    %v7879 = vmax.f32 %v7623, 0.0
    %v7880 = vmax.f32 %v7624, 0.0
    %v7881 = vmax.f32 %v7625, 0.0
    %v7882 = vmax.f32 %v7626, 0.0
    %v7883 = vmax.f32 %v7627, 0.0
    %v7884 = vmax.f32 %v7628, 0.0
    %v7885 = vmax.f32 %v7629, 0.0
    %v7886 = vmax.f32 %v7630, 0.0
    %v7887 = vmax.f32 %v7631, 0.0
    %v7888 = vmax.f32 %v7632, 0.0
    %v7889 = vmax.f32 %v7633, 0.0
    %v7890 = vmax.f32 %v7634, 0.0
    %v7891 = vmax.f32 %v7635, 0.0
    %v7892 = vmax.f32 %v7636, 0.0
    %v7893 = vmax.f32 %v7637, 0.0
    %v7894 = vmax.f32 %v7638, 0.0
    %v7895 = vmax.f32 %v7639, 0.0
    %v7896 = vmax.f32 %v7640, 0.0
    %v7897 = vmax.f32 %v7641, 0.0
    %v7898 = vmax.f32 %v7642, 0.0
    %v7899 = vmax.f32 %v7643, 0.0
    %v7900 = vmax.f32 %v7644, 0.0
    %v7901 = vmax.f32 %v7645, 0.0
    %v7902 = vmax.f32 %v7646, 0.0
    %v7903 = vmax.f32 %v7647, 0.0
    %v7904 = vmax.f32 %v7648, 0.0
    %v7905 = vmax.f32 %v7649, 0.0
    %v7906 = vmax.f32 %v7650, 0.0
    %v7907 = vmax.f32 %v7651, 0.0
    %v7908 = vmax.f32 %v7652, 0.0
    %v7909 = vmax.f32 %v7653, 0.0
    %v7910 = vmax.f32 %v7654, 0.0
    %vm7911 = vcmask 130048
    %v7912 = vsel %vm7911, %v7655, -inf
    %v7913 = vsel %vm7911, %v7656, -inf
    %v7914 = vmax.f32 %v7912, %v7913
    %v7915 = vsel %vm7911, %v7657, -inf
    %v7916 = vsel %vm7911, %v7658, -inf
    %v7917 = vmax.f32 %v7915, %v7916
    %v7918 = vsel %vm7911, %v7659, -inf
    %v7919 = vsel %vm7911, %v7660, -inf
    %v7920 = vmax.f32 %v7918, %v7919
    %v7921 = vsel %vm7911, %v7661, -inf
    %v7922 = vsel %vm7911, %v7662, -inf
    %v7923 = vmax.f32 %v7921, %v7922
    %v7924 = vsel %vm7911, %v7663, -inf
    %v7925 = vsel %vm7911, %v7664, -inf
    %v7926 = vmax.f32 %v7924, %v7925
    %v7927 = vsel %vm7911, %v7665, -inf
    %v7928 = vsel %vm7911, %v7666, -inf
    %v7929 = vmax.f32 %v7927, %v7928
    %v7930 = vsel %vm7911, %v7667, -inf
    %v7931 = vsel %vm7911, %v7668, -inf
    %v7932 = vmax.f32 %v7930, %v7931
    %v7933 = vsel %vm7911, %v7669, -inf
    %v7934 = vsel %vm7911, %v7670, -inf
    %v7935 = vmax.f32 %v7933, %v7934
    %v7936 = vsel %vm7911, %v7671, -inf
    %v7937 = vsel %vm7911, %v7672, -inf
    %v7938 = vmax.f32 %v7936, %v7937
    %v7939 = vsel %vm7911, %v7673, -inf
    %v7940 = vsel %vm7911, %v7674, -inf
    %v7941 = vmax.f32 %v7939, %v7940
    %v7942 = vsel %vm7911, %v7675, -inf
    %v7943 = vsel %vm7911, %v7676, -inf
    %v7944 = vmax.f32 %v7942, %v7943
    %v7945 = vsel %vm7911, %v7677, -inf
    %v7946 = vsel %vm7911, %v7678, -inf
    %v7947 = vmax.f32 %v7945, %v7946
    %v7948 = vsel %vm7911, %v7679, -inf
    %v7949 = vsel %vm7911, %v7680, -inf
    %v7950 = vmax.f32 %v7948, %v7949
    %v7951 = vsel %vm7911, %v7681, -inf
    %v7952 = vsel %vm7911, %v7682, -inf
    %v7953 = vmax.f32 %v7951, %v7952
    %v7954 = vsel %vm7911, %v7683, -inf
    %v7955 = vsel %vm7911, %v7684, -inf
    %v7956 = vmax.f32 %v7954, %v7955
    %v7957 = vsel %vm7911, %v7685, -inf
    %v7958 = vsel %vm7911, %v7686, -inf
    %v7959 = vmax.f32 %v7957, %v7958
    %v7960 = vsel %vm7911, %v7687, -inf
    %v7961 = vsel %vm7911, %v7688, -inf
    %v7962 = vmax.f32 %v7960, %v7961
    %v7963 = vsel %vm7911, %v7689, -inf
    %v7964 = vsel %vm7911, %v7690, -inf
    %v7965 = vmax.f32 %v7963, %v7964
    %v7966 = vsel %vm7911, %v7691, -inf
    %v7967 = vsel %vm7911, %v7692, -inf
    %v7968 = vmax.f32 %v7966, %v7967
    %v7969 = vsel %vm7911, %v7693, -inf
    %v7970 = vsel %vm7911, %v7694, -inf
    %v7971 = vmax.f32 %v7969, %v7970
    %v7972 = vsel %vm7911, %v7695, -inf
    %v7973 = vsel %vm7911, %v7696, -inf
    %v7974 = vmax.f32 %v7972, %v7973
    %v7975 = vsel %vm7911, %v7697, -inf
    %v7976 = vsel %vm7911, %v7698, -inf
    %v7977 = vmax.f32 %v7975, %v7976
    %v7978 = vsel %vm7911, %v7699, -inf
    %v7979 = vsel %vm7911, %v7700, -inf
    %v7980 = vmax.f32 %v7978, %v7979
    %v7981 = vsel %vm7911, %v7701, -inf
    %v7982 = vsel %vm7911, %v7702, -inf
    %v7983 = vmax.f32 %v7981, %v7982
    %v7984 = vsel %vm7911, %v7703, -inf
    %v7985 = vsel %vm7911, %v7704, -inf
    %v7986 = vmax.f32 %v7984, %v7985
    %v7987 = vsel %vm7911, %v7705, -inf
    %v7988 = vsel %vm7911, %v7706, -inf
    %v7989 = vmax.f32 %v7987, %v7988
    %v7990 = vsel %vm7911, %v7707, -inf
    %v7991 = vsel %vm7911, %v7708, -inf
    %v7992 = vmax.f32 %v7990, %v7991
    %v7993 = vsel %vm7911, %v7709, -inf
    %v7994 = vsel %vm7911, %v7710, -inf
    %v7995 = vmax.f32 %v7993, %v7994
    %v7996 = vsel %vm7911, %v7711, -inf
    %v7997 = vsel %vm7911, %v7712, -inf
    %v7998 = vmax.f32 %v7996, %v7997
    %v7999 = vsel %vm7911, %v7713, -inf
    %v8000 = vsel %vm7911, %v7714, -inf
    %v8001 = vmax.f32 %v7999, %v8000
    %v8002 = vsel %vm7911, %v7715, -inf
    %v8003 = vsel %vm7911, %v7716, -inf
    %v8004 = vmax.f32 %v8002, %v8003
    %v8005 = vsel %vm7911, %v7717, -inf
    %v8006 = vsel %vm7911, %v7718, -inf
    %v8007 = vmax.f32 %v8005, %v8006
    %v8008 = vsel %vm7911, %v7719, -inf
    %v8009 = vsel %vm7911, %v7720, -inf
    %v8010 = vmax.f32 %v8008, %v8009
    %v8011 = vsel %vm7911, %v7721, -inf
    %v8012 = vsel %vm7911, %v7722, -inf
    %v8013 = vmax.f32 %v8011, %v8012
    %v8014 = vsel %vm7911, %v7723, -inf
    %v8015 = vsel %vm7911, %v7724, -inf
    %v8016 = vmax.f32 %v8014, %v8015
    %v8017 = vsel %vm7911, %v7725, -inf
    %v8018 = vsel %vm7911, %v7726, -inf
    %v8019 = vmax.f32 %v8017, %v8018
    %v8020 = vsel %vm7911, %v7727, -inf
    %v8021 = vsel %vm7911, %v7728, -inf
    %v8022 = vmax.f32 %v8020, %v8021
    %v8023 = vsel %vm7911, %v7729, -inf
    %v8024 = vsel %vm7911, %v7730, -inf
    %v8025 = vmax.f32 %v8023, %v8024
    %v8026 = vsel %vm7911, %v7731, -inf
    %v8027 = vsel %vm7911, %v7732, -inf
    %v8028 = vmax.f32 %v8026, %v8027
    %v8029 = vsel %vm7911, %v7733, -inf
    %v8030 = vsel %vm7911, %v7734, -inf
    %v8031 = vmax.f32 %v8029, %v8030
    %v8032 = vsel %vm7911, %v7735, -inf
    %v8033 = vsel %vm7911, %v7736, -inf
    %v8034 = vmax.f32 %v8032, %v8033
    %v8035 = vsel %vm7911, %v7737, -inf
    %v8036 = vsel %vm7911, %v7738, -inf
    %v8037 = vmax.f32 %v8035, %v8036
    %v8038 = vsel %vm7911, %v7739, -inf
    %v8039 = vsel %vm7911, %v7740, -inf
    %v8040 = vmax.f32 %v8038, %v8039
    %v8041 = vsel %vm7911, %v7741, -inf
    %v8042 = vsel %vm7911, %v7742, -inf
    %v8043 = vmax.f32 %v8041, %v8042
    %v8044 = vsel %vm7911, %v7743, -inf
    %v8045 = vsel %vm7911, %v7744, -inf
    %v8046 = vmax.f32 %v8044, %v8045
    %v8047 = vsel %vm7911, %v7745, -inf
    %v8048 = vsel %vm7911, %v7746, -inf
    %v8049 = vmax.f32 %v8047, %v8048
    %v8050 = vsel %vm7911, %v7747, -inf
    %v8051 = vsel %vm7911, %v7748, -inf
    %v8052 = vmax.f32 %v8050, %v8051
    %v8053 = vsel %vm7911, %v7749, -inf
    %v8054 = vsel %vm7911, %v7750, -inf
    %v8055 = vmax.f32 %v8053, %v8054
    %v8056 = vsel %vm7911, %v7751, -inf
    %v8057 = vsel %vm7911, %v7752, -inf
    %v8058 = vmax.f32 %v8056, %v8057
    %v8059 = vsel %vm7911, %v7753, -inf
    %v8060 = vsel %vm7911, %v7754, -inf
    %v8061 = vmax.f32 %v8059, %v8060
    %v8062 = vsel %vm7911, %v7755, -inf
    %v8063 = vsel %vm7911, %v7756, -inf
    %v8064 = vmax.f32 %v8062, %v8063
    %v8065 = vsel %vm7911, %v7757, -inf
    %v8066 = vsel %vm7911, %v7758, -inf
    %v8067 = vmax.f32 %v8065, %v8066
    %v8068 = vsel %vm7911, %v7759, -inf
    %v8069 = vsel %vm7911, %v7760, -inf
    %v8070 = vmax.f32 %v8068, %v8069
    %v8071 = vsel %vm7911, %v7761, -inf
    %v8072 = vsel %vm7911, %v7762, -inf
    %v8073 = vmax.f32 %v8071, %v8072
    %v8074 = vsel %vm7911, %v7763, -inf
    %v8075 = vsel %vm7911, %v7764, -inf
    %v8076 = vmax.f32 %v8074, %v8075
    %v8077 = vsel %vm7911, %v7765, -inf
    %v8078 = vsel %vm7911, %v7766, -inf
    %v8079 = vmax.f32 %v8077, %v8078
    %v8080 = vsel %vm7911, %v7767, -inf
    %v8081 = vsel %vm7911, %v7768, -inf
    %v8082 = vmax.f32 %v8080, %v8081
    %v8083 = vsel %vm7911, %v7769, -inf
    %v8084 = vsel %vm7911, %v7770, -inf
    %v8085 = vmax.f32 %v8083, %v8084
    %v8086 = vsel %vm7911, %v7771, -inf
    %v8087 = vsel %vm7911, %v7772, -inf
    %v8088 = vmax.f32 %v8086, %v8087
    %v8089 = vsel %vm7911, %v7773, -inf
    %v8090 = vsel %vm7911, %v7774, -inf
    %v8091 = vmax.f32 %v8089, %v8090
    %v8092 = vsel %vm7911, %v7775, -inf
    %v8093 = vsel %vm7911, %v7776, -inf
    %v8094 = vmax.f32 %v8092, %v8093
    %v8095 = vsel %vm7911, %v7777, -inf
    %v8096 = vsel %vm7911, %v7778, -inf
    %v8097 = vmax.f32 %v8095, %v8096
    %v8098 = vsel %vm7911, %v7779, -inf
    %v8099 = vsel %vm7911, %v7780, -inf
    %v8100 = vmax.f32 %v8098, %v8099
    %v8101 = vsel %vm7911, %v7781, -inf
    %v8102 = vsel %vm7911, %v7782, -inf
    %v8103 = vmax.f32 %v8101, %v8102
    %v8104 = vsel %vm7911, %v7783, -inf
    %v8105 = vsel %vm7911, %v7784, -inf
    %v8106 = vmax.f32 %v8104, %v8105
    %v8107 = vsel %vm7911, %v7785, -inf
    %v8108 = vsel %vm7911, %v7786, -inf
    %v8109 = vmax.f32 %v8107, %v8108
    %v8110 = vsel %vm7911, %v7787, -inf
    %v8111 = vsel %vm7911, %v7788, -inf
    %v8112 = vmax.f32 %v8110, %v8111
    %v8113 = vsel %vm7911, %v7789, -inf
    %v8114 = vsel %vm7911, %v7790, -inf
    %v8115 = vmax.f32 %v8113, %v8114
    %v8116 = vsel %vm7911, %v7791, -inf
    %v8117 = vsel %vm7911, %v7792, -inf
    %v8118 = vmax.f32 %v8116, %v8117
    %v8119 = vsel %vm7911, %v7793, -inf
    %v8120 = vsel %vm7911, %v7794, -inf
    %v8121 = vmax.f32 %v8119, %v8120
    %v8122 = vsel %vm7911, %v7795, -inf
    %v8123 = vsel %vm7911, %v7796, -inf
    %v8124 = vmax.f32 %v8122, %v8123
    %v8125 = vsel %vm7911, %v7797, -inf
    %v8126 = vsel %vm7911, %v7798, -inf
    %v8127 = vmax.f32 %v8125, %v8126
    %v8128 = vsel %vm7911, %v7799, -inf
    %v8129 = vsel %vm7911, %v7800, -inf
    %v8130 = vmax.f32 %v8128, %v8129
    %v8131 = vsel %vm7911, %v7801, -inf
    %v8132 = vsel %vm7911, %v7802, -inf
    %v8133 = vmax.f32 %v8131, %v8132
    %v8134 = vsel %vm7911, %v7803, -inf
    %v8135 = vsel %vm7911, %v7804, -inf
    %v8136 = vmax.f32 %v8134, %v8135
    %v8137 = vsel %vm7911, %v7805, -inf
    %v8138 = vsel %vm7911, %v7806, -inf
    %v8139 = vmax.f32 %v8137, %v8138
    %v8140 = vsel %vm7911, %v7807, -inf
    %v8141 = vsel %vm7911, %v7808, -inf
    %v8142 = vmax.f32 %v8140, %v8141
    %v8143 = vsel %vm7911, %v7809, -inf
    %v8144 = vsel %vm7911, %v7810, -inf
    %v8145 = vmax.f32 %v8143, %v8144
    %v8146 = vsel %vm7911, %v7811, -inf
    %v8147 = vsel %vm7911, %v7812, -inf
    %v8148 = vmax.f32 %v8146, %v8147
    %v8149 = vsel %vm7911, %v7813, -inf
    %v8150 = vsel %vm7911, %v7814, -inf
    %v8151 = vmax.f32 %v8149, %v8150
    %v8152 = vsel %vm7911, %v7815, -inf
    %v8153 = vsel %vm7911, %v7816, -inf
    %v8154 = vmax.f32 %v8152, %v8153
    %v8155 = vsel %vm7911, %v7817, -inf
    %v8156 = vsel %vm7911, %v7818, -inf
    %v8157 = vmax.f32 %v8155, %v8156
    %v8158 = vsel %vm7911, %v7819, -inf
    %v8159 = vsel %vm7911, %v7820, -inf
    %v8160 = vmax.f32 %v8158, %v8159
    %v8161 = vsel %vm7911, %v7821, -inf
    %v8162 = vsel %vm7911, %v7822, -inf
    %v8163 = vmax.f32 %v8161, %v8162
    %v8164 = vsel %vm7911, %v7823, -inf
    %v8165 = vsel %vm7911, %v7824, -inf
    %v8166 = vmax.f32 %v8164, %v8165
    %v8167 = vsel %vm7911, %v7825, -inf
    %v8168 = vsel %vm7911, %v7826, -inf
    %v8169 = vmax.f32 %v8167, %v8168
    %v8170 = vsel %vm7911, %v7827, -inf
    %v8171 = vsel %vm7911, %v7828, -inf
    %v8172 = vmax.f32 %v8170, %v8171
    %v8173 = vsel %vm7911, %v7829, -inf
    %v8174 = vsel %vm7911, %v7830, -inf
    %v8175 = vmax.f32 %v8173, %v8174
    %v8176 = vsel %vm7911, %v7831, -inf
    %v8177 = vsel %vm7911, %v7832, -inf
    %v8178 = vmax.f32 %v8176, %v8177
    %v8179 = vsel %vm7911, %v7833, -inf
    %v8180 = vsel %vm7911, %v7834, -inf
    %v8181 = vmax.f32 %v8179, %v8180
    %v8182 = vsel %vm7911, %v7835, -inf
    %v8183 = vsel %vm7911, %v7836, -inf
    %v8184 = vmax.f32 %v8182, %v8183
    %v8185 = vsel %vm7911, %v7837, -inf
    %v8186 = vsel %vm7911, %v7838, -inf
    %v8187 = vmax.f32 %v8185, %v8186
    %v8188 = vsel %vm7911, %v7839, -inf
    %v8189 = vsel %vm7911, %v7840, -inf
    %v8190 = vmax.f32 %v8188, %v8189
    %v8191 = vsel %vm7911, %v7841, -inf
    %v8192 = vsel %vm7911, %v7842, -inf
    %v8193 = vmax.f32 %v8191, %v8192
    %v8194 = vsel %vm7911, %v7843, -inf
    %v8195 = vsel %vm7911, %v7844, -inf
    %v8196 = vmax.f32 %v8194, %v8195
    %v8197 = vsel %vm7911, %v7845, -inf
    %v8198 = vsel %vm7911, %v7846, -inf
    %v8199 = vmax.f32 %v8197, %v8198
    %v8200 = vsel %vm7911, %v7847, -inf
    %v8201 = vsel %vm7911, %v7848, -inf
    %v8202 = vmax.f32 %v8200, %v8201
    %v8203 = vsel %vm7911, %v7849, -inf
    %v8204 = vsel %vm7911, %v7850, -inf
    %v8205 = vmax.f32 %v8203, %v8204
    %v8206 = vsel %vm7911, %v7851, -inf
    %v8207 = vsel %vm7911, %v7852, -inf
    %v8208 = vmax.f32 %v8206, %v8207
    %v8209 = vsel %vm7911, %v7853, -inf
    %v8210 = vsel %vm7911, %v7854, -inf
    %v8211 = vmax.f32 %v8209, %v8210
    %v8212 = vsel %vm7911, %v7855, -inf
    %v8213 = vsel %vm7911, %v7856, -inf
    %v8214 = vmax.f32 %v8212, %v8213
    %v8215 = vsel %vm7911, %v7857, -inf
    %v8216 = vsel %vm7911, %v7858, -inf
    %v8217 = vmax.f32 %v8215, %v8216
    %v8218 = vsel %vm7911, %v7859, -inf
    %v8219 = vsel %vm7911, %v7860, -inf
    %v8220 = vmax.f32 %v8218, %v8219
    %v8221 = vsel %vm7911, %v7861, -inf
    %v8222 = vsel %vm7911, %v7862, -inf
    %v8223 = vmax.f32 %v8221, %v8222
    %v8224 = vsel %vm7911, %v7863, -inf
    %v8225 = vsel %vm7911, %v7864, -inf
    %v8226 = vmax.f32 %v8224, %v8225
    %v8227 = vsel %vm7911, %v7865, -inf
    %v8228 = vsel %vm7911, %v7866, -inf
    %v8229 = vmax.f32 %v8227, %v8228
    %v8230 = vsel %vm7911, %v7867, -inf
    %v8231 = vsel %vm7911, %v7868, -inf
    %v8232 = vmax.f32 %v8230, %v8231
    %v8233 = vsel %vm7911, %v7869, -inf
    %v8234 = vsel %vm7911, %v7870, -inf
    %v8235 = vmax.f32 %v8233, %v8234
    %v8236 = vsel %vm7911, %v7871, -inf
    %v8237 = vsel %vm7911, %v7872, -inf
    %v8238 = vmax.f32 %v8236, %v8237
    %v8239 = vsel %vm7911, %v7873, -inf
    %v8240 = vsel %vm7911, %v7874, -inf
    %v8241 = vmax.f32 %v8239, %v8240
    %v8242 = vsel %vm7911, %v7875, -inf
    %v8243 = vsel %vm7911, %v7876, -inf
    %v8244 = vmax.f32 %v8242, %v8243
    %v8245 = vsel %vm7911, %v7877, -inf
    %v8246 = vsel %vm7911, %v7878, -inf
    %v8247 = vmax.f32 %v8245, %v8246
    %v8248 = vsel %vm7911, %v7879, -inf
    %v8249 = vsel %vm7911, %v7880, -inf
    %v8250 = vmax.f32 %v8248, %v8249
    %v8251 = vsel %vm7911, %v7881, -inf
    %v8252 = vsel %vm7911, %v7882, -inf
    %v8253 = vmax.f32 %v8251, %v8252
    %v8254 = vsel %vm7911, %v7883, -inf
    %v8255 = vsel %vm7911, %v7884, -inf
    %v8256 = vmax.f32 %v8254, %v8255
    %v8257 = vsel %vm7911, %v7885, -inf
    %v8258 = vsel %vm7911, %v7886, -inf
    %v8259 = vmax.f32 %v8257, %v8258
    %v8260 = vsel %vm7911, %v7887, -inf
    %v8261 = vsel %vm7911, %v7888, -inf
    %v8262 = vmax.f32 %v8260, %v8261
    %v8263 = vsel %vm7911, %v7889, -inf
    %v8264 = vsel %vm7911, %v7890, -inf
    %v8265 = vmax.f32 %v8263, %v8264
    %v8266 = vsel %vm7911, %v7891, -inf
    %v8267 = vsel %vm7911, %v7892, -inf
    %v8268 = vmax.f32 %v8266, %v8267
    %v8269 = vsel %vm7911, %v7893, -inf
    %v8270 = vsel %vm7911, %v7894, -inf
    %v8271 = vmax.f32 %v8269, %v8270
    %v8272 = vsel %vm7911, %v7895, -inf
    %v8273 = vsel %vm7911, %v7896, -inf
    %v8274 = vmax.f32 %v8272, %v8273
    %v8275 = vsel %vm7911, %v7897, -inf
    %v8276 = vsel %vm7911, %v7898, -inf
    %v8277 = vmax.f32 %v8275, %v8276
    %v8278 = vsel %vm7911, %v7899, -inf
    %v8279 = vsel %vm7911, %v7900, -inf
    %v8280 = vmax.f32 %v8278, %v8279
    %v8281 = vsel %vm7911, %v7901, -inf
    %v8282 = vsel %vm7911, %v7902, -inf
    %v8283 = vmax.f32 %v8281, %v8282
    %v8284 = vsel %vm7911, %v7903, -inf
    %v8285 = vsel %vm7911, %v7904, -inf
    %v8286 = vmax.f32 %v8284, %v8285
    %v8287 = vsel %vm7911, %v7905, -inf
    %v8288 = vsel %vm7911, %v7906, -inf
    %v8289 = vmax.f32 %v8287, %v8288
    %v8290 = vsel %vm7911, %v7907, -inf
    %v8291 = vsel %vm7911, %v7908, -inf
    %v8292 = vmax.f32 %v8290, %v8291
    %v8293 = vsel %vm7911, %v7909, -inf
    %v8294 = vsel %vm7911, %v7910, -inf
    %v8295 = vmax.f32 %v8293, %v8294
    %v8296 = vsel %vm7911, %v7914, -inf
    %v8297 = vsel %vm7911, %v7938, -inf
    %v8298 = vmax.f32 %v8296, %v8297
    %v8299 = vsel %vm7911, %v7917, -inf
    %v8300 = vsel %vm7911, %v7941, -inf
    %v8301 = vmax.f32 %v8299, %v8300
    %v8302 = vsel %vm7911, %v7920, -inf
    %v8303 = vsel %vm7911, %v7944, -inf
    %v8304 = vmax.f32 %v8302, %v8303
    %v8305 = vsel %vm7911, %v7923, -inf
    %v8306 = vsel %vm7911, %v7947, -inf
    %v8307 = vmax.f32 %v8305, %v8306
    %v8308 = vsel %vm7911, %v7926, -inf
    %v8309 = vsel %vm7911, %v7950, -inf
    %v8310 = vmax.f32 %v8308, %v8309
    %v8311 = vsel %vm7911, %v7929, -inf
    %v8312 = vsel %vm7911, %v7953, -inf
    %v8313 = vmax.f32 %v8311, %v8312
    %v8314 = vsel %vm7911, %v7932, -inf
    %v8315 = vsel %vm7911, %v7956, -inf
    %v8316 = vmax.f32 %v8314, %v8315
    %v8317 = vsel %vm7911, %v7935, -inf
    %v8318 = vsel %vm7911, %v7959, -inf
    %v8319 = vmax.f32 %v8317, %v8318
    %v8320 = vsel %vm7911, %v7962, -inf
    %v8321 = vsel %vm7911, %v7986, -inf
    %v8322 = vmax.f32 %v8320, %v8321
    %v8323 = vsel %vm7911, %v7965, -inf
    %v8324 = vsel %vm7911, %v7989, -inf
    %v8325 = vmax.f32 %v8323, %v8324
    %v8326 = vsel %vm7911, %v7968, -inf
    %v8327 = vsel %vm7911, %v7992, -inf
    %v8328 = vmax.f32 %v8326, %v8327
    %v8329 = vsel %vm7911, %v7971, -inf
    %v8330 = vsel %vm7911, %v7995, -inf
    %v8331 = vmax.f32 %v8329, %v8330
    %v8332 = vsel %vm7911, %v7974, -inf
    %v8333 = vsel %vm7911, %v7998, -inf
    %v8334 = vmax.f32 %v8332, %v8333
    %v8335 = vsel %vm7911, %v7977, -inf
    %v8336 = vsel %vm7911, %v8001, -inf
    %v8337 = vmax.f32 %v8335, %v8336
    %v8338 = vsel %vm7911, %v7980, -inf
    %v8339 = vsel %vm7911, %v8004, -inf
    %v8340 = vmax.f32 %v8338, %v8339
    %v8341 = vsel %vm7911, %v7983, -inf
    %v8342 = vsel %vm7911, %v8007, -inf
    %v8343 = vmax.f32 %v8341, %v8342
    %v8344 = vsel %vm7911, %v8010, -inf
    %v8345 = vsel %vm7911, %v8034, -inf
    %v8346 = vmax.f32 %v8344, %v8345
    %v8347 = vsel %vm7911, %v8013, -inf
    %v8348 = vsel %vm7911, %v8037, -inf
    %v8349 = vmax.f32 %v8347, %v8348
    %v8350 = vsel %vm7911, %v8016, -inf
    %v8351 = vsel %vm7911, %v8040, -inf
    %v8352 = vmax.f32 %v8350, %v8351
    %v8353 = vsel %vm7911, %v8019, -inf
    %v8354 = vsel %vm7911, %v8043, -inf
    %v8355 = vmax.f32 %v8353, %v8354
    %v8356 = vsel %vm7911, %v8022, -inf
    %v8357 = vsel %vm7911, %v8046, -inf
    %v8358 = vmax.f32 %v8356, %v8357
    %v8359 = vsel %vm7911, %v8025, -inf
    %v8360 = vsel %vm7911, %v8049, -inf
    %v8361 = vmax.f32 %v8359, %v8360
    %v8362 = vsel %vm7911, %v8028, -inf
    %v8363 = vsel %vm7911, %v8052, -inf
    %v8364 = vmax.f32 %v8362, %v8363
    %v8365 = vsel %vm7911, %v8031, -inf
    %v8366 = vsel %vm7911, %v8055, -inf
    %v8367 = vmax.f32 %v8365, %v8366
    %v8368 = vsel %vm7911, %v8058, -inf
    %v8369 = vsel %vm7911, %v8082, -inf
    %v8370 = vmax.f32 %v8368, %v8369
    %v8371 = vsel %vm7911, %v8061, -inf
    %v8372 = vsel %vm7911, %v8085, -inf
    %v8373 = vmax.f32 %v8371, %v8372
    %v8374 = vsel %vm7911, %v8064, -inf
    %v8375 = vsel %vm7911, %v8088, -inf
    %v8376 = vmax.f32 %v8374, %v8375
    %v8377 = vsel %vm7911, %v8067, -inf
    %v8378 = vsel %vm7911, %v8091, -inf
    %v8379 = vmax.f32 %v8377, %v8378
    %v8380 = vsel %vm7911, %v8070, -inf
    %v8381 = vsel %vm7911, %v8094, -inf
    %v8382 = vmax.f32 %v8380, %v8381
    %v8383 = vsel %vm7911, %v8073, -inf
    %v8384 = vsel %vm7911, %v8097, -inf
    %v8385 = vmax.f32 %v8383, %v8384
    %v8386 = vsel %vm7911, %v8076, -inf
    %v8387 = vsel %vm7911, %v8100, -inf
    %v8388 = vmax.f32 %v8386, %v8387
    %v8389 = vsel %vm7911, %v8079, -inf
    %v8390 = vsel %vm7911, %v8103, -inf
    %v8391 = vmax.f32 %v8389, %v8390
    %v8392 = vsel %vm7911, %v8106, -inf
    %v8393 = vsel %vm7911, %v8130, -inf
    %v8394 = vmax.f32 %v8392, %v8393
    %v8395 = vsel %vm7911, %v8109, -inf
    %v8396 = vsel %vm7911, %v8133, -inf
    %v8397 = vmax.f32 %v8395, %v8396
    %v8398 = vsel %vm7911, %v8112, -inf
    %v8399 = vsel %vm7911, %v8136, -inf
    %v8400 = vmax.f32 %v8398, %v8399
    %v8401 = vsel %vm7911, %v8115, -inf
    %v8402 = vsel %vm7911, %v8139, -inf
    %v8403 = vmax.f32 %v8401, %v8402
    %v8404 = vsel %vm7911, %v8118, -inf
    %v8405 = vsel %vm7911, %v8142, -inf
    %v8406 = vmax.f32 %v8404, %v8405
    %v8407 = vsel %vm7911, %v8121, -inf
    %v8408 = vsel %vm7911, %v8145, -inf
    %v8409 = vmax.f32 %v8407, %v8408
    %v8410 = vsel %vm7911, %v8124, -inf
    %v8411 = vsel %vm7911, %v8148, -inf
    %v8412 = vmax.f32 %v8410, %v8411
    %v8413 = vsel %vm7911, %v8127, -inf
    %v8414 = vsel %vm7911, %v8151, -inf
    %v8415 = vmax.f32 %v8413, %v8414
    %v8416 = vsel %vm7911, %v8154, -inf
    %v8417 = vsel %vm7911, %v8178, -inf
    %v8418 = vmax.f32 %v8416, %v8417
    %v8419 = vsel %vm7911, %v8157, -inf
    %v8420 = vsel %vm7911, %v8181, -inf
    %v8421 = vmax.f32 %v8419, %v8420
    %v8422 = vsel %vm7911, %v8160, -inf
    %v8423 = vsel %vm7911, %v8184, -inf
    %v8424 = vmax.f32 %v8422, %v8423
    %v8425 = vsel %vm7911, %v8163, -inf
    %v8426 = vsel %vm7911, %v8187, -inf
    %v8427 = vmax.f32 %v8425, %v8426
    %v8428 = vsel %vm7911, %v8166, -inf
    %v8429 = vsel %vm7911, %v8190, -inf
    %v8430 = vmax.f32 %v8428, %v8429
    %v8431 = vsel %vm7911, %v8169, -inf
    %v8432 = vsel %vm7911, %v8193, -inf
    %v8433 = vmax.f32 %v8431, %v8432
    %v8434 = vsel %vm7911, %v8172, -inf
    %v8435 = vsel %vm7911, %v8196, -inf
    %v8436 = vmax.f32 %v8434, %v8435
    %v8437 = vsel %vm7911, %v8175, -inf
    %v8438 = vsel %vm7911, %v8199, -inf
    %v8439 = vmax.f32 %v8437, %v8438
    %v8440 = vsel %vm7911, %v8202, -inf
    %v8441 = vsel %vm7911, %v8226, -inf
    %v8442 = vmax.f32 %v8440, %v8441
    %v8443 = vsel %vm7911, %v8205, -inf
    %v8444 = vsel %vm7911, %v8229, -inf
    %v8445 = vmax.f32 %v8443, %v8444
    %v8446 = vsel %vm7911, %v8208, -inf
    %v8447 = vsel %vm7911, %v8232, -inf
    %v8448 = vmax.f32 %v8446, %v8447
    %v8449 = vsel %vm7911, %v8211, -inf
    %v8450 = vsel %vm7911, %v8235, -inf
    %v8451 = vmax.f32 %v8449, %v8450
    %v8452 = vsel %vm7911, %v8214, -inf
    %v8453 = vsel %vm7911, %v8238, -inf
    %v8454 = vmax.f32 %v8452, %v8453
    %v8455 = vsel %vm7911, %v8217, -inf
    %v8456 = vsel %vm7911, %v8241, -inf
    %v8457 = vmax.f32 %v8455, %v8456
    %v8458 = vsel %vm7911, %v8220, -inf
    %v8459 = vsel %vm7911, %v8244, -inf
    %v8460 = vmax.f32 %v8458, %v8459
    %v8461 = vsel %vm7911, %v8223, -inf
    %v8462 = vsel %vm7911, %v8247, -inf
    %v8463 = vmax.f32 %v8461, %v8462
    %v8464 = vsel %vm7911, %v8250, -inf
    %v8465 = vsel %vm7911, %v8274, -inf
    %v8466 = vmax.f32 %v8464, %v8465
    %v8467 = vsel %vm7911, %v8253, -inf
    %v8468 = vsel %vm7911, %v8277, -inf
    %v8469 = vmax.f32 %v8467, %v8468
    %v8470 = vsel %vm7911, %v8256, -inf
    %v8471 = vsel %vm7911, %v8280, -inf
    %v8472 = vmax.f32 %v8470, %v8471
    %v8473 = vsel %vm7911, %v8259, -inf
    %v8474 = vsel %vm7911, %v8283, -inf
    %v8475 = vmax.f32 %v8473, %v8474
    %v8476 = vsel %vm7911, %v8262, -inf
    %v8477 = vsel %vm7911, %v8286, -inf
    %v8478 = vmax.f32 %v8476, %v8477
    %v8479 = vsel %vm7911, %v8265, -inf
    %v8480 = vsel %vm7911, %v8289, -inf
    %v8481 = vmax.f32 %v8479, %v8480
    %v8482 = vsel %vm7911, %v8268, -inf
    %v8483 = vsel %vm7911, %v8292, -inf
    %v8484 = vmax.f32 %v8482, %v8483
    %v8485 = vsel %vm7911, %v8271, -inf
    %v8486 = vsel %vm7911, %v8295, -inf
    %v8487 = vmax.f32 %v8485, %v8486
    %v8488 = vld [vmem:[%s4] sm:$0x1]
    %vm8489 = vcmask 392192
    %8490 = vst.msk [vmem:[#allocation3] sm:$0xff] %vm8489, 0.0
    %8491 = vst.msk [vmem:[#allocation3 + $0x8] sm:$0xff] %vm8489, 0.0
    %8492 = vst.msk [vmem:[#allocation3 + $0x10] sm:$0xff] %vm8489, 0.0
    %8493 = vst.msk [vmem:[#allocation3 + $0x18] sm:$0xff] %vm8489, 0.0
    %8494 = vst.msk [vmem:[#allocation3 + $0x20] sm:$0xff] %vm8489, 0.0
    %8495 = vst.msk [vmem:[#allocation3 + $0x28] sm:$0xff] %vm8489, 0.0
    %8496 = vst.msk [vmem:[#allocation3 + $0x30] sm:$0xff] %vm8489, 0.0
    %8497 = vst.msk [vmem:[#allocation3 + $0x38] sm:$0xff] %vm8489, 0.0
    %s8498 = scalar_lea.vmem [#allocation3], 576
    %8499 = vst.msk [vmem:[%s8498] sm:$0xff] %vm8489, 0.0
    %8500 = vst.msk [vmem:[%s8498 + $0x8] sm:$0xff] %vm8489, 0.0
    %8501 = vst.msk [vmem:[%s8498 + $0x10] sm:$0xff] %vm8489, 0.0
    %8502 = vst.msk [vmem:[%s8498 + $0x18] sm:$0xff] %vm8489, 0.0
    %8503 = vst.msk [vmem:[%s8498 + $0x20] sm:$0xff] %vm8489, 0.0
    %8504 = vst.msk [vmem:[%s8498 + $0x28] sm:$0xff] %vm8489, 0.0
    %8505 = vst.msk [vmem:[%s8498 + $0x30] sm:$0xff] %vm8489, 0.0
    %8506 = vst.msk [vmem:[%s8498 + $0x38] sm:$0xff] %vm8489, 0.0
    %s8507 = scalar_lea.vmem [#allocation3], 64
    %8508 = vst.msk [vmem:[%s8507] sm:$0xff] %vm7911, 0.0
    %8509 = vst.msk [vmem:[%s8507 + $0x40] sm:$0xff] %vm7911, 0.0
    %8510 = vst.msk [vmem:[%s8507 + $0x80] sm:$0xff] %vm7911, 0.0
    %8511 = vst.msk [vmem:[%s8507 + $0xc0] sm:$0xff] %vm7911, 0.0
    %8512 = vst.msk [vmem:[%s8507 + $0x100] sm:$0xff] %vm7911, 0.0
    %8513 = vst.msk [vmem:[%s8507 + $0x140] sm:$0xff] %vm7911, 0.0
    %8514 = vst.msk [vmem:[%s8507 + $0x180] sm:$0xff] %vm7911, 0.0
    %8515 = vst.msk [vmem:[%s8507 + $0x1c0] sm:$0xff] %vm7911, 0.0
    %s8516 = scalar_lea.vmem [#allocation3], 120
    %vm8517 = vcmask 392448
    %8518 = vst.msk [vmem:[%s8516] sm:$0xff] %vm8517, 0.0
    %8519 = vst.msk [vmem:[%s8516 + $0x40] sm:$0xff] %vm8517, 0.0
    %8520 = vst.msk [vmem:[%s8516 + $0x80] sm:$0xff] %vm8517, 0.0
    %8521 = vst.msk [vmem:[%s8516 + $0xc0] sm:$0xff] %vm8517, 0.0
    %8522 = vst.msk [vmem:[%s8516 + $0x100] sm:$0xff] %vm8517, 0.0
    %8523 = vst.msk [vmem:[%s8516 + $0x140] sm:$0xff] %vm8517, 0.0
    %8524 = vst.msk [vmem:[%s8516 + $0x180] sm:$0xff] %vm8517, 0.0
    %8525 = vst.msk [vmem:[%s8516 + $0x1c0] sm:$0xff] %vm8517, 0.0
    %s8526 = scalar_lea.vmem [#allocation3], 72
    %8527 = vst.msk [vmem:[%s8526] sm:$0xff] %vm7911, %v8298
    %8528 = vst.msk [vmem:[%s8526 + $0x8] sm:$0xff] %vm7911, %v8301
    %8529 = vst.msk [vmem:[%s8526 + $0x10] sm:$0xff] %vm7911, %v8304
    %8530 = vst.msk [vmem:[%s8526 + $0x18] sm:$0xff] %vm7911, %v8307
    %8531 = vst.msk [vmem:[%s8526 + $0x20] sm:$0xff] %vm7911, %v8310
    %8532 = vst.msk [vmem:[%s8526 + $0x28] sm:$0xff] %vm7911, %v8313
    %8533 = vst.msk [vmem:[%s8526 + $0x30] sm:$0xff] %vm7911, %v8316
    %8534 = vst.msk [vmem:[%s8526 + $0x40] sm:$0xff] %vm7911, %v8322
    %8535 = vst.msk [vmem:[%s8526 + $0x48] sm:$0xff] %vm7911, %v8325
    %8536 = vst.msk [vmem:[%s8526 + $0x50] sm:$0xff] %vm7911, %v8328
    %8537 = vst.msk [vmem:[%s8526 + $0x58] sm:$0xff] %vm7911, %v8331
    %8538 = vst.msk [vmem:[%s8526 + $0x60] sm:$0xff] %vm7911, %v8334
    %8539 = vst.msk [vmem:[%s8526 + $0x68] sm:$0xff] %vm7911, %v8337
    %8540 = vst.msk [vmem:[%s8526 + $0x70] sm:$0xff] %vm7911, %v8340
    %8541 = vst.msk [vmem:[%s8526 + $0x80] sm:$0xff] %vm7911, %v8346
    %8542 = vst.msk [vmem:[%s8526 + $0x88] sm:$0xff] %vm7911, %v8349
    %8543 = vst.msk [vmem:[%s8526 + $0x90] sm:$0xff] %vm7911, %v8352
    %8544 = vst.msk [vmem:[%s8526 + $0x98] sm:$0xff] %vm7911, %v8355
    %8545 = vst.msk [vmem:[%s8526 + $0xa0] sm:$0xff] %vm7911, %v8358
    %8546 = vst.msk [vmem:[%s8526 + $0xa8] sm:$0xff] %vm7911, %v8361
    %8547 = vst.msk [vmem:[%s8526 + $0xb0] sm:$0xff] %vm7911, %v8364
    %8548 = vst.msk [vmem:[%s8526 + $0xc0] sm:$0xff] %vm7911, %v8370
    %8549 = vst.msk [vmem:[%s8526 + $0xc8] sm:$0xff] %vm7911, %v8373
    %8550 = vst.msk [vmem:[%s8526 + $0xd0] sm:$0xff] %vm7911, %v8376
    %8551 = vst.msk [vmem:[%s8526 + $0xd8] sm:$0xff] %vm7911, %v8379
    %8552 = vst.msk [vmem:[%s8526 + $0xe0] sm:$0xff] %vm7911, %v8382
    %8553 = vst.msk [vmem:[%s8526 + $0xe8] sm:$0xff] %vm7911, %v8385
    %8554 = vst.msk [vmem:[%s8526 + $0xf0] sm:$0xff] %vm7911, %v8388
    %8555 = vst.msk [vmem:[%s8526 + $0x100] sm:$0xff] %vm7911, %v8394
    %8556 = vst.msk [vmem:[%s8526 + $0x108] sm:$0xff] %vm7911, %v8397
    %8557 = vst.msk [vmem:[%s8526 + $0x110] sm:$0xff] %vm7911, %v8400
    %8558 = vst.msk [vmem:[%s8526 + $0x118] sm:$0xff] %vm7911, %v8403
    %8559 = vst.msk [vmem:[%s8526 + $0x120] sm:$0xff] %vm7911, %v8406
    %8560 = vst.msk [vmem:[%s8526 + $0x128] sm:$0xff] %vm7911, %v8409
    %8561 = vst.msk [vmem:[%s8526 + $0x130] sm:$0xff] %vm7911, %v8412
    %8562 = vst.msk [vmem:[%s8526 + $0x140] sm:$0xff] %vm7911, %v8418
    %8563 = vst.msk [vmem:[%s8526 + $0x148] sm:$0xff] %vm7911, %v8421
    %8564 = vst.msk [vmem:[%s8526 + $0x150] sm:$0xff] %vm7911, %v8424
    %8565 = vst.msk [vmem:[%s8526 + $0x158] sm:$0xff] %vm7911, %v8427
    %8566 = vst.msk [vmem:[%s8526 + $0x160] sm:$0xff] %vm7911, %v8430
    %8567 = vst.msk [vmem:[%s8526 + $0x168] sm:$0xff] %vm7911, %v8433
    %8568 = vst.msk [vmem:[%s8526 + $0x170] sm:$0xff] %vm7911, %v8436
    %8569 = vst.msk [vmem:[%s8526 + $0x180] sm:$0xff] %vm7911, %v8442
    %8570 = vst.msk [vmem:[%s8526 + $0x188] sm:$0xff] %vm7911, %v8445
    %8571 = vst.msk [vmem:[%s8526 + $0x190] sm:$0xff] %vm7911, %v8448
    %8572 = vst.msk [vmem:[%s8526 + $0x198] sm:$0xff] %vm7911, %v8451
    %8573 = vst.msk [vmem:[%s8526 + $0x1a0] sm:$0xff] %vm7911, %v8454
    %8574 = vst.msk [vmem:[%s8526 + $0x1a8] sm:$0xff] %vm7911, %v8457
    %8575 = vst.msk [vmem:[%s8526 + $0x1b0] sm:$0xff] %vm7911, %v8460
    %8576 = vst.msk [vmem:[%s8526 + $0x1c0] sm:$0xff] %vm7911, %v8466
    %8577 = vst.msk [vmem:[%s8526 + $0x1c8] sm:$0xff] %vm7911, %v8469
    %8578 = vst.msk [vmem:[%s8526 + $0x1d0] sm:$0xff] %vm7911, %v8472
    %8579 = vst.msk [vmem:[%s8526 + $0x1d8] sm:$0xff] %vm7911, %v8475
    %8580 = vst.msk [vmem:[%s8526 + $0x1e0] sm:$0xff] %vm7911, %v8478
    %8581 = vst.msk [vmem:[%s8526 + $0x1e8] sm:$0xff] %vm7911, %v8481
    %8582 = vst.msk [vmem:[%s8526 + $0x1f0] sm:$0xff] %vm7911, %v8484
    %8647 = vrot.lane.b32.xlu0 %v8298, 16
    %v8648 = vpop.permute.xlu0 %8647
    %8649 = vrot.lane.b32.xlu0 %v8301, 16
    %v8650 = vpop.permute.xlu0 %8649
    %8651 = vrot.lane.b32.xlu0 %v8304, 16
    %v8652 = vpop.permute.xlu0 %8651
    %8653 = vrot.lane.b32.xlu0 %v8307, 16
    %v8654 = vpop.permute.xlu0 %8653
    %8655 = vrot.lane.b32.xlu0 %v8310, 16
    %v8656 = vpop.permute.xlu0 %8655
    %8657 = vrot.lane.b32.xlu0 %v8313, 16
    %v8658 = vpop.permute.xlu0 %8657
    %8659 = vrot.lane.b32.xlu0 %v8316, 16
    %v8660 = vpop.permute.xlu0 %8659
    %8661 = vrot.lane.b32.xlu0 %v8319, 16
    %v8662 = vpop.permute.xlu0 %8661
    %8663 = vrot.lane.b32.xlu0 %v8322, 16
    %v8664 = vpop.permute.xlu0 %8663
    %8665 = vrot.lane.b32.xlu0 %v8325, 16
    %v8666 = vpop.permute.xlu0 %8665
    %8667 = vrot.lane.b32.xlu0 %v8328, 16
    %v8668 = vpop.permute.xlu0 %8667
    %8669 = vrot.lane.b32.xlu0 %v8331, 16
    %v8670 = vpop.permute.xlu0 %8669
    %8671 = vrot.lane.b32.xlu0 %v8334, 16
    %v8672 = vpop.permute.xlu0 %8671
    %8673 = vrot.lane.b32.xlu0 %v8337, 16
    %v8674 = vpop.permute.xlu0 %8673
    %8675 = vrot.lane.b32.xlu0 %v8340, 16
    %v8676 = vpop.permute.xlu0 %8675
    %8677 = vrot.lane.b32.xlu0 %v8343, 16
    %v8678 = vpop.permute.xlu0 %8677
    %8679 = vrot.lane.b32.xlu0 %v8346, 16
    %v8680 = vpop.permute.xlu0 %8679
    %8681 = vrot.lane.b32.xlu0 %v8349, 16
    %v8682 = vpop.permute.xlu0 %8681
    %8683 = vrot.lane.b32.xlu0 %v8352, 16
    %v8684 = vpop.permute.xlu0 %8683
    %8685 = vrot.lane.b32.xlu0 %v8355, 16
    %v8686 = vpop.permute.xlu0 %8685
    %8687 = vrot.lane.b32.xlu0 %v8358, 16
    %v8688 = vpop.permute.xlu0 %8687
    %8689 = vrot.lane.b32.xlu0 %v8361, 16
    %v8690 = vpop.permute.xlu0 %8689
    %8691 = vrot.lane.b32.xlu0 %v8364, 16
    %v8692 = vpop.permute.xlu0 %8691
    %8693 = vrot.lane.b32.xlu0 %v8367, 16
    %v8694 = vpop.permute.xlu0 %8693
    %8695 = vrot.lane.b32.xlu0 %v8370, 16
    %v8696 = vpop.permute.xlu0 %8695
    %8697 = vrot.lane.b32.xlu0 %v8373, 16
    %v8698 = vpop.permute.xlu0 %8697
    %8699 = vrot.lane.b32.xlu0 %v8376, 16
    %v8700 = vpop.permute.xlu0 %8699
    %8701 = vrot.lane.b32.xlu0 %v8379, 16
    %v8702 = vpop.permute.xlu0 %8701
    %8703 = vrot.lane.b32.xlu0 %v8382, 16
    %v8704 = vpop.permute.xlu0 %8703
    %8705 = vrot.lane.b32.xlu0 %v8385, 16
    %v8706 = vpop.permute.xlu0 %8705
    %8707 = vrot.lane.b32.xlu0 %v8388, 16
    %v8708 = vpop.permute.xlu0 %8707
    %8709 = vrot.lane.b32.xlu0 %v8391, 16
    %v8710 = vpop.permute.xlu0 %8709
    %8711 = vrot.lane.b32.xlu0 %v8394, 16
    %v8712 = vpop.permute.xlu0 %8711
    %8713 = vrot.lane.b32.xlu0 %v8397, 16
    %v8714 = vpop.permute.xlu0 %8713
    %8715 = vrot.lane.b32.xlu0 %v8400, 16
    %v8716 = vpop.permute.xlu0 %8715
    %8717 = vrot.lane.b32.xlu0 %v8403, 16
    %v8718 = vpop.permute.xlu0 %8717
    %8719 = vrot.lane.b32.xlu0 %v8406, 16
    %v8720 = vpop.permute.xlu0 %8719
    %8721 = vrot.lane.b32.xlu0 %v8409, 16
    %v8722 = vpop.permute.xlu0 %8721
    %8723 = vrot.lane.b32.xlu0 %v8412, 16
    %v8724 = vpop.permute.xlu0 %8723
    %8725 = vrot.lane.b32.xlu0 %v8415, 16
    %v8726 = vpop.permute.xlu0 %8725
    %8727 = vrot.lane.b32.xlu0 %v8418, 16
    %v8728 = vpop.permute.xlu0 %8727
    %8729 = vrot.lane.b32.xlu0 %v8421, 16
    %v8730 = vpop.permute.xlu0 %8729
    %8731 = vrot.lane.b32.xlu0 %v8424, 16
    %v8732 = vpop.permute.xlu0 %8731
    %8733 = vrot.lane.b32.xlu0 %v8427, 16
    %v8734 = vpop.permute.xlu0 %8733
    %8735 = vrot.lane.b32.xlu0 %v8430, 16
    %v8736 = vpop.permute.xlu0 %8735
    %8737 = vrot.lane.b32.xlu0 %v8433, 16
    %v8738 = vpop.permute.xlu0 %8737
    %8739 = vrot.lane.b32.xlu0 %v8436, 16
    %v8740 = vpop.permute.xlu0 %8739
    %8741 = vrot.lane.b32.xlu0 %v8439, 16
    %v8742 = vpop.permute.xlu0 %8741
    %8743 = vrot.lane.b32.xlu0 %v8442, 16
    %v8744 = vpop.permute.xlu0 %8743
    %8745 = vrot.lane.b32.xlu0 %v8445, 16
    %v8746 = vpop.permute.xlu0 %8745
    %8747 = vrot.lane.b32.xlu0 %v8448, 16
    %v8748 = vpop.permute.xlu0 %8747
    %8749 = vrot.lane.b32.xlu0 %v8451, 16
    %v8750 = vpop.permute.xlu0 %8749
    %8751 = vrot.lane.b32.xlu0 %v8454, 16
    %v8752 = vpop.permute.xlu0 %8751
    %8753 = vrot.lane.b32.xlu0 %v8457, 16
    %v8754 = vpop.permute.xlu0 %8753
    %8755 = vrot.lane.b32.xlu0 %v8460, 16
    %v8756 = vpop.permute.xlu0 %8755
    %8757 = vrot.lane.b32.xlu0 %v8463, 16
    %v8758 = vpop.permute.xlu0 %8757
    %8759 = vrot.lane.b32.xlu0 %v8466, 16
    %v8760 = vpop.permute.xlu0 %8759
    %8761 = vrot.lane.b32.xlu0 %v8469, 16
    %v8762 = vpop.permute.xlu0 %8761
    %8763 = vrot.lane.b32.xlu0 %v8472, 16
    %v8764 = vpop.permute.xlu0 %8763
    %8765 = vrot.lane.b32.xlu0 %v8475, 16
    %v8766 = vpop.permute.xlu0 %8765
    %8767 = vrot.lane.b32.xlu0 %v8478, 16
    %v8768 = vpop.permute.xlu0 %8767
    %8769 = vrot.lane.b32.xlu0 %v8481, 16
    %v8770 = vpop.permute.xlu0 %8769
    %8771 = vrot.lane.b32.xlu0 %v8484, 16
    %v8772 = vpop.permute.xlu0 %8771
    %8773 = vrot.lane.b32.xlu0 %v8487, 16
    %v8774 = vpop.permute.xlu0 %8773
    %vm8839 = vcmask 261248
    %8840 = vst.msk [vmem:[%s8507] sm:$0xff] %vm8839, %v8648
    %8841 = vst.msk [vmem:[%s8507 + $0x8] sm:$0xff] %vm8839, %v8650
    %8842 = vst.msk [vmem:[%s8507 + $0x10] sm:$0xff] %vm8839, %v8652
    %8843 = vst.msk [vmem:[%s8507 + $0x18] sm:$0xff] %vm8839, %v8654
    %8844 = vst.msk [vmem:[%s8507 + $0x20] sm:$0xff] %vm8839, %v8656
    %8845 = vst.msk [vmem:[%s8507 + $0x28] sm:$0xff] %vm8839, %v8658
    %8846 = vst.msk [vmem:[%s8507 + $0x30] sm:$0xff] %vm8839, %v8660
    %8847 = vst.msk [vmem:[%s8507 + $0x38] sm:$0xff] %vm8839, %v8662
    %8848 = vst.msk [vmem:[%s8507 + $0x40] sm:$0xff] %vm8839, %v8664
    %8849 = vst.msk [vmem:[%s8507 + $0x48] sm:$0xff] %vm8839, %v8666
    %8850 = vst.msk [vmem:[%s8507 + $0x50] sm:$0xff] %vm8839, %v8668
    %8851 = vst.msk [vmem:[%s8507 + $0x58] sm:$0xff] %vm8839, %v8670
    %8852 = vst.msk [vmem:[%s8507 + $0x60] sm:$0xff] %vm8839, %v8672
    %8853 = vst.msk [vmem:[%s8507 + $0x68] sm:$0xff] %vm8839, %v8674
    %8854 = vst.msk [vmem:[%s8507 + $0x70] sm:$0xff] %vm8839, %v8676
    %8855 = vst.msk [vmem:[%s8507 + $0x78] sm:$0xff] %vm8839, %v8678
    %8856 = vst.msk [vmem:[%s8507 + $0x80] sm:$0xff] %vm8839, %v8680
    %8857 = vst.msk [vmem:[%s8507 + $0x88] sm:$0xff] %vm8839, %v8682
    %8858 = vst.msk [vmem:[%s8507 + $0x90] sm:$0xff] %vm8839, %v8684
    %8859 = vst.msk [vmem:[%s8507 + $0x98] sm:$0xff] %vm8839, %v8686
    %8860 = vst.msk [vmem:[%s8507 + $0xa0] sm:$0xff] %vm8839, %v8688
    %8861 = vst.msk [vmem:[%s8507 + $0xa8] sm:$0xff] %vm8839, %v8690
    %8862 = vst.msk [vmem:[%s8507 + $0xb0] sm:$0xff] %vm8839, %v8692
    %8863 = vst.msk [vmem:[%s8507 + $0xb8] sm:$0xff] %vm8839, %v8694
    %8864 = vst.msk [vmem:[%s8507 + $0xc0] sm:$0xff] %vm8839, %v8696
    %8865 = vst.msk [vmem:[%s8507 + $0xc8] sm:$0xff] %vm8839, %v8698
    %8866 = vst.msk [vmem:[%s8507 + $0xd0] sm:$0xff] %vm8839, %v8700
    %8867 = vst.msk [vmem:[%s8507 + $0xd8] sm:$0xff] %vm8839, %v8702
    %8868 = vst.msk [vmem:[%s8507 + $0xe0] sm:$0xff] %vm8839, %v8704
    %8869 = vst.msk [vmem:[%s8507 + $0xe8] sm:$0xff] %vm8839, %v8706
    %8870 = vst.msk [vmem:[%s8507 + $0xf0] sm:$0xff] %vm8839, %v8708
    %8871 = vst.msk [vmem:[%s8507 + $0xf8] sm:$0xff] %vm8839, %v8710
    %8872 = vst.msk [vmem:[%s8507 + $0x100] sm:$0xff] %vm8839, %v8712
    %8873 = vst.msk [vmem:[%s8507 + $0x108] sm:$0xff] %vm8839, %v8714
    %8874 = vst.msk [vmem:[%s8507 + $0x110] sm:$0xff] %vm8839, %v8716
    %8875 = vst.msk [vmem:[%s8507 + $0x118] sm:$0xff] %vm8839, %v8718
    %8876 = vst.msk [vmem:[%s8507 + $0x120] sm:$0xff] %vm8839, %v8720
    %8877 = vst.msk [vmem:[%s8507 + $0x128] sm:$0xff] %vm8839, %v8722
    %8878 = vst.msk [vmem:[%s8507 + $0x130] sm:$0xff] %vm8839, %v8724
    %8879 = vst.msk [vmem:[%s8507 + $0x138] sm:$0xff] %vm8839, %v8726
    %8880 = vst.msk [vmem:[%s8507 + $0x140] sm:$0xff] %vm8839, %v8728
    %8881 = vst.msk [vmem:[%s8507 + $0x148] sm:$0xff] %vm8839, %v8730
    %8882 = vst.msk [vmem:[%s8507 + $0x150] sm:$0xff] %vm8839, %v8732
    %8883 = vst.msk [vmem:[%s8507 + $0x158] sm:$0xff] %vm8839, %v8734
    %8884 = vst.msk [vmem:[%s8507 + $0x160] sm:$0xff] %vm8839, %v8736
    %8885 = vst.msk [vmem:[%s8507 + $0x168] sm:$0xff] %vm8839, %v8738
    %8886 = vst.msk [vmem:[%s8507 + $0x170] sm:$0xff] %vm8839, %v8740
    %8887 = vst.msk [vmem:[%s8507 + $0x178] sm:$0xff] %vm8839, %v8742
    %8888 = vst.msk [vmem:[%s8507 + $0x180] sm:$0xff] %vm8839, %v8744
    %8889 = vst.msk [vmem:[%s8507 + $0x188] sm:$0xff] %vm8839, %v8746
    %8890 = vst.msk [vmem:[%s8507 + $0x190] sm:$0xff] %vm8839, %v8748
    %8891 = vst.msk [vmem:[%s8507 + $0x198] sm:$0xff] %vm8839, %v8750
    %8892 = vst.msk [vmem:[%s8507 + $0x1a0] sm:$0xff] %vm8839, %v8752
    %8893 = vst.msk [vmem:[%s8507 + $0x1a8] sm:$0xff] %vm8839, %v8754
    %8894 = vst.msk [vmem:[%s8507 + $0x1b0] sm:$0xff] %vm8839, %v8756
    %8895 = vst.msk [vmem:[%s8507 + $0x1b8] sm:$0xff] %vm8839, %v8758
    %8896 = vst.msk [vmem:[%s8507 + $0x1c0] sm:$0xff] %vm8839, %v8760
    %8897 = vst.msk [vmem:[%s8507 + $0x1c8] sm:$0xff] %vm8839, %v8762
    %8898 = vst.msk [vmem:[%s8507 + $0x1d0] sm:$0xff] %vm8839, %v8764
    %8899 = vst.msk [vmem:[%s8507 + $0x1d8] sm:$0xff] %vm8839, %v8766
    %8900 = vst.msk [vmem:[%s8507 + $0x1e0] sm:$0xff] %vm8839, %v8768
    %8901 = vst.msk [vmem:[%s8507 + $0x1e8] sm:$0xff] %vm8839, %v8770
    %8902 = vst.msk [vmem:[%s8507 + $0x1f0] sm:$0xff] %vm8839, %v8772
    %8903 = vst.msk [vmem:[%s8507 + $0x1f8] sm:$0xff] %vm8839, %v8774
    %8904 = vrot.lane.b32.xlu0 %v8301, 32
    %v8905 = vpop.permute.xlu0 %8904
    %8906 = vrot.lane.b32.xlu0 %v8304, 32
    %v8907 = vpop.permute.xlu0 %8906
    %8908 = vrot.lane.b32.xlu0 %v8307, 32
    %v8909 = vpop.permute.xlu0 %8908
    %8910 = vrot.lane.b32.xlu0 %v8310, 32
    %v8911 = vpop.permute.xlu0 %8910
    %8912 = vrot.lane.b32.xlu0 %v8313, 32
    %v8913 = vpop.permute.xlu0 %8912
    %8914 = vrot.lane.b32.xlu0 %v8316, 32
    %v8915 = vpop.permute.xlu0 %8914
    %8916 = vrot.lane.b32.xlu0 %v8319, 32
    %v8917 = vpop.permute.xlu0 %8916
    %8918 = vrot.lane.b32.xlu0 %v8325, 32
    %v8919 = vpop.permute.xlu0 %8918
    %8920 = vrot.lane.b32.xlu0 %v8328, 32
    %v8921 = vpop.permute.xlu0 %8920
    %8922 = vrot.lane.b32.xlu0 %v8331, 32
    %v8923 = vpop.permute.xlu0 %8922
    %8924 = vrot.lane.b32.xlu0 %v8334, 32
    %v8925 = vpop.permute.xlu0 %8924
    %8926 = vrot.lane.b32.xlu0 %v8337, 32
    %v8927 = vpop.permute.xlu0 %8926
    %8928 = vrot.lane.b32.xlu0 %v8340, 32
    %v8929 = vpop.permute.xlu0 %8928
    %8930 = vrot.lane.b32.xlu0 %v8343, 32
    %v8931 = vpop.permute.xlu0 %8930
    %8932 = vrot.lane.b32.xlu0 %v8349, 32
    %v8933 = vpop.permute.xlu0 %8932
    %8934 = vrot.lane.b32.xlu0 %v8352, 32
    %v8935 = vpop.permute.xlu0 %8934
    %8936 = vrot.lane.b32.xlu0 %v8355, 32
    %v8937 = vpop.permute.xlu0 %8936
    %8938 = vrot.lane.b32.xlu0 %v8358, 32
    %v8939 = vpop.permute.xlu0 %8938
    %8940 = vrot.lane.b32.xlu0 %v8361, 32
    %v8941 = vpop.permute.xlu0 %8940
    %8942 = vrot.lane.b32.xlu0 %v8364, 32
    %v8943 = vpop.permute.xlu0 %8942
    %8944 = vrot.lane.b32.xlu0 %v8367, 32
    %v8945 = vpop.permute.xlu0 %8944
    %8946 = vrot.lane.b32.xlu0 %v8373, 32
    %v8947 = vpop.permute.xlu0 %8946
    %8948 = vrot.lane.b32.xlu0 %v8376, 32
    %v8949 = vpop.permute.xlu0 %8948
    %8950 = vrot.lane.b32.xlu0 %v8379, 32
    %v8951 = vpop.permute.xlu0 %8950
    %8952 = vrot.lane.b32.xlu0 %v8382, 32
    %v8953 = vpop.permute.xlu0 %8952
    %8954 = vrot.lane.b32.xlu0 %v8385, 32
    %v8955 = vpop.permute.xlu0 %8954
    %8956 = vrot.lane.b32.xlu0 %v8388, 32
    %v8957 = vpop.permute.xlu0 %8956
    %8958 = vrot.lane.b32.xlu0 %v8391, 32
    %v8959 = vpop.permute.xlu0 %8958
    %8960 = vrot.lane.b32.xlu0 %v8397, 32
    %v8961 = vpop.permute.xlu0 %8960
    %8962 = vrot.lane.b32.xlu0 %v8400, 32
    %v8963 = vpop.permute.xlu0 %8962
    %8964 = vrot.lane.b32.xlu0 %v8403, 32
    %v8965 = vpop.permute.xlu0 %8964
    %8966 = vrot.lane.b32.xlu0 %v8406, 32
    %v8967 = vpop.permute.xlu0 %8966
    %8968 = vrot.lane.b32.xlu0 %v8409, 32
    %v8969 = vpop.permute.xlu0 %8968
    %8970 = vrot.lane.b32.xlu0 %v8412, 32
    %v8971 = vpop.permute.xlu0 %8970
    %8972 = vrot.lane.b32.xlu0 %v8415, 32
    %v8973 = vpop.permute.xlu0 %8972
    %8974 = vrot.lane.b32.xlu0 %v8421, 32
    %v8975 = vpop.permute.xlu0 %8974
    %8976 = vrot.lane.b32.xlu0 %v8424, 32
    %v8977 = vpop.permute.xlu0 %8976
    %8978 = vrot.lane.b32.xlu0 %v8427, 32
    %v8979 = vpop.permute.xlu0 %8978
    %8980 = vrot.lane.b32.xlu0 %v8430, 32
    %v8981 = vpop.permute.xlu0 %8980
    %8982 = vrot.lane.b32.xlu0 %v8433, 32
    %v8983 = vpop.permute.xlu0 %8982
    %8984 = vrot.lane.b32.xlu0 %v8436, 32
    %v8985 = vpop.permute.xlu0 %8984
    %8986 = vrot.lane.b32.xlu0 %v8439, 32
    %v8987 = vpop.permute.xlu0 %8986
    %8988 = vrot.lane.b32.xlu0 %v8445, 32
    %v8989 = vpop.permute.xlu0 %8988
    %8990 = vrot.lane.b32.xlu0 %v8448, 32
    %v8991 = vpop.permute.xlu0 %8990
    %8992 = vrot.lane.b32.xlu0 %v8451, 32
    %v8993 = vpop.permute.xlu0 %8992
    %8994 = vrot.lane.b32.xlu0 %v8454, 32
    %v8995 = vpop.permute.xlu0 %8994
    %8996 = vrot.lane.b32.xlu0 %v8457, 32
    %v8997 = vpop.permute.xlu0 %8996
    %8998 = vrot.lane.b32.xlu0 %v8460, 32
    %v8999 = vpop.permute.xlu0 %8998
    %9000 = vrot.lane.b32.xlu0 %v8463, 32
    %v9001 = vpop.permute.xlu0 %9000
    %9002 = vrot.lane.b32.xlu0 %v8469, 32
    %v9003 = vpop.permute.xlu0 %9002
    %9004 = vrot.lane.b32.xlu0 %v8472, 32
    %v9005 = vpop.permute.xlu0 %9004
    %9006 = vrot.lane.b32.xlu0 %v8475, 32
    %v9007 = vpop.permute.xlu0 %9006
    %9008 = vrot.lane.b32.xlu0 %v8478, 32
    %v9009 = vpop.permute.xlu0 %9008
    %9010 = vrot.lane.b32.xlu0 %v8481, 32
    %v9011 = vpop.permute.xlu0 %9010
    %9012 = vrot.lane.b32.xlu0 %v8484, 32
    %v9013 = vpop.permute.xlu0 %9012
    %9014 = vrot.lane.b32.xlu0 %v8487, 32
    %v9015 = vpop.permute.xlu0 %9014
    %9072 = vst.msk [vmem:[%s8507] sm:$0xff] %vm8517, %v8905
    %9073 = vst.msk [vmem:[%s8507 + $0x8] sm:$0xff] %vm8517, %v8907
    %9074 = vst.msk [vmem:[%s8507 + $0x10] sm:$0xff] %vm8517, %v8909
    %9075 = vst.msk [vmem:[%s8507 + $0x18] sm:$0xff] %vm8517, %v8911
    %9076 = vst.msk [vmem:[%s8507 + $0x20] sm:$0xff] %vm8517, %v8913
    %9077 = vst.msk [vmem:[%s8507 + $0x28] sm:$0xff] %vm8517, %v8915
    %9078 = vst.msk [vmem:[%s8507 + $0x30] sm:$0xff] %vm8517, %v8917
    %9079 = vst.msk [vmem:[%s8507 + $0x40] sm:$0xff] %vm8517, %v8919
    %9080 = vst.msk [vmem:[%s8507 + $0x48] sm:$0xff] %vm8517, %v8921
    %9081 = vst.msk [vmem:[%s8507 + $0x50] sm:$0xff] %vm8517, %v8923
    %9082 = vst.msk [vmem:[%s8507 + $0x58] sm:$0xff] %vm8517, %v8925
    %9083 = vst.msk [vmem:[%s8507 + $0x60] sm:$0xff] %vm8517, %v8927
    %9084 = vst.msk [vmem:[%s8507 + $0x68] sm:$0xff] %vm8517, %v8929
    %9085 = vst.msk [vmem:[%s8507 + $0x70] sm:$0xff] %vm8517, %v8931
    %9086 = vst.msk [vmem:[%s8507 + $0x80] sm:$0xff] %vm8517, %v8933
    %9087 = vst.msk [vmem:[%s8507 + $0x88] sm:$0xff] %vm8517, %v8935
    %9088 = vst.msk [vmem:[%s8507 + $0x90] sm:$0xff] %vm8517, %v8937
    %9089 = vst.msk [vmem:[%s8507 + $0x98] sm:$0xff] %vm8517, %v8939
    %9090 = vst.msk [vmem:[%s8507 + $0xa0] sm:$0xff] %vm8517, %v8941
    %9091 = vst.msk [vmem:[%s8507 + $0xa8] sm:$0xff] %vm8517, %v8943
    %9092 = vst.msk [vmem:[%s8507 + $0xb0] sm:$0xff] %vm8517, %v8945
    %9093 = vst.msk [vmem:[%s8507 + $0xc0] sm:$0xff] %vm8517, %v8947
    %9094 = vst.msk [vmem:[%s8507 + $0xc8] sm:$0xff] %vm8517, %v8949
    %9095 = vst.msk [vmem:[%s8507 + $0xd0] sm:$0xff] %vm8517, %v8951
    %9096 = vst.msk [vmem:[%s8507 + $0xd8] sm:$0xff] %vm8517, %v8953
    %9097 = vst.msk [vmem:[%s8507 + $0xe0] sm:$0xff] %vm8517, %v8955
    %9098 = vst.msk [vmem:[%s8507 + $0xe8] sm:$0xff] %vm8517, %v8957
    %9099 = vst.msk [vmem:[%s8507 + $0xf0] sm:$0xff] %vm8517, %v8959
    %9100 = vst.msk [vmem:[%s8507 + $0x100] sm:$0xff] %vm8517, %v8961
    %9101 = vst.msk [vmem:[%s8507 + $0x108] sm:$0xff] %vm8517, %v8963
    %9102 = vst.msk [vmem:[%s8507 + $0x110] sm:$0xff] %vm8517, %v8965
    %9103 = vst.msk [vmem:[%s8507 + $0x118] sm:$0xff] %vm8517, %v8967
    %9104 = vst.msk [vmem:[%s8507 + $0x120] sm:$0xff] %vm8517, %v8969
    %9105 = vst.msk [vmem:[%s8507 + $0x128] sm:$0xff] %vm8517, %v8971
    %9106 = vst.msk [vmem:[%s8507 + $0x130] sm:$0xff] %vm8517, %v8973
    %9107 = vst.msk [vmem:[%s8507 + $0x140] sm:$0xff] %vm8517, %v8975
    %9108 = vst.msk [vmem:[%s8507 + $0x148] sm:$0xff] %vm8517, %v8977
    %9109 = vst.msk [vmem:[%s8507 + $0x150] sm:$0xff] %vm8517, %v8979
    %9110 = vst.msk [vmem:[%s8507 + $0x158] sm:$0xff] %vm8517, %v8981
    %9111 = vst.msk [vmem:[%s8507 + $0x160] sm:$0xff] %vm8517, %v8983
    %9112 = vst.msk [vmem:[%s8507 + $0x168] sm:$0xff] %vm8517, %v8985
    %9113 = vst.msk [vmem:[%s8507 + $0x170] sm:$0xff] %vm8517, %v8987
    %9114 = vst.msk [vmem:[%s8507 + $0x180] sm:$0xff] %vm8517, %v8989
    %9115 = vst.msk [vmem:[%s8507 + $0x188] sm:$0xff] %vm8517, %v8991
    %9116 = vst.msk [vmem:[%s8507 + $0x190] sm:$0xff] %vm8517, %v8993
    %9117 = vst.msk [vmem:[%s8507 + $0x198] sm:$0xff] %vm8517, %v8995
    %9118 = vst.msk [vmem:[%s8507 + $0x1a0] sm:$0xff] %vm8517, %v8997
    %9119 = vst.msk [vmem:[%s8507 + $0x1a8] sm:$0xff] %vm8517, %v8999
    %9120 = vst.msk [vmem:[%s8507 + $0x1b0] sm:$0xff] %vm8517, %v9001
    %9121 = vst.msk [vmem:[%s8507 + $0x1c0] sm:$0xff] %vm8517, %v9003
    %9122 = vst.msk [vmem:[%s8507 + $0x1c8] sm:$0xff] %vm8517, %v9005
    %9123 = vst.msk [vmem:[%s8507 + $0x1d0] sm:$0xff] %vm8517, %v9007
    %9124 = vst.msk [vmem:[%s8507 + $0x1d8] sm:$0xff] %vm8517, %v9009
    %9125 = vst.msk [vmem:[%s8507 + $0x1e0] sm:$0xff] %vm8517, %v9011
    %9126 = vst.msk [vmem:[%s8507 + $0x1e8] sm:$0xff] %vm8517, %v9013
    %9127 = vst.msk [vmem:[%s8507 + $0x1f0] sm:$0xff] %vm8517, %v9015
    %v9128 = vld [vmem:[#allocation3] sm:$0xff]
    %v9129 = vld [vmem:[#allocation3 + $0x8] sm:$0xff]
    %v9130 = vld [vmem:[#allocation3 + $0x10] sm:$0xff]
    %v9131 = vld [vmem:[#allocation3 + $0x18] sm:$0xff]
    %v9132 = vld [vmem:[#allocation3 + $0x20] sm:$0xff]
    %v9133 = vld [vmem:[#allocation3 + $0x28] sm:$0xff]
    %v9134 = vld [vmem:[#allocation3 + $0x30] sm:$0xff]
    %v9135 = vld [vmem:[#allocation3 + $0x38] sm:$0xff]
    %v9136 = vld [vmem:[#allocation3 + $0x40] sm:$0xff]
    %v9137 = vld [vmem:[#allocation3 + $0x48] sm:$0xff]
    %v9138 = vld [vmem:[#allocation3 + $0x50] sm:$0xff]
    %v9139 = vld [vmem:[#allocation3 + $0x58] sm:$0xff]
    %v9140 = vld [vmem:[#allocation3 + $0x60] sm:$0xff]
    %v9141 = vld [vmem:[#allocation3 + $0x68] sm:$0xff]
    %v9142 = vld [vmem:[#allocation3 + $0x70] sm:$0xff]
    %v9143 = vld [vmem:[#allocation3 + $0x78] sm:$0xff]
    %v9144 = vld [vmem:[#allocation3 + $0x80] sm:$0xff]
    %v9145 = vld [vmem:[#allocation3 + $0x88] sm:$0xff]
    %v9146 = vld [vmem:[#allocation3 + $0x90] sm:$0xff]
    %v9147 = vld [vmem:[#allocation3 + $0x98] sm:$0xff]
    %v9148 = vld [vmem:[#allocation3 + $0xa0] sm:$0xff]
    %v9149 = vld [vmem:[#allocation3 + $0xa8] sm:$0xff]
    %v9150 = vld [vmem:[#allocation3 + $0xb0] sm:$0xff]
    %v9151 = vld [vmem:[#allocation3 + $0xb8] sm:$0xff]
    %v9152 = vld [vmem:[#allocation3 + $0xc0] sm:$0xff]
    %v9153 = vld [vmem:[#allocation3 + $0xc8] sm:$0xff]
    %v9154 = vld [vmem:[#allocation3 + $0xd0] sm:$0xff]
    %v9155 = vld [vmem:[#allocation3 + $0xd8] sm:$0xff]
    %v9156 = vld [vmem:[#allocation3 + $0xe0] sm:$0xff]
    %v9157 = vld [vmem:[#allocation3 + $0xe8] sm:$0xff]
    %v9158 = vld [vmem:[#allocation3 + $0xf0] sm:$0xff]
    %v9159 = vld [vmem:[#allocation3 + $0xf8] sm:$0xff]
    %v9160 = vld [vmem:[#allocation3 + $0x100] sm:$0xff]
    %v9161 = vld [vmem:[#allocation3 + $0x108] sm:$0xff]
    %v9162 = vld [vmem:[#allocation3 + $0x110] sm:$0xff]
    %v9163 = vld [vmem:[#allocation3 + $0x118] sm:$0xff]
    %v9164 = vld [vmem:[#allocation3 + $0x120] sm:$0xff]
    %v9165 = vld [vmem:[#allocation3 + $0x128] sm:$0xff]
    %v9166 = vld [vmem:[#allocation3 + $0x130] sm:$0xff]
    %v9167 = vld [vmem:[#allocation3 + $0x138] sm:$0xff]
    %v9168 = vld [vmem:[#allocation3 + $0x140] sm:$0xff]
    %v9169 = vld [vmem:[#allocation3 + $0x148] sm:$0xff]
    %v9170 = vld [vmem:[#allocation3 + $0x150] sm:$0xff]
    %v9171 = vld [vmem:[#allocation3 + $0x158] sm:$0xff]
    %v9172 = vld [vmem:[#allocation3 + $0x160] sm:$0xff]
    %v9173 = vld [vmem:[#allocation3 + $0x168] sm:$0xff]
    %v9174 = vld [vmem:[#allocation3 + $0x170] sm:$0xff]
    %v9175 = vld [vmem:[#allocation3 + $0x178] sm:$0xff]
    %v9176 = vld [vmem:[#allocation3 + $0x180] sm:$0xff]
    %v9177 = vld [vmem:[#allocation3 + $0x188] sm:$0xff]
    %v9178 = vld [vmem:[#allocation3 + $0x190] sm:$0xff]
    %v9179 = vld [vmem:[#allocation3 + $0x198] sm:$0xff]
    %v9180 = vld [vmem:[#allocation3 + $0x1a0] sm:$0xff]
    %v9181 = vld [vmem:[#allocation3 + $0x1a8] sm:$0xff]
    %v9182 = vld [vmem:[#allocation3 + $0x1b0] sm:$0xff]
    %v9183 = vld [vmem:[#allocation3 + $0x1b8] sm:$0xff]
    %v9184 = vld [vmem:[#allocation3 + $0x1c0] sm:$0xff]
    %v9185 = vld [vmem:[#allocation3 + $0x1c8] sm:$0xff]
    %v9186 = vld [vmem:[#allocation3 + $0x1d0] sm:$0xff]
    %v9187 = vld [vmem:[#allocation3 + $0x1d8] sm:$0xff]
    %v9188 = vld [vmem:[#allocation3 + $0x1e0] sm:$0xff]
    %v9189 = vld [vmem:[#allocation3 + $0x1e8] sm:$0xff]
    %v9190 = vld [vmem:[#allocation3 + $0x1f0] sm:$0xff]
    %v9191 = vld [vmem:[#allocation3 + $0x1f8] sm:$0xff]
    %v9192 = vpack.c.bf16 %v9129, %v9128
    %v9193 = vpack.c.bf16 %v9131, %v9130
    %v9194 = vpack.c.bf16 %v9133, %v9132
    %v9195 = vpack.c.bf16 %v9135, %v9134
    %v9196 = vpack.c.bf16 %v9137, %v9136
    %v9197 = vpack.c.bf16 %v9139, %v9138
    %v9198 = vpack.c.bf16 %v9141, %v9140
    %v9199 = vpack.c.bf16 %v9143, %v9142
    %v9200 = vpack.c.bf16 %v9145, %v9144
    %v9201 = vpack.c.bf16 %v9147, %v9146
    %v9202 = vpack.c.bf16 %v9149, %v9148
    %v9203 = vpack.c.bf16 %v9151, %v9150
    %v9204 = vpack.c.bf16 %v9153, %v9152
    %v9205 = vpack.c.bf16 %v9155, %v9154
    %v9206 = vpack.c.bf16 %v9157, %v9156
    %v9207 = vpack.c.bf16 %v9159, %v9158
    %v9208 = vpack.c.bf16 %v9161, %v9160
    %v9209 = vpack.c.bf16 %v9163, %v9162
    %v9210 = vpack.c.bf16 %v9165, %v9164
    %v9211 = vpack.c.bf16 %v9167, %v9166
    %v9212 = vpack.c.bf16 %v9169, %v9168
    %v9213 = vpack.c.bf16 %v9171, %v9170
    %v9214 = vpack.c.bf16 %v9173, %v9172
    %v9215 = vpack.c.bf16 %v9175, %v9174
    %v9216 = vpack.c.bf16 %v9177, %v9176
    %v9217 = vpack.c.bf16 %v9179, %v9178
    %v9218 = vpack.c.bf16 %v9181, %v9180
    %v9219 = vpack.c.bf16 %v9183, %v9182
    %v9220 = vpack.c.bf16 %v9185, %v9184
    %v9221 = vpack.c.bf16 %v9187, %v9186
    %v9222 = vpack.c.bf16 %v9189, %v9188
    %v9223 = vpack.c.bf16 %v9191, %v9190
    %v9224 = vld [vmem:[%s3] sm:$0xf]
    %v9225 = vld [vmem:[%s3 + $0x4] sm:$0xf]
    %v9226 = vld [vmem:[%s3 + $0x8] sm:$0xf]
    %v9227 = vld [vmem:[%s3 + $0xc] sm:$0xf]
    %v9228 = vld [vmem:[%s3 + $0x10] sm:$0xf]
    %v9229 = vld [vmem:[%s3 + $0x14] sm:$0xf]
    %v9230 = vld [vmem:[%s8507] sm:$0xff]
    %v9231 = vld [vmem:[%s8507 + $0x8] sm:$0xff]
    %v9232 = vld [vmem:[%s8507 + $0x10] sm:$0xff]
    %v9233 = vld [vmem:[%s8507 + $0x18] sm:$0xff]
    %v9234 = vld [vmem:[%s8507 + $0x20] sm:$0xff]
    %v9235 = vld [vmem:[%s8507 + $0x28] sm:$0xff]
    %v9236 = vld [vmem:[%s8507 + $0x30] sm:$0xff]
    %v9237 = vld [vmem:[%s8507 + $0x38] sm:$0xff]
    %v9238 = vld [vmem:[%s8507 + $0x40] sm:$0xff]
    %v9239 = vld [vmem:[%s8507 + $0x48] sm:$0xff]
    %v9240 = vld [vmem:[%s8507 + $0x50] sm:$0xff]
    %v9241 = vld [vmem:[%s8507 + $0x58] sm:$0xff]
    %v9242 = vld [vmem:[%s8507 + $0x60] sm:$0xff]
    %v9243 = vld [vmem:[%s8507 + $0x68] sm:$0xff]
    %v9244 = vld [vmem:[%s8507 + $0x70] sm:$0xff]
    %v9245 = vld [vmem:[%s8507 + $0x78] sm:$0xff]
    %v9246 = vld [vmem:[%s8507 + $0x80] sm:$0xff]
    %v9247 = vld [vmem:[%s8507 + $0x88] sm:$0xff]
    %v9248 = vld [vmem:[%s8507 + $0x90] sm:$0xff]
    %v9249 = vld [vmem:[%s8507 + $0x98] sm:$0xff]
    %v9250 = vld [vmem:[%s8507 + $0xa0] sm:$0xff]
    %v9251 = vld [vmem:[%s8507 + $0xa8] sm:$0xff]
    %v9252 = vld [vmem:[%s8507 + $0xb0] sm:$0xff]
    %v9253 = vld [vmem:[%s8507 + $0xb8] sm:$0xff]
    %v9254 = vld [vmem:[%s8507 + $0xc0] sm:$0xff]
    %v9255 = vld [vmem:[%s8507 + $0xc8] sm:$0xff]
    %v9256 = vld [vmem:[%s8507 + $0xd0] sm:$0xff]
    %v9257 = vld [vmem:[%s8507 + $0xd8] sm:$0xff]
    %v9258 = vld [vmem:[%s8507 + $0xe0] sm:$0xff]
    %v9259 = vld [vmem:[%s8507 + $0xe8] sm:$0xff]
    %v9260 = vld [vmem:[%s8507 + $0xf0] sm:$0xff]
    %v9261 = vld [vmem:[%s8507 + $0xf8] sm:$0xff]
    %v9262 = vld [vmem:[%s8507 + $0x100] sm:$0xff]
    %v9263 = vld [vmem:[%s8507 + $0x108] sm:$0xff]
    %v9264 = vld [vmem:[%s8507 + $0x110] sm:$0xff]
    %v9265 = vld [vmem:[%s8507 + $0x118] sm:$0xff]
    %v9266 = vld [vmem:[%s8507 + $0x120] sm:$0xff]
    %v9267 = vld [vmem:[%s8507 + $0x128] sm:$0xff]
    %v9268 = vld [vmem:[%s8507 + $0x130] sm:$0xff]
    %v9269 = vld [vmem:[%s8507 + $0x138] sm:$0xff]
    %v9270 = vld [vmem:[%s8507 + $0x140] sm:$0xff]
    %v9271 = vld [vmem:[%s8507 + $0x148] sm:$0xff]
    %v9272 = vld [vmem:[%s8507 + $0x150] sm:$0xff]
    %v9273 = vld [vmem:[%s8507 + $0x158] sm:$0xff]
    %v9274 = vld [vmem:[%s8507 + $0x160] sm:$0xff]
    %v9275 = vld [vmem:[%s8507 + $0x168] sm:$0xff]
    %v9276 = vld [vmem:[%s8507 + $0x170] sm:$0xff]
    %v9277 = vld [vmem:[%s8507 + $0x178] sm:$0xff]
    %v9278 = vld [vmem:[%s8507 + $0x180] sm:$0xff]
    %v9279 = vld [vmem:[%s8507 + $0x188] sm:$0xff]
    %v9280 = vld [vmem:[%s8507 + $0x190] sm:$0xff]
    %v9281 = vld [vmem:[%s8507 + $0x198] sm:$0xff]
    %v9282 = vld [vmem:[%s8507 + $0x1a0] sm:$0xff]
    %v9283 = vld [vmem:[%s8507 + $0x1a8] sm:$0xff]
    %v9284 = vld [vmem:[%s8507 + $0x1b0] sm:$0xff]
    %v9285 = vld [vmem:[%s8507 + $0x1b8] sm:$0xff]
    %v9286 = vld [vmem:[%s8507 + $0x1c0] sm:$0xff]
    %v9287 = vld [vmem:[%s8507 + $0x1c8] sm:$0xff]
    %v9288 = vld [vmem:[%s8507 + $0x1d0] sm:$0xff]
    %v9289 = vld [vmem:[%s8507 + $0x1d8] sm:$0xff]
    %v9290 = vld [vmem:[%s8507 + $0x1e0] sm:$0xff]
    %v9291 = vld [vmem:[%s8507 + $0x1e8] sm:$0xff]
    %v9292 = vld [vmem:[%s8507 + $0x1f0] sm:$0xff]
    %v9293 = vld [vmem:[%s8507 + $0x1f8] sm:$0xff]
    %v9294 = vpack.c.bf16 %v9231, %v9230
    %v9295 = vpack.c.bf16 %v9233, %v9232
    %v9296 = vpack.c.bf16 %v9235, %v9234
    %v9297 = vpack.c.bf16 %v9237, %v9236
    %v9298 = vpack.c.bf16 %v9239, %v9238
    %v9299 = vpack.c.bf16 %v9241, %v9240
    %v9300 = vpack.c.bf16 %v9243, %v9242
    %v9301 = vpack.c.bf16 %v9245, %v9244
    %v9302 = vpack.c.bf16 %v9247, %v9246
    %v9303 = vpack.c.bf16 %v9249, %v9248
    %v9304 = vpack.c.bf16 %v9251, %v9250
    %v9305 = vpack.c.bf16 %v9253, %v9252
    %v9306 = vpack.c.bf16 %v9255, %v9254
    %v9307 = vpack.c.bf16 %v9257, %v9256
    %v9308 = vpack.c.bf16 %v9259, %v9258
    %v9309 = vpack.c.bf16 %v9261, %v9260
    %v9310 = vpack.c.bf16 %v9263, %v9262
    %v9311 = vpack.c.bf16 %v9265, %v9264
    %v9312 = vpack.c.bf16 %v9267, %v9266
    %v9313 = vpack.c.bf16 %v9269, %v9268
    %v9314 = vpack.c.bf16 %v9271, %v9270
    %v9315 = vpack.c.bf16 %v9273, %v9272
    %v9316 = vpack.c.bf16 %v9275, %v9274
    %v9317 = vpack.c.bf16 %v9277, %v9276
    %v9318 = vpack.c.bf16 %v9279, %v9278
    %v9319 = vpack.c.bf16 %v9281, %v9280
    %v9320 = vpack.c.bf16 %v9283, %v9282
    %v9321 = vpack.c.bf16 %v9285, %v9284
    %v9322 = vpack.c.bf16 %v9287, %v9286
    %v9323 = vpack.c.bf16 %v9289, %v9288
    %v9324 = vpack.c.bf16 %v9291, %v9290
    %v9325 = vpack.c.bf16 %v9293, %v9292
    %s9326 = scalar_lea.vmem %s3, 24
    %v9327 = vld [vmem:[%s9326] sm:$0xf]
    %v9328 = vld [vmem:[%s9326 + $0x4] sm:$0xf]
    %v9329 = vld [vmem:[%s9326 + $0x8] sm:$0xf]
    %v9330 = vld [vmem:[%s9326 + $0xc] sm:$0xf]
    %v9331 = vld [vmem:[%s9326 + $0x10] sm:$0xf]
    %v9332 = vld [vmem:[%s9326 + $0x14] sm:$0xf]
    %v9339 = vunpack.c.l.b16 %v9327
    %v9340 = vunpack.c.l.b16 %v9328
    %v9341 = vunpack.c.l.b16 %v9329
    %v9342 = vunpack.c.l.b16 %v9330
    %v9343 = vunpack.c.l.b16 %v9331
    %v9344 = vunpack.c.l.b16 %v9332
    %v9345 = vpack.c.b16 %v9340, %v9339
    %v9346 = vpack.c.b16 %v9342, %v9341
    %v9347 = vpack.c.b16 %v9344, %v9343
    %v9352 = vsel %vm8489, %v9294, 0
    %v9355 = vsel %vm8489, %v9295, 0
    %v9358 = vsel %vm8489, %v9296, 0
    %v9361 = vsel %vm8489, %v9297, 0
    %v9364 = vsel %vm8489, %v9298, 0
    %v9367 = vsel %vm8489, %v9299, 0
    %v9370 = vsel %vm8489, %v9300, 0
    %v9373 = vsel %vm8489, %v9301, 0
    %v9376 = vsel %vm8489, %v9302, 0
    %v9379 = vsel %vm8489, %v9303, 0
    %v9382 = vsel %vm8489, %v9304, 0
    %v9385 = vsel %vm8489, %v9305, 0
    %v9388 = vsel %vm8489, %v9306, 0
    %v9391 = vsel %vm8489, %v9307, 0
    %v9394 = vsel %vm8489, %v9308, 0
    %v9397 = vsel %vm8489, %v9309, 0
    %v9400 = vsel %vm8489, %v9310, 0
    %v9403 = vsel %vm8489, %v9311, 0
    %v9406 = vsel %vm8489, %v9312, 0
    %v9409 = vsel %vm8489, %v9313, 0
    %v9412 = vsel %vm8489, %v9314, 0
    %v9415 = vsel %vm8489, %v9315, 0
    %v9418 = vsel %vm8489, %v9316, 0
    %v9421 = vsel %vm8489, %v9317, 0
    %v9424 = vsel %vm8489, %v9318, 0
    %v9427 = vsel %vm8489, %v9319, 0
    %v9430 = vsel %vm8489, %v9320, 0
    %v9433 = vsel %vm8489, %v9321, 0
    %v9436 = vsel %vm8489, %v9322, 0
    %v9439 = vsel %vm8489, %v9323, 0
    %v9442 = vsel %vm8489, %v9324, 0
    %v9445 = vsel %vm8489, %v9325, 0
    %9447 = vmatpush.bf16.msra.mxu0 0
    %9448 = vmatpush.bf16.msra.mxu0 0
    %9449 = vmatpush.bf16.msra.mxu0 0
    %9450 = vmatpush.bf16.msra.mxu0 0
    %9451 = vmatpush.bf16.msra.mxu0 0
    %9452 = vmatpush.bf16.msra.mxu0 %v9347
    %9453 = vmatpush.bf16.msra.mxu0 %v9346
    %9454 = vmatpush.bf16.msra.mxu0 %v9345
    %9455 = vmatmul.bf16.gmra.mxu0 %v9352
    %v9456 = vpop.f32.mrf.mxu0
    %v9457 = vadd.f32 0.0, %v9456
    %v9458 = vpop.f32.mrf.mxu0
    %v9459 = vadd.f32 0.0, %v9458
    %9460 = vmatmul.bf16.gmra.mxu0 %v9355
    %v9461 = vpop.f32.mrf.mxu0
    %v9462 = vadd.f32 0.0, %v9461
    %v9463 = vpop.f32.mrf.mxu0
    %v9464 = vadd.f32 0.0, %v9463
    %9465 = vmatmul.bf16.gmra.mxu0 %v9358
    %v9466 = vpop.f32.mrf.mxu0
    %v9467 = vadd.f32 0.0, %v9466
    %v9468 = vpop.f32.mrf.mxu0
    %v9469 = vadd.f32 0.0, %v9468
    %9470 = vmatmul.bf16.gmra.mxu0 %v9361
    %v9471 = vpop.f32.mrf.mxu0
    %v9472 = vadd.f32 0.0, %v9471
    %v9473 = vpop.f32.mrf.mxu0
    %v9474 = vadd.f32 0.0, %v9473
    %9475 = vmatmul.bf16.gmra.mxu0 %v9364
    %v9476 = vpop.f32.mrf.mxu0
    %v9477 = vadd.f32 0.0, %v9476
    %v9478 = vpop.f32.mrf.mxu0
    %v9479 = vadd.f32 0.0, %v9478
    %9480 = vmatmul.bf16.gmra.mxu0 %v9367
    %v9481 = vpop.f32.mrf.mxu0
    %v9482 = vadd.f32 0.0, %v9481
    %v9483 = vpop.f32.mrf.mxu0
    %v9484 = vadd.f32 0.0, %v9483
    %9485 = vmatmul.bf16.gmra.mxu0 %v9370
    %v9486 = vpop.f32.mrf.mxu0
    %v9487 = vadd.f32 0.0, %v9486
    %v9488 = vpop.f32.mrf.mxu0
    %v9489 = vadd.f32 0.0, %v9488
    %9490 = vmatmul.bf16.gmra.mxu0 %v9373
    %v9491 = vpop.f32.mrf.mxu0
    %v9492 = vadd.f32 0.0, %v9491
    %v9493 = vpop.f32.mrf.mxu0
    %v9494 = vadd.f32 0.0, %v9493
    %9495 = vmatmul.bf16.gmra.mxu0 %v9376
    %v9496 = vpop.f32.mrf.mxu0
    %v9497 = vadd.f32 0.0, %v9496
    %v9498 = vpop.f32.mrf.mxu0
    %v9499 = vadd.f32 0.0, %v9498
    %9500 = vmatmul.bf16.gmra.mxu0 %v9379
    %v9501 = vpop.f32.mrf.mxu0
    %v9502 = vadd.f32 0.0, %v9501
    %v9503 = vpop.f32.mrf.mxu0
    %v9504 = vadd.f32 0.0, %v9503
    %9505 = vmatmul.bf16.gmra.mxu0 %v9382
    %v9506 = vpop.f32.mrf.mxu0
    %v9507 = vadd.f32 0.0, %v9506
    %v9508 = vpop.f32.mrf.mxu0
    %v9509 = vadd.f32 0.0, %v9508
    %9510 = vmatmul.bf16.gmra.mxu0 %v9385
    %v9511 = vpop.f32.mrf.mxu0
    %v9512 = vadd.f32 0.0, %v9511
    %v9513 = vpop.f32.mrf.mxu0
    %v9514 = vadd.f32 0.0, %v9513
    %9515 = vmatmul.bf16.gmra.mxu0 %v9388
    %v9516 = vpop.f32.mrf.mxu0
    %v9517 = vadd.f32 0.0, %v9516
    %v9518 = vpop.f32.mrf.mxu0
    %v9519 = vadd.f32 0.0, %v9518
    %9520 = vmatmul.bf16.gmra.mxu0 %v9391
    %v9521 = vpop.f32.mrf.mxu0
    %v9522 = vadd.f32 0.0, %v9521
    %v9523 = vpop.f32.mrf.mxu0
    %v9524 = vadd.f32 0.0, %v9523
    %9525 = vmatmul.bf16.gmra.mxu0 %v9394
    %v9526 = vpop.f32.mrf.mxu0
    %v9527 = vadd.f32 0.0, %v9526
    %v9528 = vpop.f32.mrf.mxu0
    %v9529 = vadd.f32 0.0, %v9528
    %9530 = vmatmul.bf16.gmra.mxu0 %v9397
    %v9531 = vpop.f32.mrf.mxu0
    %v9532 = vadd.f32 0.0, %v9531
    %v9533 = vpop.f32.mrf.mxu0
    %v9534 = vadd.f32 0.0, %v9533
    %9535 = vmatmul.bf16.gmra.mxu0 %v9400
    %v9536 = vpop.f32.mrf.mxu0
    %v9537 = vadd.f32 0.0, %v9536
    %v9538 = vpop.f32.mrf.mxu0
    %v9539 = vadd.f32 0.0, %v9538
    %9540 = vmatmul.bf16.gmra.mxu0 %v9403
    %v9541 = vpop.f32.mrf.mxu0
    %v9542 = vadd.f32 0.0, %v9541
    %v9543 = vpop.f32.mrf.mxu0
    %v9544 = vadd.f32 0.0, %v9543
    %9545 = vmatmul.bf16.gmra.mxu0 %v9406
    %v9546 = vpop.f32.mrf.mxu0
    %v9547 = vadd.f32 0.0, %v9546
    %v9548 = vpop.f32.mrf.mxu0
    %v9549 = vadd.f32 0.0, %v9548
    %9550 = vmatmul.bf16.gmra.mxu0 %v9409
    %v9551 = vpop.f32.mrf.mxu0
    %v9552 = vadd.f32 0.0, %v9551
    %v9553 = vpop.f32.mrf.mxu0
    %v9554 = vadd.f32 0.0, %v9553
    %9555 = vmatmul.bf16.gmra.mxu0 %v9412
    %v9556 = vpop.f32.mrf.mxu0
    %v9557 = vadd.f32 0.0, %v9556
    %v9558 = vpop.f32.mrf.mxu0
    %v9559 = vadd.f32 0.0, %v9558
    %9560 = vmatmul.bf16.gmra.mxu0 %v9415
    %v9561 = vpop.f32.mrf.mxu0
    %v9562 = vadd.f32 0.0, %v9561
    %v9563 = vpop.f32.mrf.mxu0
    %v9564 = vadd.f32 0.0, %v9563
    %9565 = vmatmul.bf16.gmra.mxu0 %v9418
    %v9566 = vpop.f32.mrf.mxu0
    %v9567 = vadd.f32 0.0, %v9566
    %v9568 = vpop.f32.mrf.mxu0
    %v9569 = vadd.f32 0.0, %v9568
    %9570 = vmatmul.bf16.gmra.mxu0 %v9421
    %v9571 = vpop.f32.mrf.mxu0
    %v9572 = vadd.f32 0.0, %v9571
    %v9573 = vpop.f32.mrf.mxu0
    %v9574 = vadd.f32 0.0, %v9573
    %9575 = vmatmul.bf16.gmra.mxu0 %v9424
    %v9576 = vpop.f32.mrf.mxu0
    %v9577 = vadd.f32 0.0, %v9576
    %v9578 = vpop.f32.mrf.mxu0
    %v9579 = vadd.f32 0.0, %v9578
    %9580 = vmatmul.bf16.gmra.mxu0 %v9427
    %v9581 = vpop.f32.mrf.mxu0
    %v9582 = vadd.f32 0.0, %v9581
    %v9583 = vpop.f32.mrf.mxu0
    %v9584 = vadd.f32 0.0, %v9583
    %9585 = vmatmul.bf16.gmra.mxu0 %v9430
    %v9586 = vpop.f32.mrf.mxu0
    %v9587 = vadd.f32 0.0, %v9586
    %v9588 = vpop.f32.mrf.mxu0
    %v9589 = vadd.f32 0.0, %v9588
    %9590 = vmatmul.bf16.gmra.mxu0 %v9433
    %v9591 = vpop.f32.mrf.mxu0
    %v9592 = vadd.f32 0.0, %v9591
    %v9593 = vpop.f32.mrf.mxu0
    %v9594 = vadd.f32 0.0, %v9593
    %9595 = vmatmul.bf16.gmra.mxu0 %v9436
    %v9596 = vpop.f32.mrf.mxu0
    %v9597 = vadd.f32 0.0, %v9596
    %v9598 = vpop.f32.mrf.mxu0
    %v9599 = vadd.f32 0.0, %v9598
    %9600 = vmatmul.bf16.gmra.mxu0 %v9439
    %v9601 = vpop.f32.mrf.mxu0
    %v9602 = vadd.f32 0.0, %v9601
    %v9603 = vpop.f32.mrf.mxu0
    %v9604 = vadd.f32 0.0, %v9603
    %9605 = vmatmul.bf16.gmra.mxu0 %v9442
    %v9606 = vpop.f32.mrf.mxu0
    %v9607 = vadd.f32 0.0, %v9606
    %v9608 = vpop.f32.mrf.mxu0
    %v9609 = vadd.f32 0.0, %v9608
    %9610 = vmatmul.bf16.gmra.mxu0 %v9445
    %v9611 = vpop.f32.mrf.mxu0
    %v9612 = vadd.f32 0.0, %v9611
    %v9613 = vpop.f32.mrf.mxu0
    %v9614 = vadd.f32 0.0, %v9613
    %9615 = vdwg.mxu0
    %v9622 = vunpack.c.l.b16 %v9224
    %v9623 = vunpack.c.l.b16 %v9225
    %v9624 = vunpack.c.l.b16 %v9226
    %v9625 = vunpack.c.l.b16 %v9227
    %v9626 = vunpack.c.l.b16 %v9228
    %v9627 = vunpack.c.l.b16 %v9229
    %v9628 = vpack.c.b16 %v9623, %v9622
    %v9629 = vpack.c.b16 %v9625, %v9624
    %v9630 = vpack.c.b16 %v9627, %v9626
    %v9635 = vsel %vm8489, %v9192, 0
    %v9638 = vsel %vm8489, %v9193, 0
    %v9641 = vsel %vm8489, %v9194, 0
    %v9644 = vsel %vm8489, %v9195, 0
    %v9647 = vsel %vm8489, %v9196, 0
    %v9650 = vsel %vm8489, %v9197, 0
    %v9653 = vsel %vm8489, %v9198, 0
    %v9656 = vsel %vm8489, %v9199, 0
    %v9659 = vsel %vm8489, %v9200, 0
    %v9662 = vsel %vm8489, %v9201, 0
    %v9665 = vsel %vm8489, %v9202, 0
    %v9668 = vsel %vm8489, %v9203, 0
    %v9671 = vsel %vm8489, %v9204, 0
    %v9674 = vsel %vm8489, %v9205, 0
    %v9677 = vsel %vm8489, %v9206, 0
    %v9680 = vsel %vm8489, %v9207, 0
    %v9683 = vsel %vm8489, %v9208, 0
    %v9686 = vsel %vm8489, %v9209, 0
    %v9689 = vsel %vm8489, %v9210, 0
    %v9692 = vsel %vm8489, %v9211, 0
    %v9695 = vsel %vm8489, %v9212, 0
    %v9698 = vsel %vm8489, %v9213, 0
    %v9701 = vsel %vm8489, %v9214, 0
    %v9704 = vsel %vm8489, %v9215, 0
    %v9707 = vsel %vm8489, %v9216, 0
    %v9710 = vsel %vm8489, %v9217, 0
    %v9713 = vsel %vm8489, %v9218, 0
    %v9716 = vsel %vm8489, %v9219, 0
    %v9719 = vsel %vm8489, %v9220, 0
    %v9722 = vsel %vm8489, %v9221, 0
    %v9725 = vsel %vm8489, %v9222, 0
    %v9728 = vsel %vm8489, %v9223, 0
    %9730 = vmatpush.bf16.msra.mxu0 0
    %9731 = vmatpush.bf16.msra.mxu0 0
    %9732 = vmatpush.bf16.msra.mxu0 0
    %9733 = vmatpush.bf16.msra.mxu0 0
    %9734 = vmatpush.bf16.msra.mxu0 0
    %9735 = vmatpush.bf16.msra.mxu0 %v9630
    %9736 = vmatpush.bf16.msra.mxu0 %v9629
    %9737 = vmatpush.bf16.msra.mxu0 %v9628
    %9738 = vmatmul.bf16.gmra.mxu0 %v9635
    %v9739 = vpop.f32.mrf.mxu0
    %v9740 = vadd.f32 %v9457, %v9739
    %v9741 = vpop.f32.mrf.mxu0
    %v9742 = vadd.f32 %v9459, %v9741
    %9743 = vmatmul.bf16.gmra.mxu0 %v9638
    %v9744 = vpop.f32.mrf.mxu0
    %v9745 = vadd.f32 %v9462, %v9744
    %v9746 = vpop.f32.mrf.mxu0
    %v9747 = vadd.f32 %v9464, %v9746
    %9748 = vmatmul.bf16.gmra.mxu0 %v9641
    %v9749 = vpop.f32.mrf.mxu0
    %v9750 = vadd.f32 %v9467, %v9749
    %v9751 = vpop.f32.mrf.mxu0
    %v9752 = vadd.f32 %v9469, %v9751
    %9753 = vmatmul.bf16.gmra.mxu0 %v9644
    %v9754 = vpop.f32.mrf.mxu0
    %v9755 = vadd.f32 %v9472, %v9754
    %v9756 = vpop.f32.mrf.mxu0
    %v9757 = vadd.f32 %v9474, %v9756
    %9758 = vmatmul.bf16.gmra.mxu0 %v9647
    %v9759 = vpop.f32.mrf.mxu0
    %v9760 = vadd.f32 %v9477, %v9759
    %v9761 = vpop.f32.mrf.mxu0
    %v9762 = vadd.f32 %v9479, %v9761
    %9763 = vmatmul.bf16.gmra.mxu0 %v9650
    %v9764 = vpop.f32.mrf.mxu0
    %v9765 = vadd.f32 %v9482, %v9764
    %v9766 = vpop.f32.mrf.mxu0
    %v9767 = vadd.f32 %v9484, %v9766
    %9768 = vmatmul.bf16.gmra.mxu0 %v9653
    %v9769 = vpop.f32.mrf.mxu0
    %v9770 = vadd.f32 %v9487, %v9769
    %v9771 = vpop.f32.mrf.mxu0
    %v9772 = vadd.f32 %v9489, %v9771
    %9773 = vmatmul.bf16.gmra.mxu0 %v9656
    %v9774 = vpop.f32.mrf.mxu0
    %v9775 = vadd.f32 %v9492, %v9774
    %v9776 = vpop.f32.mrf.mxu0
    %v9777 = vadd.f32 %v9494, %v9776
    %9778 = vmatmul.bf16.gmra.mxu0 %v9659
    %v9779 = vpop.f32.mrf.mxu0
    %v9780 = vadd.f32 %v9497, %v9779
    %v9781 = vpop.f32.mrf.mxu0
    %v9782 = vadd.f32 %v9499, %v9781
    %9783 = vmatmul.bf16.gmra.mxu0 %v9662
    %v9784 = vpop.f32.mrf.mxu0
    %v9785 = vadd.f32 %v9502, %v9784
    %v9786 = vpop.f32.mrf.mxu0
    %v9787 = vadd.f32 %v9504, %v9786
    %9788 = vmatmul.bf16.gmra.mxu0 %v9665
    %v9789 = vpop.f32.mrf.mxu0
    %v9790 = vadd.f32 %v9507, %v9789
    %v9791 = vpop.f32.mrf.mxu0
    %v9792 = vadd.f32 %v9509, %v9791
    %9793 = vmatmul.bf16.gmra.mxu0 %v9668
    %v9794 = vpop.f32.mrf.mxu0
    %v9795 = vadd.f32 %v9512, %v9794
    %v9796 = vpop.f32.mrf.mxu0
    %v9797 = vadd.f32 %v9514, %v9796
    %9798 = vmatmul.bf16.gmra.mxu0 %v9671
    %v9799 = vpop.f32.mrf.mxu0
    %v9800 = vadd.f32 %v9517, %v9799
    %v9801 = vpop.f32.mrf.mxu0
    %v9802 = vadd.f32 %v9519, %v9801
    %9803 = vmatmul.bf16.gmra.mxu0 %v9674
    %v9804 = vpop.f32.mrf.mxu0
    %v9805 = vadd.f32 %v9522, %v9804
    %v9806 = vpop.f32.mrf.mxu0
    %v9807 = vadd.f32 %v9524, %v9806
    %9808 = vmatmul.bf16.gmra.mxu0 %v9677
    %v9809 = vpop.f32.mrf.mxu0
    %v9810 = vadd.f32 %v9527, %v9809
    %v9811 = vpop.f32.mrf.mxu0
    %v9812 = vadd.f32 %v9529, %v9811
    %9813 = vmatmul.bf16.gmra.mxu0 %v9680
    %v9814 = vpop.f32.mrf.mxu0
    %v9815 = vadd.f32 %v9532, %v9814
    %v9816 = vpop.f32.mrf.mxu0
    %v9817 = vadd.f32 %v9534, %v9816
    %9818 = vmatmul.bf16.gmra.mxu0 %v9683
    %v9819 = vpop.f32.mrf.mxu0
    %v9820 = vadd.f32 %v9537, %v9819
    %v9821 = vpop.f32.mrf.mxu0
    %v9822 = vadd.f32 %v9539, %v9821
    %9823 = vmatmul.bf16.gmra.mxu0 %v9686
    %v9824 = vpop.f32.mrf.mxu0
    %v9825 = vadd.f32 %v9542, %v9824
    %v9826 = vpop.f32.mrf.mxu0
    %v9827 = vadd.f32 %v9544, %v9826
    %9828 = vmatmul.bf16.gmra.mxu0 %v9689
    %v9829 = vpop.f32.mrf.mxu0
    %v9830 = vadd.f32 %v9547, %v9829
    %v9831 = vpop.f32.mrf.mxu0
    %v9832 = vadd.f32 %v9549, %v9831
    %9833 = vmatmul.bf16.gmra.mxu0 %v9692
    %v9834 = vpop.f32.mrf.mxu0
    %v9835 = vadd.f32 %v9552, %v9834
    %v9836 = vpop.f32.mrf.mxu0
    %v9837 = vadd.f32 %v9554, %v9836
    %9838 = vmatmul.bf16.gmra.mxu0 %v9695
    %v9839 = vpop.f32.mrf.mxu0
    %v9840 = vadd.f32 %v9557, %v9839
    %v9841 = vpop.f32.mrf.mxu0
    %v9842 = vadd.f32 %v9559, %v9841
    %9843 = vmatmul.bf16.gmra.mxu0 %v9698
    %v9844 = vpop.f32.mrf.mxu0
    %v9845 = vadd.f32 %v9562, %v9844
    %v9846 = vpop.f32.mrf.mxu0
    %v9847 = vadd.f32 %v9564, %v9846
    %9848 = vmatmul.bf16.gmra.mxu0 %v9701
    %v9849 = vpop.f32.mrf.mxu0
    %v9850 = vadd.f32 %v9567, %v9849
    %v9851 = vpop.f32.mrf.mxu0
    %v9852 = vadd.f32 %v9569, %v9851
    %9853 = vmatmul.bf16.gmra.mxu0 %v9704
    %v9854 = vpop.f32.mrf.mxu0
    %v9855 = vadd.f32 %v9572, %v9854
    %v9856 = vpop.f32.mrf.mxu0
    %v9857 = vadd.f32 %v9574, %v9856
    %9858 = vmatmul.bf16.gmra.mxu0 %v9707
    %v9859 = vpop.f32.mrf.mxu0
    %v9860 = vadd.f32 %v9577, %v9859
    %v9861 = vpop.f32.mrf.mxu0
    %v9862 = vadd.f32 %v9579, %v9861
    %9863 = vmatmul.bf16.gmra.mxu0 %v9710
    %v9864 = vpop.f32.mrf.mxu0
    %v9865 = vadd.f32 %v9582, %v9864
    %v9866 = vpop.f32.mrf.mxu0
    %v9867 = vadd.f32 %v9584, %v9866
    %9868 = vmatmul.bf16.gmra.mxu0 %v9713
    %v9869 = vpop.f32.mrf.mxu0
    %v9870 = vadd.f32 %v9587, %v9869
    %v9871 = vpop.f32.mrf.mxu0
    %v9872 = vadd.f32 %v9589, %v9871
    %9873 = vmatmul.bf16.gmra.mxu0 %v9716
    %v9874 = vpop.f32.mrf.mxu0
    %v9875 = vadd.f32 %v9592, %v9874
    %v9876 = vpop.f32.mrf.mxu0
    %v9877 = vadd.f32 %v9594, %v9876
    %9878 = vmatmul.bf16.gmra.mxu0 %v9719
    %v9879 = vpop.f32.mrf.mxu0
    %v9880 = vadd.f32 %v9597, %v9879
    %v9881 = vpop.f32.mrf.mxu0
    %v9882 = vadd.f32 %v9599, %v9881
    %9883 = vmatmul.bf16.gmra.mxu0 %v9722
    %v9884 = vpop.f32.mrf.mxu0
    %v9885 = vadd.f32 %v9602, %v9884
    %v9886 = vpop.f32.mrf.mxu0
    %v9887 = vadd.f32 %v9604, %v9886
    %9888 = vmatmul.bf16.gmra.mxu0 %v9725
    %v9889 = vpop.f32.mrf.mxu0
    %v9890 = vadd.f32 %v9607, %v9889
    %v9891 = vpop.f32.mrf.mxu0
    %v9892 = vadd.f32 %v9609, %v9891
    %9893 = vmatmul.bf16.gmra.mxu0 %v9728
    %v9894 = vpop.f32.mrf.mxu0
    %v9895 = vadd.f32 %v9612, %v9894
    %v9896 = vpop.f32.mrf.mxu0
    %v9897 = vadd.f32 %v9614, %v9896
    %9898 = vdwg.mxu0
    %s9899 = scalar_lea.vmem [#allocation3], 128
    %v9900 = vld [vmem:[%s9899] sm:$0xff]
    %v9901 = vld [vmem:[%s9899 + $0x8] sm:$0xff]
    %v9902 = vld [vmem:[%s9899 + $0x10] sm:$0xff]
    %v9903 = vld [vmem:[%s9899 + $0x18] sm:$0xff]
    %v9904 = vld [vmem:[%s9899 + $0x20] sm:$0xff]
    %v9905 = vld [vmem:[%s9899 + $0x28] sm:$0xff]
    %v9906 = vld [vmem:[%s9899 + $0x30] sm:$0xff]
    %v9907 = vld [vmem:[%s9899 + $0x38] sm:$0xff]
    %v9908 = vld [vmem:[%s9899 + $0x40] sm:$0xff]
    %v9909 = vld [vmem:[%s9899 + $0x48] sm:$0xff]
    %v9910 = vld [vmem:[%s9899 + $0x50] sm:$0xff]
    %v9911 = vld [vmem:[%s9899 + $0x58] sm:$0xff]
    %v9912 = vld [vmem:[%s9899 + $0x60] sm:$0xff]
    %v9913 = vld [vmem:[%s9899 + $0x68] sm:$0xff]
    %v9914 = vld [vmem:[%s9899 + $0x70] sm:$0xff]
    %v9915 = vld [vmem:[%s9899 + $0x78] sm:$0xff]
    %v9916 = vld [vmem:[%s9899 + $0x80] sm:$0xff]
    %v9917 = vld [vmem:[%s9899 + $0x88] sm:$0xff]
    %v9918 = vld [vmem:[%s9899 + $0x90] sm:$0xff]
    %v9919 = vld [vmem:[%s9899 + $0x98] sm:$0xff]
    %v9920 = vld [vmem:[%s9899 + $0xa0] sm:$0xff]
    %v9921 = vld [vmem:[%s9899 + $0xa8] sm:$0xff]
    %v9922 = vld [vmem:[%s9899 + $0xb0] sm:$0xff]
    %v9923 = vld [vmem:[%s9899 + $0xb8] sm:$0xff]
    %v9924 = vld [vmem:[%s9899 + $0xc0] sm:$0xff]
    %v9925 = vld [vmem:[%s9899 + $0xc8] sm:$0xff]
    %v9926 = vld [vmem:[%s9899 + $0xd0] sm:$0xff]
    %v9927 = vld [vmem:[%s9899 + $0xd8] sm:$0xff]
    %v9928 = vld [vmem:[%s9899 + $0xe0] sm:$0xff]
    %v9929 = vld [vmem:[%s9899 + $0xe8] sm:$0xff]
    %v9930 = vld [vmem:[%s9899 + $0xf0] sm:$0xff]
    %v9931 = vld [vmem:[%s9899 + $0xf8] sm:$0xff]
    %v9932 = vld [vmem:[%s9899 + $0x100] sm:$0xff]
    %v9933 = vld [vmem:[%s9899 + $0x108] sm:$0xff]
    %v9934 = vld [vmem:[%s9899 + $0x110] sm:$0xff]
    %v9935 = vld [vmem:[%s9899 + $0x118] sm:$0xff]
    %v9936 = vld [vmem:[%s9899 + $0x120] sm:$0xff]
    %v9937 = vld [vmem:[%s9899 + $0x128] sm:$0xff]
    %v9938 = vld [vmem:[%s9899 + $0x130] sm:$0xff]
    %v9939 = vld [vmem:[%s9899 + $0x138] sm:$0xff]
    %v9940 = vld [vmem:[%s9899 + $0x140] sm:$0xff]
    %v9941 = vld [vmem:[%s9899 + $0x148] sm:$0xff]
    %v9942 = vld [vmem:[%s9899 + $0x150] sm:$0xff]
    %v9943 = vld [vmem:[%s9899 + $0x158] sm:$0xff]
    %v9944 = vld [vmem:[%s9899 + $0x160] sm:$0xff]
    %v9945 = vld [vmem:[%s9899 + $0x168] sm:$0xff]
    %v9946 = vld [vmem:[%s9899 + $0x170] sm:$0xff]
    %v9947 = vld [vmem:[%s9899 + $0x178] sm:$0xff]
    %v9948 = vld [vmem:[%s9899 + $0x180] sm:$0xff]
    %v9949 = vld [vmem:[%s9899 + $0x188] sm:$0xff]
    %v9950 = vld [vmem:[%s9899 + $0x190] sm:$0xff]
    %v9951 = vld [vmem:[%s9899 + $0x198] sm:$0xff]
    %v9952 = vld [vmem:[%s9899 + $0x1a0] sm:$0xff]
    %v9953 = vld [vmem:[%s9899 + $0x1a8] sm:$0xff]
    %v9954 = vld [vmem:[%s9899 + $0x1b0] sm:$0xff]
    %v9955 = vld [vmem:[%s9899 + $0x1b8] sm:$0xff]
    %v9956 = vld [vmem:[%s9899 + $0x1c0] sm:$0xff]
    %v9957 = vld [vmem:[%s9899 + $0x1c8] sm:$0xff]
    %v9958 = vld [vmem:[%s9899 + $0x1d0] sm:$0xff]
    %v9959 = vld [vmem:[%s9899 + $0x1d8] sm:$0xff]
    %v9960 = vld [vmem:[%s9899 + $0x1e0] sm:$0xff]
    %v9961 = vld [vmem:[%s9899 + $0x1e8] sm:$0xff]
    %v9962 = vld [vmem:[%s9899 + $0x1f0] sm:$0xff]
    %v9963 = vld [vmem:[%s9899 + $0x1f8] sm:$0xff]
    %v9964 = vpack.c.bf16 %v9901, %v9900
    %v9965 = vpack.c.bf16 %v9903, %v9902
    %v9966 = vpack.c.bf16 %v9905, %v9904
    %v9967 = vpack.c.bf16 %v9907, %v9906
    %v9968 = vpack.c.bf16 %v9909, %v9908
    %v9969 = vpack.c.bf16 %v9911, %v9910
    %v9970 = vpack.c.bf16 %v9913, %v9912
    %v9971 = vpack.c.bf16 %v9915, %v9914
    %v9972 = vpack.c.bf16 %v9917, %v9916
    %v9973 = vpack.c.bf16 %v9919, %v9918
    %v9974 = vpack.c.bf16 %v9921, %v9920
    %v9975 = vpack.c.bf16 %v9923, %v9922
    %v9976 = vpack.c.bf16 %v9925, %v9924
    %v9977 = vpack.c.bf16 %v9927, %v9926
    %v9978 = vpack.c.bf16 %v9929, %v9928
    %v9979 = vpack.c.bf16 %v9931, %v9930
    %v9980 = vpack.c.bf16 %v9933, %v9932
    %v9981 = vpack.c.bf16 %v9935, %v9934
    %v9982 = vpack.c.bf16 %v9937, %v9936
    %v9983 = vpack.c.bf16 %v9939, %v9938
    %v9984 = vpack.c.bf16 %v9941, %v9940
    %v9985 = vpack.c.bf16 %v9943, %v9942
    %v9986 = vpack.c.bf16 %v9945, %v9944
    %v9987 = vpack.c.bf16 %v9947, %v9946
    %v9988 = vpack.c.bf16 %v9949, %v9948
    %v9989 = vpack.c.bf16 %v9951, %v9950
    %v9990 = vpack.c.bf16 %v9953, %v9952
    %v9991 = vpack.c.bf16 %v9955, %v9954
    %v9992 = vpack.c.bf16 %v9957, %v9956
    %v9993 = vpack.c.bf16 %v9959, %v9958
    %v9994 = vpack.c.bf16 %v9961, %v9960
    %v9995 = vpack.c.bf16 %v9963, %v9962
    %s9996 = scalar_lea.vmem %s3, 48
    %v9997 = vld [vmem:[%s9996] sm:$0xf]
    %v9998 = vld [vmem:[%s9996 + $0x4] sm:$0xf]
    %v9999 = vld [vmem:[%s9996 + $0x8] sm:$0xf]
    %v10000 = vld [vmem:[%s9996 + $0xc] sm:$0xf]
    %v10001 = vld [vmem:[%s9996 + $0x10] sm:$0xf]
    %v10002 = vld [vmem:[%s9996 + $0x14] sm:$0xf]
    %v10009 = vunpack.c.l.b16 %v9997
    %v10010 = vunpack.c.l.b16 %v9998
    %v10011 = vunpack.c.l.b16 %v9999
    %v10012 = vunpack.c.l.b16 %v10000
    %v10013 = vunpack.c.l.b16 %v10001
    %v10014 = vunpack.c.l.b16 %v10002
    %v10015 = vpack.c.b16 %v10010, %v10009
    %v10016 = vpack.c.b16 %v10012, %v10011
    %v10017 = vpack.c.b16 %v10014, %v10013
    %v10022 = vsel %vm8489, %v9964, 0
    %v10025 = vsel %vm8489, %v9965, 0
    %v10028 = vsel %vm8489, %v9966, 0
    %v10031 = vsel %vm8489, %v9967, 0
    %v10034 = vsel %vm8489, %v9968, 0
    %v10037 = vsel %vm8489, %v9969, 0
    %v10040 = vsel %vm8489, %v9970, 0
    %v10043 = vsel %vm8489, %v9971, 0
    %v10046 = vsel %vm8489, %v9972, 0
    %v10049 = vsel %vm8489, %v9973, 0
    %v10052 = vsel %vm8489, %v9974, 0
    %v10055 = vsel %vm8489, %v9975, 0
    %v10058 = vsel %vm8489, %v9976, 0
    %v10061 = vsel %vm8489, %v9977, 0
    %v10064 = vsel %vm8489, %v9978, 0
    %v10067 = vsel %vm8489, %v9979, 0
    %v10070 = vsel %vm8489, %v9980, 0
    %v10073 = vsel %vm8489, %v9981, 0
    %v10076 = vsel %vm8489, %v9982, 0
    %v10079 = vsel %vm8489, %v9983, 0
    %v10082 = vsel %vm8489, %v9984, 0
    %v10085 = vsel %vm8489, %v9985, 0
    %v10088 = vsel %vm8489, %v9986, 0
    %v10091 = vsel %vm8489, %v9987, 0
    %v10094 = vsel %vm8489, %v9988, 0
    %v10097 = vsel %vm8489, %v9989, 0
    %v10100 = vsel %vm8489, %v9990, 0
    %v10103 = vsel %vm8489, %v9991, 0
    %v10106 = vsel %vm8489, %v9992, 0
    %v10109 = vsel %vm8489, %v9993, 0
    %v10112 = vsel %vm8489, %v9994, 0
    %v10115 = vsel %vm8489, %v9995, 0
    %10117 = vmatpush.bf16.msra.mxu0 0
    %10118 = vmatpush.bf16.msra.mxu0 0
    %10119 = vmatpush.bf16.msra.mxu0 0
    %10120 = vmatpush.bf16.msra.mxu0 0
    %10121 = vmatpush.bf16.msra.mxu0 0
    %10122 = vmatpush.bf16.msra.mxu0 %v10017
    %10123 = vmatpush.bf16.msra.mxu0 %v10016
    %10124 = vmatpush.bf16.msra.mxu0 %v10015
    %10125 = vmatmul.bf16.gmra.mxu0 %v10022
    %v10126 = vpop.f32.mrf.mxu0
    %v10127 = vadd.f32 0.0, %v10126
    %v10128 = vpop.f32.mrf.mxu0
    %v10129 = vadd.f32 0.0, %v10128
    %10130 = vmatmul.bf16.gmra.mxu0 %v10025
    %v10131 = vpop.f32.mrf.mxu0
    %v10132 = vadd.f32 0.0, %v10131
    %v10133 = vpop.f32.mrf.mxu0
    %v10134 = vadd.f32 0.0, %v10133
    %10135 = vmatmul.bf16.gmra.mxu0 %v10028
    %v10136 = vpop.f32.mrf.mxu0
    %v10137 = vadd.f32 0.0, %v10136
    %v10138 = vpop.f32.mrf.mxu0
    %v10139 = vadd.f32 0.0, %v10138
    %10140 = vmatmul.bf16.gmra.mxu0 %v10031
    %v10141 = vpop.f32.mrf.mxu0
    %v10142 = vadd.f32 0.0, %v10141
    %v10143 = vpop.f32.mrf.mxu0
    %v10144 = vadd.f32 0.0, %v10143
    %10145 = vmatmul.bf16.gmra.mxu0 %v10034
    %v10146 = vpop.f32.mrf.mxu0
    %v10147 = vadd.f32 0.0, %v10146
    %v10148 = vpop.f32.mrf.mxu0
    %v10149 = vadd.f32 0.0, %v10148
    %10150 = vmatmul.bf16.gmra.mxu0 %v10037
    %v10151 = vpop.f32.mrf.mxu0
    %v10152 = vadd.f32 0.0, %v10151
    %v10153 = vpop.f32.mrf.mxu0
    %v10154 = vadd.f32 0.0, %v10153
    %10155 = vmatmul.bf16.gmra.mxu0 %v10040
    %v10156 = vpop.f32.mrf.mxu0
    %v10157 = vadd.f32 0.0, %v10156
    %v10158 = vpop.f32.mrf.mxu0
    %v10159 = vadd.f32 0.0, %v10158
    %10160 = vmatmul.bf16.gmra.mxu0 %v10043
    %v10161 = vpop.f32.mrf.mxu0
    %v10162 = vadd.f32 0.0, %v10161
    %v10163 = vpop.f32.mrf.mxu0
    %v10164 = vadd.f32 0.0, %v10163
    %10165 = vmatmul.bf16.gmra.mxu0 %v10046
    %v10166 = vpop.f32.mrf.mxu0
    %v10167 = vadd.f32 0.0, %v10166
    %v10168 = vpop.f32.mrf.mxu0
    %v10169 = vadd.f32 0.0, %v10168
    %10170 = vmatmul.bf16.gmra.mxu0 %v10049
    %v10171 = vpop.f32.mrf.mxu0
    %v10172 = vadd.f32 0.0, %v10171
    %v10173 = vpop.f32.mrf.mxu0
    %v10174 = vadd.f32 0.0, %v10173
    %10175 = vmatmul.bf16.gmra.mxu0 %v10052
    %v10176 = vpop.f32.mrf.mxu0
    %v10177 = vadd.f32 0.0, %v10176
    %v10178 = vpop.f32.mrf.mxu0
    %v10179 = vadd.f32 0.0, %v10178
    %10180 = vmatmul.bf16.gmra.mxu0 %v10055
    %v10181 = vpop.f32.mrf.mxu0
    %v10182 = vadd.f32 0.0, %v10181
    %v10183 = vpop.f32.mrf.mxu0
    %v10184 = vadd.f32 0.0, %v10183
    %10185 = vmatmul.bf16.gmra.mxu0 %v10058
    %v10186 = vpop.f32.mrf.mxu0
    %v10187 = vadd.f32 0.0, %v10186
    %v10188 = vpop.f32.mrf.mxu0
    %v10189 = vadd.f32 0.0, %v10188
    %10190 = vmatmul.bf16.gmra.mxu0 %v10061
    %v10191 = vpop.f32.mrf.mxu0
    %v10192 = vadd.f32 0.0, %v10191
    %v10193 = vpop.f32.mrf.mxu0
    %v10194 = vadd.f32 0.0, %v10193
    %10195 = vmatmul.bf16.gmra.mxu0 %v10064
    %v10196 = vpop.f32.mrf.mxu0
    %v10197 = vadd.f32 0.0, %v10196
    %v10198 = vpop.f32.mrf.mxu0
    %v10199 = vadd.f32 0.0, %v10198
    %10200 = vmatmul.bf16.gmra.mxu0 %v10067
    %v10201 = vpop.f32.mrf.mxu0
    %v10202 = vadd.f32 0.0, %v10201
    %v10203 = vpop.f32.mrf.mxu0
    %v10204 = vadd.f32 0.0, %v10203
    %10205 = vmatmul.bf16.gmra.mxu0 %v10070
    %v10206 = vpop.f32.mrf.mxu0
    %v10207 = vadd.f32 0.0, %v10206
    %v10208 = vpop.f32.mrf.mxu0
    %v10209 = vadd.f32 0.0, %v10208
    %10210 = vmatmul.bf16.gmra.mxu0 %v10073
    %v10211 = vpop.f32.mrf.mxu0
    %v10212 = vadd.f32 0.0, %v10211
    %v10213 = vpop.f32.mrf.mxu0
    %v10214 = vadd.f32 0.0, %v10213
    %10215 = vmatmul.bf16.gmra.mxu0 %v10076
    %v10216 = vpop.f32.mrf.mxu0
    %v10217 = vadd.f32 0.0, %v10216
    %v10218 = vpop.f32.mrf.mxu0
    %v10219 = vadd.f32 0.0, %v10218
    %10220 = vmatmul.bf16.gmra.mxu0 %v10079
    %v10221 = vpop.f32.mrf.mxu0
    %v10222 = vadd.f32 0.0, %v10221
    %v10223 = vpop.f32.mrf.mxu0
    %v10224 = vadd.f32 0.0, %v10223
    %10225 = vmatmul.bf16.gmra.mxu0 %v10082
    %v10226 = vpop.f32.mrf.mxu0
    %v10227 = vadd.f32 0.0, %v10226
    %v10228 = vpop.f32.mrf.mxu0
    %v10229 = vadd.f32 0.0, %v10228
    %10230 = vmatmul.bf16.gmra.mxu0 %v10085
    %v10231 = vpop.f32.mrf.mxu0
    %v10232 = vadd.f32 0.0, %v10231
    %v10233 = vpop.f32.mrf.mxu0
    %v10234 = vadd.f32 0.0, %v10233
    %10235 = vmatmul.bf16.gmra.mxu0 %v10088
    %v10236 = vpop.f32.mrf.mxu0
    %v10237 = vadd.f32 0.0, %v10236
    %v10238 = vpop.f32.mrf.mxu0
    %v10239 = vadd.f32 0.0, %v10238
    %10240 = vmatmul.bf16.gmra.mxu0 %v10091
    %v10241 = vpop.f32.mrf.mxu0
    %v10242 = vadd.f32 0.0, %v10241
    %v10243 = vpop.f32.mrf.mxu0
    %v10244 = vadd.f32 0.0, %v10243
    %10245 = vmatmul.bf16.gmra.mxu0 %v10094
    %v10246 = vpop.f32.mrf.mxu0
    %v10247 = vadd.f32 0.0, %v10246
    %v10248 = vpop.f32.mrf.mxu0
    %v10249 = vadd.f32 0.0, %v10248
    %10250 = vmatmul.bf16.gmra.mxu0 %v10097
    %v10251 = vpop.f32.mrf.mxu0
    %v10252 = vadd.f32 0.0, %v10251
    %v10253 = vpop.f32.mrf.mxu0
    %v10254 = vadd.f32 0.0, %v10253
    %10255 = vmatmul.bf16.gmra.mxu0 %v10100
    %v10256 = vpop.f32.mrf.mxu0
    %v10257 = vadd.f32 0.0, %v10256
    %v10258 = vpop.f32.mrf.mxu0
    %v10259 = vadd.f32 0.0, %v10258
    %10260 = vmatmul.bf16.gmra.mxu0 %v10103
    %v10261 = vpop.f32.mrf.mxu0
    %v10262 = vadd.f32 0.0, %v10261
    %v10263 = vpop.f32.mrf.mxu0
    %v10264 = vadd.f32 0.0, %v10263
    %10265 = vmatmul.bf16.gmra.mxu0 %v10106
    %v10266 = vpop.f32.mrf.mxu0
    %v10267 = vadd.f32 0.0, %v10266
    %v10268 = vpop.f32.mrf.mxu0
    %v10269 = vadd.f32 0.0, %v10268
    %10270 = vmatmul.bf16.gmra.mxu0 %v10109
    %v10271 = vpop.f32.mrf.mxu0
    %v10272 = vadd.f32 0.0, %v10271
    %v10273 = vpop.f32.mrf.mxu0
    %v10274 = vadd.f32 0.0, %v10273
    %10275 = vmatmul.bf16.gmra.mxu0 %v10112
    %v10276 = vpop.f32.mrf.mxu0
    %v10277 = vadd.f32 0.0, %v10276
    %v10278 = vpop.f32.mrf.mxu0
    %v10279 = vadd.f32 0.0, %v10278
    %10280 = vmatmul.bf16.gmra.mxu0 %v10115
    %v10281 = vpop.f32.mrf.mxu0
    %v10282 = vadd.f32 0.0, %v10281
    %v10283 = vpop.f32.mrf.mxu0
    %v10284 = vadd.f32 0.0, %v10283
    %10285 = vdwg.mxu0
    %v10286 = vadd.f32 %v9740, %v10127
    %v10287 = vadd.f32 %v9742, %v10129
    %v10288 = vadd.f32 %v9745, %v10132
    %v10289 = vadd.f32 %v9747, %v10134
    %v10290 = vadd.f32 %v9750, %v10137
    %v10291 = vadd.f32 %v9752, %v10139
    %v10292 = vadd.f32 %v9755, %v10142
    %v10293 = vadd.f32 %v9757, %v10144
    %v10294 = vadd.f32 %v9760, %v10147
    %v10295 = vadd.f32 %v9762, %v10149
    %v10296 = vadd.f32 %v9765, %v10152
    %v10297 = vadd.f32 %v9767, %v10154
    %v10298 = vadd.f32 %v9770, %v10157
    %v10299 = vadd.f32 %v9772, %v10159
    %v10300 = vadd.f32 %v9775, %v10162
    %v10301 = vadd.f32 %v9777, %v10164
    %v10302 = vadd.f32 %v9780, %v10167
    %v10303 = vadd.f32 %v9782, %v10169
    %v10304 = vadd.f32 %v9785, %v10172
    %v10305 = vadd.f32 %v9787, %v10174
    %v10306 = vadd.f32 %v9790, %v10177
    %v10307 = vadd.f32 %v9792, %v10179
    %v10308 = vadd.f32 %v9795, %v10182
    %v10309 = vadd.f32 %v9797, %v10184
    %v10310 = vadd.f32 %v9800, %v10187
    %v10311 = vadd.f32 %v9802, %v10189
    %v10312 = vadd.f32 %v9805, %v10192
    %v10313 = vadd.f32 %v9807, %v10194
    %v10314 = vadd.f32 %v9810, %v10197
    %v10315 = vadd.f32 %v9812, %v10199
    %v10316 = vadd.f32 %v9815, %v10202
    %v10317 = vadd.f32 %v9817, %v10204
    %v10318 = vadd.f32 %v9820, %v10207
    %v10319 = vadd.f32 %v9822, %v10209
    %v10320 = vadd.f32 %v9825, %v10212
    %v10321 = vadd.f32 %v9827, %v10214
    %v10322 = vadd.f32 %v9830, %v10217
    %v10323 = vadd.f32 %v9832, %v10219
    %v10324 = vadd.f32 %v9835, %v10222
    %v10325 = vadd.f32 %v9837, %v10224
    %v10326 = vadd.f32 %v9840, %v10227
    %v10327 = vadd.f32 %v9842, %v10229
    %v10328 = vadd.f32 %v9845, %v10232
    %v10329 = vadd.f32 %v9847, %v10234
    %v10330 = vadd.f32 %v9850, %v10237
    %v10331 = vadd.f32 %v9852, %v10239
    %v10332 = vadd.f32 %v9855, %v10242
    %v10333 = vadd.f32 %v9857, %v10244
    %v10334 = vadd.f32 %v9860, %v10247
    %v10335 = vadd.f32 %v9862, %v10249
    %v10336 = vadd.f32 %v9865, %v10252
    %v10337 = vadd.f32 %v9867, %v10254
    %v10338 = vadd.f32 %v9870, %v10257
    %v10339 = vadd.f32 %v9872, %v10259
    %v10340 = vadd.f32 %v9875, %v10262
    %v10341 = vadd.f32 %v9877, %v10264
    %v10342 = vadd.f32 %v9880, %v10267
    %v10343 = vadd.f32 %v9882, %v10269
    %v10344 = vadd.f32 %v9885, %v10272
    %v10345 = vadd.f32 %v9887, %v10274
    %v10346 = vadd.f32 %v9890, %v10277
    %v10347 = vadd.f32 %v9892, %v10279
    %v10348 = vadd.f32 %v9895, %v10282
    %v10349 = vadd.f32 %v9897, %v10284
    %v10351 = vperm.slane %v8488, 0
    %v10353 = vadd.f32 %v10286, %v10351
    %v10354 = vadd.f32 %v10287, %v10351
    %v10355 = vadd.f32 %v10288, %v10351
    %v10356 = vadd.f32 %v10289, %v10351
    %v10357 = vadd.f32 %v10290, %v10351
    %v10358 = vadd.f32 %v10291, %v10351
    %v10359 = vadd.f32 %v10292, %v10351
    %v10360 = vadd.f32 %v10293, %v10351
    %v10361 = vadd.f32 %v10294, %v10351
    %v10362 = vadd.f32 %v10295, %v10351
    %v10363 = vadd.f32 %v10296, %v10351
    %v10364 = vadd.f32 %v10297, %v10351
    %v10365 = vadd.f32 %v10298, %v10351
    %v10366 = vadd.f32 %v10299, %v10351
    %v10367 = vadd.f32 %v10300, %v10351
    %v10368 = vadd.f32 %v10301, %v10351
    %v10369 = vadd.f32 %v10302, %v10351
    %v10370 = vadd.f32 %v10303, %v10351
    %v10371 = vadd.f32 %v10304, %v10351
    %v10372 = vadd.f32 %v10305, %v10351
    %v10373 = vadd.f32 %v10306, %v10351
    %v10374 = vadd.f32 %v10307, %v10351
    %v10375 = vadd.f32 %v10308, %v10351
    %v10376 = vadd.f32 %v10309, %v10351
    %v10377 = vadd.f32 %v10310, %v10351
    %v10378 = vadd.f32 %v10311, %v10351
    %v10379 = vadd.f32 %v10312, %v10351
    %v10380 = vadd.f32 %v10313, %v10351
    %v10381 = vadd.f32 %v10314, %v10351
    %v10382 = vadd.f32 %v10315, %v10351
    %v10383 = vadd.f32 %v10316, %v10351
    %v10384 = vadd.f32 %v10317, %v10351
    %v10385 = vadd.f32 %v10318, %v10351
    %v10386 = vadd.f32 %v10319, %v10351
    %v10387 = vadd.f32 %v10320, %v10351
    %v10388 = vadd.f32 %v10321, %v10351
    %v10389 = vadd.f32 %v10322, %v10351
    %v10390 = vadd.f32 %v10323, %v10351
    %v10391 = vadd.f32 %v10324, %v10351
    %v10392 = vadd.f32 %v10325, %v10351
    %v10393 = vadd.f32 %v10326, %v10351
    %v10394 = vadd.f32 %v10327, %v10351
    %v10395 = vadd.f32 %v10328, %v10351
    %v10396 = vadd.f32 %v10329, %v10351
    %v10397 = vadd.f32 %v10330, %v10351
    %v10398 = vadd.f32 %v10331, %v10351
    %v10399 = vadd.f32 %v10332, %v10351
    %v10400 = vadd.f32 %v10333, %v10351
    %v10401 = vadd.f32 %v10334, %v10351
    %v10402 = vadd.f32 %v10335, %v10351
    %v10403 = vadd.f32 %v10336, %v10351
    %v10404 = vadd.f32 %v10337, %v10351
    %v10405 = vadd.f32 %v10338, %v10351
    %v10406 = vadd.f32 %v10339, %v10351
    %v10407 = vadd.f32 %v10340, %v10351
    %v10408 = vadd.f32 %v10341, %v10351
    %v10409 = vadd.f32 %v10342, %v10351
    %v10410 = vadd.f32 %v10343, %v10351
    %v10411 = vadd.f32 %v10344, %v10351
    %v10412 = vadd.f32 %v10345, %v10351
    %v10413 = vadd.f32 %v10346, %v10351
    %v10414 = vadd.f32 %v10347, %v10351
    %v10415 = vadd.f32 %v10348, %v10351
    %v10416 = vadd.f32 %v10349, %v10351
    %v10417 = vmax.f32 %v10353, 0.0
    %v10418 = vmax.f32 %v10354, 0.0
    %v10419 = vmax.f32 %v10355, 0.0
    %v10420 = vmax.f32 %v10356, 0.0
    %v10421 = vmax.f32 %v10357, 0.0
    %v10422 = vmax.f32 %v10358, 0.0
    %v10423 = vmax.f32 %v10359, 0.0
    %v10424 = vmax.f32 %v10360, 0.0
    %v10425 = vmax.f32 %v10361, 0.0
    %v10426 = vmax.f32 %v10362, 0.0
    %v10427 = vmax.f32 %v10363, 0.0
    %v10428 = vmax.f32 %v10364, 0.0
    %v10429 = vmax.f32 %v10365, 0.0
    %v10430 = vmax.f32 %v10366, 0.0
    %v10431 = vmax.f32 %v10367, 0.0
    %v10432 = vmax.f32 %v10368, 0.0
    %v10433 = vmax.f32 %v10369, 0.0
    %v10434 = vmax.f32 %v10370, 0.0
    %v10435 = vmax.f32 %v10371, 0.0
    %v10436 = vmax.f32 %v10372, 0.0
    %v10437 = vmax.f32 %v10373, 0.0
    %v10438 = vmax.f32 %v10374, 0.0
    %v10439 = vmax.f32 %v10375, 0.0
    %v10440 = vmax.f32 %v10376, 0.0
    %v10441 = vmax.f32 %v10377, 0.0
    %v10442 = vmax.f32 %v10378, 0.0
    %v10443 = vmax.f32 %v10379, 0.0
    %v10444 = vmax.f32 %v10380, 0.0
    %v10445 = vmax.f32 %v10381, 0.0
    %v10446 = vmax.f32 %v10382, 0.0
    %v10447 = vmax.f32 %v10383, 0.0
    %v10448 = vmax.f32 %v10384, 0.0
    %v10449 = vmax.f32 %v10385, 0.0
    %v10450 = vmax.f32 %v10386, 0.0
    %v10451 = vmax.f32 %v10387, 0.0
    %v10452 = vmax.f32 %v10388, 0.0
    %v10453 = vmax.f32 %v10389, 0.0
    %v10454 = vmax.f32 %v10390, 0.0
    %v10455 = vmax.f32 %v10391, 0.0
    %v10456 = vmax.f32 %v10392, 0.0
    %v10457 = vmax.f32 %v10393, 0.0
    %v10458 = vmax.f32 %v10394, 0.0
    %v10459 = vmax.f32 %v10395, 0.0
    %v10460 = vmax.f32 %v10396, 0.0
    %v10461 = vmax.f32 %v10397, 0.0
    %v10462 = vmax.f32 %v10398, 0.0
    %v10463 = vmax.f32 %v10399, 0.0
    %v10464 = vmax.f32 %v10400, 0.0
    %v10465 = vmax.f32 %v10401, 0.0
    %v10466 = vmax.f32 %v10402, 0.0
    %v10467 = vmax.f32 %v10403, 0.0
    %v10468 = vmax.f32 %v10404, 0.0
    %v10469 = vmax.f32 %v10405, 0.0
    %v10470 = vmax.f32 %v10406, 0.0
    %v10471 = vmax.f32 %v10407, 0.0
    %v10472 = vmax.f32 %v10408, 0.0
    %v10473 = vmax.f32 %v10409, 0.0
    %v10474 = vmax.f32 %v10410, 0.0
    %v10475 = vmax.f32 %v10411, 0.0
    %v10476 = vmax.f32 %v10412, 0.0
    %v10477 = vmax.f32 %v10413, 0.0
    %v10478 = vmax.f32 %v10414, 0.0
    %v10479 = vmax.f32 %v10415, 0.0
    %v10480 = vmax.f32 %v10416, 0.0
    %vm10481 = vcmask 261120
    %v10482 = vsel %vm10481, %v10417, -inf
    %v10483 = vsel %vm10481, %v10418, -inf
    %v10484 = vmax.f32 %v10482, %v10483
    %v10485 = vsel %vm10481, %v10419, -inf
    %v10486 = vsel %vm10481, %v10420, -inf
    %v10487 = vmax.f32 %v10485, %v10486
    %v10488 = vsel %vm10481, %v10421, -inf
    %v10489 = vsel %vm10481, %v10422, -inf
    %v10490 = vmax.f32 %v10488, %v10489
    %v10491 = vsel %vm10481, %v10423, -inf
    %v10492 = vsel %vm10481, %v10424, -inf
    %v10493 = vmax.f32 %v10491, %v10492
    %v10494 = vsel %vm10481, %v10425, -inf
    %v10495 = vsel %vm10481, %v10426, -inf
    %v10496 = vmax.f32 %v10494, %v10495
    %v10497 = vsel %vm10481, %v10427, -inf
    %v10498 = vsel %vm10481, %v10428, -inf
    %v10499 = vmax.f32 %v10497, %v10498
    %v10500 = vsel %vm10481, %v10429, -inf
    %v10501 = vsel %vm10481, %v10430, -inf
    %v10502 = vmax.f32 %v10500, %v10501
    %v10503 = vsel %vm10481, %v10431, -inf
    %v10504 = vsel %vm10481, %v10432, -inf
    %v10505 = vmax.f32 %v10503, %v10504
    %v10506 = vsel %vm10481, %v10433, -inf
    %v10507 = vsel %vm10481, %v10434, -inf
    %v10508 = vmax.f32 %v10506, %v10507
    %v10509 = vsel %vm10481, %v10435, -inf
    %v10510 = vsel %vm10481, %v10436, -inf
    %v10511 = vmax.f32 %v10509, %v10510
    %v10512 = vsel %vm10481, %v10437, -inf
    %v10513 = vsel %vm10481, %v10438, -inf
    %v10514 = vmax.f32 %v10512, %v10513
    %v10515 = vsel %vm10481, %v10439, -inf
    %v10516 = vsel %vm10481, %v10440, -inf
    %v10517 = vmax.f32 %v10515, %v10516
    %v10518 = vsel %vm10481, %v10441, -inf
    %v10519 = vsel %vm10481, %v10442, -inf
    %v10520 = vmax.f32 %v10518, %v10519
    %v10521 = vsel %vm10481, %v10443, -inf
    %v10522 = vsel %vm10481, %v10444, -inf
    %v10523 = vmax.f32 %v10521, %v10522
    %v10524 = vsel %vm10481, %v10445, -inf
    %v10525 = vsel %vm10481, %v10446, -inf
    %v10526 = vmax.f32 %v10524, %v10525
    %v10527 = vsel %vm10481, %v10447, -inf
    %v10528 = vsel %vm10481, %v10448, -inf
    %v10529 = vmax.f32 %v10527, %v10528
    %v10530 = vsel %vm10481, %v10449, -inf
    %v10531 = vsel %vm10481, %v10450, -inf
    %v10532 = vmax.f32 %v10530, %v10531
    %v10533 = vsel %vm10481, %v10451, -inf
    %v10534 = vsel %vm10481, %v10452, -inf
    %v10535 = vmax.f32 %v10533, %v10534
    %v10536 = vsel %vm10481, %v10453, -inf
    %v10537 = vsel %vm10481, %v10454, -inf
    %v10538 = vmax.f32 %v10536, %v10537
    %v10539 = vsel %vm10481, %v10455, -inf
    %v10540 = vsel %vm10481, %v10456, -inf
    %v10541 = vmax.f32 %v10539, %v10540
    %v10542 = vsel %vm10481, %v10457, -inf
    %v10543 = vsel %vm10481, %v10458, -inf
    %v10544 = vmax.f32 %v10542, %v10543
    %v10545 = vsel %vm10481, %v10459, -inf
    %v10546 = vsel %vm10481, %v10460, -inf
    %v10547 = vmax.f32 %v10545, %v10546
    %v10548 = vsel %vm10481, %v10461, -inf
    %v10549 = vsel %vm10481, %v10462, -inf
    %v10550 = vmax.f32 %v10548, %v10549
    %v10551 = vsel %vm10481, %v10463, -inf
    %v10552 = vsel %vm10481, %v10464, -inf
    %v10553 = vmax.f32 %v10551, %v10552
    %v10554 = vsel %vm10481, %v10465, -inf
    %v10555 = vsel %vm10481, %v10466, -inf
    %v10556 = vmax.f32 %v10554, %v10555
    %v10557 = vsel %vm10481, %v10467, -inf
    %v10558 = vsel %vm10481, %v10468, -inf
    %v10559 = vmax.f32 %v10557, %v10558
    %v10560 = vsel %vm10481, %v10469, -inf
    %v10561 = vsel %vm10481, %v10470, -inf
    %v10562 = vmax.f32 %v10560, %v10561
    %v10563 = vsel %vm10481, %v10471, -inf
    %v10564 = vsel %vm10481, %v10472, -inf
    %v10565 = vmax.f32 %v10563, %v10564
    %v10566 = vsel %vm10481, %v10473, -inf
    %v10567 = vsel %vm10481, %v10474, -inf
    %v10568 = vmax.f32 %v10566, %v10567
    %v10569 = vsel %vm10481, %v10475, -inf
    %v10570 = vsel %vm10481, %v10476, -inf
    %v10571 = vmax.f32 %v10569, %v10570
    %v10572 = vsel %vm10481, %v10477, -inf
    %v10573 = vsel %vm10481, %v10478, -inf
    %v10574 = vmax.f32 %v10572, %v10573
    %v10575 = vsel %vm10481, %v10479, -inf
    %v10576 = vsel %vm10481, %v10480, -inf
    %v10577 = vmax.f32 %v10575, %v10576
    %v10578 = vsel %vm10481, %v10484, -inf
    %v10579 = vsel %vm10481, %v10496, -inf
    %v10580 = vmax.f32 %v10578, %v10579
    %v10581 = vsel %vm10481, %v10487, -inf
    %v10582 = vsel %vm10481, %v10499, -inf
    %v10583 = vmax.f32 %v10581, %v10582
    %v10584 = vsel %vm10481, %v10490, -inf
    %v10585 = vsel %vm10481, %v10502, -inf
    %v10586 = vmax.f32 %v10584, %v10585
    %v10587 = vsel %vm10481, %v10493, -inf
    %v10588 = vsel %vm10481, %v10505, -inf
    %v10589 = vmax.f32 %v10587, %v10588
    %v10590 = vsel %vm10481, %v10508, -inf
    %v10591 = vsel %vm10481, %v10520, -inf
    %v10592 = vmax.f32 %v10590, %v10591
    %v10593 = vsel %vm10481, %v10511, -inf
    %v10594 = vsel %vm10481, %v10523, -inf
    %v10595 = vmax.f32 %v10593, %v10594
    %v10596 = vsel %vm10481, %v10514, -inf
    %v10597 = vsel %vm10481, %v10526, -inf
    %v10598 = vmax.f32 %v10596, %v10597
    %v10599 = vsel %vm10481, %v10517, -inf
    %v10600 = vsel %vm10481, %v10529, -inf
    %v10601 = vmax.f32 %v10599, %v10600
    %v10602 = vsel %vm10481, %v10532, -inf
    %v10603 = vsel %vm10481, %v10544, -inf
    %v10604 = vmax.f32 %v10602, %v10603
    %v10605 = vsel %vm10481, %v10535, -inf
    %v10606 = vsel %vm10481, %v10547, -inf
    %v10607 = vmax.f32 %v10605, %v10606
    %v10608 = vsel %vm10481, %v10538, -inf
    %v10609 = vsel %vm10481, %v10550, -inf
    %v10610 = vmax.f32 %v10608, %v10609
    %v10611 = vsel %vm10481, %v10541, -inf
    %v10612 = vsel %vm10481, %v10553, -inf
    %v10613 = vmax.f32 %v10611, %v10612
    %v10614 = vsel %vm10481, %v10556, -inf
    %v10615 = vsel %vm10481, %v10568, -inf
    %v10616 = vmax.f32 %v10614, %v10615
    %v10617 = vsel %vm10481, %v10559, -inf
    %v10618 = vsel %vm10481, %v10571, -inf
    %v10619 = vmax.f32 %v10617, %v10618
    %v10620 = vsel %vm10481, %v10562, -inf
    %v10621 = vsel %vm10481, %v10574, -inf
    %v10622 = vmax.f32 %v10620, %v10621
    %v10623 = vsel %vm10481, %v10565, -inf
    %v10624 = vsel %vm10481, %v10577, -inf
    %v10625 = vmax.f32 %v10623, %v10624
    %v10626 = vld [vmem:[%s6] sm:$0x1]
    %vm10627 = vcmask 785408
    %10628 = vst.msk [vmem:[#allocation4] sm:$0xff] %vm10627, 0.0
    %10629 = vst.msk [vmem:[#allocation4 + $0x8] sm:$0xff] %vm10627, 0.0
    %10630 = vst.msk [vmem:[#allocation4 + $0x10] sm:$0xff] %vm10627, 0.0
    %10631 = vst.msk [vmem:[#allocation4 + $0x18] sm:$0xff] %vm10627, 0.0
    %s10632 = scalar_lea.vmem [#allocation4], 160
    %10633 = vst.msk [vmem:[%s10632] sm:$0xff] %vm10627, 0.0
    %10634 = vst.msk [vmem:[%s10632 + $0x8] sm:$0xff] %vm10627, 0.0
    %10635 = vst.msk [vmem:[%s10632 + $0x10] sm:$0xff] %vm10627, 0.0
    %10636 = vst.msk [vmem:[%s10632 + $0x18] sm:$0xff] %vm10627, 0.0
    %s10637 = scalar_lea.vmem [#allocation4], 32
    %10638 = vst.msk [vmem:[%s10637] sm:$0xff] %vm10481, 0.0
    %10639 = vst.msk [vmem:[%s10637 + $0x20] sm:$0xff] %vm10481, 0.0
    %10640 = vst.msk [vmem:[%s10637 + $0x40] sm:$0xff] %vm10481, 0.0
    %10641 = vst.msk [vmem:[%s10637 + $0x60] sm:$0xff] %vm10481, 0.0
    %s10642 = scalar_lea.vmem [#allocation4], 56
    %vm10643 = vcmask 785920
    %10644 = vst.msk [vmem:[%s10642] sm:$0xff] %vm10643, 0.0
    %10645 = vst.msk [vmem:[%s10642 + $0x20] sm:$0xff] %vm10643, 0.0
    %10646 = vst.msk [vmem:[%s10642 + $0x40] sm:$0xff] %vm10643, 0.0
    %10647 = vst.msk [vmem:[%s10642 + $0x60] sm:$0xff] %vm10643, 0.0
    %s10648 = scalar_lea.vmem [#allocation4], 40
    %10649 = vst.msk [vmem:[%s10648] sm:$0xff] %vm10481, %v10580
    %10650 = vst.msk [vmem:[%s10648 + $0x8] sm:$0xff] %vm10481, %v10583
    %10651 = vst.msk [vmem:[%s10648 + $0x10] sm:$0xff] %vm10481, %v10586
    %10652 = vst.msk [vmem:[%s10648 + $0x20] sm:$0xff] %vm10481, %v10592
    %10653 = vst.msk [vmem:[%s10648 + $0x28] sm:$0xff] %vm10481, %v10595
    %10654 = vst.msk [vmem:[%s10648 + $0x30] sm:$0xff] %vm10481, %v10598
    %10655 = vst.msk [vmem:[%s10648 + $0x40] sm:$0xff] %vm10481, %v10604
    %10656 = vst.msk [vmem:[%s10648 + $0x48] sm:$0xff] %vm10481, %v10607
    %10657 = vst.msk [vmem:[%s10648 + $0x50] sm:$0xff] %vm10481, %v10610
    %10658 = vst.msk [vmem:[%s10648 + $0x60] sm:$0xff] %vm10481, %v10616
    %10659 = vst.msk [vmem:[%s10648 + $0x68] sm:$0xff] %vm10481, %v10619
    %10660 = vst.msk [vmem:[%s10648 + $0x70] sm:$0xff] %vm10481, %v10622
    %10677 = vrot.lane.b32.xlu0 %v10580, 32
    %v10678 = vpop.permute.xlu0 %10677
    %10679 = vrot.lane.b32.xlu0 %v10583, 32
    %v10680 = vpop.permute.xlu0 %10679
    %10681 = vrot.lane.b32.xlu0 %v10586, 32
    %v10682 = vpop.permute.xlu0 %10681
    %10683 = vrot.lane.b32.xlu0 %v10589, 32
    %v10684 = vpop.permute.xlu0 %10683
    %10685 = vrot.lane.b32.xlu0 %v10592, 32
    %v10686 = vpop.permute.xlu0 %10685
    %10687 = vrot.lane.b32.xlu0 %v10595, 32
    %v10688 = vpop.permute.xlu0 %10687
    %10689 = vrot.lane.b32.xlu0 %v10598, 32
    %v10690 = vpop.permute.xlu0 %10689
    %10691 = vrot.lane.b32.xlu0 %v10601, 32
    %v10692 = vpop.permute.xlu0 %10691
    %10693 = vrot.lane.b32.xlu0 %v10604, 32
    %v10694 = vpop.permute.xlu0 %10693
    %10695 = vrot.lane.b32.xlu0 %v10607, 32
    %v10696 = vpop.permute.xlu0 %10695
    %10697 = vrot.lane.b32.xlu0 %v10610, 32
    %v10698 = vpop.permute.xlu0 %10697
    %10699 = vrot.lane.b32.xlu0 %v10613, 32
    %v10700 = vpop.permute.xlu0 %10699
    %10701 = vrot.lane.b32.xlu0 %v10616, 32
    %v10702 = vpop.permute.xlu0 %10701
    %10703 = vrot.lane.b32.xlu0 %v10619, 32
    %v10704 = vpop.permute.xlu0 %10703
    %10705 = vrot.lane.b32.xlu0 %v10622, 32
    %v10706 = vpop.permute.xlu0 %10705
    %10707 = vrot.lane.b32.xlu0 %v10625, 32
    %v10708 = vpop.permute.xlu0 %10707
    %vm10725 = vcmask 523520
    %10726 = vst.msk [vmem:[%s10637] sm:$0xff] %vm10725, %v10678
    %10727 = vst.msk [vmem:[%s10637 + $0x8] sm:$0xff] %vm10725, %v10680
    %10728 = vst.msk [vmem:[%s10637 + $0x10] sm:$0xff] %vm10725, %v10682
    %10729 = vst.msk [vmem:[%s10637 + $0x18] sm:$0xff] %vm10725, %v10684
    %10730 = vst.msk [vmem:[%s10637 + $0x20] sm:$0xff] %vm10725, %v10686
    %10731 = vst.msk [vmem:[%s10637 + $0x28] sm:$0xff] %vm10725, %v10688
    %10732 = vst.msk [vmem:[%s10637 + $0x30] sm:$0xff] %vm10725, %v10690
    %10733 = vst.msk [vmem:[%s10637 + $0x38] sm:$0xff] %vm10725, %v10692
    %10734 = vst.msk [vmem:[%s10637 + $0x40] sm:$0xff] %vm10725, %v10694
    %10735 = vst.msk [vmem:[%s10637 + $0x48] sm:$0xff] %vm10725, %v10696
    %10736 = vst.msk [vmem:[%s10637 + $0x50] sm:$0xff] %vm10725, %v10698
    %10737 = vst.msk [vmem:[%s10637 + $0x58] sm:$0xff] %vm10725, %v10700
    %10738 = vst.msk [vmem:[%s10637 + $0x60] sm:$0xff] %vm10725, %v10702
    %10739 = vst.msk [vmem:[%s10637 + $0x68] sm:$0xff] %vm10725, %v10704
    %10740 = vst.msk [vmem:[%s10637 + $0x70] sm:$0xff] %vm10725, %v10706
    %10741 = vst.msk [vmem:[%s10637 + $0x78] sm:$0xff] %vm10725, %v10708
    %10742 = vrot.lane.b32.xlu0 %v10583, 64
    %v10743 = vpop.permute.xlu0 %10742
    %10744 = vrot.lane.b32.xlu0 %v10586, 64
    %v10745 = vpop.permute.xlu0 %10744
    %10746 = vrot.lane.b32.xlu0 %v10589, 64
    %v10747 = vpop.permute.xlu0 %10746
    %10748 = vrot.lane.b32.xlu0 %v10595, 64
    %v10749 = vpop.permute.xlu0 %10748
    %10750 = vrot.lane.b32.xlu0 %v10598, 64
    %v10751 = vpop.permute.xlu0 %10750
    %10752 = vrot.lane.b32.xlu0 %v10601, 64
    %v10753 = vpop.permute.xlu0 %10752
    %10754 = vrot.lane.b32.xlu0 %v10607, 64
    %v10755 = vpop.permute.xlu0 %10754
    %10756 = vrot.lane.b32.xlu0 %v10610, 64
    %v10757 = vpop.permute.xlu0 %10756
    %10758 = vrot.lane.b32.xlu0 %v10613, 64
    %v10759 = vpop.permute.xlu0 %10758
    %10760 = vrot.lane.b32.xlu0 %v10619, 64
    %v10761 = vpop.permute.xlu0 %10760
    %10762 = vrot.lane.b32.xlu0 %v10622, 64
    %v10763 = vpop.permute.xlu0 %10762
    %10764 = vrot.lane.b32.xlu0 %v10625, 64
    %v10765 = vpop.permute.xlu0 %10764
    %10778 = vst.msk [vmem:[%s10637] sm:$0xff] %vm10643, %v10743
    %10779 = vst.msk [vmem:[%s10637 + $0x8] sm:$0xff] %vm10643, %v10745
    %10780 = vst.msk [vmem:[%s10637 + $0x10] sm:$0xff] %vm10643, %v10747
    %10781 = vst.msk [vmem:[%s10637 + $0x20] sm:$0xff] %vm10643, %v10749
    %10782 = vst.msk [vmem:[%s10637 + $0x28] sm:$0xff] %vm10643, %v10751
    %10783 = vst.msk [vmem:[%s10637 + $0x30] sm:$0xff] %vm10643, %v10753
    %10784 = vst.msk [vmem:[%s10637 + $0x40] sm:$0xff] %vm10643, %v10755
    %10785 = vst.msk [vmem:[%s10637 + $0x48] sm:$0xff] %vm10643, %v10757
    %10786 = vst.msk [vmem:[%s10637 + $0x50] sm:$0xff] %vm10643, %v10759
    %10787 = vst.msk [vmem:[%s10637 + $0x60] sm:$0xff] %vm10643, %v10761
    %10788 = vst.msk [vmem:[%s10637 + $0x68] sm:$0xff] %vm10643, %v10763
    %10789 = vst.msk [vmem:[%s10637 + $0x70] sm:$0xff] %vm10643, %v10765
    %v10790 = vld [vmem:[#allocation4] sm:$0xff]
    %v10791 = vld [vmem:[#allocation4 + $0x8] sm:$0xff]
    %v10792 = vld [vmem:[#allocation4 + $0x10] sm:$0xff]
    %v10793 = vld [vmem:[#allocation4 + $0x18] sm:$0xff]
    %v10794 = vld [vmem:[#allocation4 + $0x20] sm:$0xff]
    %v10795 = vld [vmem:[#allocation4 + $0x28] sm:$0xff]
    %v10796 = vld [vmem:[#allocation4 + $0x30] sm:$0xff]
    %v10797 = vld [vmem:[#allocation4 + $0x38] sm:$0xff]
    %v10798 = vld [vmem:[#allocation4 + $0x40] sm:$0xff]
    %v10799 = vld [vmem:[#allocation4 + $0x48] sm:$0xff]
    %v10800 = vld [vmem:[#allocation4 + $0x50] sm:$0xff]
    %v10801 = vld [vmem:[#allocation4 + $0x58] sm:$0xff]
    %v10802 = vld [vmem:[#allocation4 + $0x60] sm:$0xff]
    %v10803 = vld [vmem:[#allocation4 + $0x68] sm:$0xff]
    %v10804 = vld [vmem:[#allocation4 + $0x70] sm:$0xff]
    %v10805 = vld [vmem:[#allocation4 + $0x78] sm:$0xff]
    %v10806 = vpack.c.bf16 %v10791, %v10790
    %v10807 = vpack.c.bf16 %v10793, %v10792
    %v10808 = vpack.c.bf16 %v10795, %v10794
    %v10809 = vpack.c.bf16 %v10797, %v10796
    %v10810 = vpack.c.bf16 %v10799, %v10798
    %v10811 = vpack.c.bf16 %v10801, %v10800
    %v10812 = vpack.c.bf16 %v10803, %v10802
    %v10813 = vpack.c.bf16 %v10805, %v10804
    %v10814 = vld [vmem:[%s5] sm:$0xf]
    %v10815 = vld [vmem:[%s5 + $0x4] sm:$0xf]
    %v10816 = vld [vmem:[%s5 + $0x8] sm:$0xf]
    %v10817 = vld [vmem:[%s5 + $0xc] sm:$0xf]
    %v10818 = vld [vmem:[%s5 + $0x10] sm:$0xf]
    %v10819 = vld [vmem:[%s5 + $0x14] sm:$0xf]
    %v10820 = vld [vmem:[%s5 + $0x18] sm:$0xf]
    %v10821 = vld [vmem:[%s5 + $0x1c] sm:$0xf]
    %v10822 = vld [vmem:[%s5 + $0x20] sm:$0xf]
    %v10823 = vld [vmem:[%s5 + $0x24] sm:$0xf]
    %v10824 = vld [vmem:[%s5 + $0x28] sm:$0xf]
    %v10825 = vld [vmem:[%s5 + $0x2c] sm:$0xf]
    %v10826 = vld [vmem:[%s10637] sm:$0xff]
    %v10827 = vld [vmem:[%s10637 + $0x8] sm:$0xff]
    %v10828 = vld [vmem:[%s10637 + $0x10] sm:$0xff]
    %v10829 = vld [vmem:[%s10637 + $0x18] sm:$0xff]
    %v10830 = vld [vmem:[%s10637 + $0x20] sm:$0xff]
    %v10831 = vld [vmem:[%s10637 + $0x28] sm:$0xff]
    %v10832 = vld [vmem:[%s10637 + $0x30] sm:$0xff]
    %v10833 = vld [vmem:[%s10637 + $0x38] sm:$0xff]
    %v10834 = vld [vmem:[%s10637 + $0x40] sm:$0xff]
    %v10835 = vld [vmem:[%s10637 + $0x48] sm:$0xff]
    %v10836 = vld [vmem:[%s10637 + $0x50] sm:$0xff]
    %v10837 = vld [vmem:[%s10637 + $0x58] sm:$0xff]
    %v10838 = vld [vmem:[%s10637 + $0x60] sm:$0xff]
    %v10839 = vld [vmem:[%s10637 + $0x68] sm:$0xff]
    %v10840 = vld [vmem:[%s10637 + $0x70] sm:$0xff]
    %v10841 = vld [vmem:[%s10637 + $0x78] sm:$0xff]
    %v10842 = vpack.c.bf16 %v10827, %v10826
    %v10843 = vpack.c.bf16 %v10829, %v10828
    %v10844 = vpack.c.bf16 %v10831, %v10830
    %v10845 = vpack.c.bf16 %v10833, %v10832
    %v10846 = vpack.c.bf16 %v10835, %v10834
    %v10847 = vpack.c.bf16 %v10837, %v10836
    %v10848 = vpack.c.bf16 %v10839, %v10838
    %v10849 = vpack.c.bf16 %v10841, %v10840
    %s10850 = scalar_lea.vmem %s5, 48
    %v10851 = vld [vmem:[%s10850] sm:$0xf]
    %v10852 = vld [vmem:[%s10850 + $0x4] sm:$0xf]
    %v10853 = vld [vmem:[%s10850 + $0x8] sm:$0xf]
    %v10854 = vld [vmem:[%s10850 + $0xc] sm:$0xf]
    %v10855 = vld [vmem:[%s10850 + $0x10] sm:$0xf]
    %v10856 = vld [vmem:[%s10850 + $0x14] sm:$0xf]
    %v10857 = vld [vmem:[%s10850 + $0x18] sm:$0xf]
    %v10858 = vld [vmem:[%s10850 + $0x1c] sm:$0xf]
    %v10859 = vld [vmem:[%s10850 + $0x20] sm:$0xf]
    %v10860 = vld [vmem:[%s10850 + $0x24] sm:$0xf]
    %v10861 = vld [vmem:[%s10850 + $0x28] sm:$0xf]
    %v10862 = vld [vmem:[%s10850 + $0x2c] sm:$0xf]
    %v10875 = vunpack.c.l.b16 %v10851
    %v10876 = vunpack.c.l.b16 %v10852
    %v10877 = vunpack.c.l.b16 %v10853
    %v10878 = vunpack.c.l.b16 %v10854
    %v10879 = vunpack.c.l.b16 %v10855
    %v10880 = vunpack.c.l.b16 %v10856
    %v10881 = vunpack.c.l.b16 %v10857
    %v10882 = vunpack.c.l.b16 %v10858
    %v10883 = vunpack.c.l.b16 %v10859
    %v10884 = vunpack.c.l.b16 %v10860
    %v10885 = vunpack.c.l.b16 %v10861
    %v10886 = vunpack.c.l.b16 %v10862
    %v10887 = vpack.c.b16 %v10876, %v10875
    %v10888 = vpack.c.b16 %v10878, %v10877
    %v10889 = vpack.c.b16 %v10880, %v10879
    %v10890 = vpack.c.b16 %v10882, %v10881
    %v10891 = vpack.c.b16 %v10884, %v10883
    %v10892 = vpack.c.b16 %v10886, %v10885
    %v10900 = vsel %vm10627, %v10842, 0
    %v10903 = vsel %vm10627, %v10843, 0
    %v10906 = vsel %vm10627, %v10844, 0
    %v10909 = vsel %vm10627, %v10845, 0
    %v10912 = vsel %vm10627, %v10846, 0
    %v10915 = vsel %vm10627, %v10847, 0
    %v10918 = vsel %vm10627, %v10848, 0
    %v10921 = vsel %vm10627, %v10849, 0
    %10923 = vmatpush.bf16.msra.mxu0 0
    %10924 = vmatpush.bf16.msra.mxu0 0
    %10925 = vmatpush.bf16.msra.mxu0 %v10892
    %10926 = vmatpush.bf16.msra.mxu0 %v10891
    %10927 = vmatpush.bf16.msra.mxu0 %v10890
    %10928 = vmatpush.bf16.msra.mxu0 %v10889
    %10929 = vmatpush.bf16.msra.mxu0 %v10888
    %10930 = vmatpush.bf16.msra.mxu0 %v10887
    %10931 = vmatmul.bf16.gmra.mxu0 %v10900
    %v10932 = vpop.f32.mrf.mxu0
    %v10933 = vadd.f32 0.0, %v10932
    %v10934 = vpop.f32.mrf.mxu0
    %v10935 = vadd.f32 0.0, %v10934
    %10936 = vmatmul.bf16.gmra.mxu0 %v10903
    %v10937 = vpop.f32.mrf.mxu0
    %v10938 = vadd.f32 0.0, %v10937
    %v10939 = vpop.f32.mrf.mxu0
    %v10940 = vadd.f32 0.0, %v10939
    %10941 = vmatmul.bf16.gmra.mxu0 %v10906
    %v10942 = vpop.f32.mrf.mxu0
    %v10943 = vadd.f32 0.0, %v10942
    %v10944 = vpop.f32.mrf.mxu0
    %v10945 = vadd.f32 0.0, %v10944
    %10946 = vmatmul.bf16.gmra.mxu0 %v10909
    %v10947 = vpop.f32.mrf.mxu0
    %v10948 = vadd.f32 0.0, %v10947
    %v10949 = vpop.f32.mrf.mxu0
    %v10950 = vadd.f32 0.0, %v10949
    %10951 = vmatmul.bf16.gmra.mxu0 %v10912
    %v10952 = vpop.f32.mrf.mxu0
    %v10953 = vadd.f32 0.0, %v10952
    %v10954 = vpop.f32.mrf.mxu0
    %v10955 = vadd.f32 0.0, %v10954
    %10956 = vmatmul.bf16.gmra.mxu0 %v10915
    %v10957 = vpop.f32.mrf.mxu0
    %v10958 = vadd.f32 0.0, %v10957
    %v10959 = vpop.f32.mrf.mxu0
    %v10960 = vadd.f32 0.0, %v10959
    %10961 = vmatmul.bf16.gmra.mxu0 %v10918
    %v10962 = vpop.f32.mrf.mxu0
    %v10963 = vadd.f32 0.0, %v10962
    %v10964 = vpop.f32.mrf.mxu0
    %v10965 = vadd.f32 0.0, %v10964
    %10966 = vmatmul.bf16.gmra.mxu0 %v10921
    %v10967 = vpop.f32.mrf.mxu0
    %v10968 = vadd.f32 0.0, %v10967
    %v10969 = vpop.f32.mrf.mxu0
    %v10970 = vadd.f32 0.0, %v10969
    %10971 = vdwg.mxu0
    %v10984 = vunpack.c.l.b16 %v10814
    %v10985 = vunpack.c.l.b16 %v10815
    %v10986 = vunpack.c.l.b16 %v10816
    %v10987 = vunpack.c.l.b16 %v10817
    %v10988 = vunpack.c.l.b16 %v10818
    %v10989 = vunpack.c.l.b16 %v10819
    %v10990 = vunpack.c.l.b16 %v10820
    %v10991 = vunpack.c.l.b16 %v10821
    %v10992 = vunpack.c.l.b16 %v10822
    %v10993 = vunpack.c.l.b16 %v10823
    %v10994 = vunpack.c.l.b16 %v10824
    %v10995 = vunpack.c.l.b16 %v10825
    %v10996 = vpack.c.b16 %v10985, %v10984
    %v10997 = vpack.c.b16 %v10987, %v10986
    %v10998 = vpack.c.b16 %v10989, %v10988
    %v10999 = vpack.c.b16 %v10991, %v10990
    %v11000 = vpack.c.b16 %v10993, %v10992
    %v11001 = vpack.c.b16 %v10995, %v10994
    %v11009 = vsel %vm10627, %v10806, 0
    %v11012 = vsel %vm10627, %v10807, 0
    %v11015 = vsel %vm10627, %v10808, 0
    %v11018 = vsel %vm10627, %v10809, 0
    %v11021 = vsel %vm10627, %v10810, 0
    %v11024 = vsel %vm10627, %v10811, 0
    %v11027 = vsel %vm10627, %v10812, 0
    %v11030 = vsel %vm10627, %v10813, 0
    %11032 = vmatpush.bf16.msra.mxu0 0
    %11033 = vmatpush.bf16.msra.mxu0 0
    %11034 = vmatpush.bf16.msra.mxu0 %v11001
    %11035 = vmatpush.bf16.msra.mxu0 %v11000
    %11036 = vmatpush.bf16.msra.mxu0 %v10999
    %11037 = vmatpush.bf16.msra.mxu0 %v10998
    %11038 = vmatpush.bf16.msra.mxu0 %v10997
    %11039 = vmatpush.bf16.msra.mxu0 %v10996
    %11040 = vmatmul.bf16.gmra.mxu0 %v11009
    %v11041 = vpop.f32.mrf.mxu0
    %v11042 = vadd.f32 %v10933, %v11041
    %v11043 = vpop.f32.mrf.mxu0
    %v11044 = vadd.f32 %v10935, %v11043
    %11045 = vmatmul.bf16.gmra.mxu0 %v11012
    %v11046 = vpop.f32.mrf.mxu0
    %v11047 = vadd.f32 %v10938, %v11046
    %v11048 = vpop.f32.mrf.mxu0
    %v11049 = vadd.f32 %v10940, %v11048
    %11050 = vmatmul.bf16.gmra.mxu0 %v11015
    %v11051 = vpop.f32.mrf.mxu0
    %v11052 = vadd.f32 %v10943, %v11051
    %v11053 = vpop.f32.mrf.mxu0
    %v11054 = vadd.f32 %v10945, %v11053
    %11055 = vmatmul.bf16.gmra.mxu0 %v11018
    %v11056 = vpop.f32.mrf.mxu0
    %v11057 = vadd.f32 %v10948, %v11056
    %v11058 = vpop.f32.mrf.mxu0
    %v11059 = vadd.f32 %v10950, %v11058
    %11060 = vmatmul.bf16.gmra.mxu0 %v11021
    %v11061 = vpop.f32.mrf.mxu0
    %v11062 = vadd.f32 %v10953, %v11061
    %v11063 = vpop.f32.mrf.mxu0
    %v11064 = vadd.f32 %v10955, %v11063
    %11065 = vmatmul.bf16.gmra.mxu0 %v11024
    %v11066 = vpop.f32.mrf.mxu0
    %v11067 = vadd.f32 %v10958, %v11066
    %v11068 = vpop.f32.mrf.mxu0
    %v11069 = vadd.f32 %v10960, %v11068
    %11070 = vmatmul.bf16.gmra.mxu0 %v11027
    %v11071 = vpop.f32.mrf.mxu0
    %v11072 = vadd.f32 %v10963, %v11071
    %v11073 = vpop.f32.mrf.mxu0
    %v11074 = vadd.f32 %v10965, %v11073
    %11075 = vmatmul.bf16.gmra.mxu0 %v11030
    %v11076 = vpop.f32.mrf.mxu0
    %v11077 = vadd.f32 %v10968, %v11076
    %v11078 = vpop.f32.mrf.mxu0
    %v11079 = vadd.f32 %v10970, %v11078
    %11080 = vdwg.mxu0
    %s11081 = scalar_lea.vmem [#allocation4], 64
    %v11082 = vld [vmem:[%s11081] sm:$0xff]
    %v11083 = vld [vmem:[%s11081 + $0x8] sm:$0xff]
    %v11084 = vld [vmem:[%s11081 + $0x10] sm:$0xff]
    %v11085 = vld [vmem:[%s11081 + $0x18] sm:$0xff]
    %v11086 = vld [vmem:[%s11081 + $0x20] sm:$0xff]
    %v11087 = vld [vmem:[%s11081 + $0x28] sm:$0xff]
    %v11088 = vld [vmem:[%s11081 + $0x30] sm:$0xff]
    %v11089 = vld [vmem:[%s11081 + $0x38] sm:$0xff]
    %v11090 = vld [vmem:[%s11081 + $0x40] sm:$0xff]
    %v11091 = vld [vmem:[%s11081 + $0x48] sm:$0xff]
    %v11092 = vld [vmem:[%s11081 + $0x50] sm:$0xff]
    %v11093 = vld [vmem:[%s11081 + $0x58] sm:$0xff]
    %v11094 = vld [vmem:[%s11081 + $0x60] sm:$0xff]
    %v11095 = vld [vmem:[%s11081 + $0x68] sm:$0xff]
    %v11096 = vld [vmem:[%s11081 + $0x70] sm:$0xff]
    %v11097 = vld [vmem:[%s11081 + $0x78] sm:$0xff]
    %v11098 = vpack.c.bf16 %v11083, %v11082
    %v11099 = vpack.c.bf16 %v11085, %v11084
    %v11100 = vpack.c.bf16 %v11087, %v11086
    %v11101 = vpack.c.bf16 %v11089, %v11088
    %v11102 = vpack.c.bf16 %v11091, %v11090
    %v11103 = vpack.c.bf16 %v11093, %v11092
    %v11104 = vpack.c.bf16 %v11095, %v11094
    %v11105 = vpack.c.bf16 %v11097, %v11096
    %s11106 = scalar_lea.vmem %s5, 96
    %v11107 = vld [vmem:[%s11106] sm:$0xf]
    %v11108 = vld [vmem:[%s11106 + $0x4] sm:$0xf]
    %v11109 = vld [vmem:[%s11106 + $0x8] sm:$0xf]
    %v11110 = vld [vmem:[%s11106 + $0xc] sm:$0xf]
    %v11111 = vld [vmem:[%s11106 + $0x10] sm:$0xf]
    %v11112 = vld [vmem:[%s11106 + $0x14] sm:$0xf]
    %v11113 = vld [vmem:[%s11106 + $0x18] sm:$0xf]
    %v11114 = vld [vmem:[%s11106 + $0x1c] sm:$0xf]
    %v11115 = vld [vmem:[%s11106 + $0x20] sm:$0xf]
    %v11116 = vld [vmem:[%s11106 + $0x24] sm:$0xf]
    %v11117 = vld [vmem:[%s11106 + $0x28] sm:$0xf]
    %v11118 = vld [vmem:[%s11106 + $0x2c] sm:$0xf]
    %v11131 = vunpack.c.l.b16 %v11107
    %v11132 = vunpack.c.l.b16 %v11108
    %v11133 = vunpack.c.l.b16 %v11109
    %v11134 = vunpack.c.l.b16 %v11110
    %v11135 = vunpack.c.l.b16 %v11111
    %v11136 = vunpack.c.l.b16 %v11112
    %v11137 = vunpack.c.l.b16 %v11113
    %v11138 = vunpack.c.l.b16 %v11114
    %v11139 = vunpack.c.l.b16 %v11115
    %v11140 = vunpack.c.l.b16 %v11116
    %v11141 = vunpack.c.l.b16 %v11117
    %v11142 = vunpack.c.l.b16 %v11118
    %v11143 = vpack.c.b16 %v11132, %v11131
    %v11144 = vpack.c.b16 %v11134, %v11133
    %v11145 = vpack.c.b16 %v11136, %v11135
    %v11146 = vpack.c.b16 %v11138, %v11137
    %v11147 = vpack.c.b16 %v11140, %v11139
    %v11148 = vpack.c.b16 %v11142, %v11141
    %v11156 = vsel %vm10627, %v11098, 0
    %v11159 = vsel %vm10627, %v11099, 0
    %v11162 = vsel %vm10627, %v11100, 0
    %v11165 = vsel %vm10627, %v11101, 0
    %v11168 = vsel %vm10627, %v11102, 0
    %v11171 = vsel %vm10627, %v11103, 0
    %v11174 = vsel %vm10627, %v11104, 0
    %v11177 = vsel %vm10627, %v11105, 0
    %11179 = vmatpush.bf16.msra.mxu0 0
    %11180 = vmatpush.bf16.msra.mxu0 0
    %11181 = vmatpush.bf16.msra.mxu0 %v11148
    %11182 = vmatpush.bf16.msra.mxu0 %v11147
    %11183 = vmatpush.bf16.msra.mxu0 %v11146
    %11184 = vmatpush.bf16.msra.mxu0 %v11145
    %11185 = vmatpush.bf16.msra.mxu0 %v11144
    %11186 = vmatpush.bf16.msra.mxu0 %v11143
    %11187 = vmatmul.bf16.gmra.mxu0 %v11156
    %v11188 = vpop.f32.mrf.mxu0
    %v11189 = vadd.f32 0.0, %v11188
    %v11190 = vpop.f32.mrf.mxu0
    %v11191 = vadd.f32 0.0, %v11190
    %11192 = vmatmul.bf16.gmra.mxu0 %v11159
    %v11193 = vpop.f32.mrf.mxu0
    %v11194 = vadd.f32 0.0, %v11193
    %v11195 = vpop.f32.mrf.mxu0
    %v11196 = vadd.f32 0.0, %v11195
    %11197 = vmatmul.bf16.gmra.mxu0 %v11162
    %v11198 = vpop.f32.mrf.mxu0
    %v11199 = vadd.f32 0.0, %v11198
    %v11200 = vpop.f32.mrf.mxu0
    %v11201 = vadd.f32 0.0, %v11200
    %11202 = vmatmul.bf16.gmra.mxu0 %v11165
    %v11203 = vpop.f32.mrf.mxu0
    %v11204 = vadd.f32 0.0, %v11203
    %v11205 = vpop.f32.mrf.mxu0
    %v11206 = vadd.f32 0.0, %v11205
    %11207 = vmatmul.bf16.gmra.mxu0 %v11168
    %v11208 = vpop.f32.mrf.mxu0
    %v11209 = vadd.f32 0.0, %v11208
    %v11210 = vpop.f32.mrf.mxu0
    %v11211 = vadd.f32 0.0, %v11210
    %11212 = vmatmul.bf16.gmra.mxu0 %v11171
    %v11213 = vpop.f32.mrf.mxu0
    %v11214 = vadd.f32 0.0, %v11213
    %v11215 = vpop.f32.mrf.mxu0
    %v11216 = vadd.f32 0.0, %v11215
    %11217 = vmatmul.bf16.gmra.mxu0 %v11174
    %v11218 = vpop.f32.mrf.mxu0
    %v11219 = vadd.f32 0.0, %v11218
    %v11220 = vpop.f32.mrf.mxu0
    %v11221 = vadd.f32 0.0, %v11220
    %11222 = vmatmul.bf16.gmra.mxu0 %v11177
    %v11223 = vpop.f32.mrf.mxu0
    %v11224 = vadd.f32 0.0, %v11223
    %v11225 = vpop.f32.mrf.mxu0
    %v11226 = vadd.f32 0.0, %v11225
    %11227 = vdwg.mxu0
    %v11228 = vadd.f32 %v11042, %v11189
    %v11229 = vadd.f32 %v11044, %v11191
    %v11230 = vadd.f32 %v11047, %v11194
    %v11231 = vadd.f32 %v11049, %v11196
    %v11232 = vadd.f32 %v11052, %v11199
    %v11233 = vadd.f32 %v11054, %v11201
    %v11234 = vadd.f32 %v11057, %v11204
    %v11235 = vadd.f32 %v11059, %v11206
    %v11236 = vadd.f32 %v11062, %v11209
    %v11237 = vadd.f32 %v11064, %v11211
    %v11238 = vadd.f32 %v11067, %v11214
    %v11239 = vadd.f32 %v11069, %v11216
    %v11240 = vadd.f32 %v11072, %v11219
    %v11241 = vadd.f32 %v11074, %v11221
    %v11242 = vadd.f32 %v11077, %v11224
    %v11243 = vadd.f32 %v11079, %v11226
    %v11245 = vperm.slane %v10626, 0
    %v11247 = vadd.f32 %v11228, %v11245
    %v11248 = vadd.f32 %v11229, %v11245
    %v11249 = vadd.f32 %v11230, %v11245
    %v11250 = vadd.f32 %v11231, %v11245
    %v11251 = vadd.f32 %v11232, %v11245
    %v11252 = vadd.f32 %v11233, %v11245
    %v11253 = vadd.f32 %v11234, %v11245
    %v11254 = vadd.f32 %v11235, %v11245
    %v11255 = vadd.f32 %v11236, %v11245
    %v11256 = vadd.f32 %v11237, %v11245
    %v11257 = vadd.f32 %v11238, %v11245
    %v11258 = vadd.f32 %v11239, %v11245
    %v11259 = vadd.f32 %v11240, %v11245
    %v11260 = vadd.f32 %v11241, %v11245
    %v11261 = vadd.f32 %v11242, %v11245
    %v11262 = vadd.f32 %v11243, %v11245
    %v11263 = vmax.f32 %v11247, 0.0
    %v11264 = vmax.f32 %v11248, 0.0
    %v11265 = vmax.f32 %v11249, 0.0
    %v11266 = vmax.f32 %v11250, 0.0
    %v11267 = vmax.f32 %v11251, 0.0
    %v11268 = vmax.f32 %v11252, 0.0
    %v11269 = vmax.f32 %v11253, 0.0
    %v11270 = vmax.f32 %v11254, 0.0
    %v11271 = vmax.f32 %v11255, 0.0
    %v11272 = vmax.f32 %v11256, 0.0
    %v11273 = vmax.f32 %v11257, 0.0
    %v11274 = vmax.f32 %v11258, 0.0
    %v11275 = vmax.f32 %v11259, 0.0
    %v11276 = vmax.f32 %v11260, 0.0
    %v11277 = vmax.f32 %v11261, 0.0
    %v11278 = vmax.f32 %v11262, 0.0
    %vm11279 = vcmask 523264
    %v11280 = vsel %vm11279, %v11263, 0.0
    %v11281 = vsel %vm11279, %v11264, 0.0
    %v11282 = vadd.f32 %v11280, %v11281
    %v11283 = vsel %vm11279, %v11265, 0.0
    %v11284 = vadd.f32 %v11282, %v11283
    %v11285 = vsel %vm11279, %v11266, 0.0
    %v11286 = vadd.f32 %v11284, %v11285
    %v11287 = vsel %vm11279, %v11267, 0.0
    %v11288 = vadd.f32 %v11286, %v11287
    %v11289 = vsel %vm11279, %v11268, 0.0
    %v11290 = vadd.f32 %v11288, %v11289
    %v11291 = vsel %vm11279, %v11269, 0.0
    %v11292 = vadd.f32 %v11290, %v11291
    %v11293 = vsel %vm11279, %v11270, 0.0
    %v11294 = vadd.f32 %v11292, %v11293
    %v11295 = vsel %vm11279, %v11271, 0.0
    %v11296 = vadd.f32 %v11294, %v11295
    %v11297 = vsel %vm11279, %v11272, 0.0
    %v11298 = vadd.f32 %v11296, %v11297
    %v11299 = vsel %vm11279, %v11273, 0.0
    %v11300 = vadd.f32 %v11298, %v11299
    %v11301 = vsel %vm11279, %v11274, 0.0
    %v11302 = vadd.f32 %v11300, %v11301
    %v11303 = vsel %vm11279, %v11275, 0.0
    %v11304 = vadd.f32 %v11302, %v11303
    %v11305 = vsel %vm11279, %v11276, 0.0
    %v11306 = vadd.f32 %v11304, %v11305
    %v11307 = vsel %vm11279, %v11277, 0.0
    %v11308 = vadd.f32 %v11306, %v11307
    %v11309 = vsel %vm11279, %v11278, 0.0
    %v11310 = vadd.f32 %v11308, %v11309
    %v11311 = vrcp.pop 16.0
    %v11312 = vmul.f32 16.0, %v11311
    %v11313 = vsub.f32 1.0, %v11312
    %v11314 = vmul.f32 %v11311, %v11313
    %v11315 = vadd.f32 %v11311, %v11314
    %vm11316 = vweird.f32 %v11311
    %v11317 = vsel %vm11316, %v11311, %v11315
    %v11318 = vmul.f32 %v11310, %v11317
    %v11319 = vpack.c.bf16 %v11318, %v11318
    %v11320 = vld [vmem:[%s7] sm:$0xff]
    %v11321 = vld [vmem:[%s7 + $0x8] sm:$0xff]
    %v11322 = vld [vmem:[%s7 + $0x10] sm:$0xff]
    %v11323 = vld [vmem:[%s7 + $0x18] sm:$0xff]
    %v11324 = vld [vmem:[%s7 + $0x20] sm:$0xff]
    %v11325 = vld [vmem:[%s7 + $0x28] sm:$0xff]
    %v11326 = vld [vmem:[%s7 + $0x30] sm:$0xff]
    %v11327 = vld [vmem:[%s7 + $0x38] sm:$0xff]
    %v11328 = vld [vmem:[%s9] sm:$0x3]
    %v11330 = vperm.slane %v11328, 0
    %v11331 = vperm.slane %v11328, 1
    %v11342 = vunpack.c.l.b16 %v11320
    %v11343 = vunpack.c.h.b16 %v11320
    %v11344 = vunpack.c.l.b16 %v11321
    %v11345 = vunpack.c.h.b16 %v11321
    %v11346 = vunpack.c.l.b16 %v11322
    %v11347 = vunpack.c.h.b16 %v11322
    %v11348 = vunpack.c.l.b16 %v11323
    %v11349 = vunpack.c.h.b16 %v11323
    %v11350 = vunpack.c.l.b16 %v11324
    %v11351 = vunpack.c.h.b16 %v11324
    %v11352 = vunpack.c.l.b16 %v11325
    %v11353 = vunpack.c.h.b16 %v11325
    %v11354 = vunpack.c.l.b16 %v11326
    %v11355 = vunpack.c.h.b16 %v11326
    %v11356 = vunpack.c.l.b16 %v11327
    %v11357 = vunpack.c.h.b16 %v11327
    %v11358 = vpack.c.b16 %v11344, %v11342
    %v11359 = vpack.c.b16 %v11345, %v11343
    %v11360 = vpack.c.b16 %v11348, %v11346
    %v11361 = vpack.c.b16 %v11349, %v11347
    %v11362 = vpack.c.b16 %v11352, %v11350
    %v11363 = vpack.c.b16 %v11353, %v11351
    %v11364 = vpack.c.b16 %v11356, %v11354
    %v11365 = vpack.c.b16 %v11357, %v11355
    %v11375 = vsel %vm11279, %v11319, 0
    %11377 = vmatpush.bf16.msra.mxu0 0
    %11378 = vmatpush.bf16.msra.mxu0 0
    %11379 = vmatpush.bf16.msra.mxu0 0
    %11380 = vmatpush.bf16.msra.mxu0 0
    %11381 = vmatpush.bf16.msra.mxu0 %v11364
    %11382 = vmatpush.bf16.msra.mxu0 %v11362
    %11383 = vmatpush.bf16.msra.mxu0 %v11360
    %11384 = vmatpush.bf16.msra.mxu0 %v11358
    %11385 = vmatmul.bf16.gmra.mxu0 %v11375
    %v11386 = vpop.f32.mrf.mxu0
    %v11387 = vadd.f32 %v11330, %v11386
    %v11388 = vpop.f32.mrf.mxu0
    %11389 = vdwg.mxu0
    %11390 = vmatpush.bf16.msra.mxu0 0
    %11391 = vmatpush.bf16.msra.mxu0 0
    %11392 = vmatpush.bf16.msra.mxu0 0
    %11393 = vmatpush.bf16.msra.mxu0 0
    %11394 = vmatpush.bf16.msra.mxu0 %v11365
    %11395 = vmatpush.bf16.msra.mxu0 %v11363
    %11396 = vmatpush.bf16.msra.mxu0 %v11361
    %11397 = vmatpush.bf16.msra.mxu0 %v11359
    %11398 = vmatmul.bf16.gmra.mxu0 %v11375
    %v11399 = vpop.f32.mrf.mxu0
    %v11400 = vadd.f32 %v11331, %v11399
    %v11401 = vpop.f32.mrf.mxu0
    %11402 = vdwg.mxu0
    %v11403 = vld [vmem:[%s8] sm:$0xff]
    %v11404 = vld [vmem:[%s8 + $0x8] sm:$0xff]
    %v11405 = vld [vmem:[%s8 + $0x10] sm:$0xff]
    %v11406 = vld [vmem:[%s8 + $0x18] sm:$0xff]
    %v11407 = vld [vmem:[%s8 + $0x20] sm:$0xff]
    %v11408 = vld [vmem:[%s8 + $0x28] sm:$0xff]
    %v11409 = vld [vmem:[%s8 + $0x30] sm:$0xff]
    %v11410 = vld [vmem:[%s8 + $0x38] sm:$0xff]
    %v11419 = vunpack.c.l.b16 %v11403
    %v11420 = vunpack.c.h.b16 %v11403
    %v11421 = vunpack.c.l.b16 %v11404
    %v11422 = vunpack.c.h.b16 %v11404
    %v11423 = vunpack.c.l.b16 %v11405
    %v11424 = vunpack.c.h.b16 %v11405
    %v11425 = vunpack.c.l.b16 %v11406
    %v11426 = vunpack.c.h.b16 %v11406
    %v11427 = vunpack.c.l.b16 %v11407
    %v11428 = vunpack.c.h.b16 %v11407
    %v11429 = vunpack.c.l.b16 %v11408
    %v11430 = vunpack.c.h.b16 %v11408
    %v11431 = vunpack.c.l.b16 %v11409
    %v11432 = vunpack.c.h.b16 %v11409
    %v11433 = vunpack.c.l.b16 %v11410
    %v11434 = vunpack.c.h.b16 %v11410
    %v11435 = vpack.c.b16 %v11421, %v11419
    %v11436 = vpack.c.b16 %v11422, %v11420
    %v11437 = vpack.c.b16 %v11425, %v11423
    %v11438 = vpack.c.b16 %v11426, %v11424
    %v11439 = vpack.c.b16 %v11429, %v11427
    %v11440 = vpack.c.b16 %v11430, %v11428
    %v11441 = vpack.c.b16 %v11433, %v11431
    %v11442 = vpack.c.b16 %v11434, %v11432
    %v11452 = vsel %vm11279, 0, 0
    %11454 = vmatpush.bf16.msra.mxu0 0
    %11455 = vmatpush.bf16.msra.mxu0 0
    %11456 = vmatpush.bf16.msra.mxu0 0
    %11457 = vmatpush.bf16.msra.mxu0 0
    %11458 = vmatpush.bf16.msra.mxu0 %v11441
    %11459 = vmatpush.bf16.msra.mxu0 %v11439
    %11460 = vmatpush.bf16.msra.mxu0 %v11437
    %11461 = vmatpush.bf16.msra.mxu0 %v11435
    %11462 = vmatmul.bf16.gmra.mxu0 %v11452
    %v11463 = vpop.f32.mrf.mxu0
    %v11464 = vadd.f32 0.0, %v11463
    %v11465 = vpop.f32.mrf.mxu0
    %11466 = vdwg.mxu0
    %11467 = vmatpush.bf16.msra.mxu0 0
    %11468 = vmatpush.bf16.msra.mxu0 0
    %11469 = vmatpush.bf16.msra.mxu0 0
    %11470 = vmatpush.bf16.msra.mxu0 0
    %11471 = vmatpush.bf16.msra.mxu0 %v11442
    %11472 = vmatpush.bf16.msra.mxu0 %v11440
    %11473 = vmatpush.bf16.msra.mxu0 %v11438
    %11474 = vmatpush.bf16.msra.mxu0 %v11436
    %11475 = vmatmul.bf16.gmra.mxu0 %v11452
    %v11476 = vpop.f32.mrf.mxu0
    %v11477 = vadd.f32 0.0, %v11476
    %v11478 = vpop.f32.mrf.mxu0
    %11479 = vdwg.mxu0
    %v11480 = vadd.f32 %v11387, %v11464
    %v11481 = vadd.f32 %v11400, %v11477
    %v11482 = vsub.f32 0.0, %v11480
    %v11483 = vmul.f32 %v11482, 1.442695
    %v11484 = vpow.pop %v11483
    %v11485 = vadd.f32 %v11484, 1.0
    %v11486 = vrcp.pop %v11485
    %v11487 = vmul.f32 %v11485, %v11486
    %v11488 = vsub.f32 1.0, %v11487
    %v11489 = vmul.f32 %v11486, %v11488
    %v11490 = vadd.f32 %v11486, %v11489
    %vm11491 = vweird.f32 %v11485
    %vm11492 = vweird.f32 %v11486
    %vm11493 = vmor %vm11491, %vm11492
    %v11494 = vsel %vm11493, %v11486, %v11490
    %v11495 = vand.u32 2147483647, %v11485
    %vm11496 = vcmp.eq.f32.partialorder %v11495, 8.507059e+37
    %v11497 = vand.u32 %v11485, 2147483648
    %v11498 = vor.u32 1.1754944e-38, %v11497
    %v11499 = vsel %vm11496, %v11498, %v11494
    %v11500 = vmul.f32 1.0, %v11499
    %v11501 = vtanh.pop %v11481
    %v11502 = vsub.f32 0.0, %v11481
    %v11503 = vmul.f32 %v11502, 1.442695
    %v11504 = vpow.pop %v11503
    %v11505 = vadd.f32 %v11504, 1.0
    %v11506 = vrcp.pop %v11505
    %v11507 = vmul.f32 %v11505, %v11506
    %v11508 = vsub.f32 1.0, %v11507
    %v11509 = vmul.f32 %v11506, %v11508
    %v11510 = vadd.f32 %v11506, %v11509
    %vm11511 = vweird.f32 %v11505
    %vm11512 = vweird.f32 %v11506
    %vm11513 = vmor %vm11511, %vm11512
    %v11514 = vsel %vm11513, %v11506, %v11510
    %v11515 = vand.u32 2147483647, %v11505
    %vm11516 = vcmp.eq.f32.partialorder %v11515, 8.507059e+37
    %v11517 = vand.u32 %v11505, 2147483648
    %v11518 = vor.u32 1.1754944e-38, %v11517
    %v11519 = vsel %vm11516, %v11518, %v11514
    %v11520 = vmul.f32 1.0, %v11519
    %v11521 = vmul.f32 %v11500, 0.0
    %v11522 = vmul.f32 %v11500, %v11501
    %11524 = vrot.lane.b32.xlu0 %v11522, 64
    %v11525 = vpop.permute.xlu0 %11524
    %v11527 = vadd.f32 %v11521, %v11525
    %v11528 = vtanh.pop %v11527
    %v11529 = vmul.f32 %v11520, %v11528
    %v11530 = vpack.c.bf16 %v11529, %v11529
    %11532 = vrot.lane.b32.xlu0 %v11530, 64
    %v11533 = vpop.permute.xlu0 %11532
    %v11535 = vsel %vm11279, %v11533, 0
    %11537 = vmatpush.bf16.msra.mxu0 0
    %11538 = vmatpush.bf16.msra.mxu0 0
    %11539 = vmatpush.bf16.msra.mxu0 0
    %11540 = vmatpush.bf16.msra.mxu0 0
    %11541 = vmatpush.bf16.msra.mxu0 %v11441
    %11542 = vmatpush.bf16.msra.mxu0 %v11439
    %11543 = vmatpush.bf16.msra.mxu0 %v11437
    %11544 = vmatpush.bf16.msra.mxu0 %v11435
    %11545 = vmatmul.bf16.gmra.mxu0 %v11535
    %v11546 = vpop.f32.mrf.mxu0
    %v11547 = vadd.f32 0.0, %v11546
    %v11548 = vpop.f32.mrf.mxu0
    %11549 = vdwg.mxu0
    %11550 = vmatpush.bf16.msra.mxu0 0
    %11551 = vmatpush.bf16.msra.mxu0 0
    %11552 = vmatpush.bf16.msra.mxu0 0
    %11553 = vmatpush.bf16.msra.mxu0 0
    %11554 = vmatpush.bf16.msra.mxu0 %v11442
    %11555 = vmatpush.bf16.msra.mxu0 %v11440
    %11556 = vmatpush.bf16.msra.mxu0 %v11438
    %11557 = vmatpush.bf16.msra.mxu0 %v11436
    %11558 = vmatmul.bf16.gmra.mxu0 %v11535
    %v11559 = vpop.f32.mrf.mxu0
    %v11560 = vadd.f32 0.0, %v11559
    %v11561 = vpop.f32.mrf.mxu0
    %11562 = vdwg.mxu0
    %v11565 = vrot.slane %v11547, 6
    %v11566 = vrot.slane %v11560, 6
    %v11569 = vadd.f32 %v11387, %v11565
    %v11570 = vadd.f32 %v11400, %v11566
    %v11571 = vsub.f32 0.0, %v11569
    %v11572 = vmul.f32 %v11571, 1.442695
    %v11573 = vpow.pop %v11572
    %v11574 = vadd.f32 %v11573, 1.0
    %v11575 = vrcp.pop %v11574
    %v11576 = vmul.f32 %v11574, %v11575
    %v11577 = vsub.f32 1.0, %v11576
    %v11578 = vmul.f32 %v11575, %v11577
    %v11579 = vadd.f32 %v11575, %v11578
    %vm11580 = vweird.f32 %v11574
    %vm11581 = vweird.f32 %v11575
    %vm11582 = vmor %vm11580, %vm11581
    %v11583 = vsel %vm11582, %v11575, %v11579
    %v11584 = vand.u32 2147483647, %v11574
    %vm11585 = vcmp.eq.f32.partialorder %v11584, 8.507059e+37
    %v11586 = vand.u32 %v11574, 2147483648
    %v11587 = vor.u32 1.1754944e-38, %v11586
    %v11588 = vsel %vm11585, %v11587, %v11583
    %v11589 = vmul.f32 1.0, %v11588
    %v11590 = vtanh.pop %v11570
    %v11591 = vsub.f32 0.0, %v11570
    %v11592 = vmul.f32 %v11591, 1.442695
    %v11593 = vpow.pop %v11592
    %v11594 = vadd.f32 %v11593, 1.0
    %v11595 = vrcp.pop %v11594
    %v11596 = vmul.f32 %v11594, %v11595
    %v11597 = vsub.f32 1.0, %v11596
    %v11598 = vmul.f32 %v11595, %v11597
    %v11599 = vadd.f32 %v11595, %v11598
    %vm11600 = vweird.f32 %v11594
    %vm11601 = vweird.f32 %v11595
    %vm11602 = vmor %vm11600, %vm11601
    %v11603 = vsel %vm11602, %v11595, %v11599
    %v11604 = vand.u32 2147483647, %v11594
    %vm11605 = vcmp.eq.f32.partialorder %v11604, 8.507059e+37
    %v11606 = vand.u32 %v11594, 2147483648
    %v11607 = vor.u32 1.1754944e-38, %v11606
    %v11608 = vsel %vm11605, %v11607, %v11603
    %v11609 = vmul.f32 1.0, %v11608
    %v11611 = vrot.slane %v11527, 6
    %v11613 = vmul.f32 %v11589, %v11611
    %v11614 = vmul.f32 %v11589, %v11590
    %11616 = vrot.lane.b32.xlu0 %v11614, 64
    %v11617 = vpop.permute.xlu0 %11616
    %v11619 = vadd.f32 %v11613, %v11617
    %v11620 = vtanh.pop %v11619
    %v11621 = vmul.f32 %v11609, %v11620
    %v11622 = vpack.c.bf16 %v11621, %v11621
    %v11624 = vrot.slane %v11622, 1
    %11625 = vrot.lane.b32.xlu0 %v11624, 64
    %v11626 = vpop.permute.xlu0 %11625
    %v11628 = vsel %vm11279, %v11626, 0
    %11630 = vmatpush.bf16.msra.mxu0 0
    %11631 = vmatpush.bf16.msra.mxu0 0
    %11632 = vmatpush.bf16.msra.mxu0 0
    %11633 = vmatpush.bf16.msra.mxu0 0
    %11634 = vmatpush.bf16.msra.mxu0 %v11441
    %11635 = vmatpush.bf16.msra.mxu0 %v11439
    %11636 = vmatpush.bf16.msra.mxu0 %v11437
    %11637 = vmatpush.bf16.msra.mxu0 %v11435
    %11638 = vmatmul.bf16.gmra.mxu0 %v11628
    %v11639 = vpop.f32.mrf.mxu0
    %v11640 = vadd.f32 0.0, %v11639
    %v11641 = vpop.f32.mrf.mxu0
    %11642 = vdwg.mxu0
    %11643 = vmatpush.bf16.msra.mxu0 0
    %11644 = vmatpush.bf16.msra.mxu0 0
    %11645 = vmatpush.bf16.msra.mxu0 0
    %11646 = vmatpush.bf16.msra.mxu0 0
    %11647 = vmatpush.bf16.msra.mxu0 %v11442
    %11648 = vmatpush.bf16.msra.mxu0 %v11440
    %11649 = vmatpush.bf16.msra.mxu0 %v11438
    %11650 = vmatpush.bf16.msra.mxu0 %v11436
    %11651 = vmatmul.bf16.gmra.mxu0 %v11628
    %v11652 = vpop.f32.mrf.mxu0
    %v11653 = vadd.f32 0.0, %v11652
    %v11654 = vpop.f32.mrf.mxu0
    %11655 = vdwg.mxu0
    %v11658 = vrot.slane %v11640, 4
    %v11659 = vrot.slane %v11653, 4
    %v11662 = vadd.f32 %v11387, %v11658
    %v11663 = vadd.f32 %v11400, %v11659
    %v11664 = vsub.f32 0.0, %v11662
    %v11665 = vmul.f32 %v11664, 1.442695
    %v11666 = vpow.pop %v11665
    %v11667 = vadd.f32 %v11666, 1.0
    %v11668 = vrcp.pop %v11667
    %v11669 = vmul.f32 %v11667, %v11668
    %v11670 = vsub.f32 1.0, %v11669
    %v11671 = vmul.f32 %v11668, %v11670
    %v11672 = vadd.f32 %v11668, %v11671
    %vm11673 = vweird.f32 %v11667
    %vm11674 = vweird.f32 %v11668
    %vm11675 = vmor %vm11673, %vm11674
    %v11676 = vsel %vm11675, %v11668, %v11672
    %v11677 = vand.u32 2147483647, %v11667
    %vm11678 = vcmp.eq.f32.partialorder %v11677, 8.507059e+37
    %v11679 = vand.u32 %v11667, 2147483648
    %v11680 = vor.u32 1.1754944e-38, %v11679
    %v11681 = vsel %vm11678, %v11680, %v11676
    %v11682 = vmul.f32 1.0, %v11681
    %v11683 = vtanh.pop %v11663
    %v11684 = vsub.f32 0.0, %v11663
    %v11685 = vmul.f32 %v11684, 1.442695
    %v11686 = vpow.pop %v11685
    %v11687 = vadd.f32 %v11686, 1.0
    %v11688 = vrcp.pop %v11687
    %v11689 = vmul.f32 %v11687, %v11688
    %v11690 = vsub.f32 1.0, %v11689
    %v11691 = vmul.f32 %v11688, %v11690
    %v11692 = vadd.f32 %v11688, %v11691
    %vm11693 = vweird.f32 %v11687
    %vm11694 = vweird.f32 %v11688
    %vm11695 = vmor %vm11693, %vm11694
    %v11696 = vsel %vm11695, %v11688, %v11692
    %v11697 = vand.u32 2147483647, %v11687
    %vm11698 = vcmp.eq.f32.partialorder %v11697, 8.507059e+37
    %v11699 = vand.u32 %v11687, 2147483648
    %v11700 = vor.u32 1.1754944e-38, %v11699
    %v11701 = vsel %vm11698, %v11700, %v11696
    %v11702 = vmul.f32 1.0, %v11701
    %v11704 = vrot.slane %v11619, 6
    %v11706 = vmul.f32 %v11682, %v11704
    %v11707 = vmul.f32 %v11682, %v11683
    %11709 = vrot.lane.b32.xlu0 %v11707, 64
    %v11710 = vpop.permute.xlu0 %11709
    %v11712 = vadd.f32 %v11706, %v11710
    %v11713 = vtanh.pop %v11712
    %v11714 = vmul.f32 %v11702, %v11713
    %v11715 = vpack.c.bf16 %v11714, %v11714
    %v11717 = vrot.slane %v11715, 2
    %11718 = vrot.lane.b32.xlu0 %v11717, 64
    %v11719 = vpop.permute.xlu0 %11718
    %v11721 = vsel %vm11279, %v11719, 0
    %11723 = vmatpush.bf16.msra.mxu0 0
    %11724 = vmatpush.bf16.msra.mxu0 0
    %11725 = vmatpush.bf16.msra.mxu0 0
    %11726 = vmatpush.bf16.msra.mxu0 0
    %11727 = vmatpush.bf16.msra.mxu0 %v11441
    %11728 = vmatpush.bf16.msra.mxu0 %v11439
    %11729 = vmatpush.bf16.msra.mxu0 %v11437
    %11730 = vmatpush.bf16.msra.mxu0 %v11435
    %11731 = vmatmul.bf16.gmra.mxu0 %v11721
    %v11732 = vpop.f32.mrf.mxu0
    %v11733 = vadd.f32 0.0, %v11732
    %v11734 = vpop.f32.mrf.mxu0
    %11735 = vdwg.mxu0
    %11736 = vmatpush.bf16.msra.mxu0 0
    %11737 = vmatpush.bf16.msra.mxu0 0
    %11738 = vmatpush.bf16.msra.mxu0 0
    %11739 = vmatpush.bf16.msra.mxu0 0
    %11740 = vmatpush.bf16.msra.mxu0 %v11442
    %11741 = vmatpush.bf16.msra.mxu0 %v11440
    %11742 = vmatpush.bf16.msra.mxu0 %v11438
    %11743 = vmatpush.bf16.msra.mxu0 %v11436
    %11744 = vmatmul.bf16.gmra.mxu0 %v11721
    %v11745 = vpop.f32.mrf.mxu0
    %v11746 = vadd.f32 0.0, %v11745
    %v11747 = vpop.f32.mrf.mxu0
    %11748 = vdwg.mxu0
    %v11751 = vrot.slane %v11733, 2
    %v11752 = vrot.slane %v11746, 2
    %v11755 = vadd.f32 %v11387, %v11751
    %v11756 = vadd.f32 %v11400, %v11752
    %v11757 = vsub.f32 0.0, %v11755
    %v11758 = vmul.f32 %v11757, 1.442695
    %v11759 = vpow.pop %v11758
    %v11760 = vadd.f32 %v11759, 1.0
    %v11761 = vrcp.pop %v11760
    %v11762 = vmul.f32 %v11760, %v11761
    %v11763 = vsub.f32 1.0, %v11762
    %v11764 = vmul.f32 %v11761, %v11763
    %v11765 = vadd.f32 %v11761, %v11764
    %vm11766 = vweird.f32 %v11760
    %vm11767 = vweird.f32 %v11761
    %vm11768 = vmor %vm11766, %vm11767
    %v11769 = vsel %vm11768, %v11761, %v11765
    %v11770 = vand.u32 2147483647, %v11760
    %vm11771 = vcmp.eq.f32.partialorder %v11770, 8.507059e+37
    %v11772 = vand.u32 %v11760, 2147483648
    %v11773 = vor.u32 1.1754944e-38, %v11772
    %v11774 = vsel %vm11771, %v11773, %v11769
    %v11775 = vmul.f32 1.0, %v11774
    %v11776 = vtanh.pop %v11756
    %v11777 = vsub.f32 0.0, %v11756
    %v11778 = vmul.f32 %v11777, 1.442695
    %v11779 = vpow.pop %v11778
    %v11780 = vadd.f32 %v11779, 1.0
    %v11781 = vrcp.pop %v11780
    %v11782 = vmul.f32 %v11780, %v11781
    %v11783 = vsub.f32 1.0, %v11782
    %v11784 = vmul.f32 %v11781, %v11783
    %v11785 = vadd.f32 %v11781, %v11784
    %vm11786 = vweird.f32 %v11780
    %vm11787 = vweird.f32 %v11781
    %vm11788 = vmor %vm11786, %vm11787
    %v11789 = vsel %vm11788, %v11781, %v11785
    %v11790 = vand.u32 2147483647, %v11780
    %vm11791 = vcmp.eq.f32.partialorder %v11790, 8.507059e+37
    %v11792 = vand.u32 %v11780, 2147483648
    %v11793 = vor.u32 1.1754944e-38, %v11792
    %v11794 = vsel %vm11791, %v11793, %v11789
    %v11795 = vmul.f32 1.0, %v11794
    %v11797 = vrot.slane %v11712, 6
    %v11799 = vmul.f32 %v11775, %v11797
    %v11800 = vmul.f32 %v11775, %v11776
    %11802 = vrot.lane.b32.xlu0 %v11800, 64
    %v11803 = vpop.permute.xlu0 %11802
    %v11805 = vadd.f32 %v11799, %v11803
    %v11806 = vtanh.pop %v11805
    %v11807 = vmul.f32 %v11795, %v11806
    %v11808 = vpack.c.bf16 %v11807, %v11807
    %v11809 = vld [vmem:[%s10] sm:$0xf]
    %v11810 = vld [vmem:[%s10 + $0x4] sm:$0xf]
    %v11811 = vld [vmem:[%s10 + $0x8] sm:$0xf]
    %v11812 = vld [vmem:[%s10 + $0xc] sm:$0xf]
    %v11813 = vld [vmem:[%s10 + $0x10] sm:$0xf]
    %v11814 = vld [vmem:[%s10 + $0x14] sm:$0xf]
    %v11815 = vld [vmem:[%s10 + $0x18] sm:$0xf]
    %v11816 = vld [vmem:[%s10 + $0x1c] sm:$0xf]
    %v11817 = vld [vmem:[%s11] sm:$0x1]
    %v11819 = vperm.slane %v11817, 0
    %v11822 = vrot.slane %v11808, 3
    %11823 = vrot.lane.b32.xlu0 %v11822, 64
    %v11824 = vpop.permute.xlu0 %11823
    %v11833 = vunpack.c.l.b16 %v11809
    %v11834 = vunpack.c.l.b16 %v11810
    %v11835 = vunpack.c.l.b16 %v11811
    %v11836 = vunpack.c.l.b16 %v11812
    %v11837 = vunpack.c.l.b16 %v11813
    %v11838 = vunpack.c.l.b16 %v11814
    %v11839 = vunpack.c.l.b16 %v11815
    %v11840 = vunpack.c.l.b16 %v11816
    %v11841 = vpack.c.b16 %v11834, %v11833
    %v11842 = vpack.c.b16 %v11836, %v11835
    %v11843 = vpack.c.b16 %v11838, %v11837
    %v11844 = vpack.c.b16 %v11840, %v11839
    %v11850 = vsel %vm11279, %v11824, 0
    %11852 = vmatpush.bf16.msra.mxu0 0
    %11853 = vmatpush.bf16.msra.mxu0 0
    %11854 = vmatpush.bf16.msra.mxu0 0
    %11855 = vmatpush.bf16.msra.mxu0 0
    %11856 = vmatpush.bf16.msra.mxu0 %v11844
    %11857 = vmatpush.bf16.msra.mxu0 %v11843
    %11858 = vmatpush.bf16.msra.mxu0 %v11842
    %11859 = vmatpush.bf16.msra.mxu0 %v11841
    %11860 = vmatmul.bf16.gmra.mxu0 %v11850
    %v11861 = vpop.f32.mrf.mxu0
    %v11862 = vadd.f32 %v11819, %v11861
    %v11863 = vpop.f32.mrf.mxu0
    %11864 = vdwg.mxu0
    %vm11865 = vcmask 9216
    %11866 = vst.msk [vmem:[#allocation5] sm:$0x3] %vm11865, %v11862
    // Predicated region
    $region50: #{cnn_lstm_forward.1} parent=1 // pred_check
      _
    $region51: #{cnn_lstm_forward.1} parent=1 // pred_check_branch
      %11868 = sbr.rel (0) target = $region53
    $region52: #{cnn_lstm_forward.1} parent=1 // pred_region
      %11870 = vsyncadd [#allocation6], 0
      %s11872 = sshll.u32 [#allocation5], 4
      %s11873 = int_to_ptr.vmem [resolvable:$true] %s11872
      %s11874 = sshll.u32 %s12, 4
      %s11875 = int_to_ptr.hbm [resolvable:$true] %s11874
      %11877 = dma.vmem_to_hbm [thread:$0]  %s11873, 32, %s11875, [#allocation6]
    $region53: #{cnn_lstm_forward.1} parent=1 // pred_fallthru
      _
    // Predicated region
    $region54: #{cnn_lstm_forward.1} parent=1 // pred_check
      _
    $region55: #{cnn_lstm_forward.1} parent=1 // pred_check_branch
      %11879 = sbr.rel (0) target = $region57
    $region56: #{cnn_lstm_forward.1} parent=1 // pred_region
      %11881 = dma.done [#allocation6], 32
    $region57: #{cnn_lstm_forward.1} parent=1 // pred_fallthru
      _
    %11882 = vsyncpa [#allocation6], 1

</llo_original>
